<compile_context>
chip_gen: v7x
topology: tpu7x:2x2x1
jax: 0.10.0
libtpu: 0.0.40
codegen_flags: <defaults>
</compile_context>

<pallas_src>
import functools

import jax
import jax.numpy as jnp
from jax.experimental import pallas as pl
from jax.experimental.pallas import tpu as pltpu


# ----------------------------------------------------------------------------
# Pallas kernel: one (batch, S-row-block) tile, all heads fused.
# ----------------------------------------------------------------------------
def _row_attn_kernel(q_ref, k_ref, v_ref, g_ref, zb_ref, maskb_ref, o_ref, *,
                     num_heads, c_hidden):
    # q/k/v/g : [S_BLK, R, H*Dh]   zb : [H, R, R]   maskb : [S_BLK, 1, R] (f32)
    # out     : [S_BLK, R, H*Dh]
    H, Dh = num_heads, c_hidden

    # Load full tiles once; slice values (static lane slices) per head.
    q_full = q_ref[...]                               # [S_BLK, R, H*Dh]
    k_full = k_ref[...]
    v_full = v_ref[...]
    maskb = maskb_ref[...]                            # [S_BLK, 1, R], f32
    # One fused sigmoid for the whole gate tile (EUP), sliced per head below.
    gate_full = jax.nn.sigmoid(g_ref[...].astype(jnp.float32))

    # TODO(synk): key-dim (flash-style online-softmax) tiling for very large
    # N_res so the [S_BLK, R, R] logits tile fits v7x's 64 MiB VMEM.
    outs = []
    for h in range(H):                                # static unrolled head loop
        lo, hi = h * Dh, (h + 1) * Dh
        q = q_full[:, :, lo:hi]                       # [S_BLK, R, Dh]
        k = k_full[:, :, lo:hi]
        v = v_full[:, :, lo:hi]
        zb = zb_ref[h].astype(jnp.float32)            # [R, R]

        # logits = q @ k^T  (contract last dims, batch over S_BLK; no k.T)
        logits = jax.lax.dot_general(
            q, k, (((2,), (2,)), ((0,), (0,))),
            preferred_element_type=jnp.float32)       # [S_BLK, R, R]
        logits = logits + zb[None, :, :] + maskb

        # numerically-stable softmax with deferred normalization
        mx = jnp.max(logits, axis=-1, keepdims=True)
        p = jnp.exp(logits - mx)
        l = jnp.sum(p, axis=-1, keepdims=True)        # [S_BLK, R, 1]

        o = jax.lax.dot_general(
            p.astype(v.dtype), v, (((2,), (1,)), ((0,), (0,))),
            preferred_element_type=jnp.float32)       # [S_BLK, R, Dh]

        # normalize + gate on the small [R, Dh] tile (not on [R, R] probs)
        o = o * pl.reciprocal(l, approx=True) * gate_full[:, :, lo:hi]
        outs.append(o)

    # single lane-dense store of the full [S_BLK, R, H*Dh] block
    o_ref[...] = jnp.concatenate(outs, axis=-1).astype(o_ref.dtype)


def _row_attention_pallas(q, k, v, g, zb, mask_bias, *, num_heads, c_hidden,
                          s_block=8):
    """q,k,v,g: [B,S,R,H*Dh]  zb: [B,H,R,R]  mask_bias: [B,S,1,R] -> [B,S,R,H*Dh]."""
    B, S, R, C = q.shape
    H = num_heads

    S_BLK = min(s_block, S)
    n_s = pl.cdiv(S, S_BLK)
    S_pad = n_s * S_BLK
    if S_pad != S:  # pad the MSA-row axis so the S-block divides evenly
        pad = ((0, 0), (0, S_pad - S), (0, 0), (0, 0))
        q, k, v, g = (jnp.pad(x, pad) for x in (q, k, v, g))
        mask_bias = jnp.pad(mask_bias, pad)

    qkv_spec = pl.BlockSpec((None, S_BLK, R, C), lambda b, s: (b, s, 0, 0))
    zb_spec = pl.BlockSpec((None, H, R, R), lambda b, s: (b, 0, 0, 0))   # const over s
    mask_spec = pl.BlockSpec((None, S_BLK, 1, R), lambda b, s: (b, s, 0, 0))
    out_spec = pl.BlockSpec((None, S_BLK, R, C), lambda b, s: (b, s, 0, 0))

    out = pl.pallas_call(
        functools.partial(_row_attn_kernel, num_heads=H, c_hidden=c_hidden),
        out_shape=jax.ShapeDtypeStruct((B, S_pad, R, C), q.dtype),
        grid=(B, n_s),
        in_specs=[qkv_spec, qkv_spec, qkv_spec, qkv_spec, zb_spec, mask_spec],
        out_specs=out_spec,
        compiler_params=pltpu.CompilerParams(
            dimension_semantics=("parallel", "parallel"),
            vmem_limit_bytes=48 * 1024 * 1024),
    )(q, k, v, g, zb, mask_bias)
    return out[:, :S] if S_pad != S else out


# ----------------------------------------------------------------------------
# Plain-JAX glue (layer norms, linear projections) + kernel call.
# ----------------------------------------------------------------------------
def _layer_norm(x, w, b, eps=1e-5):
    x32 = x.astype(jnp.float32)
    mu = jnp.mean(x32, axis=-1, keepdims=True)
    var = jnp.mean(jnp.square(x32 - mu), axis=-1, keepdims=True)
    return ((x32 - mu) * jax.lax.rsqrt(var + eps) * w + b).astype(x.dtype)


def msa_row_attention_with_pair_bias(m, z, mask, params, *, num_heads,
                                     c_hidden, inf=1e9, s_block=8,
                                     use_pallas=True):
    B, S, R, c_m = m.shape
    H, Dh = num_heads, c_hidden
    dtype = m.dtype

    # layer_norm_z -> linear_z (no bias) -> movedim(-1, -3): [B, H, R, R]
    z_ln = _layer_norm(z, params["ln_z_w"], params["ln_z_b"])
    zb = jnp.einsum("bijc,hc->bhij", z_ln, params["w_z"]).astype(dtype)

    # layer_norm_m
    m_ln = _layer_norm(m, params["ln_m_w"], params["ln_m_b"])

    # q/k/v/g projections (PyTorch Linear: y = x @ W.T + b), channels-last,
    # head-major packing along the last dim (head h = channels [h*Dh:(h+1)*Dh]).
    def proj(x, w, b=None):
        y = jnp.einsum("bsrc,oc->bsro", x, w)
        if b is not None:
            y = y + b
        return y.astype(dtype)

    q = (proj(m_ln, params["w_q"]) * (Dh ** -0.5)).astype(dtype)
    k = proj(m_ln, params["w_k"])
    v = proj(m_ln, params["w_v"])
    g = proj(m_ln, params["w_g"], params["b_g"])

    # hoisted additive mask bias, computed once: [B, S, 1, R] (f32)
    mask_bias = ((mask.astype(jnp.float32) - 1.0) * inf)[:, :, None, :]

    if use_pallas:
        o = _row_attention_pallas(q, k, v, g, zb, mask_bias,
                                  num_heads=H, c_hidden=Dh, s_block=s_block)
    else:  # pure-JAX reference of the kernel body (same head-major packing)
        qh = q.reshape(B, S, R, H, Dh).astype(jnp.float32)
        kh = k.reshape(B, S, R, H, Dh).astype(jnp.float32)
        vh = v.reshape(B, S, R, H, Dh).astype(jnp.float32)
        gh = g.reshape(B, S, R, H, Dh).astype(jnp.float32)
        logits = jnp.einsum("bsqhd,bskhd->bshqk", qh, kh)
        logits = logits + zb[:, None].astype(jnp.float32) \
                        + mask_bias[:, :, :, None, :]
        p = jax.nn.softmax(logits, axis=-1)
        o = jnp.einsum("bshqk,bskhd->bsqhd", p, vh) * jax.nn.sigmoid(gh)
        o = o.reshape(B, S, R, H * Dh).astype(dtype)

    # output projection (linear_o has bias); o is already [B, S, R, H*Dh]
    return jnp.einsum("bsrk,ok->bsro", o, params["w_o"]) + params["b_o"]


# ----------------------------------------------------------------------------
# Deterministic synthetic parameter init (module __init__ shapes).
# ----------------------------------------------------------------------------
def init_params(key, c_m, c_z, c_hidden, num_heads):
    H, Dh = num_heads, c_hidden
    ks = jax.random.split(key, 8)
    scale = 0.1
    return {
        "ln_m_w": jnp.ones((c_m,), jnp.float32),
        "ln_m_b": jnp.zeros((c_m,), jnp.float32),
        "ln_z_w": jnp.ones((c_z,), jnp.float32),
        "ln_z_b": jnp.zeros((c_z,), jnp.float32),
        "w_z": scale * jax.random.normal(ks[0], (H, c_z), jnp.float32),
        "w_q": scale * jax.random.normal(ks[1], (H * Dh, c_m), jnp.float32),
        "w_k": scale * jax.random.normal(ks[2], (H * Dh, c_m), jnp.float32),
        "w_v": scale * jax.random.normal(ks[3], (H * Dh, c_m), jnp.float32),
        "w_g": scale * jax.random.normal(ks[4], (H * Dh, c_m), jnp.float32),
        "b_g": scale * jax.random.normal(ks[5], (H * Dh,), jnp.float32),
        "w_o": scale * jax.random.normal(ks[6], (c_m, H * Dh), jnp.float32),
        "b_o": scale * jax.random.normal(ks[7], (c_m,), jnp.float32),
    }


if __name__ == "__main__":
    B, N_seq, N_res = 2, 8, 16
    c_m, c_z, c_hidden, num_heads = 32, 16, 8, 4
    inf = 1e9

    key = jax.random.PRNGKey(0)
    k_m, k_z, k_mask, k_p = jax.random.split(key, 4)
    m = jax.random.normal(k_m, (B, N_seq, N_res, c_m), jnp.float32)
    z = jax.random.normal(k_z, (B, N_res, N_res, c_z), jnp.float32)
    mask = (jax.random.uniform(k_mask, (B, N_seq, N_res)) > 0.2).astype(jnp.float32)

    params = init_params(k_p, c_m, c_z, c_hidden, num_heads)

    out = msa_row_attention_with_pair_bias(
        m, z, mask, params, num_heads=num_heads, c_hidden=c_hidden, inf=inf,
        s_block=8, use_pallas=True)
    out = jax.block_until_ready(out)

    ref = msa_row_attention_with_pair_bias(
        m, z, mask, params, num_heads=num_heads, c_hidden=c_hidden, inf=inf,
        use_pallas=False)
    ref = jax.block_until_ready(ref)

    assert out.shape == (B, N_seq, N_res, c_m)
    assert jnp.allclose(out, ref, atol=2e-2, rtol=2e-2)
    print("KERNEL_OK")
</pallas_src>

<mosaic_0001>
module attributes {stable_mosaic.version = 11 : i64} {
  func.func @_row_attn_kernel(%arg0: i32, %arg1: i32, %arg2: memref<1x8x16x32xf32, #tpu.memory_space<vmem>>, %arg3: memref<1x8x16x32xf32, #tpu.memory_space<vmem>>, %arg4: memref<1x8x16x32xf32, #tpu.memory_space<vmem>>, %arg5: memref<1x8x16x32xf32, #tpu.memory_space<vmem>>, %arg6: memref<1x4x16x16xf32, #tpu.memory_space<vmem>>, %arg7: memref<1x8x1x16xf32, #tpu.memory_space<vmem>>, %arg8: memref<1x8x16x32xf32, #tpu.memory_space<vmem>>) attributes {dimension_semantics = [#tpu.dimension_semantics<parallel>, #tpu.dimension_semantics<parallel>], iteration_bounds = array<i64: 2, 1>, scalar_prefetch = 0 : i64, scratch_operands = 0 : i64, tpu.core_type = #tpu.core_type<tc>, window_params = [{transform_indices = @transform_0, window_bounds = array<i64: 1, 8, 16, 32>}, {transform_indices = @transform_1, window_bounds = array<i64: 1, 8, 16, 32>}, {transform_indices = @transform_2, window_bounds = array<i64: 1, 8, 16, 32>}, {transform_indices = @transform_3, window_bounds = array<i64: 1, 8, 16, 32>}, {transform_indices = @transform_4, window_bounds = array<i64: 1, 4, 16, 16>}, {transform_indices = @transform_5, window_bounds = array<i64: 1, 8, 1, 16>}, {transform_indices = @transform_6, window_bounds = array<i64: 1, 8, 16, 32>}]} {
    %c0 = arith.constant 0 : index
    %c0_0 = arith.constant 0 : index
    %c0_1 = arith.constant 0 : index
    %c0_2 = arith.constant 0 : index
    %0 = vector.load %arg2[%c0, %c0_0, %c0_1, %c0_2] : memref<1x8x16x32xf32, #tpu.memory_space<vmem>>, vector<1x8x16x32xf32>
    %1 = vector.shape_cast %0 : vector<1x8x16x32xf32> to vector<8x16x32xf32>
    %c0_3 = arith.constant 0 : index
    %c0_4 = arith.constant 0 : index
    %c0_5 = arith.constant 0 : index
    %c0_6 = arith.constant 0 : index
    %2 = vector.load %arg3[%c0_3, %c0_4, %c0_5, %c0_6] : memref<1x8x16x32xf32, #tpu.memory_space<vmem>>, vector<1x8x16x32xf32>
    %3 = vector.shape_cast %2 : vector<1x8x16x32xf32> to vector<8x16x32xf32>
    %c0_7 = arith.constant 0 : index
    %c0_8 = arith.constant 0 : index
    %c0_9 = arith.constant 0 : index
    %c0_10 = arith.constant 0 : index
    %4 = vector.load %arg4[%c0_7, %c0_8, %c0_9, %c0_10] : memref<1x8x16x32xf32, #tpu.memory_space<vmem>>, vector<1x8x16x32xf32>
    %5 = vector.shape_cast %4 : vector<1x8x16x32xf32> to vector<8x16x32xf32>
    %c0_11 = arith.constant 0 : index
    %c0_12 = arith.constant 0 : index
    %c0_13 = arith.constant 0 : index
    %c0_14 = arith.constant 0 : index
    %6 = vector.load %arg7[%c0_11, %c0_12, %c0_13, %c0_14] : memref<1x8x1x16xf32, #tpu.memory_space<vmem>>, vector<1x8x1x16xf32>
    %7 = vector.shape_cast %6 : vector<1x8x1x16xf32> to vector<8x1x16xf32>
    %c0_15 = arith.constant 0 : index
    %c0_16 = arith.constant 0 : index
    %c0_17 = arith.constant 0 : index
    %c0_18 = arith.constant 0 : index
    %8 = vector.load %arg5[%c0_15, %c0_16, %c0_17, %c0_18] : memref<1x8x16x32xf32, #tpu.memory_space<vmem>>, vector<1x8x16x32xf32>
    %9 = vector.shape_cast %8 : vector<1x8x16x32xf32> to vector<8x16x32xf32>
    %10 = arith.negf %9 : vector<8x16x32xf32>
    %11 = math.exp %10 : vector<8x16x32xf32>
    %cst = arith.constant 1.000000e+00 : f32
    %12 = vector.broadcast %cst : f32 to vector<8x16x32xf32>
    %13 = arith.addf %12, %11 : vector<8x16x32xf32>
    %14 = arith.divf %12, %13 : vector<8x16x32xf32>
    %15 = vector.extract_strided_slice %1 {offsets = [0, 0, 0], sizes = [8, 16, 8], strides = [1, 1, 1]} : vector<8x16x32xf32> to vector<8x16x8xf32>
    %16 = vector.extract_strided_slice %3 {offsets = [0, 0, 0], sizes = [8, 16, 8], strides = [1, 1, 1]} : vector<8x16x32xf32> to vector<8x16x8xf32>
    %17 = vector.extract_strided_slice %5 {offsets = [0, 0, 0], sizes = [8, 16, 8], strides = [1, 1, 1]} : vector<8x16x32xf32> to vector<8x16x8xf32>
    %c0_19 = arith.constant 0 : index
    %c0_20 = arith.constant 0 : index
    %c0_21 = arith.constant 0 : index
    %c0_22 = arith.constant 0 : index
    %18 = vector.load %arg6[%c0_19, %c0_20, %c0_21, %c0_22] : memref<1x4x16x16xf32, #tpu.memory_space<vmem>>, vector<1x1x16x16xf32>
    %19 = vector.shape_cast %18 : vector<1x1x16x16xf32> to vector<16x16xf32>
    %cst_23 = arith.constant dense<0.000000e+00> : vector<8x16x16xf32>
    %20 = tpu.matmul %15, %16, %cst_23 {dimension_numbers = #tpu.dot_dimension_numbers<[2], [2], [1], [1], [0, 0, 0, 1, 1, 1], [0], [0]>} : vector<8x16x8xf32>, vector<8x16x8xf32>, vector<8x16x16xf32> -> vector<8x16x16xf32>
    %21 = vector.shape_cast %19 : vector<16x16xf32> to vector<1x16x16xf32>
    %22 = vector.broadcast %21 : vector<1x16x16xf32> to vector<8x16x16xf32>
    %23 = arith.addf %20, %22 : vector<8x16x16xf32>
    %24 = vector.broadcast %7 : vector<8x1x16xf32> to vector<8x16x16xf32>
    %25 = arith.addf %23, %24 : vector<8x16x16xf32>
    %cst_24 = arith.constant dense<0xFF800000> : vector<8x16xf32>
    %26 = vector.multi_reduction <maximumf>, %25, %cst_24 [2] : vector<8x16x16xf32> to vector<8x16xf32>
    %27 = vector.shape_cast %26 : vector<8x16xf32> to vector<8x16x1xf32>
    %28 = vector.broadcast %27 : vector<8x16x1xf32> to vector<8x16x16xf32>
    %29 = arith.subf %25, %28 : vector<8x16x16xf32>
    %30 = math.exp %29 : vector<8x16x16xf32>
    %cst_25 = arith.constant dense<0.000000e+00> : vector<8x16xf32>
    %31 = vector.multi_reduction <add>, %30, %cst_25 [2] : vector<8x16x16xf32> to vector<8x16xf32>
    %32 = vector.shape_cast %31 : vector<8x16xf32> to vector<8x16x1xf32>
    %cst_26 = arith.constant dense<0.000000e+00> : vector<8x16x8xf32>
    %33 = tpu.matmul %30, %17, %cst_26 {dimension_numbers = #tpu.dot_dimension_numbers<[2], [1], [1], [2], [0, 0, 0, 1, 1, 2], [0], [0]>} : vector<8x16x16xf32>, vector<8x16x8xf32>, vector<8x16x8xf32> -> vector<8x16x8xf32>
    %34 = tpu.reciprocal %32 {approx = true} : vector<8x16x1xf32> -> vector<8x16x1xf32>
    %35 = vector.broadcast %34 : vector<8x16x1xf32> to vector<8x16x8xf32>
    %36 = arith.mulf %33, %35 : vector<8x16x8xf32>
    %37 = vector.extract_strided_slice %14 {offsets = [0, 0, 0], sizes = [8, 16, 8], strides = [1, 1, 1]} : vector<8x16x32xf32> to vector<8x16x8xf32>
    %38 = arith.mulf %36, %37 : vector<8x16x8xf32>
    %39 = vector.extract_strided_slice %1 {offsets = [0, 0, 8], sizes = [8, 16, 8], strides = [1, 1, 1]} : vector<8x16x32xf32> to vector<8x16x8xf32>
    %40 = vector.extract_strided_slice %3 {offsets = [0, 0, 8], sizes = [8, 16, 8], strides = [1, 1, 1]} : vector<8x16x32xf32> to vector<8x16x8xf32>
    %41 = vector.extract_strided_slice %5 {offsets = [0, 0, 8], sizes = [8, 16, 8], strides = [1, 1, 1]} : vector<8x16x32xf32> to vector<8x16x8xf32>
    %c0_27 = arith.constant 0 : index
    %c1 = arith.constant 1 : index
    %c0_28 = arith.constant 0 : index
    %c0_29 = arith.constant 0 : index
    %42 = vector.load %arg6[%c0_27, %c1, %c0_28, %c0_29] : memref<1x4x16x16xf32, #tpu.memory_space<vmem>>, vector<1x1x16x16xf32>
    %43 = vector.shape_cast %42 : vector<1x1x16x16xf32> to vector<16x16xf32>
    %cst_30 = arith.constant dense<0.000000e+00> : vector<8x16x16xf32>
    %44 = tpu.matmul %39, %40, %cst_30 {dimension_numbers = #tpu.dot_dimension_numbers<[2], [2], [1], [1], [0, 0, 0, 1, 1, 1], [0], [0]>} : vector<8x16x8xf32>, vector<8x16x8xf32>, vector<8x16x16xf32> -> vector<8x16x16xf32>
    %45 = vector.shape_cast %43 : vector<16x16xf32> to vector<1x16x16xf32>
    %46 = vector.broadcast %45 : vector<1x16x16xf32> to vector<8x16x16xf32>
    %47 = arith.addf %44, %46 : vector<8x16x16xf32>
    %48 = vector.broadcast %7 : vector<8x1x16xf32> to vector<8x16x16xf32>
    %49 = arith.addf %47, %48 : vector<8x16x16xf32>
    %cst_31 = arith.constant dense<0xFF800000> : vector<8x16xf32>
    %50 = vector.multi_reduction <maximumf>, %49, %cst_31 [2] : vector<8x16x16xf32> to vector<8x16xf32>
    %51 = vector.shape_cast %50 : vector<8x16xf32> to vector<8x16x1xf32>
    %52 = vector.broadcast %51 : vector<8x16x1xf32> to vector<8x16x16xf32>
    %53 = arith.subf %49, %52 : vector<8x16x16xf32>
    %54 = math.exp %53 : vector<8x16x16xf32>
    %cst_32 = arith.constant dense<0.000000e+00> : vector<8x16xf32>
    %55 = vector.multi_reduction <add>, %54, %cst_32 [2] : vector<8x16x16xf32> to vector<8x16xf32>
    %56 = vector.shape_cast %55 : vector<8x16xf32> to vector<8x16x1xf32>
    %cst_33 = arith.constant dense<0.000000e+00> : vector<8x16x8xf32>
    %57 = tpu.matmul %54, %41, %cst_33 {dimension_numbers = #tpu.dot_dimension_numbers<[2], [1], [1], [2], [0, 0, 0, 1, 1, 2], [0], [0]>} : vector<8x16x16xf32>, vector<8x16x8xf32>, vector<8x16x8xf32> -> vector<8x16x8xf32>
    %58 = tpu.reciprocal %56 {approx = true} : vector<8x16x1xf32> -> vector<8x16x1xf32>
    %59 = vector.broadcast %58 : vector<8x16x1xf32> to vector<8x16x8xf32>
    %60 = arith.mulf %57, %59 : vector<8x16x8xf32>
    %61 = vector.extract_strided_slice %14 {offsets = [0, 0, 8], sizes = [8, 16, 8], strides = [1, 1, 1]} : vector<8x16x32xf32> to vector<8x16x8xf32>
    %62 = arith.mulf %60, %61 : vector<8x16x8xf32>
    %63 = vector.extract_strided_slice %1 {offsets = [0, 0, 16], sizes = [8, 16, 8], strides = [1, 1, 1]} : vector<8x16x32xf32> to vector<8x16x8xf32>
    %64 = vector.extract_strided_slice %3 {offsets = [0, 0, 16], sizes = [8, 16, 8], strides = [1, 1, 1]} : vector<8x16x32xf32> to vector<8x16x8xf32>
    %65 = vector.extract_strided_slice %5 {offsets = [0, 0, 16], sizes = [8, 16, 8], strides = [1, 1, 1]} : vector<8x16x32xf32> to vector<8x16x8xf32>
    %c0_34 = arith.constant 0 : index
    %c2 = arith.constant 2 : index
    %c0_35 = arith.constant 0 : index
    %c0_36 = arith.constant 0 : index
    %66 = vector.load %arg6[%c0_34, %c2, %c0_35, %c0_36] : memref<1x4x16x16xf32, #tpu.memory_space<vmem>>, vector<1x1x16x16xf32>
    %67 = vector.shape_cast %66 : vector<1x1x16x16xf32> to vector<16x16xf32>
    %cst_37 = arith.constant dense<0.000000e+00> : vector<8x16x16xf32>
    %68 = tpu.matmul %63, %64, %cst_37 {dimension_numbers = #tpu.dot_dimension_numbers<[2], [2], [1], [1], [0, 0, 0, 1, 1, 1], [0], [0]>} : vector<8x16x8xf32>, vector<8x16x8xf32>, vector<8x16x16xf32> -> vector<8x16x16xf32>
    %69 = vector.shape_cast %67 : vector<16x16xf32> to vector<1x16x16xf32>
    %70 = vector.broadcast %69 : vector<1x16x16xf32> to vector<8x16x16xf32>
    %71 = arith.addf %68, %70 : vector<8x16x16xf32>
    %72 = vector.broadcast %7 : vector<8x1x16xf32> to vector<8x16x16xf32>
    %73 = arith.addf %71, %72 : vector<8x16x16xf32>
    %cst_38 = arith.constant dense<0xFF800000> : vector<8x16xf32>
    %74 = vector.multi_reduction <maximumf>, %73, %cst_38 [2] : vector<8x16x16xf32> to vector<8x16xf32>
    %75 = vector.shape_cast %74 : vector<8x16xf32> to vector<8x16x1xf32>
    %76 = vector.broadcast %75 : vector<8x16x1xf32> to vector<8x16x16xf32>
    %77 = arith.subf %73, %76 : vector<8x16x16xf32>
    %78 = math.exp %77 : vector<8x16x16xf32>
    %cst_39 = arith.constant dense<0.000000e+00> : vector<8x16xf32>
    %79 = vector.multi_reduction <add>, %78, %cst_39 [2] : vector<8x16x16xf32> to vector<8x16xf32>
    %80 = vector.shape_cast %79 : vector<8x16xf32> to vector<8x16x1xf32>
    %cst_40 = arith.constant dense<0.000000e+00> : vector<8x16x8xf32>
    %81 = tpu.matmul %78, %65, %cst_40 {dimension_numbers = #tpu.dot_dimension_numbers<[2], [1], [1], [2], [0, 0, 0, 1, 1, 2], [0], [0]>} : vector<8x16x16xf32>, vector<8x16x8xf32>, vector<8x16x8xf32> -> vector<8x16x8xf32>
    %82 = tpu.reciprocal %80 {approx = true} : vector<8x16x1xf32> -> vector<8x16x1xf32>
    %83 = vector.broadcast %82 : vector<8x16x1xf32> to vector<8x16x8xf32>
    %84 = arith.mulf %81, %83 : vector<8x16x8xf32>
    %85 = vector.extract_strided_slice %14 {offsets = [0, 0, 16], sizes = [8, 16, 8], strides = [1, 1, 1]} : vector<8x16x32xf32> to vector<8x16x8xf32>
    %86 = arith.mulf %84, %85 : vector<8x16x8xf32>
    %87 = vector.extract_strided_slice %1 {offsets = [0, 0, 24], sizes = [8, 16, 8], strides = [1, 1, 1]} : vector<8x16x32xf32> to vector<8x16x8xf32>
    %88 = vector.extract_strided_slice %3 {offsets = [0, 0, 24], sizes = [8, 16, 8], strides = [1, 1, 1]} : vector<8x16x32xf32> to vector<8x16x8xf32>
    %89 = vector.extract_strided_slice %5 {offsets = [0, 0, 24], sizes = [8, 16, 8], strides = [1, 1, 1]} : vector<8x16x32xf32> to vector<8x16x8xf32>
    %c0_41 = arith.constant 0 : index
    %c3 = arith.constant 3 : index
    %c0_42 = arith.constant 0 : index
    %c0_43 = arith.constant 0 : index
    %90 = vector.load %arg6[%c0_41, %c3, %c0_42, %c0_43] : memref<1x4x16x16xf32, #tpu.memory_space<vmem>>, vector<1x1x16x16xf32>
    %91 = vector.shape_cast %90 : vector<1x1x16x16xf32> to vector<16x16xf32>
    %cst_44 = arith.constant dense<0.000000e+00> : vector<8x16x16xf32>
    %92 = tpu.matmul %87, %88, %cst_44 {dimension_numbers = #tpu.dot_dimension_numbers<[2], [2], [1], [1], [0, 0, 0, 1, 1, 1], [0], [0]>} : vector<8x16x8xf32>, vector<8x16x8xf32>, vector<8x16x16xf32> -> vector<8x16x16xf32>
    %93 = vector.shape_cast %91 : vector<16x16xf32> to vector<1x16x16xf32>
    %94 = vector.broadcast %93 : vector<1x16x16xf32> to vector<8x16x16xf32>
    %95 = arith.addf %92, %94 : vector<8x16x16xf32>
    %96 = vector.broadcast %7 : vector<8x1x16xf32> to vector<8x16x16xf32>
    %97 = arith.addf %95, %96 : vector<8x16x16xf32>
    %cst_45 = arith.constant dense<0xFF800000> : vector<8x16xf32>
    %98 = vector.multi_reduction <maximumf>, %97, %cst_45 [2] : vector<8x16x16xf32> to vector<8x16xf32>
    %99 = vector.shape_cast %98 : vector<8x16xf32> to vector<8x16x1xf32>
    %100 = vector.broadcast %99 : vector<8x16x1xf32> to vector<8x16x16xf32>
    %101 = arith.subf %97, %100 : vector<8x16x16xf32>
    %102 = math.exp %101 : vector<8x16x16xf32>
    %cst_46 = arith.constant dense<0.000000e+00> : vector<8x16xf32>
    %103 = vector.multi_reduction <add>, %102, %cst_46 [2] : vector<8x16x16xf32> to vector<8x16xf32>
    %104 = vector.shape_cast %103 : vector<8x16xf32> to vector<8x16x1xf32>
    %cst_47 = arith.constant dense<0.000000e+00> : vector<8x16x8xf32>
    %105 = tpu.matmul %102, %89, %cst_47 {dimension_numbers = #tpu.dot_dimension_numbers<[2], [1], [1], [2], [0, 0, 0, 1, 1, 2], [0], [0]>} : vector<8x16x16xf32>, vector<8x16x8xf32>, vector<8x16x8xf32> -> vector<8x16x8xf32>
    %106 = tpu.reciprocal %104 {approx = true} : vector<8x16x1xf32> -> vector<8x16x1xf32>
    %107 = vector.broadcast %106 : vector<8x16x1xf32> to vector<8x16x8xf32>
    %108 = arith.mulf %105, %107 : vector<8x16x8xf32>
    %109 = vector.extract_strided_slice %14 {offsets = [0, 0, 24], sizes = [8, 16, 8], strides = [1, 1, 1]} : vector<8x16x32xf32> to vector<8x16x8xf32>
    %110 = arith.mulf %108, %109 : vector<8x16x8xf32>
    %111 = tpu.concatenate %38, %62, %86, %110 in 2 : vector<8x16x8xf32>, vector<8x16x8xf32>, vector<8x16x8xf32>, vector<8x16x8xf32> -> vector<8x16x32xf32>
    %c0_48 = arith.constant 0 : index
    %c0_49 = arith.constant 0 : index
    %c0_50 = arith.constant 0 : index
    %c0_51 = arith.constant 0 : index
    %112 = vector.load %arg8[%c0_48, %c0_49, %c0_50, %c0_51] : memref<1x8x16x32xf32, #tpu.memory_space<vmem>>, vector<1x8x16x32xf32>
    %113 = vector.shape_cast %112 : vector<1x8x16x32xf32> to vector<8x16x32xf32>
    %114 = vector.shape_cast %111 : vector<8x16x32xf32> to vector<1x8x16x32xf32>
    tpu.vector_store %arg8[%c0_48, %c0_49, %c0_50, %c0_51], %114 {strides = array<i32>} : memref<1x8x16x32xf32, #tpu.memory_space<vmem>>, vector<1x8x16x32xf32>,
    return
  }
  func.func @transform_0(%arg0: i32, %arg1: i32) -> (i32, i32, i32, i32) {
    %c0_i32 = arith.constant 0 : i32
    %c0_i32_0 = arith.constant 0 : i32
    %c0_i32_1 = arith.constant 0 : i32
    return %arg0, %arg1, %c0_i32, %c0_i32_0 : i32, i32, i32, i32
  }
  func.func @transform_1(%arg0: i32, %arg1: i32) -> (i32, i32, i32, i32) {
    %c0_i32 = arith.constant 0 : i32
    %c0_i32_0 = arith.constant 0 : i32
    %c0_i32_1 = arith.constant 0 : i32
    return %arg0, %arg1, %c0_i32, %c0_i32_0 : i32, i32, i32, i32
  }
  func.func @transform_2(%arg0: i32, %arg1: i32) -> (i32, i32, i32, i32) {
    %c0_i32 = arith.constant 0 : i32
    %c0_i32_0 = arith.constant 0 : i32
    %c0_i32_1 = arith.constant 0 : i32
    return %arg0, %arg1, %c0_i32, %c0_i32_0 : i32, i32, i32, i32
  }
  func.func @transform_3(%arg0: i32, %arg1: i32) -> (i32, i32, i32, i32) {
    %c0_i32 = arith.constant 0 : i32
    %c0_i32_0 = arith.constant 0 : i32
    %c0_i32_1 = arith.constant 0 : i32
    return %arg0, %arg1, %c0_i32, %c0_i32_0 : i32, i32, i32, i32
  }
  func.func @transform_4(%arg0: i32, %arg1: i32) -> (i32, i32, i32, i32) {
    %c0_i32 = arith.constant 0 : i32
    %c0_i32_0 = arith.constant 0 : i32
    %c0_i32_1 = arith.constant 0 : i32
    %c0_i32_2 = arith.constant 0 : i32
    return %arg0, %c0_i32, %c0_i32_0, %c0_i32_1 : i32, i32, i32, i32
  }
  func.func @transform_5(%arg0: i32, %arg1: i32) -> (i32, i32, i32, i32) {
    %c0_i32 = arith.constant 0 : i32
    %c0_i32_0 = arith.constant 0 : i32
    %c0_i32_1 = arith.constant 0 : i32
    return %arg0, %arg1, %c0_i32, %c0_i32_0 : i32, i32, i32, i32
  }
  func.func @transform_6(%arg0: i32, %arg1: i32) -> (i32, i32, i32, i32) {
    %c0_i32 = arith.constant 0 : i32
    %c0_i32_0 = arith.constant 0 : i32
    %c0_i32_1 = arith.constant 0 : i32
    return %arg0, %arg1, %c0_i32, %c0_i32_0 : i32, i32, i32, i32
  }
}

</mosaic_0001>

<llo_original>
// kernel: tpu_custom_call.1
$region0: #{tpu_custom_call.1}
  #allocation0 [shape = 'u32[]', space=smem, size = 0x4, offset = 0x4, fixed_abs, tag = 'smem constant byte address 0x4 - core index']
  #allocation1 [shape = 'u32[144,128]{1,0:T(1,128)}', space=vmem, size = 0x12000, scoped, tag = 'internal scratch']
  %s0 = inlined_call_operand.hbm [shape: f32[2,8,16,32], index: 0, kind: input, shape index: {}]
  %s1 = inlined_call_operand.hbm [shape: f32[2,8,16,32], index: 1, kind: input, shape index: {}]
  %s2 = inlined_call_operand.hbm [shape: f32[2,8,16,32], index: 2, kind: input, shape index: {}]
  %s3 = inlined_call_operand.hbm [shape: f32[2,8,16,32], index: 3, kind: input, shape index: {}]
  %s4 = inlined_call_operand.hbm [shape: f32[2,4,16,16], index: 4, kind: input, shape index: {}]
  %s5 = inlined_call_operand.vmem [shape: f32[2,8,1,16], index: 5, kind: input, shape index: {}]
  %s6 = inlined_call_operand.hbm [shape: f32[2,8,16,32], index: 6, kind: output, shape index: {}]
  %s7 = sld [smem:[#allocation0]]
  $region77: #{tpu_custom_call.1} parent=0
    _
  %s9 = ssub.s32 1, %s7
  %s10 = scalar_select 0, %s9, %s7
  $region1: #{tpu_custom_call.1} parent=0
    #allocation2 [shape = 'u8[131072]{0}', space=vmem, size = 0x20000, scoped, tag = 'input window, operand 0']
    #allocation3 [shape = 's32[2]{0}', space=sflag, size = 0x8, scoped, tag = 'scoped memory for tpu_custom_call.1']
    #allocation4 [shape = 's32[2]{0}', space=sflag, size = 0x8, scoped, tag = 'scoped memory for tpu_custom_call.1']
    #allocation5 [shape = 'u8[131072]{0}', space=vmem, size = 0x20000, scoped, tag = 'input window, operand 1']
    #allocation6 [shape = 's32[2]{0}', space=sflag, size = 0x8, scoped, tag = 'scoped memory for tpu_custom_call.1']
    #allocation7 [shape = 'u8[131072]{0}', space=vmem, size = 0x20000, scoped, tag = 'input window, operand 2']
    #allocation8 [shape = 'u8[131072]{0}', space=vmem, size = 0x20000, scoped, tag = 'input window, operand 3']
    #allocation9 [shape = 's32[2]{0}', space=sflag, size = 0x8, scoped, tag = 'scoped memory for tpu_custom_call.1']
    #allocation10 [shape = 'u8[65536]{0}', space=vmem, size = 0x10000, scoped, tag = 'input window, operand 4']
    #allocation11 [shape = 'u8[131072]{0}', space=vmem, size = 0x20000, scoped, tag = 'output window, operand 0']
    %11 = vsyncpa [#allocation3], 0
    %s12 = scalar_lea.sflag [#allocation3], 1
    %13 = vsyncpa %s12, 0
    %14 = vsyncpa [#allocation6], 0
    %s15 = scalar_lea.sflag [#allocation6], 1
    %16 = vsyncpa %s15, 0
    %17 = vsyncpa [#allocation9], 0
    %s18 = scalar_lea.sflag [#allocation9], 1
    %19 = vsyncpa %s18, 0
    %20 = vsyncpa [#allocation4], 0
    %s21 = scalar_lea.sflag [#allocation4], 1
    %22 = vsyncpa %s21, 0
    loop: start=0, step=1, limit=4
    $region2: #{tpu_custom_call.1} parent=1 // loop_pre_header
      _
    $region3: #{tpu_custom_call.1} parent=1 // loop_header
      %s24 = sphi 0, %s28
      %p25 = scmp.ge.s32.totalorder %s24, 4
      %s31 = sphi 0, %s43
      %s32 = sphi 0, %s39
      %s33 = sphi 0, %s31
      %s34 = sphi 0, %s32
      %s35 = sphi 0, %s33
      %s36 = sphi 0, %s34
      %s48 = sphi 0, %s50
      %s51 = sphi 0, %s48
      %s52 = sphi 0, %s51
      %s68 = sphi 0, %s52
      %s76 = sphi 0, %s78
      %s79 = sphi 0, %s76
      %s80 = sphi 0, %s79
      %s96 = sphi 0, %s80
      %s104 = sphi 0, %s106
      %s107 = sphi 0, %s104
      %s108 = sphi 0, %s107
      %s124 = sphi 0, %s108
      %s132 = sphi 0, %s134
      %s135 = sphi 0, %s132
      %s136 = sphi 0, %s135
      %s152 = sphi 0, %s136
      %s158 = sphi 0, %s160
      %s161 = sphi 0, %s158
      %s162 = sphi 0, %s161
      %s178 = sphi 0, %s162
      %s186 = sphi 0, %s188
      %s189 = sphi 0, %s186
      %s190 = sphi 0, %s189
      %s206 = sphi 0, %s190
      %s214 = sphi 0, %s216
      %s217 = sphi 0, %s214
      %s218 = sphi 0, %s217
      %s234 = sphi 0, %s218
    $region4: #{tpu_custom_call.1} parent=1 // loop_header_branch
      %27 = sbr.rel (%p25) target = $region8
    $region5: #{tpu_custom_call.1} parent=1 // loop_body
      %s29 = ssub.s32 %s24, 1
      %s30 = ssub.s32 %s24, 2
      %s37 = sadd.s32 1, %s32
      %p38 = scmp.ge.s32.totalorder %s37, 1
      %s39 = scalar_select %p38, 0, %s37
      %s40 = sadd.s32 1, %s31
      %s41 = scalar_select %p38, %s40, %s31
      %p42 = scmp.ge.s32.totalorder %s41, 2
      %s43 = scalar_select %p42, 0, %s41
      %s44 = ssub.s32 %s31, %s43
      %s45 = ssub.s32 %s32, %s39
      %s46 = sor.u32 %s44, %s45
      %p47 = scmp.eq.s32.totalorder %s46, 0
      %s49 = sadd.s32 %s48, 1
      %s50 = scalar_select %p47, %s48, %s49
      %p53 = pneg %p47
      %p54 = scmp.eq.s32.totalorder %s24, 1
      %p55 = por %p53, %p54
      %p56 = scmp.ne.s32.totalorder %s48, %s51
      %p57 = scmp.eq.s32.totalorder %s24, 0
      %p58 = por %p56, %p57
      %p59 = scmp.ne.s32.totalorder %s48, %s51
      %p60 = scmp.eq.s32.totalorder %s29, 1
      %p61 = por %p59, %p60
      %p62 = scmp.ne.s32.totalorder %s51, %s52
      %p63 = scmp.eq.s32.totalorder %s29, 0
      %p64 = por %p62, %p63
      %p65 = scmp.ne.s32.totalorder %s51, %s52
      %p66 = scmp.eq.s32.totalorder %s30, 1
      %p67 = por %p65, %p66
      %p69 = scmp.ne.s32.totalorder %s52, %s68
      %p70 = scmp.eq.s32.totalorder %s30, 0
      %p71 = por %p69, %p70
      %s72 = ssub.s32 %s31, %s43
      %s73 = ssub.s32 %s32, %s39
      %s74 = sor.u32 %s72, %s73
      %p75 = scmp.eq.s32.totalorder %s74, 0
      %s77 = sadd.s32 %s76, 1
      %s78 = scalar_select %p75, %s76, %s77
      %p81 = pneg %p75
      %p82 = scmp.eq.s32.totalorder %s24, 1
      %p83 = por %p81, %p82
      %p84 = scmp.ne.s32.totalorder %s76, %s79
      %p85 = scmp.eq.s32.totalorder %s24, 0
      %p86 = por %p84, %p85
      %p87 = scmp.ne.s32.totalorder %s76, %s79
      %p88 = scmp.eq.s32.totalorder %s29, 1
      %p89 = por %p87, %p88
      %p90 = scmp.ne.s32.totalorder %s79, %s80
      %p91 = scmp.eq.s32.totalorder %s29, 0
      %p92 = por %p90, %p91
      %p93 = scmp.ne.s32.totalorder %s79, %s80
      %p94 = scmp.eq.s32.totalorder %s30, 1
      %p95 = por %p93, %p94
      %p97 = scmp.ne.s32.totalorder %s80, %s96
      %p98 = scmp.eq.s32.totalorder %s30, 0
      %p99 = por %p97, %p98
      %s100 = ssub.s32 %s31, %s43
      %s101 = ssub.s32 %s32, %s39
      %s102 = sor.u32 %s100, %s101
      %p103 = scmp.eq.s32.totalorder %s102, 0
      %s105 = sadd.s32 %s104, 1
      %s106 = scalar_select %p103, %s104, %s105
      %p109 = pneg %p103
      %p110 = scmp.eq.s32.totalorder %s24, 1
      %p111 = por %p109, %p110
      %p112 = scmp.ne.s32.totalorder %s104, %s107
      %p113 = scmp.eq.s32.totalorder %s24, 0
      %p114 = por %p112, %p113
      %p115 = scmp.ne.s32.totalorder %s104, %s107
      %p116 = scmp.eq.s32.totalorder %s29, 1
      %p117 = por %p115, %p116
      %p118 = scmp.ne.s32.totalorder %s107, %s108
      %p119 = scmp.eq.s32.totalorder %s29, 0
      %p120 = por %p118, %p119
      %p121 = scmp.ne.s32.totalorder %s107, %s108
      %p122 = scmp.eq.s32.totalorder %s30, 1
      %p123 = por %p121, %p122
      %p125 = scmp.ne.s32.totalorder %s108, %s124
      %p126 = scmp.eq.s32.totalorder %s30, 0
      %p127 = por %p125, %p126
      %s128 = ssub.s32 %s31, %s43
      %s129 = ssub.s32 %s32, %s39
      %s130 = sor.u32 %s128, %s129
      %p131 = scmp.eq.s32.totalorder %s130, 0
      %s133 = sadd.s32 %s132, 1
      %s134 = scalar_select %p131, %s132, %s133
      %p137 = pneg %p131
      %p138 = scmp.eq.s32.totalorder %s24, 1
      %p139 = por %p137, %p138
      %p140 = scmp.ne.s32.totalorder %s132, %s135
      %p141 = scmp.eq.s32.totalorder %s24, 0
      %p142 = por %p140, %p141
      %p143 = scmp.ne.s32.totalorder %s132, %s135
      %p144 = scmp.eq.s32.totalorder %s29, 1
      %p145 = por %p143, %p144
      %p146 = scmp.ne.s32.totalorder %s135, %s136
      %p147 = scmp.eq.s32.totalorder %s29, 0
      %p148 = por %p146, %p147
      %p149 = scmp.ne.s32.totalorder %s135, %s136
      %p150 = scmp.eq.s32.totalorder %s30, 1
      %p151 = por %p149, %p150
      %p153 = scmp.ne.s32.totalorder %s136, %s152
      %p154 = scmp.eq.s32.totalorder %s30, 0
      %p155 = por %p153, %p154
      %s156 = ssub.s32 %s31, %s43
      %p157 = scmp.eq.s32.totalorder %s156, 0
      %s159 = sadd.s32 %s158, 1
      %s160 = scalar_select %p157, %s158, %s159
      %p163 = pneg %p157
      %p164 = scmp.eq.s32.totalorder %s24, 1
      %p165 = por %p163, %p164
      %p166 = scmp.ne.s32.totalorder %s158, %s161
      %p167 = scmp.eq.s32.totalorder %s24, 0
      %p168 = por %p166, %p167
      %p169 = scmp.ne.s32.totalorder %s158, %s161
      %p170 = scmp.eq.s32.totalorder %s29, 1
      %p171 = por %p169, %p170
      %p172 = scmp.ne.s32.totalorder %s161, %s162
      %p173 = scmp.eq.s32.totalorder %s29, 0
      %p174 = por %p172, %p173
      %p175 = scmp.ne.s32.totalorder %s161, %s162
      %p176 = scmp.eq.s32.totalorder %s30, 1
      %p177 = por %p175, %p176
      %p179 = scmp.ne.s32.totalorder %s162, %s178
      %p180 = scmp.eq.s32.totalorder %s30, 0
      %p181 = por %p179, %p180
      %s182 = ssub.s32 %s31, %s43
      %s183 = ssub.s32 %s32, %s39
      %s184 = sor.u32 %s182, %s183
      %p185 = scmp.eq.s32.totalorder %s184, 0
      %s187 = sadd.s32 %s186, 1
      %s188 = scalar_select %p185, %s186, %s187
      %p191 = pneg %p185
      %p192 = scmp.eq.s32.totalorder %s24, 1
      %p193 = por %p191, %p192
      %p194 = scmp.ne.s32.totalorder %s186, %s189
      %p195 = scmp.eq.s32.totalorder %s24, 0
      %p196 = por %p194, %p195
      %p197 = scmp.ne.s32.totalorder %s186, %s189
      %p198 = scmp.eq.s32.totalorder %s29, 1
      %p199 = por %p197, %p198
      %p200 = scmp.ne.s32.totalorder %s189, %s190
      %p201 = scmp.eq.s32.totalorder %s29, 0
      %p202 = por %p200, %p201
      %p203 = scmp.ne.s32.totalorder %s189, %s190
      %p204 = scmp.eq.s32.totalorder %s30, 1
      %p205 = por %p203, %p204
      %p207 = scmp.ne.s32.totalorder %s190, %s206
      %p208 = scmp.eq.s32.totalorder %s30, 0
      %p209 = por %p207, %p208
      %s210 = ssub.s32 %s31, %s43
      %s211 = ssub.s32 %s32, %s39
      %s212 = sor.u32 %s210, %s211
      %p213 = scmp.eq.s32.totalorder %s212, 0
      %s215 = sadd.s32 %s214, 1
      %s216 = scalar_select %p213, %s214, %s215
      %p219 = pneg %p213
      %p220 = scmp.eq.s32.totalorder %s24, 1
      %p221 = por %p219, %p220
      %p222 = scmp.ne.s32.totalorder %s214, %s217
      %p223 = scmp.eq.s32.totalorder %s24, 0
      %p224 = por %p222, %p223
      %p225 = scmp.ne.s32.totalorder %s214, %s217
      %p226 = scmp.eq.s32.totalorder %s29, 1
      %p227 = por %p225, %p226
      %p228 = scmp.ne.s32.totalorder %s217, %s218
      %p229 = scmp.eq.s32.totalorder %s29, 0
      %p230 = por %p228, %p229
      %p231 = scmp.ne.s32.totalorder %s217, %s218
      %p232 = scmp.eq.s32.totalorder %s30, 1
      %p233 = por %p231, %p232
      %p235 = scmp.ne.s32.totalorder %s218, %s234
      %p236 = scmp.eq.s32.totalorder %s30, 0
      %p237 = por %p235, %p236
      %p238 = scmp.le.s32.totalorder 1, %s24
      %p239 = scmp.lt.s32.totalorder %s24, 3
      %p240 = pnand %p238, %p239
      %p241 = pneg %p240
      // Predicated region
      $region9: #{tpu_custom_call.1} parent=5 // pred_check
        _
      $region10: #{tpu_custom_call.1} parent=5 // pred_check_branch
        %243 = sbr.rel (%p240) target = $region12
      $region11: #{tpu_custom_call.1} parent=5 // pred_region
        %s244 = ssub.s32 %s24, 1
      $region12: #{tpu_custom_call.1} parent=5 // pred_fallthru
        _
      %p245 = scmp.lt.s32.totalorder %s24, 2
      // Predicated region
      $region13: #{tpu_custom_call.1} parent=5 // pred_check
        %p246 = pneg %p245
      $region14: #{tpu_custom_call.1} parent=5 // pred_check_branch
        %248 = sbr.rel (%p246) target = $region16
      $region15: #{tpu_custom_call.1} parent=5 // pred_region
        // Predicated region
        $region17: #{tpu_custom_call.1} parent=15 // pred_check
          %p249 = pneg %p58
        $region18: #{tpu_custom_call.1} parent=15 // pred_check_branch
          %251 = sbr.rel (%p249) target = $region20
        $region19: #{tpu_custom_call.1} parent=15 // pred_region
          %s252 = sand.u32 %s48, 1
          %s253 = scalar_lea.sflag [#allocation3], %s252
          %s254 = sand.u32 %s48, 1
          %s255 = smul.addr %s254, 128
          %s256 = scalar_lea.vmem [#allocation2], %s255
          %s257 = smul.u32 8, %s32
          %s259 = ssub.s32 2048, 2048
          %260 = vsyncadd %s253, %s259
          %s261 = smul.addr %s257, 2
          %s262 = smul.addr %s31, 16
          %s263 = sadd.s32 %s261, %s262
          %s264 = smul.addr %s263, 128
          %s265 = scalar_lea.hbm %s0, %s264
          %s266 = sshll.u32 %s256, 4
          %s267 = int_to_ptr.vmem [resolvable:$true] %s266
          %272 = dma.hbm_to_vmem [thread:$0]  %s265, 2048, %s267, %s253, 128, 128, 8
        $region20: #{tpu_custom_call.1} parent=15 // pred_fallthru
          _
        // Predicated region
        $region21: #{tpu_custom_call.1} parent=15 // pred_check
          %p273 = pneg %p86
        $region22: #{tpu_custom_call.1} parent=15 // pred_check_branch
          %275 = sbr.rel (%p273) target = $region24
        $region23: #{tpu_custom_call.1} parent=15 // pred_region
          %s276 = sand.u32 %s24, 1
          %s277 = scalar_lea.sflag [#allocation6], %s276
          %s278 = sand.u32 %s76, 1
          %s279 = smul.addr %s278, 128
          %s280 = scalar_lea.vmem [#allocation5], %s279
          %s281 = smul.u32 8, %s32
          %s283 = ssub.s32 2048, 2048
          %284 = vsyncadd %s277, %s283
          %s285 = smul.addr %s281, 2
          %s286 = smul.addr %s31, 16
          %s287 = sadd.s32 %s285, %s286
          %s288 = smul.addr %s287, 128
          %s289 = scalar_lea.hbm %s1, %s288
          %s290 = sshll.u32 %s280, 4
          %s291 = int_to_ptr.vmem [resolvable:$true] %s290
          %296 = dma.hbm_to_vmem [thread:$0]  %s289, 2048, %s291, %s277, 128, 128, 8
        $region24: #{tpu_custom_call.1} parent=15 // pred_fallthru
          _
        // Predicated region
        $region25: #{tpu_custom_call.1} parent=15 // pred_check
          %p297 = pneg %p114
        $region26: #{tpu_custom_call.1} parent=15 // pred_check_branch
          %299 = sbr.rel (%p297) target = $region28
        $region27: #{tpu_custom_call.1} parent=15 // pred_region
          %s300 = sand.u32 %s24, 1
          %s301 = scalar_lea.sflag [#allocation6], %s300
          %s302 = sand.u32 %s104, 1
          %s303 = smul.addr %s302, 128
          %s304 = scalar_lea.vmem [#allocation7], %s303
          %s305 = smul.u32 8, %s32
          %s307 = ssub.s32 2048, 2048
          %308 = vsyncadd %s301, %s307
          %s309 = smul.addr %s305, 2
          %s310 = smul.addr %s31, 16
          %s311 = sadd.s32 %s309, %s310
          %s312 = smul.addr %s311, 128
          %s313 = scalar_lea.hbm %s2, %s312
          %s314 = sshll.u32 %s304, 4
          %s315 = int_to_ptr.vmem [resolvable:$true] %s314
          %320 = dma.hbm_to_vmem [thread:$0]  %s313, 2048, %s315, %s301, 128, 128, 8
        $region28: #{tpu_custom_call.1} parent=15 // pred_fallthru
          _
        // Predicated region
        $region29: #{tpu_custom_call.1} parent=15 // pred_check
          %p321 = pneg %p142
        $region30: #{tpu_custom_call.1} parent=15 // pred_check_branch
          %323 = sbr.rel (%p321) target = $region32
        $region31: #{tpu_custom_call.1} parent=15 // pred_region
          %s324 = sand.u32 %s24, 1
          %s325 = scalar_lea.sflag [#allocation9], %s324
          %s326 = sand.u32 %s132, 1
          %s327 = smul.addr %s326, 128
          %s328 = scalar_lea.vmem [#allocation8], %s327
          %s329 = smul.u32 8, %s32
          %s331 = ssub.s32 2048, 2048
          %332 = vsyncadd %s325, %s331
          %s333 = smul.addr %s329, 2
          %s334 = smul.addr %s31, 16
          %s335 = sadd.s32 %s333, %s334
          %s336 = smul.addr %s335, 128
          %s337 = scalar_lea.hbm %s3, %s336
          %s338 = sshll.u32 %s328, 4
          %s339 = int_to_ptr.vmem [resolvable:$true] %s338
          %344 = dma.hbm_to_vmem [thread:$0]  %s337, 2048, %s339, %s325, 128, 128, 8
        $region32: #{tpu_custom_call.1} parent=15 // pred_fallthru
          _
        // Predicated region
        $region33: #{tpu_custom_call.1} parent=15 // pred_check
          %p345 = pneg %p168
        $region34: #{tpu_custom_call.1} parent=15 // pred_check_branch
          %347 = sbr.rel (%p345) target = $region36
        $region35: #{tpu_custom_call.1} parent=15 // pred_region
          %s348 = sand.u32 %s24, 1
          %s349 = scalar_lea.sflag [#allocation9], %s348
          %s350 = sand.u32 %s158, 1
          %s351 = smul.addr %s350, 64
          %s352 = scalar_lea.vmem [#allocation10], %s351
          %s354 = ssub.s32 1024, 1024
          %355 = vsyncadd %s349, %s354
          %s356 = smul.addr %s31, 8
          %s357 = smul.addr %s356, 128
          %s358 = scalar_lea.hbm %s4, %s357
          %s359 = sshll.u32 %s352, 4
          %s360 = int_to_ptr.vmem [resolvable:$true] %s359
          %365 = dma.hbm_to_vmem [thread:$0]  %s358, 1024, %s360, %s349, 128, 128, 8
        $region36: #{tpu_custom_call.1} parent=15 // pred_fallthru
          _
        // Predicated region
        $region37: #{tpu_custom_call.1} parent=15 // pred_check
          %p366 = pneg %p196
        $region38: #{tpu_custom_call.1} parent=15 // pred_check_branch
          %368 = sbr.rel (%p366) target = $region40
        $region39: #{tpu_custom_call.1} parent=15 // pred_region
          %s369 = smul.u32 8, %s32
          %p370 = scmp.lt.s32.totalorder %s31, 1
          %s371 = scalar_select %p370, %s31, 1
          %p372 = scmp.lt.s32.totalorder %s369, 7
          %s373 = scalar_select %p372, %s369, 7
          %s374 = smul.addr %s371, 8
          %s375 = sadd.s32 %s373, %s374
          %s376 = scalar_lea.vmem %s5, %s375
          %s377 = smul.u32 8, %s32
        $region40: #{tpu_custom_call.1} parent=15 // pred_fallthru
          _
      $region16: #{tpu_custom_call.1} parent=5 // pred_fallthru
        _
      %p378 = scmp.le.s32.totalorder 1, %s24
      %p379 = scmp.lt.s32.totalorder %s24, 3
      %p380 = pnand %p378, %p379
      %p381 = pneg %p380
      // Predicated region
      $region41: #{tpu_custom_call.1} parent=5 // pred_check
        _
      $region42: #{tpu_custom_call.1} parent=5 // pred_check_branch
        %383 = sbr.rel (%p380) target = $region44
      $region43: #{tpu_custom_call.1} parent=5 // pred_region
        %s384 = ssub.s32 %s24, 1
        %s385 = sand.u32 %s51, 1
        %s386 = scalar_lea.sflag [#allocation3], %s385
        %s387 = sand.u32 %s51, 1
        %s388 = smul.addr %s387, 128
        %s389 = scalar_lea.vmem [#allocation2], %s388
        // Predicated region
        $region45: #{tpu_custom_call.1} parent=43 // pred_check
          %p390 = pneg %p64
        $region46: #{tpu_custom_call.1} parent=43 // pred_check_branch
          %392 = sbr.rel (%p390) target = $region48
        $region47: #{tpu_custom_call.1} parent=43 // pred_region
          %393 = dma.done %s386, 2048
        $region48: #{tpu_custom_call.1} parent=43 // pred_fallthru
          _
        %s394 = sand.u32 %s29, 1
        %s395 = scalar_lea.sflag [#allocation6], %s394
        %s396 = sand.u32 %s79, 1
        %s397 = smul.addr %s396, 128
        %s398 = scalar_lea.vmem [#allocation5], %s397
        // Predicated region
        $region49: #{tpu_custom_call.1} parent=43 // pred_check
          %p399 = pneg %p92
        $region50: #{tpu_custom_call.1} parent=43 // pred_check_branch
          %401 = sbr.rel (%p399) target = $region52
        $region51: #{tpu_custom_call.1} parent=43 // pred_region
          %402 = dma.done %s395, 2048
        $region52: #{tpu_custom_call.1} parent=43 // pred_fallthru
          _
        %s403 = sand.u32 %s29, 1
        %s404 = scalar_lea.sflag [#allocation6], %s403
        %s405 = sand.u32 %s107, 1
        %s406 = smul.addr %s405, 128
        %s407 = scalar_lea.vmem [#allocation7], %s406
        // Predicated region
        $region53: #{tpu_custom_call.1} parent=43 // pred_check
          %p408 = pneg %p120
        $region54: #{tpu_custom_call.1} parent=43 // pred_check_branch
          %410 = sbr.rel (%p408) target = $region56
        $region55: #{tpu_custom_call.1} parent=43 // pred_region
          %411 = dma.done %s404, 2048
        $region56: #{tpu_custom_call.1} parent=43 // pred_fallthru
          _
        %s412 = sand.u32 %s29, 1
        %s413 = scalar_lea.sflag [#allocation9], %s412
        %s414 = sand.u32 %s135, 1
        %s415 = smul.addr %s414, 128
        %s416 = scalar_lea.vmem [#allocation8], %s415
        // Predicated region
        $region57: #{tpu_custom_call.1} parent=43 // pred_check
          %p417 = pneg %p148
        $region58: #{tpu_custom_call.1} parent=43 // pred_check_branch
          %419 = sbr.rel (%p417) target = $region60
        $region59: #{tpu_custom_call.1} parent=43 // pred_region
          %420 = dma.done %s413, 2048
        $region60: #{tpu_custom_call.1} parent=43 // pred_fallthru
          _
        %s421 = sand.u32 %s29, 1
        %s422 = scalar_lea.sflag [#allocation9], %s421
        %s423 = sand.u32 %s161, 1
        %s424 = smul.addr %s423, 64
        %s425 = scalar_lea.vmem [#allocation10], %s424
        // Predicated region
        $region61: #{tpu_custom_call.1} parent=43 // pred_check
          %p426 = pneg %p174
        $region62: #{tpu_custom_call.1} parent=43 // pred_check_branch
          %428 = sbr.rel (%p426) target = $region64
        $region63: #{tpu_custom_call.1} parent=43 // pred_region
          %429 = dma.done %s422, 1024
        $region64: #{tpu_custom_call.1} parent=43 // pred_fallthru
          _
        %s430 = sand.u32 %s51, 1
        %s431 = scalar_lea.sflag [#allocation3], %s430
        %s432 = sand.u32 %s51, 1
        %s433 = smul.addr %s432, 128
        %s434 = scalar_lea.vmem [#allocation2], %s433
        %p435 = pneg %p64
        %p436 = pneg %p61
        %s437 = sand.u32 %s29, 1
        %s438 = scalar_lea.sflag [#allocation6], %s437
        %s439 = sand.u32 %s79, 1
        %s440 = smul.addr %s439, 128
        %s441 = scalar_lea.vmem [#allocation5], %s440
        %p442 = pneg %p92
        %p443 = pneg %p89
        %s444 = sand.u32 %s29, 1
        %s445 = scalar_lea.sflag [#allocation6], %s444
        %s446 = sand.u32 %s107, 1
        %s447 = smul.addr %s446, 128
        %s448 = scalar_lea.vmem [#allocation7], %s447
        %p449 = pneg %p120
        %p450 = pneg %p117
        %s451 = sand.u32 %s29, 1
        %s452 = scalar_lea.sflag [#allocation9], %s451
        %s453 = sand.u32 %s135, 1
        %s454 = smul.addr %s453, 128
        %s455 = scalar_lea.vmem [#allocation8], %s454
        %p456 = pneg %p148
        %p457 = pneg %p145
        %s458 = sand.u32 %s29, 1
        %s459 = scalar_lea.sflag [#allocation9], %s458
        %s460 = sand.u32 %s161, 1
        %s461 = smul.addr %s460, 64
        %s462 = scalar_lea.vmem [#allocation10], %s461
        %p463 = pneg %p174
        %p464 = pneg %p171
        %s465 = smul.u32 8, %s34
        %p466 = scmp.lt.s32.totalorder %s33, 1
        %s467 = scalar_select %p466, %s33, 1
        %p468 = scmp.lt.s32.totalorder %s465, 7
        %s469 = scalar_select %p468, %s465, 7
        %s470 = smul.addr %s467, 8
        %s471 = sadd.s32 %s469, %s470
        %s472 = scalar_lea.vmem %s5, %s471
        %p473 = pneg %p202
        %p474 = pneg %p199
        %p475 = pneg %p230
        %p476 = pneg %p227
        %s477 = sand.u32 %s217, 1
        %s478 = scalar_lea.sflag [#allocation4], %s477
        %s479 = sand.u32 %s217, 1
        %s480 = smul.addr %s479, 128
        %s481 = scalar_lea.vmem [#allocation11], %s480
        %s482 = smul.u32 8, %s34
        %s483 = smul.u32 8, %s34
        %s484 = smul.u32 8, %s34
        %s485 = smul.u32 8, %s34
        %s486 = smul.u32 8, %s34
        %p487 = scmp.lt.s32.totalorder %s33, 1
        %s488 = scalar_select %p487, %s33, 1
        %p489 = scmp.lt.s32.totalorder %s486, 7
        %s490 = scalar_select %p489, %s486, 7
        %s491 = smul.addr %s488, 8
        %s492 = sadd.s32 %s490, %s491
        %s493 = scalar_lea.vmem %s5, %s492
        %s494 = smul.u32 8, %s34
        %s495 = smul.u32 8, %s34
        %v496 = vld [vmem:[%s389] sm:$0xff]
        %v497 = vld [vmem:[%s389 + $0x8] sm:$0xff]
        %v498 = vld [vmem:[%s389 + $0x10] sm:$0xff]
        %v499 = vld [vmem:[%s389 + $0x18] sm:$0xff]
        %v500 = vld [vmem:[%s389 + $0x20] sm:$0xff]
        %v501 = vld [vmem:[%s389 + $0x28] sm:$0xff]
        %v502 = vld [vmem:[%s389 + $0x30] sm:$0xff]
        %v503 = vld [vmem:[%s389 + $0x38] sm:$0xff]
        %v504 = vld [vmem:[%s389 + $0x40] sm:$0xff]
        %v505 = vld [vmem:[%s389 + $0x48] sm:$0xff]
        %v506 = vld [vmem:[%s389 + $0x50] sm:$0xff]
        %v507 = vld [vmem:[%s389 + $0x58] sm:$0xff]
        %v508 = vld [vmem:[%s389 + $0x60] sm:$0xff]
        %v509 = vld [vmem:[%s389 + $0x68] sm:$0xff]
        %v510 = vld [vmem:[%s389 + $0x70] sm:$0xff]
        %v511 = vld [vmem:[%s389 + $0x78] sm:$0xff]
        %v512 = vld [vmem:[%s398] sm:$0xff]
        %v513 = vld [vmem:[%s398 + $0x8] sm:$0xff]
        %v514 = vld [vmem:[%s398 + $0x10] sm:$0xff]
        %v515 = vld [vmem:[%s398 + $0x18] sm:$0xff]
        %v516 = vld [vmem:[%s398 + $0x20] sm:$0xff]
        %v517 = vld [vmem:[%s398 + $0x28] sm:$0xff]
        %v518 = vld [vmem:[%s398 + $0x30] sm:$0xff]
        %v519 = vld [vmem:[%s398 + $0x38] sm:$0xff]
        %v520 = vld [vmem:[%s398 + $0x40] sm:$0xff]
        %v521 = vld [vmem:[%s398 + $0x48] sm:$0xff]
        %v522 = vld [vmem:[%s398 + $0x50] sm:$0xff]
        %v523 = vld [vmem:[%s398 + $0x58] sm:$0xff]
        %v524 = vld [vmem:[%s398 + $0x60] sm:$0xff]
        %v525 = vld [vmem:[%s398 + $0x68] sm:$0xff]
        %v526 = vld [vmem:[%s398 + $0x70] sm:$0xff]
        %v527 = vld [vmem:[%s398 + $0x78] sm:$0xff]
        %v528 = vld [vmem:[%s407] sm:$0xff]
        %v529 = vld [vmem:[%s407 + $0x8] sm:$0xff]
        %v530 = vld [vmem:[%s407 + $0x10] sm:$0xff]
        %v531 = vld [vmem:[%s407 + $0x18] sm:$0xff]
        %v532 = vld [vmem:[%s407 + $0x20] sm:$0xff]
        %v533 = vld [vmem:[%s407 + $0x28] sm:$0xff]
        %v534 = vld [vmem:[%s407 + $0x30] sm:$0xff]
        %v535 = vld [vmem:[%s407 + $0x38] sm:$0xff]
        %v536 = vld [vmem:[%s407 + $0x40] sm:$0xff]
        %v537 = vld [vmem:[%s407 + $0x48] sm:$0xff]
        %v538 = vld [vmem:[%s407 + $0x50] sm:$0xff]
        %v539 = vld [vmem:[%s407 + $0x58] sm:$0xff]
        %v540 = vld [vmem:[%s407 + $0x60] sm:$0xff]
        %v541 = vld [vmem:[%s407 + $0x68] sm:$0xff]
        %v542 = vld [vmem:[%s407 + $0x70] sm:$0xff]
        %v543 = vld [vmem:[%s407 + $0x78] sm:$0xff]
        %v544 = vld [vmem:[%s493] sm:$0x1]
        %v545 = vld [vmem:[%s493 + $0x1] sm:$0x1]
        %v546 = vld [vmem:[%s493 + $0x2] sm:$0x1]
        %v547 = vld [vmem:[%s493 + $0x3] sm:$0x1]
        %v548 = vld [vmem:[%s493 + $0x4] sm:$0x1]
        %v549 = vld [vmem:[%s493 + $0x5] sm:$0x1]
        %v550 = vld [vmem:[%s493 + $0x6] sm:$0x1]
        %v551 = vld [vmem:[%s493 + $0x7] sm:$0x1]
        %v552 = vld [vmem:[%s416] sm:$0xff]
        %v553 = vld [vmem:[%s416 + $0x8] sm:$0xff]
        %v554 = vld [vmem:[%s416 + $0x10] sm:$0xff]
        %v555 = vld [vmem:[%s416 + $0x18] sm:$0xff]
        %v556 = vld [vmem:[%s416 + $0x20] sm:$0xff]
        %v557 = vld [vmem:[%s416 + $0x28] sm:$0xff]
        %v558 = vld [vmem:[%s416 + $0x30] sm:$0xff]
        %v559 = vld [vmem:[%s416 + $0x38] sm:$0xff]
        %v560 = vld [vmem:[%s416 + $0x40] sm:$0xff]
        %v561 = vld [vmem:[%s416 + $0x48] sm:$0xff]
        %v562 = vld [vmem:[%s416 + $0x50] sm:$0xff]
        %v563 = vld [vmem:[%s416 + $0x58] sm:$0xff]
        %v564 = vld [vmem:[%s416 + $0x60] sm:$0xff]
        %v565 = vld [vmem:[%s416 + $0x68] sm:$0xff]
        %v566 = vld [vmem:[%s416 + $0x70] sm:$0xff]
        %v567 = vld [vmem:[%s416 + $0x78] sm:$0xff]
        %v568 = vxor.u32 %v552, 2147483648
        %v569 = vxor.u32 %v553, 2147483648
        %v570 = vxor.u32 %v554, 2147483648
        %v571 = vxor.u32 %v555, 2147483648
        %v572 = vxor.u32 %v556, 2147483648
        %v573 = vxor.u32 %v557, 2147483648
        %v574 = vxor.u32 %v558, 2147483648
        %v575 = vxor.u32 %v559, 2147483648
        %v576 = vxor.u32 %v560, 2147483648
        %v577 = vxor.u32 %v561, 2147483648
        %v578 = vxor.u32 %v562, 2147483648
        %v579 = vxor.u32 %v563, 2147483648
        %v580 = vxor.u32 %v564, 2147483648
        %v581 = vxor.u32 %v565, 2147483648
        %v582 = vxor.u32 %v566, 2147483648
        %v583 = vxor.u32 %v567, 2147483648
        %v584 = vmul.f32 %v568, 1.442695
        %v585 = vpow.pop %v584
        %v586 = vmul.f32 %v569, 1.442695
        %v587 = vpow.pop %v586
        %v588 = vmul.f32 %v570, 1.442695
        %v589 = vpow.pop %v588
        %v590 = vmul.f32 %v571, 1.442695
        %v591 = vpow.pop %v590
        %v592 = vmul.f32 %v572, 1.442695
        %v593 = vpow.pop %v592
        %v594 = vmul.f32 %v573, 1.442695
        %v595 = vpow.pop %v594
        %v596 = vmul.f32 %v574, 1.442695
        %v597 = vpow.pop %v596
        %v598 = vmul.f32 %v575, 1.442695
        %v599 = vpow.pop %v598
        %v600 = vmul.f32 %v576, 1.442695
        %v601 = vpow.pop %v600
        %v602 = vmul.f32 %v577, 1.442695
        %v603 = vpow.pop %v602
        %v604 = vmul.f32 %v578, 1.442695
        %v605 = vpow.pop %v604
        %v606 = vmul.f32 %v579, 1.442695
        %v607 = vpow.pop %v606
        %v608 = vmul.f32 %v580, 1.442695
        %v609 = vpow.pop %v608
        %v610 = vmul.f32 %v581, 1.442695
        %v611 = vpow.pop %v610
        %v612 = vmul.f32 %v582, 1.442695
        %v613 = vpow.pop %v612
        %v614 = vmul.f32 %v583, 1.442695
        %v615 = vpow.pop %v614
        %v616 = vadd.f32 %v585, 1.0
        %v617 = vadd.f32 %v587, 1.0
        %v618 = vadd.f32 %v589, 1.0
        %v619 = vadd.f32 %v591, 1.0
        %v620 = vadd.f32 %v593, 1.0
        %v621 = vadd.f32 %v595, 1.0
        %v622 = vadd.f32 %v597, 1.0
        %v623 = vadd.f32 %v599, 1.0
        %v624 = vadd.f32 %v601, 1.0
        %v625 = vadd.f32 %v603, 1.0
        %v626 = vadd.f32 %v605, 1.0
        %v627 = vadd.f32 %v607, 1.0
        %v628 = vadd.f32 %v609, 1.0
        %v629 = vadd.f32 %v611, 1.0
        %v630 = vadd.f32 %v613, 1.0
        %v631 = vadd.f32 %v615, 1.0
        %v632 = vrcp.pop %v616
        %v633 = vmul.f32 1.0, %v632
        %v634 = vrcp.pop %v617
        %v635 = vmul.f32 1.0, %v634
        %v636 = vrcp.pop %v618
        %v637 = vmul.f32 1.0, %v636
        %v638 = vrcp.pop %v619
        %v639 = vmul.f32 1.0, %v638
        %v640 = vrcp.pop %v620
        %v641 = vmul.f32 1.0, %v640
        %v642 = vrcp.pop %v621
        %v643 = vmul.f32 1.0, %v642
        %v644 = vrcp.pop %v622
        %v645 = vmul.f32 1.0, %v644
        %v646 = vrcp.pop %v623
        %v647 = vmul.f32 1.0, %v646
        %v648 = vrcp.pop %v624
        %v649 = vmul.f32 1.0, %v648
        %v650 = vrcp.pop %v625
        %v651 = vmul.f32 1.0, %v650
        %v652 = vrcp.pop %v626
        %v653 = vmul.f32 1.0, %v652
        %v654 = vrcp.pop %v627
        %v655 = vmul.f32 1.0, %v654
        %v656 = vrcp.pop %v628
        %v657 = vmul.f32 1.0, %v656
        %v658 = vrcp.pop %v629
        %v659 = vmul.f32 1.0, %v658
        %v660 = vrcp.pop %v630
        %v661 = vmul.f32 1.0, %v660
        %v662 = vrcp.pop %v631
        %v663 = vmul.f32 1.0, %v662
        %v664 = vld [vmem:[%s425] sm:$0xff]
        %v665 = vld [vmem:[%s425 + $0x8] sm:$0xff]
        %vm666 = vcmask 64512
        %v668 = vsel %vm666, %v496, 0
        %v671 = vsel %vm666, %v497, 0
        %v674 = vsel %vm666, %v512, 0
        %v677 = vsel %vm666, %v513, 0
        %679 = vmatprep.subr.mxu0 0.0
        %680 = vmatpush1.xpose.msra.mxu0 %v674
        %681 = vmatprep.subr.mxu0 0.0
        %682 = vmatpush1.xpose.msra.mxu0 %v677
        %683 = vmatprep.subr.mxu0 0.0
        %684 = vmatpush1.xpose.msra.mxu0 0.0
        %685 = vmatprep.subr.mxu0 0.0
        %686 = vmatpush1.xpose.msra.mxu0 0.0
        %687 = vmatprep.subr.mxu0 0.0
        %688 = vmatpush1.xpose.msra.mxu0 0.0
        %689 = vmatprep.subr.mxu0 0.0
        %690 = vmatpush1.xpose.msra.mxu0 0.0
        %691 = vmatprep.subr.mxu0 0.0
        %692 = vmatpush1.xpose.msra.mxu0 0.0
        %693 = vmatprep.subr.mxu0 0.0
        %694 = vmatpush1.xpose.msra.mxu0 0.0
        %695 = vmatprep.subr.mxu0 0.0
        %696 = vmatpush1.xpose.msra.mxu0 0.0
        %697 = vmatprep.subr.mxu0 0.0
        %698 = vmatpush1.xpose.msra.mxu0 0.0
        %699 = vmatprep.subr.mxu0 0.0
        %700 = vmatpush1.xpose.msra.mxu0 0.0
        %701 = vmatprep.subr.mxu0 0.0
        %702 = vmatpush1.xpose.msra.mxu0 0.0
        %703 = vmatprep.subr.mxu0 0.0
        %704 = vmatpush1.xpose.msra.mxu0 0.0
        %705 = vmatprep.subr.mxu0 0.0
        %706 = vmatpush1.xpose.msra.mxu0 0.0
        %707 = vmatprep.subr.mxu0 0.0
        %708 = vmatpush1.xpose.msra.mxu0 0.0
        %709 = vmatprep.subr.mxu0 0.0
        %710 = vmatpush1.xpose.msra.mxu0 0.0
        %711 = vmatprep.subr.mxu0 0.0
        %712 = vmatpush1.xpose.msra.mxu0 0.0
        %713 = vmatprep.subr.mxu0 0.0
        %714 = vmatpush1.xpose.msra.mxu0 0.0
        %715 = vmatprep.subr.mxu0 0.0
        %716 = vmatpush1.xpose.msra.mxu0 0.0
        %717 = vmatprep.subr.mxu0 0.0
        %718 = vmatpush1.xpose.msra.mxu0 0.0
        %719 = vmatprep.subr.mxu0 0.0
        %720 = vmatpush1.xpose.msra.mxu0 0.0
        %721 = vmatprep.subr.mxu0 0.0
        %722 = vmatpush1.xpose.msra.mxu0 0.0
        %723 = vmatprep.subr.mxu0 0.0
        %724 = vmatpush1.xpose.msra.mxu0 0.0
        %725 = vmatprep.subr.mxu0 0.0
        %726 = vmatpush1.xpose.msra.mxu0 0.0
        %727 = vmatprep.subr.mxu0 0.0
        %728 = vmatpush1.xpose.msra.mxu0 0.0
        %729 = vmatprep.subr.mxu0 0.0
        %730 = vmatpush1.xpose.msra.mxu0 0.0
        %731 = vmatprep.subr.mxu0 0.0
        %732 = vmatpush1.xpose.msra.mxu0 0.0
        %733 = vmatprep.subr.mxu0 0.0
        %734 = vmatpush1.xpose.msra.mxu0 0.0
        %735 = vmatprep.subr.mxu0 0.0
        %736 = vmatpush1.xpose.msra.mxu0 0.0
        %737 = vmatprep.subr.mxu0 0.0
        %738 = vmatpush1.xpose.msra.mxu0 0.0
        %739 = vmatprep.subr.mxu0 0.0
        %740 = vmatpush1.xpose.msra.mxu0 0.0
        %741 = vmatprep.subr.mxu0 0.0
        %742 = vmatpush1.xpose.msra.mxu0 0.0
        %743 = vmatprep.mubr.f32.mxu0 0.0
        %744 = vmatmul.mubr.f32.gmra.mrb[0].mxu0 %v668
        %v745 = vpop.f32.mrb[0].mxu0
        %v746 = vadd.f32 %v664, %v745
        %v747 = vpop.f32.mrb[0].mxu0
        %748 = vmatprep.mubr.f32.mxu0 0.0
        %749 = vmatmul.mubr.f32.gmra.mrb[0].mxu0 %v671
        %v750 = vpop.f32.mrb[0].mxu0
        %v751 = vadd.f32 %v665, %v750
        %v752 = vpop.f32.mrb[0].mxu0
        %753 = vdwg.mxu0
        %v755 = vsel %vm666, %v498, 0
        %v758 = vsel %vm666, %v499, 0
        %v761 = vsel %vm666, %v514, 0
        %v764 = vsel %vm666, %v515, 0
        %766 = vmatprep.subr.mxu0 0.0
        %767 = vmatpush1.xpose.msra.mxu0 %v761
        %768 = vmatprep.subr.mxu0 0.0
        %769 = vmatpush1.xpose.msra.mxu0 %v764
        %770 = vmatprep.subr.mxu0 0.0
        %771 = vmatpush1.xpose.msra.mxu0 0.0
        %772 = vmatprep.subr.mxu0 0.0
        %773 = vmatpush1.xpose.msra.mxu0 0.0
        %774 = vmatprep.subr.mxu0 0.0
        %775 = vmatpush1.xpose.msra.mxu0 0.0
        %776 = vmatprep.subr.mxu0 0.0
        %777 = vmatpush1.xpose.msra.mxu0 0.0
        %778 = vmatprep.subr.mxu0 0.0
        %779 = vmatpush1.xpose.msra.mxu0 0.0
        %780 = vmatprep.subr.mxu0 0.0
        %781 = vmatpush1.xpose.msra.mxu0 0.0
        %782 = vmatprep.subr.mxu0 0.0
        %783 = vmatpush1.xpose.msra.mxu0 0.0
        %784 = vmatprep.subr.mxu0 0.0
        %785 = vmatpush1.xpose.msra.mxu0 0.0
        %786 = vmatprep.subr.mxu0 0.0
        %787 = vmatpush1.xpose.msra.mxu0 0.0
        %788 = vmatprep.subr.mxu0 0.0
        %789 = vmatpush1.xpose.msra.mxu0 0.0
        %790 = vmatprep.subr.mxu0 0.0
        %791 = vmatpush1.xpose.msra.mxu0 0.0
        %792 = vmatprep.subr.mxu0 0.0
        %793 = vmatpush1.xpose.msra.mxu0 0.0
        %794 = vmatprep.subr.mxu0 0.0
        %795 = vmatpush1.xpose.msra.mxu0 0.0
        %796 = vmatprep.subr.mxu0 0.0
        %797 = vmatpush1.xpose.msra.mxu0 0.0
        %798 = vmatprep.subr.mxu0 0.0
        %799 = vmatpush1.xpose.msra.mxu0 0.0
        %800 = vmatprep.subr.mxu0 0.0
        %801 = vmatpush1.xpose.msra.mxu0 0.0
        %802 = vmatprep.subr.mxu0 0.0
        %803 = vmatpush1.xpose.msra.mxu0 0.0
        %804 = vmatprep.subr.mxu0 0.0
        %805 = vmatpush1.xpose.msra.mxu0 0.0
        %806 = vmatprep.subr.mxu0 0.0
        %807 = vmatpush1.xpose.msra.mxu0 0.0
        %808 = vmatprep.subr.mxu0 0.0
        %809 = vmatpush1.xpose.msra.mxu0 0.0
        %810 = vmatprep.subr.mxu0 0.0
        %811 = vmatpush1.xpose.msra.mxu0 0.0
        %812 = vmatprep.subr.mxu0 0.0
        %813 = vmatpush1.xpose.msra.mxu0 0.0
        %814 = vmatprep.subr.mxu0 0.0
        %815 = vmatpush1.xpose.msra.mxu0 0.0
        %816 = vmatprep.subr.mxu0 0.0
        %817 = vmatpush1.xpose.msra.mxu0 0.0
        %818 = vmatprep.subr.mxu0 0.0
        %819 = vmatpush1.xpose.msra.mxu0 0.0
        %820 = vmatprep.subr.mxu0 0.0
        %821 = vmatpush1.xpose.msra.mxu0 0.0
        %822 = vmatprep.subr.mxu0 0.0
        %823 = vmatpush1.xpose.msra.mxu0 0.0
        %824 = vmatprep.subr.mxu0 0.0
        %825 = vmatpush1.xpose.msra.mxu0 0.0
        %826 = vmatprep.subr.mxu0 0.0
        %827 = vmatpush1.xpose.msra.mxu0 0.0
        %828 = vmatprep.subr.mxu0 0.0
        %829 = vmatpush1.xpose.msra.mxu0 0.0
        %830 = vmatprep.mubr.f32.mxu0 0.0
        %831 = vmatmul.mubr.f32.gmra.mrb[0].mxu0 %v755
        %v832 = vpop.f32.mrb[0].mxu0
        %v833 = vadd.f32 %v664, %v832
        %v834 = vpop.f32.mrb[0].mxu0
        %835 = vmatprep.mubr.f32.mxu0 0.0
        %836 = vmatmul.mubr.f32.gmra.mrb[0].mxu0 %v758
        %v837 = vpop.f32.mrb[0].mxu0
        %v838 = vadd.f32 %v665, %v837
        %v839 = vpop.f32.mrb[0].mxu0
        %840 = vdwg.mxu0
        %v842 = vsel %vm666, %v500, 0
        %v845 = vsel %vm666, %v501, 0
        %v848 = vsel %vm666, %v516, 0
        %v851 = vsel %vm666, %v517, 0
        %853 = vmatprep.subr.mxu0 0.0
        %854 = vmatpush1.xpose.msra.mxu0 %v848
        %855 = vmatprep.subr.mxu0 0.0
        %856 = vmatpush1.xpose.msra.mxu0 %v851
        %857 = vmatprep.subr.mxu0 0.0
        %858 = vmatpush1.xpose.msra.mxu0 0.0
        %859 = vmatprep.subr.mxu0 0.0
        %860 = vmatpush1.xpose.msra.mxu0 0.0
        %861 = vmatprep.subr.mxu0 0.0
        %862 = vmatpush1.xpose.msra.mxu0 0.0
        %863 = vmatprep.subr.mxu0 0.0
        %864 = vmatpush1.xpose.msra.mxu0 0.0
        %865 = vmatprep.subr.mxu0 0.0
        %866 = vmatpush1.xpose.msra.mxu0 0.0
        %867 = vmatprep.subr.mxu0 0.0
        %868 = vmatpush1.xpose.msra.mxu0 0.0
        %869 = vmatprep.subr.mxu0 0.0
        %870 = vmatpush1.xpose.msra.mxu0 0.0
        %871 = vmatprep.subr.mxu0 0.0
        %872 = vmatpush1.xpose.msra.mxu0 0.0
        %873 = vmatprep.subr.mxu0 0.0
        %874 = vmatpush1.xpose.msra.mxu0 0.0
        %875 = vmatprep.subr.mxu0 0.0
        %876 = vmatpush1.xpose.msra.mxu0 0.0
        %877 = vmatprep.subr.mxu0 0.0
        %878 = vmatpush1.xpose.msra.mxu0 0.0
        %879 = vmatprep.subr.mxu0 0.0
        %880 = vmatpush1.xpose.msra.mxu0 0.0
        %881 = vmatprep.subr.mxu0 0.0
        %882 = vmatpush1.xpose.msra.mxu0 0.0
        %883 = vmatprep.subr.mxu0 0.0
        %884 = vmatpush1.xpose.msra.mxu0 0.0
        %885 = vmatprep.subr.mxu0 0.0
        %886 = vmatpush1.xpose.msra.mxu0 0.0
        %887 = vmatprep.subr.mxu0 0.0
        %888 = vmatpush1.xpose.msra.mxu0 0.0
        %889 = vmatprep.subr.mxu0 0.0
        %890 = vmatpush1.xpose.msra.mxu0 0.0
        %891 = vmatprep.subr.mxu0 0.0
        %892 = vmatpush1.xpose.msra.mxu0 0.0
        %893 = vmatprep.subr.mxu0 0.0
        %894 = vmatpush1.xpose.msra.mxu0 0.0
        %895 = vmatprep.subr.mxu0 0.0
        %896 = vmatpush1.xpose.msra.mxu0 0.0
        %897 = vmatprep.subr.mxu0 0.0
        %898 = vmatpush1.xpose.msra.mxu0 0.0
        %899 = vmatprep.subr.mxu0 0.0
        %900 = vmatpush1.xpose.msra.mxu0 0.0
        %901 = vmatprep.subr.mxu0 0.0
        %902 = vmatpush1.xpose.msra.mxu0 0.0
        %903 = vmatprep.subr.mxu0 0.0
        %904 = vmatpush1.xpose.msra.mxu0 0.0
        %905 = vmatprep.subr.mxu0 0.0
        %906 = vmatpush1.xpose.msra.mxu0 0.0
        %907 = vmatprep.subr.mxu0 0.0
        %908 = vmatpush1.xpose.msra.mxu0 0.0
        %909 = vmatprep.subr.mxu0 0.0
        %910 = vmatpush1.xpose.msra.mxu0 0.0
        %911 = vmatprep.subr.mxu0 0.0
        %912 = vmatpush1.xpose.msra.mxu0 0.0
        %913 = vmatprep.subr.mxu0 0.0
        %914 = vmatpush1.xpose.msra.mxu0 0.0
        %915 = vmatprep.subr.mxu0 0.0
        %916 = vmatpush1.xpose.msra.mxu0 0.0
        %917 = vmatprep.mubr.f32.mxu0 0.0
        %918 = vmatmul.mubr.f32.gmra.mrb[0].mxu0 %v842
        %v919 = vpop.f32.mrb[0].mxu0
        %v920 = vadd.f32 %v664, %v919
        %v921 = vpop.f32.mrb[0].mxu0
        %922 = vmatprep.mubr.f32.mxu0 0.0
        %923 = vmatmul.mubr.f32.gmra.mrb[0].mxu0 %v845
        %v924 = vpop.f32.mrb[0].mxu0
        %v925 = vadd.f32 %v665, %v924
        %v926 = vpop.f32.mrb[0].mxu0
        %927 = vdwg.mxu0
        %v929 = vsel %vm666, %v502, 0
        %v932 = vsel %vm666, %v503, 0
        %v935 = vsel %vm666, %v518, 0
        %v938 = vsel %vm666, %v519, 0
        %940 = vmatprep.subr.mxu0 0.0
        %941 = vmatpush1.xpose.msra.mxu0 %v935
        %942 = vmatprep.subr.mxu0 0.0
        %943 = vmatpush1.xpose.msra.mxu0 %v938
        %944 = vmatprep.subr.mxu0 0.0
        %945 = vmatpush1.xpose.msra.mxu0 0.0
        %946 = vmatprep.subr.mxu0 0.0
        %947 = vmatpush1.xpose.msra.mxu0 0.0
        %948 = vmatprep.subr.mxu0 0.0
        %949 = vmatpush1.xpose.msra.mxu0 0.0
        %950 = vmatprep.subr.mxu0 0.0
        %951 = vmatpush1.xpose.msra.mxu0 0.0
        %952 = vmatprep.subr.mxu0 0.0
        %953 = vmatpush1.xpose.msra.mxu0 0.0
        %954 = vmatprep.subr.mxu0 0.0
        %955 = vmatpush1.xpose.msra.mxu0 0.0
        %956 = vmatprep.subr.mxu0 0.0
        %957 = vmatpush1.xpose.msra.mxu0 0.0
        %958 = vmatprep.subr.mxu0 0.0
        %959 = vmatpush1.xpose.msra.mxu0 0.0
        %960 = vmatprep.subr.mxu0 0.0
        %961 = vmatpush1.xpose.msra.mxu0 0.0
        %962 = vmatprep.subr.mxu0 0.0
        %963 = vmatpush1.xpose.msra.mxu0 0.0
        %964 = vmatprep.subr.mxu0 0.0
        %965 = vmatpush1.xpose.msra.mxu0 0.0
        %966 = vmatprep.subr.mxu0 0.0
        %967 = vmatpush1.xpose.msra.mxu0 0.0
        %968 = vmatprep.subr.mxu0 0.0
        %969 = vmatpush1.xpose.msra.mxu0 0.0
        %970 = vmatprep.subr.mxu0 0.0
        %971 = vmatpush1.xpose.msra.mxu0 0.0
        %972 = vmatprep.subr.mxu0 0.0
        %973 = vmatpush1.xpose.msra.mxu0 0.0
        %974 = vmatprep.subr.mxu0 0.0
        %975 = vmatpush1.xpose.msra.mxu0 0.0
        %976 = vmatprep.subr.mxu0 0.0
        %977 = vmatpush1.xpose.msra.mxu0 0.0
        %978 = vmatprep.subr.mxu0 0.0
        %979 = vmatpush1.xpose.msra.mxu0 0.0
        %980 = vmatprep.subr.mxu0 0.0
        %981 = vmatpush1.xpose.msra.mxu0 0.0
        %982 = vmatprep.subr.mxu0 0.0
        %983 = vmatpush1.xpose.msra.mxu0 0.0
        %984 = vmatprep.subr.mxu0 0.0
        %985 = vmatpush1.xpose.msra.mxu0 0.0
        %986 = vmatprep.subr.mxu0 0.0
        %987 = vmatpush1.xpose.msra.mxu0 0.0
        %988 = vmatprep.subr.mxu0 0.0
        %989 = vmatpush1.xpose.msra.mxu0 0.0
        %990 = vmatprep.subr.mxu0 0.0
        %991 = vmatpush1.xpose.msra.mxu0 0.0
        %992 = vmatprep.subr.mxu0 0.0
        %993 = vmatpush1.xpose.msra.mxu0 0.0
        %994 = vmatprep.subr.mxu0 0.0
        %995 = vmatpush1.xpose.msra.mxu0 0.0
        %996 = vmatprep.subr.mxu0 0.0
        %997 = vmatpush1.xpose.msra.mxu0 0.0
        %998 = vmatprep.subr.mxu0 0.0
        %999 = vmatpush1.xpose.msra.mxu0 0.0
        %1000 = vmatprep.subr.mxu0 0.0
        %1001 = vmatpush1.xpose.msra.mxu0 0.0
        %1002 = vmatprep.subr.mxu0 0.0
        %1003 = vmatpush1.xpose.msra.mxu0 0.0
        %1004 = vmatprep.mubr.f32.mxu0 0.0
        %1005 = vmatmul.mubr.f32.gmra.mrb[0].mxu0 %v929
        %v1006 = vpop.f32.mrb[0].mxu0
        %v1007 = vadd.f32 %v664, %v1006
        %v1008 = vpop.f32.mrb[0].mxu0
        %1009 = vmatprep.mubr.f32.mxu0 0.0
        %1010 = vmatmul.mubr.f32.gmra.mrb[0].mxu0 %v932
        %v1011 = vpop.f32.mrb[0].mxu0
        %v1012 = vadd.f32 %v665, %v1011
        %v1013 = vpop.f32.mrb[0].mxu0
        %1014 = vdwg.mxu0
        %v1016 = vsel %vm666, %v504, 0
        %v1019 = vsel %vm666, %v505, 0
        %v1022 = vsel %vm666, %v520, 0
        %v1025 = vsel %vm666, %v521, 0
        %1027 = vmatprep.subr.mxu0 0.0
        %1028 = vmatpush1.xpose.msra.mxu0 %v1022
        %1029 = vmatprep.subr.mxu0 0.0
        %1030 = vmatpush1.xpose.msra.mxu0 %v1025
        %1031 = vmatprep.subr.mxu0 0.0
        %1032 = vmatpush1.xpose.msra.mxu0 0.0
        %1033 = vmatprep.subr.mxu0 0.0
        %1034 = vmatpush1.xpose.msra.mxu0 0.0
        %1035 = vmatprep.subr.mxu0 0.0
        %1036 = vmatpush1.xpose.msra.mxu0 0.0
        %1037 = vmatprep.subr.mxu0 0.0
        %1038 = vmatpush1.xpose.msra.mxu0 0.0
        %1039 = vmatprep.subr.mxu0 0.0
        %1040 = vmatpush1.xpose.msra.mxu0 0.0
        %1041 = vmatprep.subr.mxu0 0.0
        %1042 = vmatpush1.xpose.msra.mxu0 0.0
        %1043 = vmatprep.subr.mxu0 0.0
        %1044 = vmatpush1.xpose.msra.mxu0 0.0
        %1045 = vmatprep.subr.mxu0 0.0
        %1046 = vmatpush1.xpose.msra.mxu0 0.0
        %1047 = vmatprep.subr.mxu0 0.0
        %1048 = vmatpush1.xpose.msra.mxu0 0.0
        %1049 = vmatprep.subr.mxu0 0.0
        %1050 = vmatpush1.xpose.msra.mxu0 0.0
        %1051 = vmatprep.subr.mxu0 0.0
        %1052 = vmatpush1.xpose.msra.mxu0 0.0
        %1053 = vmatprep.subr.mxu0 0.0
        %1054 = vmatpush1.xpose.msra.mxu0 0.0
        %1055 = vmatprep.subr.mxu0 0.0
        %1056 = vmatpush1.xpose.msra.mxu0 0.0
        %1057 = vmatprep.subr.mxu0 0.0
        %1058 = vmatpush1.xpose.msra.mxu0 0.0
        %1059 = vmatprep.subr.mxu0 0.0
        %1060 = vmatpush1.xpose.msra.mxu0 0.0
        %1061 = vmatprep.subr.mxu0 0.0
        %1062 = vmatpush1.xpose.msra.mxu0 0.0
        %1063 = vmatprep.subr.mxu0 0.0
        %1064 = vmatpush1.xpose.msra.mxu0 0.0
        %1065 = vmatprep.subr.mxu0 0.0
        %1066 = vmatpush1.xpose.msra.mxu0 0.0
        %1067 = vmatprep.subr.mxu0 0.0
        %1068 = vmatpush1.xpose.msra.mxu0 0.0
        %1069 = vmatprep.subr.mxu0 0.0
        %1070 = vmatpush1.xpose.msra.mxu0 0.0
        %1071 = vmatprep.subr.mxu0 0.0
        %1072 = vmatpush1.xpose.msra.mxu0 0.0
        %1073 = vmatprep.subr.mxu0 0.0
        %1074 = vmatpush1.xpose.msra.mxu0 0.0
        %1075 = vmatprep.subr.mxu0 0.0
        %1076 = vmatpush1.xpose.msra.mxu0 0.0
        %1077 = vmatprep.subr.mxu0 0.0
        %1078 = vmatpush1.xpose.msra.mxu0 0.0
        %1079 = vmatprep.subr.mxu0 0.0
        %1080 = vmatpush1.xpose.msra.mxu0 0.0
        %1081 = vmatprep.subr.mxu0 0.0
        %1082 = vmatpush1.xpose.msra.mxu0 0.0
        %1083 = vmatprep.subr.mxu0 0.0
        %1084 = vmatpush1.xpose.msra.mxu0 0.0
        %1085 = vmatprep.subr.mxu0 0.0
        %1086 = vmatpush1.xpose.msra.mxu0 0.0
        %1087 = vmatprep.subr.mxu0 0.0
        %1088 = vmatpush1.xpose.msra.mxu0 0.0
        %1089 = vmatprep.subr.mxu0 0.0
        %1090 = vmatpush1.xpose.msra.mxu0 0.0
        %1091 = vmatprep.mubr.f32.mxu0 0.0
        %1092 = vmatmul.mubr.f32.gmra.mrb[0].mxu0 %v1016
        %v1093 = vpop.f32.mrb[0].mxu0
        %v1094 = vadd.f32 %v664, %v1093
        %v1095 = vpop.f32.mrb[0].mxu0
        %1096 = vmatprep.mubr.f32.mxu0 0.0
        %1097 = vmatmul.mubr.f32.gmra.mrb[0].mxu0 %v1019
        %v1098 = vpop.f32.mrb[0].mxu0
        %v1099 = vadd.f32 %v665, %v1098
        %v1100 = vpop.f32.mrb[0].mxu0
        %1101 = vdwg.mxu0
        %v1103 = vsel %vm666, %v506, 0
        %v1106 = vsel %vm666, %v507, 0
        %v1109 = vsel %vm666, %v522, 0
        %v1112 = vsel %vm666, %v523, 0
        %1114 = vmatprep.subr.mxu0 0.0
        %1115 = vmatpush1.xpose.msra.mxu0 %v1109
        %1116 = vmatprep.subr.mxu0 0.0
        %1117 = vmatpush1.xpose.msra.mxu0 %v1112
        %1118 = vmatprep.subr.mxu0 0.0
        %1119 = vmatpush1.xpose.msra.mxu0 0.0
        %1120 = vmatprep.subr.mxu0 0.0
        %1121 = vmatpush1.xpose.msra.mxu0 0.0
        %1122 = vmatprep.subr.mxu0 0.0
        %1123 = vmatpush1.xpose.msra.mxu0 0.0
        %1124 = vmatprep.subr.mxu0 0.0
        %1125 = vmatpush1.xpose.msra.mxu0 0.0
        %1126 = vmatprep.subr.mxu0 0.0
        %1127 = vmatpush1.xpose.msra.mxu0 0.0
        %1128 = vmatprep.subr.mxu0 0.0
        %1129 = vmatpush1.xpose.msra.mxu0 0.0
        %1130 = vmatprep.subr.mxu0 0.0
        %1131 = vmatpush1.xpose.msra.mxu0 0.0
        %1132 = vmatprep.subr.mxu0 0.0
        %1133 = vmatpush1.xpose.msra.mxu0 0.0
        %1134 = vmatprep.subr.mxu0 0.0
        %1135 = vmatpush1.xpose.msra.mxu0 0.0
        %1136 = vmatprep.subr.mxu0 0.0
        %1137 = vmatpush1.xpose.msra.mxu0 0.0
        %1138 = vmatprep.subr.mxu0 0.0
        %1139 = vmatpush1.xpose.msra.mxu0 0.0
        %1140 = vmatprep.subr.mxu0 0.0
        %1141 = vmatpush1.xpose.msra.mxu0 0.0
        %1142 = vmatprep.subr.mxu0 0.0
        %1143 = vmatpush1.xpose.msra.mxu0 0.0
        %1144 = vmatprep.subr.mxu0 0.0
        %1145 = vmatpush1.xpose.msra.mxu0 0.0
        %1146 = vmatprep.subr.mxu0 0.0
        %1147 = vmatpush1.xpose.msra.mxu0 0.0
        %1148 = vmatprep.subr.mxu0 0.0
        %1149 = vmatpush1.xpose.msra.mxu0 0.0
        %1150 = vmatprep.subr.mxu0 0.0
        %1151 = vmatpush1.xpose.msra.mxu0 0.0
        %1152 = vmatprep.subr.mxu0 0.0
        %1153 = vmatpush1.xpose.msra.mxu0 0.0
        %1154 = vmatprep.subr.mxu0 0.0
        %1155 = vmatpush1.xpose.msra.mxu0 0.0
        %1156 = vmatprep.subr.mxu0 0.0
        %1157 = vmatpush1.xpose.msra.mxu0 0.0
        %1158 = vmatprep.subr.mxu0 0.0
        %1159 = vmatpush1.xpose.msra.mxu0 0.0
        %1160 = vmatprep.subr.mxu0 0.0
        %1161 = vmatpush1.xpose.msra.mxu0 0.0
        %1162 = vmatprep.subr.mxu0 0.0
        %1163 = vmatpush1.xpose.msra.mxu0 0.0
        %1164 = vmatprep.subr.mxu0 0.0
        %1165 = vmatpush1.xpose.msra.mxu0 0.0
        %1166 = vmatprep.subr.mxu0 0.0
        %1167 = vmatpush1.xpose.msra.mxu0 0.0
        %1168 = vmatprep.subr.mxu0 0.0
        %1169 = vmatpush1.xpose.msra.mxu0 0.0
        %1170 = vmatprep.subr.mxu0 0.0
        %1171 = vmatpush1.xpose.msra.mxu0 0.0
        %1172 = vmatprep.subr.mxu0 0.0
        %1173 = vmatpush1.xpose.msra.mxu0 0.0
        %1174 = vmatprep.subr.mxu0 0.0
        %1175 = vmatpush1.xpose.msra.mxu0 0.0
        %1176 = vmatprep.subr.mxu0 0.0
        %1177 = vmatpush1.xpose.msra.mxu0 0.0
        %1178 = vmatprep.mubr.f32.mxu0 0.0
        %1179 = vmatmul.mubr.f32.gmra.mrb[0].mxu0 %v1103
        %v1180 = vpop.f32.mrb[0].mxu0
        %v1181 = vadd.f32 %v664, %v1180
        %v1182 = vpop.f32.mrb[0].mxu0
        %1183 = vmatprep.mubr.f32.mxu0 0.0
        %1184 = vmatmul.mubr.f32.gmra.mrb[0].mxu0 %v1106
        %v1185 = vpop.f32.mrb[0].mxu0
        %v1186 = vadd.f32 %v665, %v1185
        %v1187 = vpop.f32.mrb[0].mxu0
        %1188 = vdwg.mxu0
        %v1190 = vsel %vm666, %v508, 0
        %v1193 = vsel %vm666, %v509, 0
        %v1196 = vsel %vm666, %v524, 0
        %v1199 = vsel %vm666, %v525, 0
        %1201 = vmatprep.subr.mxu0 0.0
        %1202 = vmatpush1.xpose.msra.mxu0 %v1196
        %1203 = vmatprep.subr.mxu0 0.0
        %1204 = vmatpush1.xpose.msra.mxu0 %v1199
        %1205 = vmatprep.subr.mxu0 0.0
        %1206 = vmatpush1.xpose.msra.mxu0 0.0
        %1207 = vmatprep.subr.mxu0 0.0
        %1208 = vmatpush1.xpose.msra.mxu0 0.0
        %1209 = vmatprep.subr.mxu0 0.0
        %1210 = vmatpush1.xpose.msra.mxu0 0.0
        %1211 = vmatprep.subr.mxu0 0.0
        %1212 = vmatpush1.xpose.msra.mxu0 0.0
        %1213 = vmatprep.subr.mxu0 0.0
        %1214 = vmatpush1.xpose.msra.mxu0 0.0
        %1215 = vmatprep.subr.mxu0 0.0
        %1216 = vmatpush1.xpose.msra.mxu0 0.0
        %1217 = vmatprep.subr.mxu0 0.0
        %1218 = vmatpush1.xpose.msra.mxu0 0.0
        %1219 = vmatprep.subr.mxu0 0.0
        %1220 = vmatpush1.xpose.msra.mxu0 0.0
        %1221 = vmatprep.subr.mxu0 0.0
        %1222 = vmatpush1.xpose.msra.mxu0 0.0
        %1223 = vmatprep.subr.mxu0 0.0
        %1224 = vmatpush1.xpose.msra.mxu0 0.0
        %1225 = vmatprep.subr.mxu0 0.0
        %1226 = vmatpush1.xpose.msra.mxu0 0.0
        %1227 = vmatprep.subr.mxu0 0.0
        %1228 = vmatpush1.xpose.msra.mxu0 0.0
        %1229 = vmatprep.subr.mxu0 0.0
        %1230 = vmatpush1.xpose.msra.mxu0 0.0
        %1231 = vmatprep.subr.mxu0 0.0
        %1232 = vmatpush1.xpose.msra.mxu0 0.0
        %1233 = vmatprep.subr.mxu0 0.0
        %1234 = vmatpush1.xpose.msra.mxu0 0.0
        %1235 = vmatprep.subr.mxu0 0.0
        %1236 = vmatpush1.xpose.msra.mxu0 0.0
        %1237 = vmatprep.subr.mxu0 0.0
        %1238 = vmatpush1.xpose.msra.mxu0 0.0
        %1239 = vmatprep.subr.mxu0 0.0
        %1240 = vmatpush1.xpose.msra.mxu0 0.0
        %1241 = vmatprep.subr.mxu0 0.0
        %1242 = vmatpush1.xpose.msra.mxu0 0.0
        %1243 = vmatprep.subr.mxu0 0.0
        %1244 = vmatpush1.xpose.msra.mxu0 0.0
        %1245 = vmatprep.subr.mxu0 0.0
        %1246 = vmatpush1.xpose.msra.mxu0 0.0
        %1247 = vmatprep.subr.mxu0 0.0
        %1248 = vmatpush1.xpose.msra.mxu0 0.0
        %1249 = vmatprep.subr.mxu0 0.0
        %1250 = vmatpush1.xpose.msra.mxu0 0.0
        %1251 = vmatprep.subr.mxu0 0.0
        %1252 = vmatpush1.xpose.msra.mxu0 0.0
        %1253 = vmatprep.subr.mxu0 0.0
        %1254 = vmatpush1.xpose.msra.mxu0 0.0
        %1255 = vmatprep.subr.mxu0 0.0
        %1256 = vmatpush1.xpose.msra.mxu0 0.0
        %1257 = vmatprep.subr.mxu0 0.0
        %1258 = vmatpush1.xpose.msra.mxu0 0.0
        %1259 = vmatprep.subr.mxu0 0.0
        %1260 = vmatpush1.xpose.msra.mxu0 0.0
        %1261 = vmatprep.subr.mxu0 0.0
        %1262 = vmatpush1.xpose.msra.mxu0 0.0
        %1263 = vmatprep.subr.mxu0 0.0
        %1264 = vmatpush1.xpose.msra.mxu0 0.0
        %1265 = vmatprep.mubr.f32.mxu0 0.0
        %1266 = vmatmul.mubr.f32.gmra.mrb[0].mxu0 %v1190
        %v1267 = vpop.f32.mrb[0].mxu0
        %v1268 = vadd.f32 %v664, %v1267
        %v1269 = vpop.f32.mrb[0].mxu0
        %1270 = vmatprep.mubr.f32.mxu0 0.0
        %1271 = vmatmul.mubr.f32.gmra.mrb[0].mxu0 %v1193
        %v1272 = vpop.f32.mrb[0].mxu0
        %v1273 = vadd.f32 %v665, %v1272
        %v1274 = vpop.f32.mrb[0].mxu0
        %1275 = vdwg.mxu0
        %v1277 = vsel %vm666, %v510, 0
        %v1280 = vsel %vm666, %v511, 0
        %v1283 = vsel %vm666, %v526, 0
        %v1286 = vsel %vm666, %v527, 0
        %1288 = vmatprep.subr.mxu0 0.0
        %1289 = vmatpush1.xpose.msra.mxu0 %v1283
        %1290 = vmatprep.subr.mxu0 0.0
        %1291 = vmatpush1.xpose.msra.mxu0 %v1286
        %1292 = vmatprep.subr.mxu0 0.0
        %1293 = vmatpush1.xpose.msra.mxu0 0.0
        %1294 = vmatprep.subr.mxu0 0.0
        %1295 = vmatpush1.xpose.msra.mxu0 0.0
        %1296 = vmatprep.subr.mxu0 0.0
        %1297 = vmatpush1.xpose.msra.mxu0 0.0
        %1298 = vmatprep.subr.mxu0 0.0
        %1299 = vmatpush1.xpose.msra.mxu0 0.0
        %1300 = vmatprep.subr.mxu0 0.0
        %1301 = vmatpush1.xpose.msra.mxu0 0.0
        %1302 = vmatprep.subr.mxu0 0.0
        %1303 = vmatpush1.xpose.msra.mxu0 0.0
        %1304 = vmatprep.subr.mxu0 0.0
        %1305 = vmatpush1.xpose.msra.mxu0 0.0
        %1306 = vmatprep.subr.mxu0 0.0
        %1307 = vmatpush1.xpose.msra.mxu0 0.0
        %1308 = vmatprep.subr.mxu0 0.0
        %1309 = vmatpush1.xpose.msra.mxu0 0.0
        %1310 = vmatprep.subr.mxu0 0.0
        %1311 = vmatpush1.xpose.msra.mxu0 0.0
        %1312 = vmatprep.subr.mxu0 0.0
        %1313 = vmatpush1.xpose.msra.mxu0 0.0
        %1314 = vmatprep.subr.mxu0 0.0
        %1315 = vmatpush1.xpose.msra.mxu0 0.0
        %1316 = vmatprep.subr.mxu0 0.0
        %1317 = vmatpush1.xpose.msra.mxu0 0.0
        %1318 = vmatprep.subr.mxu0 0.0
        %1319 = vmatpush1.xpose.msra.mxu0 0.0
        %1320 = vmatprep.subr.mxu0 0.0
        %1321 = vmatpush1.xpose.msra.mxu0 0.0
        %1322 = vmatprep.subr.mxu0 0.0
        %1323 = vmatpush1.xpose.msra.mxu0 0.0
        %1324 = vmatprep.subr.mxu0 0.0
        %1325 = vmatpush1.xpose.msra.mxu0 0.0
        %1326 = vmatprep.subr.mxu0 0.0
        %1327 = vmatpush1.xpose.msra.mxu0 0.0
        %1328 = vmatprep.subr.mxu0 0.0
        %1329 = vmatpush1.xpose.msra.mxu0 0.0
        %1330 = vmatprep.subr.mxu0 0.0
        %1331 = vmatpush1.xpose.msra.mxu0 0.0
        %1332 = vmatprep.subr.mxu0 0.0
        %1333 = vmatpush1.xpose.msra.mxu0 0.0
        %1334 = vmatprep.subr.mxu0 0.0
        %1335 = vmatpush1.xpose.msra.mxu0 0.0
        %1336 = vmatprep.subr.mxu0 0.0
        %1337 = vmatpush1.xpose.msra.mxu0 0.0
        %1338 = vmatprep.subr.mxu0 0.0
        %1339 = vmatpush1.xpose.msra.mxu0 0.0
        %1340 = vmatprep.subr.mxu0 0.0
        %1341 = vmatpush1.xpose.msra.mxu0 0.0
        %1342 = vmatprep.subr.mxu0 0.0
        %1343 = vmatpush1.xpose.msra.mxu0 0.0
        %1344 = vmatprep.subr.mxu0 0.0
        %1345 = vmatpush1.xpose.msra.mxu0 0.0
        %1346 = vmatprep.subr.mxu0 0.0
        %1347 = vmatpush1.xpose.msra.mxu0 0.0
        %1348 = vmatprep.subr.mxu0 0.0
        %1349 = vmatpush1.xpose.msra.mxu0 0.0
        %1350 = vmatprep.subr.mxu0 0.0
        %1351 = vmatpush1.xpose.msra.mxu0 0.0
        %1352 = vmatprep.mubr.f32.mxu0 0.0
        %1353 = vmatmul.mubr.f32.gmra.mrb[0].mxu0 %v1277
        %v1354 = vpop.f32.mrb[0].mxu0
        %v1355 = vadd.f32 %v664, %v1354
        %v1356 = vpop.f32.mrb[0].mxu0
        %1357 = vmatprep.mubr.f32.mxu0 0.0
        %1358 = vmatmul.mubr.f32.gmra.mrb[0].mxu0 %v1280
        %v1359 = vpop.f32.mrb[0].mxu0
        %v1360 = vadd.f32 %v665, %v1359
        %v1361 = vpop.f32.mrb[0].mxu0
        %1362 = vdwg.mxu0
        %v1371 = vlaneseq
        %v1372 = vshrl.u32 %v1371, 7
        %v1373 = vsub.s32 0, %v1372
        %v1374 = vrot.slane %v544, %v1373
        %v1375 = vlaneseq
        %v1376 = vshrl.u32 %v1375, 7
        %v1377 = vsub.s32 0, %v1376
        %v1378 = vrot.slane %v545, %v1377
        %v1379 = vlaneseq
        %v1380 = vshrl.u32 %v1379, 7
        %v1381 = vsub.s32 0, %v1380
        %v1382 = vrot.slane %v546, %v1381
        %v1383 = vlaneseq
        %v1384 = vshrl.u32 %v1383, 7
        %v1385 = vsub.s32 0, %v1384
        %v1386 = vrot.slane %v547, %v1385
        %v1387 = vlaneseq
        %v1388 = vshrl.u32 %v1387, 7
        %v1389 = vsub.s32 0, %v1388
        %v1390 = vrot.slane %v548, %v1389
        %v1391 = vlaneseq
        %v1392 = vshrl.u32 %v1391, 7
        %v1393 = vsub.s32 0, %v1392
        %v1394 = vrot.slane %v549, %v1393
        %v1395 = vlaneseq
        %v1396 = vshrl.u32 %v1395, 7
        %v1397 = vsub.s32 0, %v1396
        %v1398 = vrot.slane %v550, %v1397
        %v1399 = vlaneseq
        %v1400 = vshrl.u32 %v1399, 7
        %v1401 = vsub.s32 0, %v1400
        %v1402 = vrot.slane %v551, %v1401
        %v1411 = vadd.f32 %v746, %v1374
        %v1412 = vadd.f32 %v751, %v1374
        %v1413 = vadd.f32 %v833, %v1378
        %v1414 = vadd.f32 %v838, %v1378
        %v1415 = vadd.f32 %v920, %v1382
        %v1416 = vadd.f32 %v925, %v1382
        %v1417 = vadd.f32 %v1007, %v1386
        %v1418 = vadd.f32 %v1012, %v1386
        %v1419 = vadd.f32 %v1094, %v1390
        %v1420 = vadd.f32 %v1099, %v1390
        %v1421 = vadd.f32 %v1181, %v1394
        %v1422 = vadd.f32 %v1186, %v1394
        %v1423 = vadd.f32 %v1268, %v1398
        %v1424 = vadd.f32 %v1273, %v1398
        %v1425 = vadd.f32 %v1355, %v1402
        %v1426 = vadd.f32 %v1360, %v1402
        %vm1427 = vcmask 130048
        %v1428 = vsel %vm1427, %v1411, -inf
        %1429 = vmax.xlane.f32.xlu0 %v1428
        %v1430 = vpop.xlane.xlu0 %1429
        %v1431 = vsel %vm1427, %v1412, -inf
        %1432 = vmax.xlane.f32.xlu0 %v1431
        %v1433 = vpop.xlane.xlu0 %1432
        %v1434 = vsel %vm1427, %v1413, -inf
        %1435 = vmax.xlane.f32.xlu0 %v1434
        %v1436 = vpop.xlane.xlu0 %1435
        %v1437 = vsel %vm1427, %v1414, -inf
        %1438 = vmax.xlane.f32.xlu0 %v1437
        %v1439 = vpop.xlane.xlu0 %1438
        %v1440 = vsel %vm1427, %v1415, -inf
        %1441 = vmax.xlane.f32.xlu0 %v1440
        %v1442 = vpop.xlane.xlu0 %1441
        %v1443 = vsel %vm1427, %v1416, -inf
        %1444 = vmax.xlane.f32.xlu0 %v1443
        %v1445 = vpop.xlane.xlu0 %1444
        %v1446 = vsel %vm1427, %v1417, -inf
        %1447 = vmax.xlane.f32.xlu0 %v1446
        %v1448 = vpop.xlane.xlu0 %1447
        %v1449 = vsel %vm1427, %v1418, -inf
        %1450 = vmax.xlane.f32.xlu0 %v1449
        %v1451 = vpop.xlane.xlu0 %1450
        %v1452 = vsel %vm1427, %v1419, -inf
        %1453 = vmax.xlane.f32.xlu0 %v1452
        %v1454 = vpop.xlane.xlu0 %1453
        %v1455 = vsel %vm1427, %v1420, -inf
        %1456 = vmax.xlane.f32.xlu0 %v1455
        %v1457 = vpop.xlane.xlu0 %1456
        %v1458 = vsel %vm1427, %v1421, -inf
        %1459 = vmax.xlane.f32.xlu0 %v1458
        %v1460 = vpop.xlane.xlu0 %1459
        %v1461 = vsel %vm1427, %v1422, -inf
        %1462 = vmax.xlane.f32.xlu0 %v1461
        %v1463 = vpop.xlane.xlu0 %1462
        %v1464 = vsel %vm1427, %v1423, -inf
        %1465 = vmax.xlane.f32.xlu0 %v1464
        %v1466 = vpop.xlane.xlu0 %1465
        %v1467 = vsel %vm1427, %v1424, -inf
        %1468 = vmax.xlane.f32.xlu0 %v1467
        %v1469 = vpop.xlane.xlu0 %1468
        %v1470 = vsel %vm1427, %v1425, -inf
        %1471 = vmax.xlane.f32.xlu0 %v1470
        %v1472 = vpop.xlane.xlu0 %1471
        %v1473 = vsel %vm1427, %v1426, -inf
        %1474 = vmax.xlane.f32.xlu0 %v1473
        %v1475 = vpop.xlane.xlu0 %1474
        %v1476 = vsub.f32 %v1411, %v1430
        %v1477 = vsub.f32 %v1412, %v1433
        %v1478 = vsub.f32 %v1413, %v1436
        %v1479 = vsub.f32 %v1414, %v1439
        %v1480 = vsub.f32 %v1415, %v1442
        %v1481 = vsub.f32 %v1416, %v1445
        %v1482 = vsub.f32 %v1417, %v1448
        %v1483 = vsub.f32 %v1418, %v1451
        %v1484 = vsub.f32 %v1419, %v1454
        %v1485 = vsub.f32 %v1420, %v1457
        %v1486 = vsub.f32 %v1421, %v1460
        %v1487 = vsub.f32 %v1422, %v1463
        %v1488 = vsub.f32 %v1423, %v1466
        %v1489 = vsub.f32 %v1424, %v1469
        %v1490 = vsub.f32 %v1425, %v1472
        %v1491 = vsub.f32 %v1426, %v1475
        %v1492 = vmul.f32 %v1476, 1.442695
        %v1493 = vpow.pop %v1492
        %v1494 = vmul.f32 %v1477, 1.442695
        %v1495 = vpow.pop %v1494
        %v1496 = vmul.f32 %v1478, 1.442695
        %v1497 = vpow.pop %v1496
        %v1498 = vmul.f32 %v1479, 1.442695
        %v1499 = vpow.pop %v1498
        %v1500 = vmul.f32 %v1480, 1.442695
        %v1501 = vpow.pop %v1500
        %v1502 = vmul.f32 %v1481, 1.442695
        %v1503 = vpow.pop %v1502
        %v1504 = vmul.f32 %v1482, 1.442695
        %v1505 = vpow.pop %v1504
        %v1506 = vmul.f32 %v1483, 1.442695
        %v1507 = vpow.pop %v1506
        %v1508 = vmul.f32 %v1484, 1.442695
        %v1509 = vpow.pop %v1508
        %v1510 = vmul.f32 %v1485, 1.442695
        %v1511 = vpow.pop %v1510
        %v1512 = vmul.f32 %v1486, 1.442695
        %v1513 = vpow.pop %v1512
        %v1514 = vmul.f32 %v1487, 1.442695
        %v1515 = vpow.pop %v1514
        %v1516 = vmul.f32 %v1488, 1.442695
        %v1517 = vpow.pop %v1516
        %v1518 = vmul.f32 %v1489, 1.442695
        %v1519 = vpow.pop %v1518
        %v1520 = vmul.f32 %v1490, 1.442695
        %v1521 = vpow.pop %v1520
        %v1522 = vmul.f32 %v1491, 1.442695
        %v1523 = vpow.pop %v1522
        %v1524 = vsel %vm1427, %v1493, 0.0
        %1525 = vadd.xlane.f32.xlu0 %v1524
        %v1526 = vpop.xlane.xlu0 %1525
        %v1527 = vsel %vm1427, %v1495, 0.0
        %1528 = vadd.xlane.f32.xlu0 %v1527
        %v1529 = vpop.xlane.xlu0 %1528
        %v1530 = vsel %vm1427, %v1497, 0.0
        %1531 = vadd.xlane.f32.xlu0 %v1530
        %v1532 = vpop.xlane.xlu0 %1531
        %v1533 = vsel %vm1427, %v1499, 0.0
        %1534 = vadd.xlane.f32.xlu0 %v1533
        %v1535 = vpop.xlane.xlu0 %1534
        %v1536 = vsel %vm1427, %v1501, 0.0
        %1537 = vadd.xlane.f32.xlu0 %v1536
        %v1538 = vpop.xlane.xlu0 %1537
        %v1539 = vsel %vm1427, %v1503, 0.0
        %1540 = vadd.xlane.f32.xlu0 %v1539
        %v1541 = vpop.xlane.xlu0 %1540
        %v1542 = vsel %vm1427, %v1505, 0.0
        %1543 = vadd.xlane.f32.xlu0 %v1542
        %v1544 = vpop.xlane.xlu0 %1543
        %v1545 = vsel %vm1427, %v1507, 0.0
        %1546 = vadd.xlane.f32.xlu0 %v1545
        %v1547 = vpop.xlane.xlu0 %1546
        %v1548 = vsel %vm1427, %v1509, 0.0
        %1549 = vadd.xlane.f32.xlu0 %v1548
        %v1550 = vpop.xlane.xlu0 %1549
        %v1551 = vsel %vm1427, %v1511, 0.0
        %1552 = vadd.xlane.f32.xlu0 %v1551
        %v1553 = vpop.xlane.xlu0 %1552
        %v1554 = vsel %vm1427, %v1513, 0.0
        %1555 = vadd.xlane.f32.xlu0 %v1554
        %v1556 = vpop.xlane.xlu0 %1555
        %v1557 = vsel %vm1427, %v1515, 0.0
        %1558 = vadd.xlane.f32.xlu0 %v1557
        %v1559 = vpop.xlane.xlu0 %1558
        %v1560 = vsel %vm1427, %v1517, 0.0
        %1561 = vadd.xlane.f32.xlu0 %v1560
        %v1562 = vpop.xlane.xlu0 %1561
        %v1563 = vsel %vm1427, %v1519, 0.0
        %1564 = vadd.xlane.f32.xlu0 %v1563
        %v1565 = vpop.xlane.xlu0 %1564
        %v1566 = vsel %vm1427, %v1521, 0.0
        %1567 = vadd.xlane.f32.xlu0 %v1566
        %v1568 = vpop.xlane.xlu0 %1567
        %v1569 = vsel %vm1427, %v1523, 0.0
        %1570 = vadd.xlane.f32.xlu0 %v1569
        %v1571 = vpop.xlane.xlu0 %1570
        %v1573 = vsel %vm1427, %v1493, 0
        %v1576 = vsel %vm1427, %v1495, 0
        %1578 = vmatprep.subr.mxu0 0.0
        %1579 = vmatpush1.msra.mxu0 %v528
        %1580 = vmatprep.subr.mxu0 0.0
        %1581 = vmatpush1.msra.mxu0 %v529
        %1582 = vmatprep.subr.mxu0 0.0
        %1583 = vmatpush1.msra.mxu0 0.0
        %1584 = vmatprep.subr.mxu0 0.0
        %1585 = vmatpush1.msra.mxu0 0.0
        %1586 = vmatprep.subr.mxu0 0.0
        %1587 = vmatpush1.msra.mxu0 0.0
        %1588 = vmatprep.subr.mxu0 0.0
        %1589 = vmatpush1.msra.mxu0 0.0
        %1590 = vmatprep.subr.mxu0 0.0
        %1591 = vmatpush1.msra.mxu0 0.0
        %1592 = vmatprep.subr.mxu0 0.0
        %1593 = vmatpush1.msra.mxu0 0.0
        %1594 = vmatprep.subr.mxu0 0.0
        %1595 = vmatpush1.msra.mxu0 0.0
        %1596 = vmatprep.subr.mxu0 0.0
        %1597 = vmatpush1.msra.mxu0 0.0
        %1598 = vmatprep.subr.mxu0 0.0
        %1599 = vmatpush1.msra.mxu0 0.0
        %1600 = vmatprep.subr.mxu0 0.0
        %1601 = vmatpush1.msra.mxu0 0.0
        %1602 = vmatprep.subr.mxu0 0.0
        %1603 = vmatpush1.msra.mxu0 0.0
        %1604 = vmatprep.subr.mxu0 0.0
        %1605 = vmatpush1.msra.mxu0 0.0
        %1606 = vmatprep.subr.mxu0 0.0
        %1607 = vmatpush1.msra.mxu0 0.0
        %1608 = vmatprep.subr.mxu0 0.0
        %1609 = vmatpush1.msra.mxu0 0.0
        %1610 = vmatprep.subr.mxu0 0.0
        %1611 = vmatpush1.msra.mxu0 0.0
        %1612 = vmatprep.subr.mxu0 0.0
        %1613 = vmatpush1.msra.mxu0 0.0
        %1614 = vmatprep.subr.mxu0 0.0
        %1615 = vmatpush1.msra.mxu0 0.0
        %1616 = vmatprep.subr.mxu0 0.0
        %1617 = vmatpush1.msra.mxu0 0.0
        %1618 = vmatprep.subr.mxu0 0.0
        %1619 = vmatpush1.msra.mxu0 0.0
        %1620 = vmatprep.subr.mxu0 0.0
        %1621 = vmatpush1.msra.mxu0 0.0
        %1622 = vmatprep.subr.mxu0 0.0
        %1623 = vmatpush1.msra.mxu0 0.0
        %1624 = vmatprep.subr.mxu0 0.0
        %1625 = vmatpush1.msra.mxu0 0.0
        %1626 = vmatprep.subr.mxu0 0.0
        %1627 = vmatpush1.msra.mxu0 0.0
        %1628 = vmatprep.subr.mxu0 0.0
        %1629 = vmatpush1.msra.mxu0 0.0
        %1630 = vmatprep.subr.mxu0 0.0
        %1631 = vmatpush1.msra.mxu0 0.0
        %1632 = vmatprep.subr.mxu0 0.0
        %1633 = vmatpush1.msra.mxu0 0.0
        %1634 = vmatprep.subr.mxu0 0.0
        %1635 = vmatpush1.msra.mxu0 0.0
        %1636 = vmatprep.subr.mxu0 0.0
        %1637 = vmatpush1.msra.mxu0 0.0
        %1638 = vmatprep.subr.mxu0 0.0
        %1639 = vmatpush1.msra.mxu0 0.0
        %1640 = vmatprep.subr.mxu0 0.0
        %1641 = vmatpush1.msra.mxu0 0.0
        %1642 = vmatprep.mubr.f32.mxu0 0.0
        %1643 = vmatmul.mubr.f32.gmra.mrb[0].mxu0 %v1573
        %v1644 = vpop.f32.mrb[0].mxu0
        %v1645 = vadd.f32 0.0, %v1644
        %v1646 = vpop.f32.mrb[0].mxu0
        %1647 = vmatprep.mubr.f32.mxu0 0.0
        %1648 = vmatmul.mubr.f32.gmra.mrb[0].mxu0 %v1576
        %v1649 = vpop.f32.mrb[0].mxu0
        %v1650 = vadd.f32 0.0, %v1649
        %v1651 = vpop.f32.mrb[0].mxu0
        %1652 = vdwg.mxu0
        %v1654 = vsel %vm1427, %v1497, 0
        %v1657 = vsel %vm1427, %v1499, 0
        %1659 = vmatprep.subr.mxu0 0.0
        %1660 = vmatpush1.msra.mxu0 %v530
        %1661 = vmatprep.subr.mxu0 0.0
        %1662 = vmatpush1.msra.mxu0 %v531
        %1663 = vmatprep.subr.mxu0 0.0
        %1664 = vmatpush1.msra.mxu0 0.0
        %1665 = vmatprep.subr.mxu0 0.0
        %1666 = vmatpush1.msra.mxu0 0.0
        %1667 = vmatprep.subr.mxu0 0.0
        %1668 = vmatpush1.msra.mxu0 0.0
        %1669 = vmatprep.subr.mxu0 0.0
        %1670 = vmatpush1.msra.mxu0 0.0
        %1671 = vmatprep.subr.mxu0 0.0
        %1672 = vmatpush1.msra.mxu0 0.0
        %1673 = vmatprep.subr.mxu0 0.0
        %1674 = vmatpush1.msra.mxu0 0.0
        %1675 = vmatprep.subr.mxu0 0.0
        %1676 = vmatpush1.msra.mxu0 0.0
        %1677 = vmatprep.subr.mxu0 0.0
        %1678 = vmatpush1.msra.mxu0 0.0
        %1679 = vmatprep.subr.mxu0 0.0
        %1680 = vmatpush1.msra.mxu0 0.0
        %1681 = vmatprep.subr.mxu0 0.0
        %1682 = vmatpush1.msra.mxu0 0.0
        %1683 = vmatprep.subr.mxu0 0.0
        %1684 = vmatpush1.msra.mxu0 0.0
        %1685 = vmatprep.subr.mxu0 0.0
        %1686 = vmatpush1.msra.mxu0 0.0
        %1687 = vmatprep.subr.mxu0 0.0
        %1688 = vmatpush1.msra.mxu0 0.0
        %1689 = vmatprep.subr.mxu0 0.0
        %1690 = vmatpush1.msra.mxu0 0.0
        %1691 = vmatprep.subr.mxu0 0.0
        %1692 = vmatpush1.msra.mxu0 0.0
        %1693 = vmatprep.subr.mxu0 0.0
        %1694 = vmatpush1.msra.mxu0 0.0
        %1695 = vmatprep.subr.mxu0 0.0
        %1696 = vmatpush1.msra.mxu0 0.0
        %1697 = vmatprep.subr.mxu0 0.0
        %1698 = vmatpush1.msra.mxu0 0.0
        %1699 = vmatprep.subr.mxu0 0.0
        %1700 = vmatpush1.msra.mxu0 0.0
        %1701 = vmatprep.subr.mxu0 0.0
        %1702 = vmatpush1.msra.mxu0 0.0
        %1703 = vmatprep.subr.mxu0 0.0
        %1704 = vmatpush1.msra.mxu0 0.0
        %1705 = vmatprep.subr.mxu0 0.0
        %1706 = vmatpush1.msra.mxu0 0.0
        %1707 = vmatprep.subr.mxu0 0.0
        %1708 = vmatpush1.msra.mxu0 0.0
        %1709 = vmatprep.subr.mxu0 0.0
        %1710 = vmatpush1.msra.mxu0 0.0
        %1711 = vmatprep.subr.mxu0 0.0
        %1712 = vmatpush1.msra.mxu0 0.0
        %1713 = vmatprep.subr.mxu0 0.0
        %1714 = vmatpush1.msra.mxu0 0.0
        %1715 = vmatprep.subr.mxu0 0.0
        %1716 = vmatpush1.msra.mxu0 0.0
        %1717 = vmatprep.subr.mxu0 0.0
        %1718 = vmatpush1.msra.mxu0 0.0
        %1719 = vmatprep.subr.mxu0 0.0
        %1720 = vmatpush1.msra.mxu0 0.0
        %1721 = vmatprep.subr.mxu0 0.0
        %1722 = vmatpush1.msra.mxu0 0.0
        %1723 = vmatprep.mubr.f32.mxu0 0.0
        %1724 = vmatmul.mubr.f32.gmra.mrb[0].mxu0 %v1654
        %v1725 = vpop.f32.mrb[0].mxu0
        %v1726 = vadd.f32 0.0, %v1725
        %v1727 = vpop.f32.mrb[0].mxu0
        %1728 = vmatprep.mubr.f32.mxu0 0.0
        %1729 = vmatmul.mubr.f32.gmra.mrb[0].mxu0 %v1657
        %v1730 = vpop.f32.mrb[0].mxu0
        %v1731 = vadd.f32 0.0, %v1730
        %v1732 = vpop.f32.mrb[0].mxu0
        %1733 = vdwg.mxu0
        %v1735 = vsel %vm1427, %v1501, 0
        %v1738 = vsel %vm1427, %v1503, 0
        %1740 = vmatprep.subr.mxu0 0.0
        %1741 = vmatpush1.msra.mxu0 %v532
        %1742 = vmatprep.subr.mxu0 0.0
        %1743 = vmatpush1.msra.mxu0 %v533
        %1744 = vmatprep.subr.mxu0 0.0
        %1745 = vmatpush1.msra.mxu0 0.0
        %1746 = vmatprep.subr.mxu0 0.0
        %1747 = vmatpush1.msra.mxu0 0.0
        %1748 = vmatprep.subr.mxu0 0.0
        %1749 = vmatpush1.msra.mxu0 0.0
        %1750 = vmatprep.subr.mxu0 0.0
        %1751 = vmatpush1.msra.mxu0 0.0
        %1752 = vmatprep.subr.mxu0 0.0
        %1753 = vmatpush1.msra.mxu0 0.0
        %1754 = vmatprep.subr.mxu0 0.0
        %1755 = vmatpush1.msra.mxu0 0.0
        %1756 = vmatprep.subr.mxu0 0.0
        %1757 = vmatpush1.msra.mxu0 0.0
        %1758 = vmatprep.subr.mxu0 0.0
        %1759 = vmatpush1.msra.mxu0 0.0
        %1760 = vmatprep.subr.mxu0 0.0
        %1761 = vmatpush1.msra.mxu0 0.0
        %1762 = vmatprep.subr.mxu0 0.0
        %1763 = vmatpush1.msra.mxu0 0.0
        %1764 = vmatprep.subr.mxu0 0.0
        %1765 = vmatpush1.msra.mxu0 0.0
        %1766 = vmatprep.subr.mxu0 0.0
        %1767 = vmatpush1.msra.mxu0 0.0
        %1768 = vmatprep.subr.mxu0 0.0
        %1769 = vmatpush1.msra.mxu0 0.0
        %1770 = vmatprep.subr.mxu0 0.0
        %1771 = vmatpush1.msra.mxu0 0.0
        %1772 = vmatprep.subr.mxu0 0.0
        %1773 = vmatpush1.msra.mxu0 0.0
        %1774 = vmatprep.subr.mxu0 0.0
        %1775 = vmatpush1.msra.mxu0 0.0
        %1776 = vmatprep.subr.mxu0 0.0
        %1777 = vmatpush1.msra.mxu0 0.0
        %1778 = vmatprep.subr.mxu0 0.0
        %1779 = vmatpush1.msra.mxu0 0.0
        %1780 = vmatprep.subr.mxu0 0.0
        %1781 = vmatpush1.msra.mxu0 0.0
        %1782 = vmatprep.subr.mxu0 0.0
        %1783 = vmatpush1.msra.mxu0 0.0
        %1784 = vmatprep.subr.mxu0 0.0
        %1785 = vmatpush1.msra.mxu0 0.0
        %1786 = vmatprep.subr.mxu0 0.0
        %1787 = vmatpush1.msra.mxu0 0.0
        %1788 = vmatprep.subr.mxu0 0.0
        %1789 = vmatpush1.msra.mxu0 0.0
        %1790 = vmatprep.subr.mxu0 0.0
        %1791 = vmatpush1.msra.mxu0 0.0
        %1792 = vmatprep.subr.mxu0 0.0
        %1793 = vmatpush1.msra.mxu0 0.0
        %1794 = vmatprep.subr.mxu0 0.0
        %1795 = vmatpush1.msra.mxu0 0.0
        %1796 = vmatprep.subr.mxu0 0.0
        %1797 = vmatpush1.msra.mxu0 0.0
        %1798 = vmatprep.subr.mxu0 0.0
        %1799 = vmatpush1.msra.mxu0 0.0
        %1800 = vmatprep.subr.mxu0 0.0
        %1801 = vmatpush1.msra.mxu0 0.0
        %1802 = vmatprep.subr.mxu0 0.0
        %1803 = vmatpush1.msra.mxu0 0.0
        %1804 = vmatprep.mubr.f32.mxu0 0.0
        %1805 = vmatmul.mubr.f32.gmra.mrb[0].mxu0 %v1735
        %v1806 = vpop.f32.mrb[0].mxu0
        %v1807 = vadd.f32 0.0, %v1806
        %v1808 = vpop.f32.mrb[0].mxu0
        %1809 = vmatprep.mubr.f32.mxu0 0.0
        %1810 = vmatmul.mubr.f32.gmra.mrb[0].mxu0 %v1738
        %v1811 = vpop.f32.mrb[0].mxu0
        %v1812 = vadd.f32 0.0, %v1811
        %v1813 = vpop.f32.mrb[0].mxu0
        %1814 = vdwg.mxu0
        %v1816 = vsel %vm1427, %v1505, 0
        %v1819 = vsel %vm1427, %v1507, 0
        %1821 = vmatprep.subr.mxu0 0.0
        %1822 = vmatpush1.msra.mxu0 %v534
        %1823 = vmatprep.subr.mxu0 0.0
        %1824 = vmatpush1.msra.mxu0 %v535
        %1825 = vmatprep.subr.mxu0 0.0
        %1826 = vmatpush1.msra.mxu0 0.0
        %1827 = vmatprep.subr.mxu0 0.0
        %1828 = vmatpush1.msra.mxu0 0.0
        %1829 = vmatprep.subr.mxu0 0.0
        %1830 = vmatpush1.msra.mxu0 0.0
        %1831 = vmatprep.subr.mxu0 0.0
        %1832 = vmatpush1.msra.mxu0 0.0
        %1833 = vmatprep.subr.mxu0 0.0
        %1834 = vmatpush1.msra.mxu0 0.0
        %1835 = vmatprep.subr.mxu0 0.0
        %1836 = vmatpush1.msra.mxu0 0.0
        %1837 = vmatprep.subr.mxu0 0.0
        %1838 = vmatpush1.msra.mxu0 0.0
        %1839 = vmatprep.subr.mxu0 0.0
        %1840 = vmatpush1.msra.mxu0 0.0
        %1841 = vmatprep.subr.mxu0 0.0
        %1842 = vmatpush1.msra.mxu0 0.0
        %1843 = vmatprep.subr.mxu0 0.0
        %1844 = vmatpush1.msra.mxu0 0.0
        %1845 = vmatprep.subr.mxu0 0.0
        %1846 = vmatpush1.msra.mxu0 0.0
        %1847 = vmatprep.subr.mxu0 0.0
        %1848 = vmatpush1.msra.mxu0 0.0
        %1849 = vmatprep.subr.mxu0 0.0
        %1850 = vmatpush1.msra.mxu0 0.0
        %1851 = vmatprep.subr.mxu0 0.0
        %1852 = vmatpush1.msra.mxu0 0.0
        %1853 = vmatprep.subr.mxu0 0.0
        %1854 = vmatpush1.msra.mxu0 0.0
        %1855 = vmatprep.subr.mxu0 0.0
        %1856 = vmatpush1.msra.mxu0 0.0
        %1857 = vmatprep.subr.mxu0 0.0
        %1858 = vmatpush1.msra.mxu0 0.0
        %1859 = vmatprep.subr.mxu0 0.0
        %1860 = vmatpush1.msra.mxu0 0.0
        %1861 = vmatprep.subr.mxu0 0.0
        %1862 = vmatpush1.msra.mxu0 0.0
        %1863 = vmatprep.subr.mxu0 0.0
        %1864 = vmatpush1.msra.mxu0 0.0
        %1865 = vmatprep.subr.mxu0 0.0
        %1866 = vmatpush1.msra.mxu0 0.0
        %1867 = vmatprep.subr.mxu0 0.0
        %1868 = vmatpush1.msra.mxu0 0.0
        %1869 = vmatprep.subr.mxu0 0.0
        %1870 = vmatpush1.msra.mxu0 0.0
        %1871 = vmatprep.subr.mxu0 0.0
        %1872 = vmatpush1.msra.mxu0 0.0
        %1873 = vmatprep.subr.mxu0 0.0
        %1874 = vmatpush1.msra.mxu0 0.0
        %1875 = vmatprep.subr.mxu0 0.0
        %1876 = vmatpush1.msra.mxu0 0.0
        %1877 = vmatprep.subr.mxu0 0.0
        %1878 = vmatpush1.msra.mxu0 0.0
        %1879 = vmatprep.subr.mxu0 0.0
        %1880 = vmatpush1.msra.mxu0 0.0
        %1881 = vmatprep.subr.mxu0 0.0
        %1882 = vmatpush1.msra.mxu0 0.0
        %1883 = vmatprep.subr.mxu0 0.0
        %1884 = vmatpush1.msra.mxu0 0.0
        %1885 = vmatprep.mubr.f32.mxu0 0.0
        %1886 = vmatmul.mubr.f32.gmra.mrb[0].mxu0 %v1816
        %v1887 = vpop.f32.mrb[0].mxu0
        %v1888 = vadd.f32 0.0, %v1887
        %v1889 = vpop.f32.mrb[0].mxu0
        %1890 = vmatprep.mubr.f32.mxu0 0.0
        %1891 = vmatmul.mubr.f32.gmra.mrb[0].mxu0 %v1819
        %v1892 = vpop.f32.mrb[0].mxu0
        %v1893 = vadd.f32 0.0, %v1892
        %v1894 = vpop.f32.mrb[0].mxu0
        %1895 = vdwg.mxu0
        %v1897 = vsel %vm1427, %v1509, 0
        %v1900 = vsel %vm1427, %v1511, 0
        %1902 = vmatprep.subr.mxu0 0.0
        %1903 = vmatpush1.msra.mxu0 %v536
        %1904 = vmatprep.subr.mxu0 0.0
        %1905 = vmatpush1.msra.mxu0 %v537
        %1906 = vmatprep.subr.mxu0 0.0
        %1907 = vmatpush1.msra.mxu0 0.0
        %1908 = vmatprep.subr.mxu0 0.0
        %1909 = vmatpush1.msra.mxu0 0.0
        %1910 = vmatprep.subr.mxu0 0.0
        %1911 = vmatpush1.msra.mxu0 0.0
        %1912 = vmatprep.subr.mxu0 0.0
        %1913 = vmatpush1.msra.mxu0 0.0
        %1914 = vmatprep.subr.mxu0 0.0
        %1915 = vmatpush1.msra.mxu0 0.0
        %1916 = vmatprep.subr.mxu0 0.0
        %1917 = vmatpush1.msra.mxu0 0.0
        %1918 = vmatprep.subr.mxu0 0.0
        %1919 = vmatpush1.msra.mxu0 0.0
        %1920 = vmatprep.subr.mxu0 0.0
        %1921 = vmatpush1.msra.mxu0 0.0
        %1922 = vmatprep.subr.mxu0 0.0
        %1923 = vmatpush1.msra.mxu0 0.0
        %1924 = vmatprep.subr.mxu0 0.0
        %1925 = vmatpush1.msra.mxu0 0.0
        %1926 = vmatprep.subr.mxu0 0.0
        %1927 = vmatpush1.msra.mxu0 0.0
        %1928 = vmatprep.subr.mxu0 0.0
        %1929 = vmatpush1.msra.mxu0 0.0
        %1930 = vmatprep.subr.mxu0 0.0
        %1931 = vmatpush1.msra.mxu0 0.0
        %1932 = vmatprep.subr.mxu0 0.0
        %1933 = vmatpush1.msra.mxu0 0.0
        %1934 = vmatprep.subr.mxu0 0.0
        %1935 = vmatpush1.msra.mxu0 0.0
        %1936 = vmatprep.subr.mxu0 0.0
        %1937 = vmatpush1.msra.mxu0 0.0
        %1938 = vmatprep.subr.mxu0 0.0
        %1939 = vmatpush1.msra.mxu0 0.0
        %1940 = vmatprep.subr.mxu0 0.0
        %1941 = vmatpush1.msra.mxu0 0.0
        %1942 = vmatprep.subr.mxu0 0.0
        %1943 = vmatpush1.msra.mxu0 0.0
        %1944 = vmatprep.subr.mxu0 0.0
        %1945 = vmatpush1.msra.mxu0 0.0
        %1946 = vmatprep.subr.mxu0 0.0
        %1947 = vmatpush1.msra.mxu0 0.0
        %1948 = vmatprep.subr.mxu0 0.0
        %1949 = vmatpush1.msra.mxu0 0.0
        %1950 = vmatprep.subr.mxu0 0.0
        %1951 = vmatpush1.msra.mxu0 0.0
        %1952 = vmatprep.subr.mxu0 0.0
        %1953 = vmatpush1.msra.mxu0 0.0
        %1954 = vmatprep.subr.mxu0 0.0
        %1955 = vmatpush1.msra.mxu0 0.0
        %1956 = vmatprep.subr.mxu0 0.0
        %1957 = vmatpush1.msra.mxu0 0.0
        %1958 = vmatprep.subr.mxu0 0.0
        %1959 = vmatpush1.msra.mxu0 0.0
        %1960 = vmatprep.subr.mxu0 0.0
        %1961 = vmatpush1.msra.mxu0 0.0
        %1962 = vmatprep.subr.mxu0 0.0
        %1963 = vmatpush1.msra.mxu0 0.0
        %1964 = vmatprep.subr.mxu0 0.0
        %1965 = vmatpush1.msra.mxu0 0.0
        %1966 = vmatprep.mubr.f32.mxu0 0.0
        %1967 = vmatmul.mubr.f32.gmra.mrb[0].mxu0 %v1897
        %v1968 = vpop.f32.mrb[0].mxu0
        %v1969 = vadd.f32 0.0, %v1968
        %v1970 = vpop.f32.mrb[0].mxu0
        %1971 = vmatprep.mubr.f32.mxu0 0.0
        %1972 = vmatmul.mubr.f32.gmra.mrb[0].mxu0 %v1900
        %v1973 = vpop.f32.mrb[0].mxu0
        %v1974 = vadd.f32 0.0, %v1973
        %v1975 = vpop.f32.mrb[0].mxu0
        %1976 = vdwg.mxu0
        %v1978 = vsel %vm1427, %v1513, 0
        %v1981 = vsel %vm1427, %v1515, 0
        %1983 = vmatprep.subr.mxu0 0.0
        %1984 = vmatpush1.msra.mxu0 %v538
        %1985 = vmatprep.subr.mxu0 0.0
        %1986 = vmatpush1.msra.mxu0 %v539
        %1987 = vmatprep.subr.mxu0 0.0
        %1988 = vmatpush1.msra.mxu0 0.0
        %1989 = vmatprep.subr.mxu0 0.0
        %1990 = vmatpush1.msra.mxu0 0.0
        %1991 = vmatprep.subr.mxu0 0.0
        %1992 = vmatpush1.msra.mxu0 0.0
        %1993 = vmatprep.subr.mxu0 0.0
        %1994 = vmatpush1.msra.mxu0 0.0
        %1995 = vmatprep.subr.mxu0 0.0
        %1996 = vmatpush1.msra.mxu0 0.0
        %1997 = vmatprep.subr.mxu0 0.0
        %1998 = vmatpush1.msra.mxu0 0.0
        %1999 = vmatprep.subr.mxu0 0.0
        %2000 = vmatpush1.msra.mxu0 0.0
        %2001 = vmatprep.subr.mxu0 0.0
        %2002 = vmatpush1.msra.mxu0 0.0
        %2003 = vmatprep.subr.mxu0 0.0
        %2004 = vmatpush1.msra.mxu0 0.0
        %2005 = vmatprep.subr.mxu0 0.0
        %2006 = vmatpush1.msra.mxu0 0.0
        %2007 = vmatprep.subr.mxu0 0.0
        %2008 = vmatpush1.msra.mxu0 0.0
        %2009 = vmatprep.subr.mxu0 0.0
        %2010 = vmatpush1.msra.mxu0 0.0
        %2011 = vmatprep.subr.mxu0 0.0
        %2012 = vmatpush1.msra.mxu0 0.0
        %2013 = vmatprep.subr.mxu0 0.0
        %2014 = vmatpush1.msra.mxu0 0.0
        %2015 = vmatprep.subr.mxu0 0.0
        %2016 = vmatpush1.msra.mxu0 0.0
        %2017 = vmatprep.subr.mxu0 0.0
        %2018 = vmatpush1.msra.mxu0 0.0
        %2019 = vmatprep.subr.mxu0 0.0
        %2020 = vmatpush1.msra.mxu0 0.0
        %2021 = vmatprep.subr.mxu0 0.0
        %2022 = vmatpush1.msra.mxu0 0.0
        %2023 = vmatprep.subr.mxu0 0.0
        %2024 = vmatpush1.msra.mxu0 0.0
        %2025 = vmatprep.subr.mxu0 0.0
        %2026 = vmatpush1.msra.mxu0 0.0
        %2027 = vmatprep.subr.mxu0 0.0
        %2028 = vmatpush1.msra.mxu0 0.0
        %2029 = vmatprep.subr.mxu0 0.0
        %2030 = vmatpush1.msra.mxu0 0.0
        %2031 = vmatprep.subr.mxu0 0.0
        %2032 = vmatpush1.msra.mxu0 0.0
        %2033 = vmatprep.subr.mxu0 0.0
        %2034 = vmatpush1.msra.mxu0 0.0
        %2035 = vmatprep.subr.mxu0 0.0
        %2036 = vmatpush1.msra.mxu0 0.0
        %2037 = vmatprep.subr.mxu0 0.0
        %2038 = vmatpush1.msra.mxu0 0.0
        %2039 = vmatprep.subr.mxu0 0.0
        %2040 = vmatpush1.msra.mxu0 0.0
        %2041 = vmatprep.subr.mxu0 0.0
        %2042 = vmatpush1.msra.mxu0 0.0
        %2043 = vmatprep.subr.mxu0 0.0
        %2044 = vmatpush1.msra.mxu0 0.0
        %2045 = vmatprep.subr.mxu0 0.0
        %2046 = vmatpush1.msra.mxu0 0.0
        %2047 = vmatprep.mubr.f32.mxu0 0.0
        %2048 = vmatmul.mubr.f32.gmra.mrb[0].mxu0 %v1978
        %v2049 = vpop.f32.mrb[0].mxu0
        %v2050 = vadd.f32 0.0, %v2049
        %v2051 = vpop.f32.mrb[0].mxu0
        %2052 = vmatprep.mubr.f32.mxu0 0.0
        %2053 = vmatmul.mubr.f32.gmra.mrb[0].mxu0 %v1981
        %v2054 = vpop.f32.mrb[0].mxu0
        %v2055 = vadd.f32 0.0, %v2054
        %v2056 = vpop.f32.mrb[0].mxu0
        %2057 = vdwg.mxu0
        %v2059 = vsel %vm1427, %v1517, 0
        %v2062 = vsel %vm1427, %v1519, 0
        %2064 = vmatprep.subr.mxu0 0.0
        %2065 = vmatpush1.msra.mxu0 %v540
        %2066 = vmatprep.subr.mxu0 0.0
        %2067 = vmatpush1.msra.mxu0 %v541
        %2068 = vmatprep.subr.mxu0 0.0
        %2069 = vmatpush1.msra.mxu0 0.0
        %2070 = vmatprep.subr.mxu0 0.0
        %2071 = vmatpush1.msra.mxu0 0.0
        %2072 = vmatprep.subr.mxu0 0.0
        %2073 = vmatpush1.msra.mxu0 0.0
        %2074 = vmatprep.subr.mxu0 0.0
        %2075 = vmatpush1.msra.mxu0 0.0
        %2076 = vmatprep.subr.mxu0 0.0
        %2077 = vmatpush1.msra.mxu0 0.0
        %2078 = vmatprep.subr.mxu0 0.0
        %2079 = vmatpush1.msra.mxu0 0.0
        %2080 = vmatprep.subr.mxu0 0.0
        %2081 = vmatpush1.msra.mxu0 0.0
        %2082 = vmatprep.subr.mxu0 0.0
        %2083 = vmatpush1.msra.mxu0 0.0
        %2084 = vmatprep.subr.mxu0 0.0
        %2085 = vmatpush1.msra.mxu0 0.0
        %2086 = vmatprep.subr.mxu0 0.0
        %2087 = vmatpush1.msra.mxu0 0.0
        %2088 = vmatprep.subr.mxu0 0.0
        %2089 = vmatpush1.msra.mxu0 0.0
        %2090 = vmatprep.subr.mxu0 0.0
        %2091 = vmatpush1.msra.mxu0 0.0
        %2092 = vmatprep.subr.mxu0 0.0
        %2093 = vmatpush1.msra.mxu0 0.0
        %2094 = vmatprep.subr.mxu0 0.0
        %2095 = vmatpush1.msra.mxu0 0.0
        %2096 = vmatprep.subr.mxu0 0.0
        %2097 = vmatpush1.msra.mxu0 0.0
        %2098 = vmatprep.subr.mxu0 0.0
        %2099 = vmatpush1.msra.mxu0 0.0
        %2100 = vmatprep.subr.mxu0 0.0
        %2101 = vmatpush1.msra.mxu0 0.0
        %2102 = vmatprep.subr.mxu0 0.0
        %2103 = vmatpush1.msra.mxu0 0.0
        %2104 = vmatprep.subr.mxu0 0.0
        %2105 = vmatpush1.msra.mxu0 0.0
        %2106 = vmatprep.subr.mxu0 0.0
        %2107 = vmatpush1.msra.mxu0 0.0
        %2108 = vmatprep.subr.mxu0 0.0
        %2109 = vmatpush1.msra.mxu0 0.0
        %2110 = vmatprep.subr.mxu0 0.0
        %2111 = vmatpush1.msra.mxu0 0.0
        %2112 = vmatprep.subr.mxu0 0.0
        %2113 = vmatpush1.msra.mxu0 0.0
        %2114 = vmatprep.subr.mxu0 0.0
        %2115 = vmatpush1.msra.mxu0 0.0
        %2116 = vmatprep.subr.mxu0 0.0
        %2117 = vmatpush1.msra.mxu0 0.0
        %2118 = vmatprep.subr.mxu0 0.0
        %2119 = vmatpush1.msra.mxu0 0.0
        %2120 = vmatprep.subr.mxu0 0.0
        %2121 = vmatpush1.msra.mxu0 0.0
        %2122 = vmatprep.subr.mxu0 0.0
        %2123 = vmatpush1.msra.mxu0 0.0
        %2124 = vmatprep.subr.mxu0 0.0
        %2125 = vmatpush1.msra.mxu0 0.0
        %2126 = vmatprep.subr.mxu0 0.0
        %2127 = vmatpush1.msra.mxu0 0.0
        %2128 = vmatprep.mubr.f32.mxu0 0.0
        %2129 = vmatmul.mubr.f32.gmra.mrb[0].mxu0 %v2059
        %v2130 = vpop.f32.mrb[0].mxu0
        %v2131 = vadd.f32 0.0, %v2130
        %v2132 = vpop.f32.mrb[0].mxu0
        %2133 = vmatprep.mubr.f32.mxu0 0.0
        %2134 = vmatmul.mubr.f32.gmra.mrb[0].mxu0 %v2062
        %v2135 = vpop.f32.mrb[0].mxu0
        %v2136 = vadd.f32 0.0, %v2135
        %v2137 = vpop.f32.mrb[0].mxu0
        %2138 = vdwg.mxu0
        %v2140 = vsel %vm1427, %v1521, 0
        %v2143 = vsel %vm1427, %v1523, 0
        %2145 = vmatprep.subr.mxu0 0.0
        %2146 = vmatpush1.msra.mxu0 %v542
        %2147 = vmatprep.subr.mxu0 0.0
        %2148 = vmatpush1.msra.mxu0 %v543
        %2149 = vmatprep.subr.mxu0 0.0
        %2150 = vmatpush1.msra.mxu0 0.0
        %2151 = vmatprep.subr.mxu0 0.0
        %2152 = vmatpush1.msra.mxu0 0.0
        %2153 = vmatprep.subr.mxu0 0.0
        %2154 = vmatpush1.msra.mxu0 0.0
        %2155 = vmatprep.subr.mxu0 0.0
        %2156 = vmatpush1.msra.mxu0 0.0
        %2157 = vmatprep.subr.mxu0 0.0
        %2158 = vmatpush1.msra.mxu0 0.0
        %2159 = vmatprep.subr.mxu0 0.0
        %2160 = vmatpush1.msra.mxu0 0.0
        %2161 = vmatprep.subr.mxu0 0.0
        %2162 = vmatpush1.msra.mxu0 0.0
        %2163 = vmatprep.subr.mxu0 0.0
        %2164 = vmatpush1.msra.mxu0 0.0
        %2165 = vmatprep.subr.mxu0 0.0
        %2166 = vmatpush1.msra.mxu0 0.0
        %2167 = vmatprep.subr.mxu0 0.0
        %2168 = vmatpush1.msra.mxu0 0.0
        %2169 = vmatprep.subr.mxu0 0.0
        %2170 = vmatpush1.msra.mxu0 0.0
        %2171 = vmatprep.subr.mxu0 0.0
        %2172 = vmatpush1.msra.mxu0 0.0
        %2173 = vmatprep.subr.mxu0 0.0
        %2174 = vmatpush1.msra.mxu0 0.0
        %2175 = vmatprep.subr.mxu0 0.0
        %2176 = vmatpush1.msra.mxu0 0.0
        %2177 = vmatprep.subr.mxu0 0.0
        %2178 = vmatpush1.msra.mxu0 0.0
        %2179 = vmatprep.subr.mxu0 0.0
        %2180 = vmatpush1.msra.mxu0 0.0
        %2181 = vmatprep.subr.mxu0 0.0
        %2182 = vmatpush1.msra.mxu0 0.0
        %2183 = vmatprep.subr.mxu0 0.0
        %2184 = vmatpush1.msra.mxu0 0.0
        %2185 = vmatprep.subr.mxu0 0.0
        %2186 = vmatpush1.msra.mxu0 0.0
        %2187 = vmatprep.subr.mxu0 0.0
        %2188 = vmatpush1.msra.mxu0 0.0
        %2189 = vmatprep.subr.mxu0 0.0
        %2190 = vmatpush1.msra.mxu0 0.0
        %2191 = vmatprep.subr.mxu0 0.0
        %2192 = vmatpush1.msra.mxu0 0.0
        %2193 = vmatprep.subr.mxu0 0.0
        %2194 = vmatpush1.msra.mxu0 0.0
        %2195 = vmatprep.subr.mxu0 0.0
        %2196 = vmatpush1.msra.mxu0 0.0
        %2197 = vmatprep.subr.mxu0 0.0
        %2198 = vmatpush1.msra.mxu0 0.0
        %2199 = vmatprep.subr.mxu0 0.0
        %2200 = vmatpush1.msra.mxu0 0.0
        %2201 = vmatprep.subr.mxu0 0.0
        %2202 = vmatpush1.msra.mxu0 0.0
        %2203 = vmatprep.subr.mxu0 0.0
        %2204 = vmatpush1.msra.mxu0 0.0
        %2205 = vmatprep.subr.mxu0 0.0
        %2206 = vmatpush1.msra.mxu0 0.0
        %2207 = vmatprep.subr.mxu0 0.0
        %2208 = vmatpush1.msra.mxu0 0.0
        %2209 = vmatprep.mubr.f32.mxu0 0.0
        %2210 = vmatmul.mubr.f32.gmra.mrb[0].mxu0 %v2140
        %v2211 = vpop.f32.mrb[0].mxu0
        %v2212 = vadd.f32 0.0, %v2211
        %v2213 = vpop.f32.mrb[0].mxu0
        %2214 = vmatprep.mubr.f32.mxu0 0.0
        %2215 = vmatmul.mubr.f32.gmra.mrb[0].mxu0 %v2143
        %v2216 = vpop.f32.mrb[0].mxu0
        %v2217 = vadd.f32 0.0, %v2216
        %v2218 = vpop.f32.mrb[0].mxu0
        %2219 = vdwg.mxu0
        %v2220 = vrcp.pop %v1526
        %v2221 = vrcp.pop %v1529
        %v2222 = vrcp.pop %v1532
        %v2223 = vrcp.pop %v1535
        %v2224 = vrcp.pop %v1538
        %v2225 = vrcp.pop %v1541
        %v2226 = vrcp.pop %v1544
        %v2227 = vrcp.pop %v1547
        %v2228 = vrcp.pop %v1550
        %v2229 = vrcp.pop %v1553
        %v2230 = vrcp.pop %v1556
        %v2231 = vrcp.pop %v1559
        %v2232 = vrcp.pop %v1562
        %v2233 = vrcp.pop %v1565
        %v2234 = vrcp.pop %v1568
        %v2235 = vrcp.pop %v1571
        %v2236 = vmul.f32 %v1645, %v2220
        %v2237 = vmul.f32 %v1650, %v2221
        %v2238 = vmul.f32 %v1726, %v2222
        %v2239 = vmul.f32 %v1731, %v2223
        %v2240 = vmul.f32 %v1807, %v2224
        %v2241 = vmul.f32 %v1812, %v2225
        %v2242 = vmul.f32 %v1888, %v2226
        %v2243 = vmul.f32 %v1893, %v2227
        %v2244 = vmul.f32 %v1969, %v2228
        %v2245 = vmul.f32 %v1974, %v2229
        %v2246 = vmul.f32 %v2050, %v2230
        %v2247 = vmul.f32 %v2055, %v2231
        %v2248 = vmul.f32 %v2131, %v2232
        %v2249 = vmul.f32 %v2136, %v2233
        %v2250 = vmul.f32 %v2212, %v2234
        %v2251 = vmul.f32 %v2217, %v2235
        %v2252 = vmul.f32 %v2236, %v633
        %v2253 = vmul.f32 %v2237, %v635
        %v2254 = vmul.f32 %v2238, %v637
        %v2255 = vmul.f32 %v2239, %v639
        %v2256 = vmul.f32 %v2240, %v641
        %v2257 = vmul.f32 %v2241, %v643
        %v2258 = vmul.f32 %v2242, %v645
        %v2259 = vmul.f32 %v2243, %v647
        %v2260 = vmul.f32 %v2244, %v649
        %v2261 = vmul.f32 %v2245, %v651
        %v2262 = vmul.f32 %v2246, %v653
        %v2263 = vmul.f32 %v2247, %v655
        %v2264 = vmul.f32 %v2248, %v657
        %v2265 = vmul.f32 %v2249, %v659
        %v2266 = vmul.f32 %v2250, %v661
        %v2267 = vmul.f32 %v2251, %v663
        %s2268 = scalar_lea.vmem %s425, 16 [#allocation10]
        %v2269 = vld [vmem:[%s2268] sm:$0xff]
        %v2270 = vld [vmem:[%s2268 + $0x8] sm:$0xff]
        %2271 = vrot.lane.b32.xlu0 %v496, 120
        %v2272 = vpop.permute.xlu0 %2271
        %2273 = vrot.lane.b32.xlu0 %v497, 120
        %v2274 = vpop.permute.xlu0 %2273
        %2275 = vrot.lane.b32.xlu0 %v512, 120
        %v2276 = vpop.permute.xlu0 %2275
        %2277 = vrot.lane.b32.xlu0 %v513, 120
        %v2278 = vpop.permute.xlu0 %2277
        %v2279 = vsel %vm666, %v2272, 0
        %v2281 = vsel %vm666, %v2274, 0
        %v2283 = vsel %vm666, %v2276, 0
        %v2285 = vsel %vm666, %v2278, 0
        %2287 = vmatprep.subr.mxu0 0.0
        %2288 = vmatpush1.xpose.msra.mxu0 %v2283
        %2289 = vmatprep.subr.mxu0 0.0
        %2290 = vmatpush1.xpose.msra.mxu0 %v2285
        %2291 = vmatprep.subr.mxu0 0.0
        %2292 = vmatpush1.xpose.msra.mxu0 0.0
        %2293 = vmatprep.subr.mxu0 0.0
        %2294 = vmatpush1.xpose.msra.mxu0 0.0
        %2295 = vmatprep.subr.mxu0 0.0
        %2296 = vmatpush1.xpose.msra.mxu0 0.0
        %2297 = vmatprep.subr.mxu0 0.0
        %2298 = vmatpush1.xpose.msra.mxu0 0.0
        %2299 = vmatprep.subr.mxu0 0.0
        %2300 = vmatpush1.xpose.msra.mxu0 0.0
        %2301 = vmatprep.subr.mxu0 0.0
        %2302 = vmatpush1.xpose.msra.mxu0 0.0
        %2303 = vmatprep.subr.mxu0 0.0
        %2304 = vmatpush1.xpose.msra.mxu0 0.0
        %2305 = vmatprep.subr.mxu0 0.0
        %2306 = vmatpush1.xpose.msra.mxu0 0.0
        %2307 = vmatprep.subr.mxu0 0.0
        %2308 = vmatpush1.xpose.msra.mxu0 0.0
        %2309 = vmatprep.subr.mxu0 0.0
        %2310 = vmatpush1.xpose.msra.mxu0 0.0
        %2311 = vmatprep.subr.mxu0 0.0
        %2312 = vmatpush1.xpose.msra.mxu0 0.0
        %2313 = vmatprep.subr.mxu0 0.0
        %2314 = vmatpush1.xpose.msra.mxu0 0.0
        %2315 = vmatprep.subr.mxu0 0.0
        %2316 = vmatpush1.xpose.msra.mxu0 0.0
        %2317 = vmatprep.subr.mxu0 0.0
        %2318 = vmatpush1.xpose.msra.mxu0 0.0
        %2319 = vmatprep.subr.mxu0 0.0
        %2320 = vmatpush1.xpose.msra.mxu0 0.0
        %2321 = vmatprep.subr.mxu0 0.0
        %2322 = vmatpush1.xpose.msra.mxu0 0.0
        %2323 = vmatprep.subr.mxu0 0.0
        %2324 = vmatpush1.xpose.msra.mxu0 0.0
        %2325 = vmatprep.subr.mxu0 0.0
        %2326 = vmatpush1.xpose.msra.mxu0 0.0
        %2327 = vmatprep.subr.mxu0 0.0
        %2328 = vmatpush1.xpose.msra.mxu0 0.0
        %2329 = vmatprep.subr.mxu0 0.0
        %2330 = vmatpush1.xpose.msra.mxu0 0.0
        %2331 = vmatprep.subr.mxu0 0.0
        %2332 = vmatpush1.xpose.msra.mxu0 0.0
        %2333 = vmatprep.subr.mxu0 0.0
        %2334 = vmatpush1.xpose.msra.mxu0 0.0
        %2335 = vmatprep.subr.mxu0 0.0
        %2336 = vmatpush1.xpose.msra.mxu0 0.0
        %2337 = vmatprep.subr.mxu0 0.0
        %2338 = vmatpush1.xpose.msra.mxu0 0.0
        %2339 = vmatprep.subr.mxu0 0.0
        %2340 = vmatpush1.xpose.msra.mxu0 0.0
        %2341 = vmatprep.subr.mxu0 0.0
        %2342 = vmatpush1.xpose.msra.mxu0 0.0
        %2343 = vmatprep.subr.mxu0 0.0
        %2344 = vmatpush1.xpose.msra.mxu0 0.0
        %2345 = vmatprep.subr.mxu0 0.0
        %2346 = vmatpush1.xpose.msra.mxu0 0.0
        %2347 = vmatprep.subr.mxu0 0.0
        %2348 = vmatpush1.xpose.msra.mxu0 0.0
        %2349 = vmatprep.subr.mxu0 0.0
        %2350 = vmatpush1.xpose.msra.mxu0 0.0
        %2351 = vmatprep.mubr.f32.mxu0 0.0
        %2352 = vmatmul.mubr.f32.gmra.mrb[0].mxu0 %v2279
        %v2353 = vpop.f32.mrb[0].mxu0
        %v2354 = vadd.f32 %v2269, %v2353
        %v2355 = vpop.f32.mrb[0].mxu0
        %2356 = vmatprep.mubr.f32.mxu0 0.0
        %2357 = vmatmul.mubr.f32.gmra.mrb[0].mxu0 %v2281
        %v2358 = vpop.f32.mrb[0].mxu0
        %v2359 = vadd.f32 %v2270, %v2358
        %v2360 = vpop.f32.mrb[0].mxu0
        %2361 = vdwg.mxu0
        %2362 = vrot.lane.b32.xlu0 %v498, 120
        %v2363 = vpop.permute.xlu0 %2362
        %2364 = vrot.lane.b32.xlu0 %v499, 120
        %v2365 = vpop.permute.xlu0 %2364
        %2366 = vrot.lane.b32.xlu0 %v514, 120
        %v2367 = vpop.permute.xlu0 %2366
        %2368 = vrot.lane.b32.xlu0 %v515, 120
        %v2369 = vpop.permute.xlu0 %2368
        %v2370 = vsel %vm666, %v2363, 0
        %v2372 = vsel %vm666, %v2365, 0
        %v2374 = vsel %vm666, %v2367, 0
        %v2376 = vsel %vm666, %v2369, 0
        %2378 = vmatprep.subr.mxu0 0.0
        %2379 = vmatpush1.xpose.msra.mxu0 %v2374
        %2380 = vmatprep.subr.mxu0 0.0
        %2381 = vmatpush1.xpose.msra.mxu0 %v2376
        %2382 = vmatprep.subr.mxu0 0.0
        %2383 = vmatpush1.xpose.msra.mxu0 0.0
        %2384 = vmatprep.subr.mxu0 0.0
        %2385 = vmatpush1.xpose.msra.mxu0 0.0
        %2386 = vmatprep.subr.mxu0 0.0
        %2387 = vmatpush1.xpose.msra.mxu0 0.0
        %2388 = vmatprep.subr.mxu0 0.0
        %2389 = vmatpush1.xpose.msra.mxu0 0.0
        %2390 = vmatprep.subr.mxu0 0.0
        %2391 = vmatpush1.xpose.msra.mxu0 0.0
        %2392 = vmatprep.subr.mxu0 0.0
        %2393 = vmatpush1.xpose.msra.mxu0 0.0
        %2394 = vmatprep.subr.mxu0 0.0
        %2395 = vmatpush1.xpose.msra.mxu0 0.0
        %2396 = vmatprep.subr.mxu0 0.0
        %2397 = vmatpush1.xpose.msra.mxu0 0.0
        %2398 = vmatprep.subr.mxu0 0.0
        %2399 = vmatpush1.xpose.msra.mxu0 0.0
        %2400 = vmatprep.subr.mxu0 0.0
        %2401 = vmatpush1.xpose.msra.mxu0 0.0
        %2402 = vmatprep.subr.mxu0 0.0
        %2403 = vmatpush1.xpose.msra.mxu0 0.0
        %2404 = vmatprep.subr.mxu0 0.0
        %2405 = vmatpush1.xpose.msra.mxu0 0.0
        %2406 = vmatprep.subr.mxu0 0.0
        %2407 = vmatpush1.xpose.msra.mxu0 0.0
        %2408 = vmatprep.subr.mxu0 0.0
        %2409 = vmatpush1.xpose.msra.mxu0 0.0
        %2410 = vmatprep.subr.mxu0 0.0
        %2411 = vmatpush1.xpose.msra.mxu0 0.0
        %2412 = vmatprep.subr.mxu0 0.0
        %2413 = vmatpush1.xpose.msra.mxu0 0.0
        %2414 = vmatprep.subr.mxu0 0.0
        %2415 = vmatpush1.xpose.msra.mxu0 0.0
        %2416 = vmatprep.subr.mxu0 0.0
        %2417 = vmatpush1.xpose.msra.mxu0 0.0
        %2418 = vmatprep.subr.mxu0 0.0
        %2419 = vmatpush1.xpose.msra.mxu0 0.0
        %2420 = vmatprep.subr.mxu0 0.0
        %2421 = vmatpush1.xpose.msra.mxu0 0.0
        %2422 = vmatprep.subr.mxu0 0.0
        %2423 = vmatpush1.xpose.msra.mxu0 0.0
        %2424 = vmatprep.subr.mxu0 0.0
        %2425 = vmatpush1.xpose.msra.mxu0 0.0
        %2426 = vmatprep.subr.mxu0 0.0
        %2427 = vmatpush1.xpose.msra.mxu0 0.0
        %2428 = vmatprep.subr.mxu0 0.0
        %2429 = vmatpush1.xpose.msra.mxu0 0.0
        %2430 = vmatprep.subr.mxu0 0.0
        %2431 = vmatpush1.xpose.msra.mxu0 0.0
        %2432 = vmatprep.subr.mxu0 0.0
        %2433 = vmatpush1.xpose.msra.mxu0 0.0
        %2434 = vmatprep.subr.mxu0 0.0
        %2435 = vmatpush1.xpose.msra.mxu0 0.0
        %2436 = vmatprep.subr.mxu0 0.0
        %2437 = vmatpush1.xpose.msra.mxu0 0.0
        %2438 = vmatprep.subr.mxu0 0.0
        %2439 = vmatpush1.xpose.msra.mxu0 0.0
        %2440 = vmatprep.subr.mxu0 0.0
        %2441 = vmatpush1.xpose.msra.mxu0 0.0
        %2442 = vmatprep.mubr.f32.mxu0 0.0
        %2443 = vmatmul.mubr.f32.gmra.mrb[0].mxu0 %v2370
        %v2444 = vpop.f32.mrb[0].mxu0
        %v2445 = vadd.f32 %v2269, %v2444
        %v2446 = vpop.f32.mrb[0].mxu0
        %2447 = vmatprep.mubr.f32.mxu0 0.0
        %2448 = vmatmul.mubr.f32.gmra.mrb[0].mxu0 %v2372
        %v2449 = vpop.f32.mrb[0].mxu0
        %v2450 = vadd.f32 %v2270, %v2449
        %v2451 = vpop.f32.mrb[0].mxu0
        %2452 = vdwg.mxu0
        %2453 = vrot.lane.b32.xlu0 %v500, 120
        %v2454 = vpop.permute.xlu0 %2453
        %2455 = vrot.lane.b32.xlu0 %v501, 120
        %v2456 = vpop.permute.xlu0 %2455
        %2457 = vrot.lane.b32.xlu0 %v516, 120
        %v2458 = vpop.permute.xlu0 %2457
        %2459 = vrot.lane.b32.xlu0 %v517, 120
        %v2460 = vpop.permute.xlu0 %2459
        %v2461 = vsel %vm666, %v2454, 0
        %v2463 = vsel %vm666, %v2456, 0
        %v2465 = vsel %vm666, %v2458, 0
        %v2467 = vsel %vm666, %v2460, 0
        %2469 = vmatprep.subr.mxu0 0.0
        %2470 = vmatpush1.xpose.msra.mxu0 %v2465
        %2471 = vmatprep.subr.mxu0 0.0
        %2472 = vmatpush1.xpose.msra.mxu0 %v2467
        %2473 = vmatprep.subr.mxu0 0.0
        %2474 = vmatpush1.xpose.msra.mxu0 0.0
        %2475 = vmatprep.subr.mxu0 0.0
        %2476 = vmatpush1.xpose.msra.mxu0 0.0
        %2477 = vmatprep.subr.mxu0 0.0
        %2478 = vmatpush1.xpose.msra.mxu0 0.0
        %2479 = vmatprep.subr.mxu0 0.0
        %2480 = vmatpush1.xpose.msra.mxu0 0.0
        %2481 = vmatprep.subr.mxu0 0.0
        %2482 = vmatpush1.xpose.msra.mxu0 0.0
        %2483 = vmatprep.subr.mxu0 0.0
        %2484 = vmatpush1.xpose.msra.mxu0 0.0
        %2485 = vmatprep.subr.mxu0 0.0
        %2486 = vmatpush1.xpose.msra.mxu0 0.0
        %2487 = vmatprep.subr.mxu0 0.0
        %2488 = vmatpush1.xpose.msra.mxu0 0.0
        %2489 = vmatprep.subr.mxu0 0.0
        %2490 = vmatpush1.xpose.msra.mxu0 0.0
        %2491 = vmatprep.subr.mxu0 0.0
        %2492 = vmatpush1.xpose.msra.mxu0 0.0
        %2493 = vmatprep.subr.mxu0 0.0
        %2494 = vmatpush1.xpose.msra.mxu0 0.0
        %2495 = vmatprep.subr.mxu0 0.0
        %2496 = vmatpush1.xpose.msra.mxu0 0.0
        %2497 = vmatprep.subr.mxu0 0.0
        %2498 = vmatpush1.xpose.msra.mxu0 0.0
        %2499 = vmatprep.subr.mxu0 0.0
        %2500 = vmatpush1.xpose.msra.mxu0 0.0
        %2501 = vmatprep.subr.mxu0 0.0
        %2502 = vmatpush1.xpose.msra.mxu0 0.0
        %2503 = vmatprep.subr.mxu0 0.0
        %2504 = vmatpush1.xpose.msra.mxu0 0.0
        %2505 = vmatprep.subr.mxu0 0.0
        %2506 = vmatpush1.xpose.msra.mxu0 0.0
        %2507 = vmatprep.subr.mxu0 0.0
        %2508 = vmatpush1.xpose.msra.mxu0 0.0
        %2509 = vmatprep.subr.mxu0 0.0
        %2510 = vmatpush1.xpose.msra.mxu0 0.0
        %2511 = vmatprep.subr.mxu0 0.0
        %2512 = vmatpush1.xpose.msra.mxu0 0.0
        %2513 = vmatprep.subr.mxu0 0.0
        %2514 = vmatpush1.xpose.msra.mxu0 0.0
        %2515 = vmatprep.subr.mxu0 0.0
        %2516 = vmatpush1.xpose.msra.mxu0 0.0
        %2517 = vmatprep.subr.mxu0 0.0
        %2518 = vmatpush1.xpose.msra.mxu0 0.0
        %2519 = vmatprep.subr.mxu0 0.0
        %2520 = vmatpush1.xpose.msra.mxu0 0.0
        %2521 = vmatprep.subr.mxu0 0.0
        %2522 = vmatpush1.xpose.msra.mxu0 0.0
        %2523 = vmatprep.subr.mxu0 0.0
        %2524 = vmatpush1.xpose.msra.mxu0 0.0
        %2525 = vmatprep.subr.mxu0 0.0
        %2526 = vmatpush1.xpose.msra.mxu0 0.0
        %2527 = vmatprep.subr.mxu0 0.0
        %2528 = vmatpush1.xpose.msra.mxu0 0.0
        %2529 = vmatprep.subr.mxu0 0.0
        %2530 = vmatpush1.xpose.msra.mxu0 0.0
        %2531 = vmatprep.subr.mxu0 0.0
        %2532 = vmatpush1.xpose.msra.mxu0 0.0
        %2533 = vmatprep.mubr.f32.mxu0 0.0
        %2534 = vmatmul.mubr.f32.gmra.mrb[0].mxu0 %v2461
        %v2535 = vpop.f32.mrb[0].mxu0
        %v2536 = vadd.f32 %v2269, %v2535
        %v2537 = vpop.f32.mrb[0].mxu0
        %2538 = vmatprep.mubr.f32.mxu0 0.0
        %2539 = vmatmul.mubr.f32.gmra.mrb[0].mxu0 %v2463
        %v2540 = vpop.f32.mrb[0].mxu0
        %v2541 = vadd.f32 %v2270, %v2540
        %v2542 = vpop.f32.mrb[0].mxu0
        %2543 = vdwg.mxu0
        %2544 = vrot.lane.b32.xlu0 %v502, 120
        %v2545 = vpop.permute.xlu0 %2544
        %2546 = vrot.lane.b32.xlu0 %v503, 120
        %v2547 = vpop.permute.xlu0 %2546
        %2548 = vrot.lane.b32.xlu0 %v518, 120
        %v2549 = vpop.permute.xlu0 %2548
        %2550 = vrot.lane.b32.xlu0 %v519, 120
        %v2551 = vpop.permute.xlu0 %2550
        %v2552 = vsel %vm666, %v2545, 0
        %v2554 = vsel %vm666, %v2547, 0
        %v2556 = vsel %vm666, %v2549, 0
        %v2558 = vsel %vm666, %v2551, 0
        %2560 = vmatprep.subr.mxu0 0.0
        %2561 = vmatpush1.xpose.msra.mxu0 %v2556
        %2562 = vmatprep.subr.mxu0 0.0
        %2563 = vmatpush1.xpose.msra.mxu0 %v2558
        %2564 = vmatprep.subr.mxu0 0.0
        %2565 = vmatpush1.xpose.msra.mxu0 0.0
        %2566 = vmatprep.subr.mxu0 0.0
        %2567 = vmatpush1.xpose.msra.mxu0 0.0
        %2568 = vmatprep.subr.mxu0 0.0
        %2569 = vmatpush1.xpose.msra.mxu0 0.0
        %2570 = vmatprep.subr.mxu0 0.0
        %2571 = vmatpush1.xpose.msra.mxu0 0.0
        %2572 = vmatprep.subr.mxu0 0.0
        %2573 = vmatpush1.xpose.msra.mxu0 0.0
        %2574 = vmatprep.subr.mxu0 0.0
        %2575 = vmatpush1.xpose.msra.mxu0 0.0
        %2576 = vmatprep.subr.mxu0 0.0
        %2577 = vmatpush1.xpose.msra.mxu0 0.0
        %2578 = vmatprep.subr.mxu0 0.0
        %2579 = vmatpush1.xpose.msra.mxu0 0.0
        %2580 = vmatprep.subr.mxu0 0.0
        %2581 = vmatpush1.xpose.msra.mxu0 0.0
        %2582 = vmatprep.subr.mxu0 0.0
        %2583 = vmatpush1.xpose.msra.mxu0 0.0
        %2584 = vmatprep.subr.mxu0 0.0
        %2585 = vmatpush1.xpose.msra.mxu0 0.0
        %2586 = vmatprep.subr.mxu0 0.0
        %2587 = vmatpush1.xpose.msra.mxu0 0.0
        %2588 = vmatprep.subr.mxu0 0.0
        %2589 = vmatpush1.xpose.msra.mxu0 0.0
        %2590 = vmatprep.subr.mxu0 0.0
        %2591 = vmatpush1.xpose.msra.mxu0 0.0
        %2592 = vmatprep.subr.mxu0 0.0
        %2593 = vmatpush1.xpose.msra.mxu0 0.0
        %2594 = vmatprep.subr.mxu0 0.0
        %2595 = vmatpush1.xpose.msra.mxu0 0.0
        %2596 = vmatprep.subr.mxu0 0.0
        %2597 = vmatpush1.xpose.msra.mxu0 0.0
        %2598 = vmatprep.subr.mxu0 0.0
        %2599 = vmatpush1.xpose.msra.mxu0 0.0
        %2600 = vmatprep.subr.mxu0 0.0
        %2601 = vmatpush1.xpose.msra.mxu0 0.0
        %2602 = vmatprep.subr.mxu0 0.0
        %2603 = vmatpush1.xpose.msra.mxu0 0.0
        %2604 = vmatprep.subr.mxu0 0.0
        %2605 = vmatpush1.xpose.msra.mxu0 0.0
        %2606 = vmatprep.subr.mxu0 0.0
        %2607 = vmatpush1.xpose.msra.mxu0 0.0
        %2608 = vmatprep.subr.mxu0 0.0
        %2609 = vmatpush1.xpose.msra.mxu0 0.0
        %2610 = vmatprep.subr.mxu0 0.0
        %2611 = vmatpush1.xpose.msra.mxu0 0.0
        %2612 = vmatprep.subr.mxu0 0.0
        %2613 = vmatpush1.xpose.msra.mxu0 0.0
        %2614 = vmatprep.subr.mxu0 0.0
        %2615 = vmatpush1.xpose.msra.mxu0 0.0
        %2616 = vmatprep.subr.mxu0 0.0
        %2617 = vmatpush1.xpose.msra.mxu0 0.0
        %2618 = vmatprep.subr.mxu0 0.0
        %2619 = vmatpush1.xpose.msra.mxu0 0.0
        %2620 = vmatprep.subr.mxu0 0.0
        %2621 = vmatpush1.xpose.msra.mxu0 0.0
        %2622 = vmatprep.subr.mxu0 0.0
        %2623 = vmatpush1.xpose.msra.mxu0 0.0
        %2624 = vmatprep.mubr.f32.mxu0 0.0
        %2625 = vmatmul.mubr.f32.gmra.mrb[0].mxu0 %v2552
        %v2626 = vpop.f32.mrb[0].mxu0
        %v2627 = vadd.f32 %v2269, %v2626
        %v2628 = vpop.f32.mrb[0].mxu0
        %2629 = vmatprep.mubr.f32.mxu0 0.0
        %2630 = vmatmul.mubr.f32.gmra.mrb[0].mxu0 %v2554
        %v2631 = vpop.f32.mrb[0].mxu0
        %v2632 = vadd.f32 %v2270, %v2631
        %v2633 = vpop.f32.mrb[0].mxu0
        %2634 = vdwg.mxu0
        %2635 = vrot.lane.b32.xlu0 %v504, 120
        %v2636 = vpop.permute.xlu0 %2635
        %2637 = vrot.lane.b32.xlu0 %v505, 120
        %v2638 = vpop.permute.xlu0 %2637
        %2639 = vrot.lane.b32.xlu0 %v520, 120
        %v2640 = vpop.permute.xlu0 %2639
        %2641 = vrot.lane.b32.xlu0 %v521, 120
        %v2642 = vpop.permute.xlu0 %2641
        %v2643 = vsel %vm666, %v2636, 0
        %v2645 = vsel %vm666, %v2638, 0
        %v2647 = vsel %vm666, %v2640, 0
        %v2649 = vsel %vm666, %v2642, 0
        %2651 = vmatprep.subr.mxu0 0.0
        %2652 = vmatpush1.xpose.msra.mxu0 %v2647
        %2653 = vmatprep.subr.mxu0 0.0
        %2654 = vmatpush1.xpose.msra.mxu0 %v2649
        %2655 = vmatprep.subr.mxu0 0.0
        %2656 = vmatpush1.xpose.msra.mxu0 0.0
        %2657 = vmatprep.subr.mxu0 0.0
        %2658 = vmatpush1.xpose.msra.mxu0 0.0
        %2659 = vmatprep.subr.mxu0 0.0
        %2660 = vmatpush1.xpose.msra.mxu0 0.0
        %2661 = vmatprep.subr.mxu0 0.0
        %2662 = vmatpush1.xpose.msra.mxu0 0.0
        %2663 = vmatprep.subr.mxu0 0.0
        %2664 = vmatpush1.xpose.msra.mxu0 0.0
        %2665 = vmatprep.subr.mxu0 0.0
        %2666 = vmatpush1.xpose.msra.mxu0 0.0
        %2667 = vmatprep.subr.mxu0 0.0
        %2668 = vmatpush1.xpose.msra.mxu0 0.0
        %2669 = vmatprep.subr.mxu0 0.0
        %2670 = vmatpush1.xpose.msra.mxu0 0.0
        %2671 = vmatprep.subr.mxu0 0.0
        %2672 = vmatpush1.xpose.msra.mxu0 0.0
        %2673 = vmatprep.subr.mxu0 0.0
        %2674 = vmatpush1.xpose.msra.mxu0 0.0
        %2675 = vmatprep.subr.mxu0 0.0
        %2676 = vmatpush1.xpose.msra.mxu0 0.0
        %2677 = vmatprep.subr.mxu0 0.0
        %2678 = vmatpush1.xpose.msra.mxu0 0.0
        %2679 = vmatprep.subr.mxu0 0.0
        %2680 = vmatpush1.xpose.msra.mxu0 0.0
        %2681 = vmatprep.subr.mxu0 0.0
        %2682 = vmatpush1.xpose.msra.mxu0 0.0
        %2683 = vmatprep.subr.mxu0 0.0
        %2684 = vmatpush1.xpose.msra.mxu0 0.0
        %2685 = vmatprep.subr.mxu0 0.0
        %2686 = vmatpush1.xpose.msra.mxu0 0.0
        %2687 = vmatprep.subr.mxu0 0.0
        %2688 = vmatpush1.xpose.msra.mxu0 0.0
        %2689 = vmatprep.subr.mxu0 0.0
        %2690 = vmatpush1.xpose.msra.mxu0 0.0
        %2691 = vmatprep.subr.mxu0 0.0
        %2692 = vmatpush1.xpose.msra.mxu0 0.0
        %2693 = vmatprep.subr.mxu0 0.0
        %2694 = vmatpush1.xpose.msra.mxu0 0.0
        %2695 = vmatprep.subr.mxu0 0.0
        %2696 = vmatpush1.xpose.msra.mxu0 0.0
        %2697 = vmatprep.subr.mxu0 0.0
        %2698 = vmatpush1.xpose.msra.mxu0 0.0
        %2699 = vmatprep.subr.mxu0 0.0
        %2700 = vmatpush1.xpose.msra.mxu0 0.0
        %2701 = vmatprep.subr.mxu0 0.0
        %2702 = vmatpush1.xpose.msra.mxu0 0.0
        %2703 = vmatprep.subr.mxu0 0.0
        %2704 = vmatpush1.xpose.msra.mxu0 0.0
        %2705 = vmatprep.subr.mxu0 0.0
        %2706 = vmatpush1.xpose.msra.mxu0 0.0
        %2707 = vmatprep.subr.mxu0 0.0
        %2708 = vmatpush1.xpose.msra.mxu0 0.0
        %2709 = vmatprep.subr.mxu0 0.0
        %2710 = vmatpush1.xpose.msra.mxu0 0.0
        %2711 = vmatprep.subr.mxu0 0.0
        %2712 = vmatpush1.xpose.msra.mxu0 0.0
        %2713 = vmatprep.subr.mxu0 0.0
        %2714 = vmatpush1.xpose.msra.mxu0 0.0
        %2715 = vmatprep.mubr.f32.mxu0 0.0
        %2716 = vmatmul.mubr.f32.gmra.mrb[0].mxu0 %v2643
        %v2717 = vpop.f32.mrb[0].mxu0
        %v2718 = vadd.f32 %v2269, %v2717
        %v2719 = vpop.f32.mrb[0].mxu0
        %2720 = vmatprep.mubr.f32.mxu0 0.0
        %2721 = vmatmul.mubr.f32.gmra.mrb[0].mxu0 %v2645
        %v2722 = vpop.f32.mrb[0].mxu0
        %v2723 = vadd.f32 %v2270, %v2722
        %v2724 = vpop.f32.mrb[0].mxu0
        %2725 = vdwg.mxu0
        %2726 = vrot.lane.b32.xlu0 %v506, 120
        %v2727 = vpop.permute.xlu0 %2726
        %2728 = vrot.lane.b32.xlu0 %v507, 120
        %v2729 = vpop.permute.xlu0 %2728
        %2730 = vrot.lane.b32.xlu0 %v522, 120
        %v2731 = vpop.permute.xlu0 %2730
        %2732 = vrot.lane.b32.xlu0 %v523, 120
        %v2733 = vpop.permute.xlu0 %2732
        %v2734 = vsel %vm666, %v2727, 0
        %v2736 = vsel %vm666, %v2729, 0
        %v2738 = vsel %vm666, %v2731, 0
        %v2740 = vsel %vm666, %v2733, 0
        %2742 = vmatprep.subr.mxu0 0.0
        %2743 = vmatpush1.xpose.msra.mxu0 %v2738
        %2744 = vmatprep.subr.mxu0 0.0
        %2745 = vmatpush1.xpose.msra.mxu0 %v2740
        %2746 = vmatprep.subr.mxu0 0.0
        %2747 = vmatpush1.xpose.msra.mxu0 0.0
        %2748 = vmatprep.subr.mxu0 0.0
        %2749 = vmatpush1.xpose.msra.mxu0 0.0
        %2750 = vmatprep.subr.mxu0 0.0
        %2751 = vmatpush1.xpose.msra.mxu0 0.0
        %2752 = vmatprep.subr.mxu0 0.0
        %2753 = vmatpush1.xpose.msra.mxu0 0.0
        %2754 = vmatprep.subr.mxu0 0.0
        %2755 = vmatpush1.xpose.msra.mxu0 0.0
        %2756 = vmatprep.subr.mxu0 0.0
        %2757 = vmatpush1.xpose.msra.mxu0 0.0
        %2758 = vmatprep.subr.mxu0 0.0
        %2759 = vmatpush1.xpose.msra.mxu0 0.0
        %2760 = vmatprep.subr.mxu0 0.0
        %2761 = vmatpush1.xpose.msra.mxu0 0.0
        %2762 = vmatprep.subr.mxu0 0.0
        %2763 = vmatpush1.xpose.msra.mxu0 0.0
        %2764 = vmatprep.subr.mxu0 0.0
        %2765 = vmatpush1.xpose.msra.mxu0 0.0
        %2766 = vmatprep.subr.mxu0 0.0
        %2767 = vmatpush1.xpose.msra.mxu0 0.0
        %2768 = vmatprep.subr.mxu0 0.0
        %2769 = vmatpush1.xpose.msra.mxu0 0.0
        %2770 = vmatprep.subr.mxu0 0.0
        %2771 = vmatpush1.xpose.msra.mxu0 0.0
        %2772 = vmatprep.subr.mxu0 0.0
        %2773 = vmatpush1.xpose.msra.mxu0 0.0
        %2774 = vmatprep.subr.mxu0 0.0
        %2775 = vmatpush1.xpose.msra.mxu0 0.0
        %2776 = vmatprep.subr.mxu0 0.0
        %2777 = vmatpush1.xpose.msra.mxu0 0.0
        %2778 = vmatprep.subr.mxu0 0.0
        %2779 = vmatpush1.xpose.msra.mxu0 0.0
        %2780 = vmatprep.subr.mxu0 0.0
        %2781 = vmatpush1.xpose.msra.mxu0 0.0
        %2782 = vmatprep.subr.mxu0 0.0
        %2783 = vmatpush1.xpose.msra.mxu0 0.0
        %2784 = vmatprep.subr.mxu0 0.0
        %2785 = vmatpush1.xpose.msra.mxu0 0.0
        %2786 = vmatprep.subr.mxu0 0.0
        %2787 = vmatpush1.xpose.msra.mxu0 0.0
        %2788 = vmatprep.subr.mxu0 0.0
        %2789 = vmatpush1.xpose.msra.mxu0 0.0
        %2790 = vmatprep.subr.mxu0 0.0
        %2791 = vmatpush1.xpose.msra.mxu0 0.0
        %2792 = vmatprep.subr.mxu0 0.0
        %2793 = vmatpush1.xpose.msra.mxu0 0.0
        %2794 = vmatprep.subr.mxu0 0.0
        %2795 = vmatpush1.xpose.msra.mxu0 0.0
        %2796 = vmatprep.subr.mxu0 0.0
        %2797 = vmatpush1.xpose.msra.mxu0 0.0
        %2798 = vmatprep.subr.mxu0 0.0
        %2799 = vmatpush1.xpose.msra.mxu0 0.0
        %2800 = vmatprep.subr.mxu0 0.0
        %2801 = vmatpush1.xpose.msra.mxu0 0.0
        %2802 = vmatprep.subr.mxu0 0.0
        %2803 = vmatpush1.xpose.msra.mxu0 0.0
        %2804 = vmatprep.subr.mxu0 0.0
        %2805 = vmatpush1.xpose.msra.mxu0 0.0
        %2806 = vmatprep.mubr.f32.mxu0 0.0
        %2807 = vmatmul.mubr.f32.gmra.mrb[0].mxu0 %v2734
        %v2808 = vpop.f32.mrb[0].mxu0
        %v2809 = vadd.f32 %v2269, %v2808
        %v2810 = vpop.f32.mrb[0].mxu0
        %2811 = vmatprep.mubr.f32.mxu0 0.0
        %2812 = vmatmul.mubr.f32.gmra.mrb[0].mxu0 %v2736
        %v2813 = vpop.f32.mrb[0].mxu0
        %v2814 = vadd.f32 %v2270, %v2813
        %v2815 = vpop.f32.mrb[0].mxu0
        %2816 = vdwg.mxu0
        %2817 = vrot.lane.b32.xlu0 %v508, 120
        %v2818 = vpop.permute.xlu0 %2817
        %2819 = vrot.lane.b32.xlu0 %v509, 120
        %v2820 = vpop.permute.xlu0 %2819
        %2821 = vrot.lane.b32.xlu0 %v524, 120
        %v2822 = vpop.permute.xlu0 %2821
        %2823 = vrot.lane.b32.xlu0 %v525, 120
        %v2824 = vpop.permute.xlu0 %2823
        %v2825 = vsel %vm666, %v2818, 0
        %v2827 = vsel %vm666, %v2820, 0
        %v2829 = vsel %vm666, %v2822, 0
        %v2831 = vsel %vm666, %v2824, 0
        %2833 = vmatprep.subr.mxu0 0.0
        %2834 = vmatpush1.xpose.msra.mxu0 %v2829
        %2835 = vmatprep.subr.mxu0 0.0
        %2836 = vmatpush1.xpose.msra.mxu0 %v2831
        %2837 = vmatprep.subr.mxu0 0.0
        %2838 = vmatpush1.xpose.msra.mxu0 0.0
        %2839 = vmatprep.subr.mxu0 0.0
        %2840 = vmatpush1.xpose.msra.mxu0 0.0
        %2841 = vmatprep.subr.mxu0 0.0
        %2842 = vmatpush1.xpose.msra.mxu0 0.0
        %2843 = vmatprep.subr.mxu0 0.0
        %2844 = vmatpush1.xpose.msra.mxu0 0.0
        %2845 = vmatprep.subr.mxu0 0.0
        %2846 = vmatpush1.xpose.msra.mxu0 0.0
        %2847 = vmatprep.subr.mxu0 0.0
        %2848 = vmatpush1.xpose.msra.mxu0 0.0
        %2849 = vmatprep.subr.mxu0 0.0
        %2850 = vmatpush1.xpose.msra.mxu0 0.0
        %2851 = vmatprep.subr.mxu0 0.0
        %2852 = vmatpush1.xpose.msra.mxu0 0.0
        %2853 = vmatprep.subr.mxu0 0.0
        %2854 = vmatpush1.xpose.msra.mxu0 0.0
        %2855 = vmatprep.subr.mxu0 0.0
        %2856 = vmatpush1.xpose.msra.mxu0 0.0
        %2857 = vmatprep.subr.mxu0 0.0
        %2858 = vmatpush1.xpose.msra.mxu0 0.0
        %2859 = vmatprep.subr.mxu0 0.0
        %2860 = vmatpush1.xpose.msra.mxu0 0.0
        %2861 = vmatprep.subr.mxu0 0.0
        %2862 = vmatpush1.xpose.msra.mxu0 0.0
        %2863 = vmatprep.subr.mxu0 0.0
        %2864 = vmatpush1.xpose.msra.mxu0 0.0
        %2865 = vmatprep.subr.mxu0 0.0
        %2866 = vmatpush1.xpose.msra.mxu0 0.0
        %2867 = vmatprep.subr.mxu0 0.0
        %2868 = vmatpush1.xpose.msra.mxu0 0.0
        %2869 = vmatprep.subr.mxu0 0.0
        %2870 = vmatpush1.xpose.msra.mxu0 0.0
        %2871 = vmatprep.subr.mxu0 0.0
        %2872 = vmatpush1.xpose.msra.mxu0 0.0
        %2873 = vmatprep.subr.mxu0 0.0
        %2874 = vmatpush1.xpose.msra.mxu0 0.0
        %2875 = vmatprep.subr.mxu0 0.0
        %2876 = vmatpush1.xpose.msra.mxu0 0.0
        %2877 = vmatprep.subr.mxu0 0.0
        %2878 = vmatpush1.xpose.msra.mxu0 0.0
        %2879 = vmatprep.subr.mxu0 0.0
        %2880 = vmatpush1.xpose.msra.mxu0 0.0
        %2881 = vmatprep.subr.mxu0 0.0
        %2882 = vmatpush1.xpose.msra.mxu0 0.0
        %2883 = vmatprep.subr.mxu0 0.0
        %2884 = vmatpush1.xpose.msra.mxu0 0.0
        %2885 = vmatprep.subr.mxu0 0.0
        %2886 = vmatpush1.xpose.msra.mxu0 0.0
        %2887 = vmatprep.subr.mxu0 0.0
        %2888 = vmatpush1.xpose.msra.mxu0 0.0
        %2889 = vmatprep.subr.mxu0 0.0
        %2890 = vmatpush1.xpose.msra.mxu0 0.0
        %2891 = vmatprep.subr.mxu0 0.0
        %2892 = vmatpush1.xpose.msra.mxu0 0.0
        %2893 = vmatprep.subr.mxu0 0.0
        %2894 = vmatpush1.xpose.msra.mxu0 0.0
        %2895 = vmatprep.subr.mxu0 0.0
        %2896 = vmatpush1.xpose.msra.mxu0 0.0
        %2897 = vmatprep.mubr.f32.mxu0 0.0
        %2898 = vmatmul.mubr.f32.gmra.mrb[0].mxu0 %v2825
        %v2899 = vpop.f32.mrb[0].mxu0
        %v2900 = vadd.f32 %v2269, %v2899
        %v2901 = vpop.f32.mrb[0].mxu0
        %2902 = vmatprep.mubr.f32.mxu0 0.0
        %2903 = vmatmul.mubr.f32.gmra.mrb[0].mxu0 %v2827
        %v2904 = vpop.f32.mrb[0].mxu0
        %v2905 = vadd.f32 %v2270, %v2904
        %v2906 = vpop.f32.mrb[0].mxu0
        %2907 = vdwg.mxu0
        %2908 = vrot.lane.b32.xlu0 %v510, 120
        %v2909 = vpop.permute.xlu0 %2908
        %2910 = vrot.lane.b32.xlu0 %v511, 120
        %v2911 = vpop.permute.xlu0 %2910
        %2912 = vrot.lane.b32.xlu0 %v526, 120
        %v2913 = vpop.permute.xlu0 %2912
        %2914 = vrot.lane.b32.xlu0 %v527, 120
        %v2915 = vpop.permute.xlu0 %2914
        %v2916 = vsel %vm666, %v2909, 0
        %v2918 = vsel %vm666, %v2911, 0
        %v2920 = vsel %vm666, %v2913, 0
        %v2922 = vsel %vm666, %v2915, 0
        %2924 = vmatprep.subr.mxu0 0.0
        %2925 = vmatpush1.xpose.msra.mxu0 %v2920
        %2926 = vmatprep.subr.mxu0 0.0
        %2927 = vmatpush1.xpose.msra.mxu0 %v2922
        %2928 = vmatprep.subr.mxu0 0.0
        %2929 = vmatpush1.xpose.msra.mxu0 0.0
        %2930 = vmatprep.subr.mxu0 0.0
        %2931 = vmatpush1.xpose.msra.mxu0 0.0
        %2932 = vmatprep.subr.mxu0 0.0
        %2933 = vmatpush1.xpose.msra.mxu0 0.0
        %2934 = vmatprep.subr.mxu0 0.0
        %2935 = vmatpush1.xpose.msra.mxu0 0.0
        %2936 = vmatprep.subr.mxu0 0.0
        %2937 = vmatpush1.xpose.msra.mxu0 0.0
        %2938 = vmatprep.subr.mxu0 0.0
        %2939 = vmatpush1.xpose.msra.mxu0 0.0
        %2940 = vmatprep.subr.mxu0 0.0
        %2941 = vmatpush1.xpose.msra.mxu0 0.0
        %2942 = vmatprep.subr.mxu0 0.0
        %2943 = vmatpush1.xpose.msra.mxu0 0.0
        %2944 = vmatprep.subr.mxu0 0.0
        %2945 = vmatpush1.xpose.msra.mxu0 0.0
        %2946 = vmatprep.subr.mxu0 0.0
        %2947 = vmatpush1.xpose.msra.mxu0 0.0
        %2948 = vmatprep.subr.mxu0 0.0
        %2949 = vmatpush1.xpose.msra.mxu0 0.0
        %2950 = vmatprep.subr.mxu0 0.0
        %2951 = vmatpush1.xpose.msra.mxu0 0.0
        %2952 = vmatprep.subr.mxu0 0.0
        %2953 = vmatpush1.xpose.msra.mxu0 0.0
        %2954 = vmatprep.subr.mxu0 0.0
        %2955 = vmatpush1.xpose.msra.mxu0 0.0
        %2956 = vmatprep.subr.mxu0 0.0
        %2957 = vmatpush1.xpose.msra.mxu0 0.0
        %2958 = vmatprep.subr.mxu0 0.0
        %2959 = vmatpush1.xpose.msra.mxu0 0.0
        %2960 = vmatprep.subr.mxu0 0.0
        %2961 = vmatpush1.xpose.msra.mxu0 0.0
        %2962 = vmatprep.subr.mxu0 0.0
        %2963 = vmatpush1.xpose.msra.mxu0 0.0
        %2964 = vmatprep.subr.mxu0 0.0
        %2965 = vmatpush1.xpose.msra.mxu0 0.0
        %2966 = vmatprep.subr.mxu0 0.0
        %2967 = vmatpush1.xpose.msra.mxu0 0.0
        %2968 = vmatprep.subr.mxu0 0.0
        %2969 = vmatpush1.xpose.msra.mxu0 0.0
        %2970 = vmatprep.subr.mxu0 0.0
        %2971 = vmatpush1.xpose.msra.mxu0 0.0
        %2972 = vmatprep.subr.mxu0 0.0
        %2973 = vmatpush1.xpose.msra.mxu0 0.0
        %2974 = vmatprep.subr.mxu0 0.0
        %2975 = vmatpush1.xpose.msra.mxu0 0.0
        %2976 = vmatprep.subr.mxu0 0.0
        %2977 = vmatpush1.xpose.msra.mxu0 0.0
        %2978 = vmatprep.subr.mxu0 0.0
        %2979 = vmatpush1.xpose.msra.mxu0 0.0
        %2980 = vmatprep.subr.mxu0 0.0
        %2981 = vmatpush1.xpose.msra.mxu0 0.0
        %2982 = vmatprep.subr.mxu0 0.0
        %2983 = vmatpush1.xpose.msra.mxu0 0.0
        %2984 = vmatprep.subr.mxu0 0.0
        %2985 = vmatpush1.xpose.msra.mxu0 0.0
        %2986 = vmatprep.subr.mxu0 0.0
        %2987 = vmatpush1.xpose.msra.mxu0 0.0
        %2988 = vmatprep.mubr.f32.mxu0 0.0
        %2989 = vmatmul.mubr.f32.gmra.mrb[0].mxu0 %v2916
        %v2990 = vpop.f32.mrb[0].mxu0
        %v2991 = vadd.f32 %v2269, %v2990
        %v2992 = vpop.f32.mrb[0].mxu0
        %2993 = vmatprep.mubr.f32.mxu0 0.0
        %2994 = vmatmul.mubr.f32.gmra.mrb[0].mxu0 %v2918
        %v2995 = vpop.f32.mrb[0].mxu0
        %v2996 = vadd.f32 %v2270, %v2995
        %v2997 = vpop.f32.mrb[0].mxu0
        %2998 = vdwg.mxu0
        %v2999 = vadd.f32 %v2354, %v1374
        %v3000 = vadd.f32 %v2359, %v1374
        %v3001 = vadd.f32 %v2445, %v1378
        %v3002 = vadd.f32 %v2450, %v1378
        %v3003 = vadd.f32 %v2536, %v1382
        %v3004 = vadd.f32 %v2541, %v1382
        %v3005 = vadd.f32 %v2627, %v1386
        %v3006 = vadd.f32 %v2632, %v1386
        %v3007 = vadd.f32 %v2718, %v1390
        %v3008 = vadd.f32 %v2723, %v1390
        %v3009 = vadd.f32 %v2809, %v1394
        %v3010 = vadd.f32 %v2814, %v1394
        %v3011 = vadd.f32 %v2900, %v1398
        %v3012 = vadd.f32 %v2905, %v1398
        %v3013 = vadd.f32 %v2991, %v1402
        %v3014 = vadd.f32 %v2996, %v1402
        %v3015 = vsel %vm1427, %v2999, -inf
        %3016 = vmax.xlane.f32.xlu0 %v3015
        %v3017 = vpop.xlane.xlu0 %3016
        %v3018 = vsel %vm1427, %v3000, -inf
        %3019 = vmax.xlane.f32.xlu0 %v3018
        %v3020 = vpop.xlane.xlu0 %3019
        %v3021 = vsel %vm1427, %v3001, -inf
        %3022 = vmax.xlane.f32.xlu0 %v3021
        %v3023 = vpop.xlane.xlu0 %3022
        %v3024 = vsel %vm1427, %v3002, -inf
        %3025 = vmax.xlane.f32.xlu0 %v3024
        %v3026 = vpop.xlane.xlu0 %3025
        %v3027 = vsel %vm1427, %v3003, -inf
        %3028 = vmax.xlane.f32.xlu0 %v3027
        %v3029 = vpop.xlane.xlu0 %3028
        %v3030 = vsel %vm1427, %v3004, -inf
        %3031 = vmax.xlane.f32.xlu0 %v3030
        %v3032 = vpop.xlane.xlu0 %3031
        %v3033 = vsel %vm1427, %v3005, -inf
        %3034 = vmax.xlane.f32.xlu0 %v3033
        %v3035 = vpop.xlane.xlu0 %3034
        %v3036 = vsel %vm1427, %v3006, -inf
        %3037 = vmax.xlane.f32.xlu0 %v3036
        %v3038 = vpop.xlane.xlu0 %3037
        %v3039 = vsel %vm1427, %v3007, -inf
        %3040 = vmax.xlane.f32.xlu0 %v3039
        %v3041 = vpop.xlane.xlu0 %3040
        %v3042 = vsel %vm1427, %v3008, -inf
        %3043 = vmax.xlane.f32.xlu0 %v3042
        %v3044 = vpop.xlane.xlu0 %3043
        %v3045 = vsel %vm1427, %v3009, -inf
        %3046 = vmax.xlane.f32.xlu0 %v3045
        %v3047 = vpop.xlane.xlu0 %3046
        %v3048 = vsel %vm1427, %v3010, -inf
        %3049 = vmax.xlane.f32.xlu0 %v3048
        %v3050 = vpop.xlane.xlu0 %3049
        %v3051 = vsel %vm1427, %v3011, -inf
        %3052 = vmax.xlane.f32.xlu0 %v3051
        %v3053 = vpop.xlane.xlu0 %3052
        %v3054 = vsel %vm1427, %v3012, -inf
        %3055 = vmax.xlane.f32.xlu0 %v3054
        %v3056 = vpop.xlane.xlu0 %3055
        %v3057 = vsel %vm1427, %v3013, -inf
        %3058 = vmax.xlane.f32.xlu0 %v3057
        %v3059 = vpop.xlane.xlu0 %3058
        %v3060 = vsel %vm1427, %v3014, -inf
        %3061 = vmax.xlane.f32.xlu0 %v3060
        %v3062 = vpop.xlane.xlu0 %3061
        %v3063 = vsub.f32 %v2999, %v3017
        %v3064 = vsub.f32 %v3000, %v3020
        %v3065 = vsub.f32 %v3001, %v3023
        %v3066 = vsub.f32 %v3002, %v3026
        %v3067 = vsub.f32 %v3003, %v3029
        %v3068 = vsub.f32 %v3004, %v3032
        %v3069 = vsub.f32 %v3005, %v3035
        %v3070 = vsub.f32 %v3006, %v3038
        %v3071 = vsub.f32 %v3007, %v3041
        %v3072 = vsub.f32 %v3008, %v3044
        %v3073 = vsub.f32 %v3009, %v3047
        %v3074 = vsub.f32 %v3010, %v3050
        %v3075 = vsub.f32 %v3011, %v3053
        %v3076 = vsub.f32 %v3012, %v3056
        %v3077 = vsub.f32 %v3013, %v3059
        %v3078 = vsub.f32 %v3014, %v3062
        %v3079 = vmul.f32 %v3063, 1.442695
        %v3080 = vpow.pop %v3079
        %v3081 = vmul.f32 %v3064, 1.442695
        %v3082 = vpow.pop %v3081
        %v3083 = vmul.f32 %v3065, 1.442695
        %v3084 = vpow.pop %v3083
        %v3085 = vmul.f32 %v3066, 1.442695
        %v3086 = vpow.pop %v3085
        %v3087 = vmul.f32 %v3067, 1.442695
        %v3088 = vpow.pop %v3087
        %v3089 = vmul.f32 %v3068, 1.442695
        %v3090 = vpow.pop %v3089
        %v3091 = vmul.f32 %v3069, 1.442695
        %v3092 = vpow.pop %v3091
        %v3093 = vmul.f32 %v3070, 1.442695
        %v3094 = vpow.pop %v3093
        %v3095 = vmul.f32 %v3071, 1.442695
        %v3096 = vpow.pop %v3095
        %v3097 = vmul.f32 %v3072, 1.442695
        %v3098 = vpow.pop %v3097
        %v3099 = vmul.f32 %v3073, 1.442695
        %v3100 = vpow.pop %v3099
        %v3101 = vmul.f32 %v3074, 1.442695
        %v3102 = vpow.pop %v3101
        %v3103 = vmul.f32 %v3075, 1.442695
        %v3104 = vpow.pop %v3103
        %v3105 = vmul.f32 %v3076, 1.442695
        %v3106 = vpow.pop %v3105
        %v3107 = vmul.f32 %v3077, 1.442695
        %v3108 = vpow.pop %v3107
        %v3109 = vmul.f32 %v3078, 1.442695
        %v3110 = vpow.pop %v3109
        %v3111 = vsel %vm1427, %v3080, 0.0
        %3112 = vadd.xlane.f32.xlu0 %v3111
        %v3113 = vpop.xlane.xlu0 %3112
        %v3114 = vsel %vm1427, %v3082, 0.0
        %3115 = vadd.xlane.f32.xlu0 %v3114
        %v3116 = vpop.xlane.xlu0 %3115
        %v3117 = vsel %vm1427, %v3084, 0.0
        %3118 = vadd.xlane.f32.xlu0 %v3117
        %v3119 = vpop.xlane.xlu0 %3118
        %v3120 = vsel %vm1427, %v3086, 0.0
        %3121 = vadd.xlane.f32.xlu0 %v3120
        %v3122 = vpop.xlane.xlu0 %3121
        %v3123 = vsel %vm1427, %v3088, 0.0
        %3124 = vadd.xlane.f32.xlu0 %v3123
        %v3125 = vpop.xlane.xlu0 %3124
        %v3126 = vsel %vm1427, %v3090, 0.0
        %3127 = vadd.xlane.f32.xlu0 %v3126
        %v3128 = vpop.xlane.xlu0 %3127
        %v3129 = vsel %vm1427, %v3092, 0.0
        %3130 = vadd.xlane.f32.xlu0 %v3129
        %v3131 = vpop.xlane.xlu0 %3130
        %v3132 = vsel %vm1427, %v3094, 0.0
        %3133 = vadd.xlane.f32.xlu0 %v3132
        %v3134 = vpop.xlane.xlu0 %3133
        %v3135 = vsel %vm1427, %v3096, 0.0
        %3136 = vadd.xlane.f32.xlu0 %v3135
        %v3137 = vpop.xlane.xlu0 %3136
        %v3138 = vsel %vm1427, %v3098, 0.0
        %3139 = vadd.xlane.f32.xlu0 %v3138
        %v3140 = vpop.xlane.xlu0 %3139
        %v3141 = vsel %vm1427, %v3100, 0.0
        %3142 = vadd.xlane.f32.xlu0 %v3141
        %v3143 = vpop.xlane.xlu0 %3142
        %v3144 = vsel %vm1427, %v3102, 0.0
        %3145 = vadd.xlane.f32.xlu0 %v3144
        %v3146 = vpop.xlane.xlu0 %3145
        %v3147 = vsel %vm1427, %v3104, 0.0
        %3148 = vadd.xlane.f32.xlu0 %v3147
        %v3149 = vpop.xlane.xlu0 %3148
        %v3150 = vsel %vm1427, %v3106, 0.0
        %3151 = vadd.xlane.f32.xlu0 %v3150
        %v3152 = vpop.xlane.xlu0 %3151
        %v3153 = vsel %vm1427, %v3108, 0.0
        %3154 = vadd.xlane.f32.xlu0 %v3153
        %v3155 = vpop.xlane.xlu0 %3154
        %v3156 = vsel %vm1427, %v3110, 0.0
        %3157 = vadd.xlane.f32.xlu0 %v3156
        %v3158 = vpop.xlane.xlu0 %3157
        %3161 = vrot.lane.b32.xlu0 %v528, 120
        %v3162 = vpop.permute.xlu0 %3161
        %3163 = vrot.lane.b32.xlu0 %v529, 120
        %v3164 = vpop.permute.xlu0 %3163
        %v3168 = vsel %vm1427, %v3080, 0
        %v3171 = vsel %vm1427, %v3082, 0
        %3173 = vmatprep.subr.mxu0 0.0
        %3174 = vmatpush1.msra.mxu0 %v3162
        %3175 = vmatprep.subr.mxu0 0.0
        %3176 = vmatpush1.msra.mxu0 %v3164
        %3177 = vmatprep.subr.mxu0 0.0
        %3178 = vmatpush1.msra.mxu0 0.0
        %3179 = vmatprep.subr.mxu0 0.0
        %3180 = vmatpush1.msra.mxu0 0.0
        %3181 = vmatprep.subr.mxu0 0.0
        %3182 = vmatpush1.msra.mxu0 0.0
        %3183 = vmatprep.subr.mxu0 0.0
        %3184 = vmatpush1.msra.mxu0 0.0
        %3185 = vmatprep.subr.mxu0 0.0
        %3186 = vmatpush1.msra.mxu0 0.0
        %3187 = vmatprep.subr.mxu0 0.0
        %3188 = vmatpush1.msra.mxu0 0.0
        %3189 = vmatprep.subr.mxu0 0.0
        %3190 = vmatpush1.msra.mxu0 0.0
        %3191 = vmatprep.subr.mxu0 0.0
        %3192 = vmatpush1.msra.mxu0 0.0
        %3193 = vmatprep.subr.mxu0 0.0
        %3194 = vmatpush1.msra.mxu0 0.0
        %3195 = vmatprep.subr.mxu0 0.0
        %3196 = vmatpush1.msra.mxu0 0.0
        %3197 = vmatprep.subr.mxu0 0.0
        %3198 = vmatpush1.msra.mxu0 0.0
        %3199 = vmatprep.subr.mxu0 0.0
        %3200 = vmatpush1.msra.mxu0 0.0
        %3201 = vmatprep.subr.mxu0 0.0
        %3202 = vmatpush1.msra.mxu0 0.0
        %3203 = vmatprep.subr.mxu0 0.0
        %3204 = vmatpush1.msra.mxu0 0.0
        %3205 = vmatprep.subr.mxu0 0.0
        %3206 = vmatpush1.msra.mxu0 0.0
        %3207 = vmatprep.subr.mxu0 0.0
        %3208 = vmatpush1.msra.mxu0 0.0
        %3209 = vmatprep.subr.mxu0 0.0
        %3210 = vmatpush1.msra.mxu0 0.0
        %3211 = vmatprep.subr.mxu0 0.0
        %3212 = vmatpush1.msra.mxu0 0.0
        %3213 = vmatprep.subr.mxu0 0.0
        %3214 = vmatpush1.msra.mxu0 0.0
        %3215 = vmatprep.subr.mxu0 0.0
        %3216 = vmatpush1.msra.mxu0 0.0
        %3217 = vmatprep.subr.mxu0 0.0
        %3218 = vmatpush1.msra.mxu0 0.0
        %3219 = vmatprep.subr.mxu0 0.0
        %3220 = vmatpush1.msra.mxu0 0.0
        %3221 = vmatprep.subr.mxu0 0.0
        %3222 = vmatpush1.msra.mxu0 0.0
        %3223 = vmatprep.subr.mxu0 0.0
        %3224 = vmatpush1.msra.mxu0 0.0
        %3225 = vmatprep.subr.mxu0 0.0
        %3226 = vmatpush1.msra.mxu0 0.0
        %3227 = vmatprep.subr.mxu0 0.0
        %3228 = vmatpush1.msra.mxu0 0.0
        %3229 = vmatprep.subr.mxu0 0.0
        %3230 = vmatpush1.msra.mxu0 0.0
        %3231 = vmatprep.subr.mxu0 0.0
        %3232 = vmatpush1.msra.mxu0 0.0
        %3233 = vmatprep.subr.mxu0 0.0
        %3234 = vmatpush1.msra.mxu0 0.0
        %3235 = vmatprep.subr.mxu0 0.0
        %3236 = vmatpush1.msra.mxu0 0.0
        %3237 = vmatprep.mubr.f32.mxu0 0.0
        %3238 = vmatmul.mubr.f32.gmra.mrb[0].mxu0 %v3168
        %v3239 = vpop.f32.mrb[0].mxu0
        %v3240 = vadd.f32 0.0, %v3239
        %v3241 = vpop.f32.mrb[0].mxu0
        %3242 = vmatprep.mubr.f32.mxu0 0.0
        %3243 = vmatmul.mubr.f32.gmra.mrb[0].mxu0 %v3171
        %v3244 = vpop.f32.mrb[0].mxu0
        %v3245 = vadd.f32 0.0, %v3244
        %v3246 = vpop.f32.mrb[0].mxu0
        %3247 = vdwg.mxu0
        %3250 = vrot.lane.b32.xlu0 %v530, 120
        %v3251 = vpop.permute.xlu0 %3250
        %3252 = vrot.lane.b32.xlu0 %v531, 120
        %v3253 = vpop.permute.xlu0 %3252
        %v3257 = vsel %vm1427, %v3084, 0
        %v3260 = vsel %vm1427, %v3086, 0
        %3262 = vmatprep.subr.mxu0 0.0
        %3263 = vmatpush1.msra.mxu0 %v3251
        %3264 = vmatprep.subr.mxu0 0.0
        %3265 = vmatpush1.msra.mxu0 %v3253
        %3266 = vmatprep.subr.mxu0 0.0
        %3267 = vmatpush1.msra.mxu0 0.0
        %3268 = vmatprep.subr.mxu0 0.0
        %3269 = vmatpush1.msra.mxu0 0.0
        %3270 = vmatprep.subr.mxu0 0.0
        %3271 = vmatpush1.msra.mxu0 0.0
        %3272 = vmatprep.subr.mxu0 0.0
        %3273 = vmatpush1.msra.mxu0 0.0
        %3274 = vmatprep.subr.mxu0 0.0
        %3275 = vmatpush1.msra.mxu0 0.0
        %3276 = vmatprep.subr.mxu0 0.0
        %3277 = vmatpush1.msra.mxu0 0.0
        %3278 = vmatprep.subr.mxu0 0.0
        %3279 = vmatpush1.msra.mxu0 0.0
        %3280 = vmatprep.subr.mxu0 0.0
        %3281 = vmatpush1.msra.mxu0 0.0
        %3282 = vmatprep.subr.mxu0 0.0
        %3283 = vmatpush1.msra.mxu0 0.0
        %3284 = vmatprep.subr.mxu0 0.0
        %3285 = vmatpush1.msra.mxu0 0.0
        %3286 = vmatprep.subr.mxu0 0.0
        %3287 = vmatpush1.msra.mxu0 0.0
        %3288 = vmatprep.subr.mxu0 0.0
        %3289 = vmatpush1.msra.mxu0 0.0
        %3290 = vmatprep.subr.mxu0 0.0
        %3291 = vmatpush1.msra.mxu0 0.0
        %3292 = vmatprep.subr.mxu0 0.0
        %3293 = vmatpush1.msra.mxu0 0.0
        %3294 = vmatprep.subr.mxu0 0.0
        %3295 = vmatpush1.msra.mxu0 0.0
        %3296 = vmatprep.subr.mxu0 0.0
        %3297 = vmatpush1.msra.mxu0 0.0
        %3298 = vmatprep.subr.mxu0 0.0
        %3299 = vmatpush1.msra.mxu0 0.0
        %3300 = vmatprep.subr.mxu0 0.0
        %3301 = vmatpush1.msra.mxu0 0.0
        %3302 = vmatprep.subr.mxu0 0.0
        %3303 = vmatpush1.msra.mxu0 0.0
        %3304 = vmatprep.subr.mxu0 0.0
        %3305 = vmatpush1.msra.mxu0 0.0
        %3306 = vmatprep.subr.mxu0 0.0
        %3307 = vmatpush1.msra.mxu0 0.0
        %3308 = vmatprep.subr.mxu0 0.0
        %3309 = vmatpush1.msra.mxu0 0.0
        %3310 = vmatprep.subr.mxu0 0.0
        %3311 = vmatpush1.msra.mxu0 0.0
        %3312 = vmatprep.subr.mxu0 0.0
        %3313 = vmatpush1.msra.mxu0 0.0
        %3314 = vmatprep.subr.mxu0 0.0
        %3315 = vmatpush1.msra.mxu0 0.0
        %3316 = vmatprep.subr.mxu0 0.0
        %3317 = vmatpush1.msra.mxu0 0.0
        %3318 = vmatprep.subr.mxu0 0.0
        %3319 = vmatpush1.msra.mxu0 0.0
        %3320 = vmatprep.subr.mxu0 0.0
        %3321 = vmatpush1.msra.mxu0 0.0
        %3322 = vmatprep.subr.mxu0 0.0
        %3323 = vmatpush1.msra.mxu0 0.0
        %3324 = vmatprep.subr.mxu0 0.0
        %3325 = vmatpush1.msra.mxu0 0.0
        %3326 = vmatprep.mubr.f32.mxu0 0.0
        %3327 = vmatmul.mubr.f32.gmra.mrb[0].mxu0 %v3257
        %v3328 = vpop.f32.mrb[0].mxu0
        %v3329 = vadd.f32 0.0, %v3328
        %v3330 = vpop.f32.mrb[0].mxu0
        %3331 = vmatprep.mubr.f32.mxu0 0.0
        %3332 = vmatmul.mubr.f32.gmra.mrb[0].mxu0 %v3260
        %v3333 = vpop.f32.mrb[0].mxu0
        %v3334 = vadd.f32 0.0, %v3333
        %v3335 = vpop.f32.mrb[0].mxu0
        %3336 = vdwg.mxu0
        %3339 = vrot.lane.b32.xlu0 %v532, 120
        %v3340 = vpop.permute.xlu0 %3339
        %3341 = vrot.lane.b32.xlu0 %v533, 120
        %v3342 = vpop.permute.xlu0 %3341
        %v3346 = vsel %vm1427, %v3088, 0
        %v3349 = vsel %vm1427, %v3090, 0
        %3351 = vmatprep.subr.mxu0 0.0
        %3352 = vmatpush1.msra.mxu0 %v3340
        %3353 = vmatprep.subr.mxu0 0.0
        %3354 = vmatpush1.msra.mxu0 %v3342
        %3355 = vmatprep.subr.mxu0 0.0
        %3356 = vmatpush1.msra.mxu0 0.0
        %3357 = vmatprep.subr.mxu0 0.0
        %3358 = vmatpush1.msra.mxu0 0.0
        %3359 = vmatprep.subr.mxu0 0.0
        %3360 = vmatpush1.msra.mxu0 0.0
        %3361 = vmatprep.subr.mxu0 0.0
        %3362 = vmatpush1.msra.mxu0 0.0
        %3363 = vmatprep.subr.mxu0 0.0
        %3364 = vmatpush1.msra.mxu0 0.0
        %3365 = vmatprep.subr.mxu0 0.0
        %3366 = vmatpush1.msra.mxu0 0.0
        %3367 = vmatprep.subr.mxu0 0.0
        %3368 = vmatpush1.msra.mxu0 0.0
        %3369 = vmatprep.subr.mxu0 0.0
        %3370 = vmatpush1.msra.mxu0 0.0
        %3371 = vmatprep.subr.mxu0 0.0
        %3372 = vmatpush1.msra.mxu0 0.0
        %3373 = vmatprep.subr.mxu0 0.0
        %3374 = vmatpush1.msra.mxu0 0.0
        %3375 = vmatprep.subr.mxu0 0.0
        %3376 = vmatpush1.msra.mxu0 0.0
        %3377 = vmatprep.subr.mxu0 0.0
        %3378 = vmatpush1.msra.mxu0 0.0
        %3379 = vmatprep.subr.mxu0 0.0
        %3380 = vmatpush1.msra.mxu0 0.0
        %3381 = vmatprep.subr.mxu0 0.0
        %3382 = vmatpush1.msra.mxu0 0.0
        %3383 = vmatprep.subr.mxu0 0.0
        %3384 = vmatpush1.msra.mxu0 0.0
        %3385 = vmatprep.subr.mxu0 0.0
        %3386 = vmatpush1.msra.mxu0 0.0
        %3387 = vmatprep.subr.mxu0 0.0
        %3388 = vmatpush1.msra.mxu0 0.0
        %3389 = vmatprep.subr.mxu0 0.0
        %3390 = vmatpush1.msra.mxu0 0.0
        %3391 = vmatprep.subr.mxu0 0.0
        %3392 = vmatpush1.msra.mxu0 0.0
        %3393 = vmatprep.subr.mxu0 0.0
        %3394 = vmatpush1.msra.mxu0 0.0
        %3395 = vmatprep.subr.mxu0 0.0
        %3396 = vmatpush1.msra.mxu0 0.0
        %3397 = vmatprep.subr.mxu0 0.0
        %3398 = vmatpush1.msra.mxu0 0.0
        %3399 = vmatprep.subr.mxu0 0.0
        %3400 = vmatpush1.msra.mxu0 0.0
        %3401 = vmatprep.subr.mxu0 0.0
        %3402 = vmatpush1.msra.mxu0 0.0
        %3403 = vmatprep.subr.mxu0 0.0
        %3404 = vmatpush1.msra.mxu0 0.0
        %3405 = vmatprep.subr.mxu0 0.0
        %3406 = vmatpush1.msra.mxu0 0.0
        %3407 = vmatprep.subr.mxu0 0.0
        %3408 = vmatpush1.msra.mxu0 0.0
        %3409 = vmatprep.subr.mxu0 0.0
        %3410 = vmatpush1.msra.mxu0 0.0
        %3411 = vmatprep.subr.mxu0 0.0
        %3412 = vmatpush1.msra.mxu0 0.0
        %3413 = vmatprep.subr.mxu0 0.0
        %3414 = vmatpush1.msra.mxu0 0.0
        %3415 = vmatprep.mubr.f32.mxu0 0.0
        %3416 = vmatmul.mubr.f32.gmra.mrb[0].mxu0 %v3346
        %v3417 = vpop.f32.mrb[0].mxu0
        %v3418 = vadd.f32 0.0, %v3417
        %v3419 = vpop.f32.mrb[0].mxu0
        %3420 = vmatprep.mubr.f32.mxu0 0.0
        %3421 = vmatmul.mubr.f32.gmra.mrb[0].mxu0 %v3349
        %v3422 = vpop.f32.mrb[0].mxu0
        %v3423 = vadd.f32 0.0, %v3422
        %v3424 = vpop.f32.mrb[0].mxu0
        %3425 = vdwg.mxu0
        %3428 = vrot.lane.b32.xlu0 %v534, 120
        %v3429 = vpop.permute.xlu0 %3428
        %3430 = vrot.lane.b32.xlu0 %v535, 120
        %v3431 = vpop.permute.xlu0 %3430
        %v3435 = vsel %vm1427, %v3092, 0
        %v3438 = vsel %vm1427, %v3094, 0
        %3440 = vmatprep.subr.mxu0 0.0
        %3441 = vmatpush1.msra.mxu0 %v3429
        %3442 = vmatprep.subr.mxu0 0.0
        %3443 = vmatpush1.msra.mxu0 %v3431
        %3444 = vmatprep.subr.mxu0 0.0
        %3445 = vmatpush1.msra.mxu0 0.0
        %3446 = vmatprep.subr.mxu0 0.0
        %3447 = vmatpush1.msra.mxu0 0.0
        %3448 = vmatprep.subr.mxu0 0.0
        %3449 = vmatpush1.msra.mxu0 0.0
        %3450 = vmatprep.subr.mxu0 0.0
        %3451 = vmatpush1.msra.mxu0 0.0
        %3452 = vmatprep.subr.mxu0 0.0
        %3453 = vmatpush1.msra.mxu0 0.0
        %3454 = vmatprep.subr.mxu0 0.0
        %3455 = vmatpush1.msra.mxu0 0.0
        %3456 = vmatprep.subr.mxu0 0.0
        %3457 = vmatpush1.msra.mxu0 0.0
        %3458 = vmatprep.subr.mxu0 0.0
        %3459 = vmatpush1.msra.mxu0 0.0
        %3460 = vmatprep.subr.mxu0 0.0
        %3461 = vmatpush1.msra.mxu0 0.0
        %3462 = vmatprep.subr.mxu0 0.0
        %3463 = vmatpush1.msra.mxu0 0.0
        %3464 = vmatprep.subr.mxu0 0.0
        %3465 = vmatpush1.msra.mxu0 0.0
        %3466 = vmatprep.subr.mxu0 0.0
        %3467 = vmatpush1.msra.mxu0 0.0
        %3468 = vmatprep.subr.mxu0 0.0
        %3469 = vmatpush1.msra.mxu0 0.0
        %3470 = vmatprep.subr.mxu0 0.0
        %3471 = vmatpush1.msra.mxu0 0.0
        %3472 = vmatprep.subr.mxu0 0.0
        %3473 = vmatpush1.msra.mxu0 0.0
        %3474 = vmatprep.subr.mxu0 0.0
        %3475 = vmatpush1.msra.mxu0 0.0
        %3476 = vmatprep.subr.mxu0 0.0
        %3477 = vmatpush1.msra.mxu0 0.0
        %3478 = vmatprep.subr.mxu0 0.0
        %3479 = vmatpush1.msra.mxu0 0.0
        %3480 = vmatprep.subr.mxu0 0.0
        %3481 = vmatpush1.msra.mxu0 0.0
        %3482 = vmatprep.subr.mxu0 0.0
        %3483 = vmatpush1.msra.mxu0 0.0
        %3484 = vmatprep.subr.mxu0 0.0
        %3485 = vmatpush1.msra.mxu0 0.0
        %3486 = vmatprep.subr.mxu0 0.0
        %3487 = vmatpush1.msra.mxu0 0.0
        %3488 = vmatprep.subr.mxu0 0.0
        %3489 = vmatpush1.msra.mxu0 0.0
        %3490 = vmatprep.subr.mxu0 0.0
        %3491 = vmatpush1.msra.mxu0 0.0
        %3492 = vmatprep.subr.mxu0 0.0
        %3493 = vmatpush1.msra.mxu0 0.0
        %3494 = vmatprep.subr.mxu0 0.0
        %3495 = vmatpush1.msra.mxu0 0.0
        %3496 = vmatprep.subr.mxu0 0.0
        %3497 = vmatpush1.msra.mxu0 0.0
        %3498 = vmatprep.subr.mxu0 0.0
        %3499 = vmatpush1.msra.mxu0 0.0
        %3500 = vmatprep.subr.mxu0 0.0
        %3501 = vmatpush1.msra.mxu0 0.0
        %3502 = vmatprep.subr.mxu0 0.0
        %3503 = vmatpush1.msra.mxu0 0.0
        %3504 = vmatprep.mubr.f32.mxu0 0.0
        %3505 = vmatmul.mubr.f32.gmra.mrb[0].mxu0 %v3435
        %v3506 = vpop.f32.mrb[0].mxu0
        %v3507 = vadd.f32 0.0, %v3506
        %v3508 = vpop.f32.mrb[0].mxu0
        %3509 = vmatprep.mubr.f32.mxu0 0.0
        %3510 = vmatmul.mubr.f32.gmra.mrb[0].mxu0 %v3438
        %v3511 = vpop.f32.mrb[0].mxu0
        %v3512 = vadd.f32 0.0, %v3511
        %v3513 = vpop.f32.mrb[0].mxu0
        %3514 = vdwg.mxu0
        %3517 = vrot.lane.b32.xlu0 %v536, 120
        %v3518 = vpop.permute.xlu0 %3517
        %3519 = vrot.lane.b32.xlu0 %v537, 120
        %v3520 = vpop.permute.xlu0 %3519
        %v3524 = vsel %vm1427, %v3096, 0
        %v3527 = vsel %vm1427, %v3098, 0
        %3529 = vmatprep.subr.mxu0 0.0
        %3530 = vmatpush1.msra.mxu0 %v3518
        %3531 = vmatprep.subr.mxu0 0.0
        %3532 = vmatpush1.msra.mxu0 %v3520
        %3533 = vmatprep.subr.mxu0 0.0
        %3534 = vmatpush1.msra.mxu0 0.0
        %3535 = vmatprep.subr.mxu0 0.0
        %3536 = vmatpush1.msra.mxu0 0.0
        %3537 = vmatprep.subr.mxu0 0.0
        %3538 = vmatpush1.msra.mxu0 0.0
        %3539 = vmatprep.subr.mxu0 0.0
        %3540 = vmatpush1.msra.mxu0 0.0
        %3541 = vmatprep.subr.mxu0 0.0
        %3542 = vmatpush1.msra.mxu0 0.0
        %3543 = vmatprep.subr.mxu0 0.0
        %3544 = vmatpush1.msra.mxu0 0.0
        %3545 = vmatprep.subr.mxu0 0.0
        %3546 = vmatpush1.msra.mxu0 0.0
        %3547 = vmatprep.subr.mxu0 0.0
        %3548 = vmatpush1.msra.mxu0 0.0
        %3549 = vmatprep.subr.mxu0 0.0
        %3550 = vmatpush1.msra.mxu0 0.0
        %3551 = vmatprep.subr.mxu0 0.0
        %3552 = vmatpush1.msra.mxu0 0.0
        %3553 = vmatprep.subr.mxu0 0.0
        %3554 = vmatpush1.msra.mxu0 0.0
        %3555 = vmatprep.subr.mxu0 0.0
        %3556 = vmatpush1.msra.mxu0 0.0
        %3557 = vmatprep.subr.mxu0 0.0
        %3558 = vmatpush1.msra.mxu0 0.0
        %3559 = vmatprep.subr.mxu0 0.0
        %3560 = vmatpush1.msra.mxu0 0.0
        %3561 = vmatprep.subr.mxu0 0.0
        %3562 = vmatpush1.msra.mxu0 0.0
        %3563 = vmatprep.subr.mxu0 0.0
        %3564 = vmatpush1.msra.mxu0 0.0
        %3565 = vmatprep.subr.mxu0 0.0
        %3566 = vmatpush1.msra.mxu0 0.0
        %3567 = vmatprep.subr.mxu0 0.0
        %3568 = vmatpush1.msra.mxu0 0.0
        %3569 = vmatprep.subr.mxu0 0.0
        %3570 = vmatpush1.msra.mxu0 0.0
        %3571 = vmatprep.subr.mxu0 0.0
        %3572 = vmatpush1.msra.mxu0 0.0
        %3573 = vmatprep.subr.mxu0 0.0
        %3574 = vmatpush1.msra.mxu0 0.0
        %3575 = vmatprep.subr.mxu0 0.0
        %3576 = vmatpush1.msra.mxu0 0.0
        %3577 = vmatprep.subr.mxu0 0.0
        %3578 = vmatpush1.msra.mxu0 0.0
        %3579 = vmatprep.subr.mxu0 0.0
        %3580 = vmatpush1.msra.mxu0 0.0
        %3581 = vmatprep.subr.mxu0 0.0
        %3582 = vmatpush1.msra.mxu0 0.0
        %3583 = vmatprep.subr.mxu0 0.0
        %3584 = vmatpush1.msra.mxu0 0.0
        %3585 = vmatprep.subr.mxu0 0.0
        %3586 = vmatpush1.msra.mxu0 0.0
        %3587 = vmatprep.subr.mxu0 0.0
        %3588 = vmatpush1.msra.mxu0 0.0
        %3589 = vmatprep.subr.mxu0 0.0
        %3590 = vmatpush1.msra.mxu0 0.0
        %3591 = vmatprep.subr.mxu0 0.0
        %3592 = vmatpush1.msra.mxu0 0.0
        %3593 = vmatprep.mubr.f32.mxu0 0.0
        %3594 = vmatmul.mubr.f32.gmra.mrb[0].mxu0 %v3524
        %v3595 = vpop.f32.mrb[0].mxu0
        %v3596 = vadd.f32 0.0, %v3595
        %v3597 = vpop.f32.mrb[0].mxu0
        %3598 = vmatprep.mubr.f32.mxu0 0.0
        %3599 = vmatmul.mubr.f32.gmra.mrb[0].mxu0 %v3527
        %v3600 = vpop.f32.mrb[0].mxu0
        %v3601 = vadd.f32 0.0, %v3600
        %v3602 = vpop.f32.mrb[0].mxu0
        %3603 = vdwg.mxu0
        %3606 = vrot.lane.b32.xlu0 %v538, 120
        %v3607 = vpop.permute.xlu0 %3606
        %3608 = vrot.lane.b32.xlu0 %v539, 120
        %v3609 = vpop.permute.xlu0 %3608
        %v3613 = vsel %vm1427, %v3100, 0
        %v3616 = vsel %vm1427, %v3102, 0
        %3618 = vmatprep.subr.mxu0 0.0
        %3619 = vmatpush1.msra.mxu0 %v3607
        %3620 = vmatprep.subr.mxu0 0.0
        %3621 = vmatpush1.msra.mxu0 %v3609
        %3622 = vmatprep.subr.mxu0 0.0
        %3623 = vmatpush1.msra.mxu0 0.0
        %3624 = vmatprep.subr.mxu0 0.0
        %3625 = vmatpush1.msra.mxu0 0.0
        %3626 = vmatprep.subr.mxu0 0.0
        %3627 = vmatpush1.msra.mxu0 0.0
        %3628 = vmatprep.subr.mxu0 0.0
        %3629 = vmatpush1.msra.mxu0 0.0
        %3630 = vmatprep.subr.mxu0 0.0
        %3631 = vmatpush1.msra.mxu0 0.0
        %3632 = vmatprep.subr.mxu0 0.0
        %3633 = vmatpush1.msra.mxu0 0.0
        %3634 = vmatprep.subr.mxu0 0.0
        %3635 = vmatpush1.msra.mxu0 0.0
        %3636 = vmatprep.subr.mxu0 0.0
        %3637 = vmatpush1.msra.mxu0 0.0
        %3638 = vmatprep.subr.mxu0 0.0
        %3639 = vmatpush1.msra.mxu0 0.0
        %3640 = vmatprep.subr.mxu0 0.0
        %3641 = vmatpush1.msra.mxu0 0.0
        %3642 = vmatprep.subr.mxu0 0.0
        %3643 = vmatpush1.msra.mxu0 0.0
        %3644 = vmatprep.subr.mxu0 0.0
        %3645 = vmatpush1.msra.mxu0 0.0
        %3646 = vmatprep.subr.mxu0 0.0
        %3647 = vmatpush1.msra.mxu0 0.0
        %3648 = vmatprep.subr.mxu0 0.0
        %3649 = vmatpush1.msra.mxu0 0.0
        %3650 = vmatprep.subr.mxu0 0.0
        %3651 = vmatpush1.msra.mxu0 0.0
        %3652 = vmatprep.subr.mxu0 0.0
        %3653 = vmatpush1.msra.mxu0 0.0
        %3654 = vmatprep.subr.mxu0 0.0
        %3655 = vmatpush1.msra.mxu0 0.0
        %3656 = vmatprep.subr.mxu0 0.0
        %3657 = vmatpush1.msra.mxu0 0.0
        %3658 = vmatprep.subr.mxu0 0.0
        %3659 = vmatpush1.msra.mxu0 0.0
        %3660 = vmatprep.subr.mxu0 0.0
        %3661 = vmatpush1.msra.mxu0 0.0
        %3662 = vmatprep.subr.mxu0 0.0
        %3663 = vmatpush1.msra.mxu0 0.0
        %3664 = vmatprep.subr.mxu0 0.0
        %3665 = vmatpush1.msra.mxu0 0.0
        %3666 = vmatprep.subr.mxu0 0.0
        %3667 = vmatpush1.msra.mxu0 0.0
        %3668 = vmatprep.subr.mxu0 0.0
        %3669 = vmatpush1.msra.mxu0 0.0
        %3670 = vmatprep.subr.mxu0 0.0
        %3671 = vmatpush1.msra.mxu0 0.0
        %3672 = vmatprep.subr.mxu0 0.0
        %3673 = vmatpush1.msra.mxu0 0.0
        %3674 = vmatprep.subr.mxu0 0.0
        %3675 = vmatpush1.msra.mxu0 0.0
        %3676 = vmatprep.subr.mxu0 0.0
        %3677 = vmatpush1.msra.mxu0 0.0
        %3678 = vmatprep.subr.mxu0 0.0
        %3679 = vmatpush1.msra.mxu0 0.0
        %3680 = vmatprep.subr.mxu0 0.0
        %3681 = vmatpush1.msra.mxu0 0.0
        %3682 = vmatprep.mubr.f32.mxu0 0.0
        %3683 = vmatmul.mubr.f32.gmra.mrb[0].mxu0 %v3613
        %v3684 = vpop.f32.mrb[0].mxu0
        %v3685 = vadd.f32 0.0, %v3684
        %v3686 = vpop.f32.mrb[0].mxu0
        %3687 = vmatprep.mubr.f32.mxu0 0.0
        %3688 = vmatmul.mubr.f32.gmra.mrb[0].mxu0 %v3616
        %v3689 = vpop.f32.mrb[0].mxu0
        %v3690 = vadd.f32 0.0, %v3689
        %v3691 = vpop.f32.mrb[0].mxu0
        %3692 = vdwg.mxu0
        %3695 = vrot.lane.b32.xlu0 %v540, 120
        %v3696 = vpop.permute.xlu0 %3695
        %3697 = vrot.lane.b32.xlu0 %v541, 120
        %v3698 = vpop.permute.xlu0 %3697
        %v3702 = vsel %vm1427, %v3104, 0
        %v3705 = vsel %vm1427, %v3106, 0
        %3707 = vmatprep.subr.mxu0 0.0
        %3708 = vmatpush1.msra.mxu0 %v3696
        %3709 = vmatprep.subr.mxu0 0.0
        %3710 = vmatpush1.msra.mxu0 %v3698
        %3711 = vmatprep.subr.mxu0 0.0
        %3712 = vmatpush1.msra.mxu0 0.0
        %3713 = vmatprep.subr.mxu0 0.0
        %3714 = vmatpush1.msra.mxu0 0.0
        %3715 = vmatprep.subr.mxu0 0.0
        %3716 = vmatpush1.msra.mxu0 0.0
        %3717 = vmatprep.subr.mxu0 0.0
        %3718 = vmatpush1.msra.mxu0 0.0
        %3719 = vmatprep.subr.mxu0 0.0
        %3720 = vmatpush1.msra.mxu0 0.0
        %3721 = vmatprep.subr.mxu0 0.0
        %3722 = vmatpush1.msra.mxu0 0.0
        %3723 = vmatprep.subr.mxu0 0.0
        %3724 = vmatpush1.msra.mxu0 0.0
        %3725 = vmatprep.subr.mxu0 0.0
        %3726 = vmatpush1.msra.mxu0 0.0
        %3727 = vmatprep.subr.mxu0 0.0
        %3728 = vmatpush1.msra.mxu0 0.0
        %3729 = vmatprep.subr.mxu0 0.0
        %3730 = vmatpush1.msra.mxu0 0.0
        %3731 = vmatprep.subr.mxu0 0.0
        %3732 = vmatpush1.msra.mxu0 0.0
        %3733 = vmatprep.subr.mxu0 0.0
        %3734 = vmatpush1.msra.mxu0 0.0
        %3735 = vmatprep.subr.mxu0 0.0
        %3736 = vmatpush1.msra.mxu0 0.0
        %3737 = vmatprep.subr.mxu0 0.0
        %3738 = vmatpush1.msra.mxu0 0.0
        %3739 = vmatprep.subr.mxu0 0.0
        %3740 = vmatpush1.msra.mxu0 0.0
        %3741 = vmatprep.subr.mxu0 0.0
        %3742 = vmatpush1.msra.mxu0 0.0
        %3743 = vmatprep.subr.mxu0 0.0
        %3744 = vmatpush1.msra.mxu0 0.0
        %3745 = vmatprep.subr.mxu0 0.0
        %3746 = vmatpush1.msra.mxu0 0.0
        %3747 = vmatprep.subr.mxu0 0.0
        %3748 = vmatpush1.msra.mxu0 0.0
        %3749 = vmatprep.subr.mxu0 0.0
        %3750 = vmatpush1.msra.mxu0 0.0
        %3751 = vmatprep.subr.mxu0 0.0
        %3752 = vmatpush1.msra.mxu0 0.0
        %3753 = vmatprep.subr.mxu0 0.0
        %3754 = vmatpush1.msra.mxu0 0.0
        %3755 = vmatprep.subr.mxu0 0.0
        %3756 = vmatpush1.msra.mxu0 0.0
        %3757 = vmatprep.subr.mxu0 0.0
        %3758 = vmatpush1.msra.mxu0 0.0
        %3759 = vmatprep.subr.mxu0 0.0
        %3760 = vmatpush1.msra.mxu0 0.0
        %3761 = vmatprep.subr.mxu0 0.0
        %3762 = vmatpush1.msra.mxu0 0.0
        %3763 = vmatprep.subr.mxu0 0.0
        %3764 = vmatpush1.msra.mxu0 0.0
        %3765 = vmatprep.subr.mxu0 0.0
        %3766 = vmatpush1.msra.mxu0 0.0
        %3767 = vmatprep.subr.mxu0 0.0
        %3768 = vmatpush1.msra.mxu0 0.0
        %3769 = vmatprep.subr.mxu0 0.0
        %3770 = vmatpush1.msra.mxu0 0.0
        %3771 = vmatprep.mubr.f32.mxu0 0.0
        %3772 = vmatmul.mubr.f32.gmra.mrb[0].mxu0 %v3702
        %v3773 = vpop.f32.mrb[0].mxu0
        %v3774 = vadd.f32 0.0, %v3773
        %v3775 = vpop.f32.mrb[0].mxu0
        %3776 = vmatprep.mubr.f32.mxu0 0.0
        %3777 = vmatmul.mubr.f32.gmra.mrb[0].mxu0 %v3705
        %v3778 = vpop.f32.mrb[0].mxu0
        %v3779 = vadd.f32 0.0, %v3778
        %v3780 = vpop.f32.mrb[0].mxu0
        %3781 = vdwg.mxu0
        %3784 = vrot.lane.b32.xlu0 %v542, 120
        %v3785 = vpop.permute.xlu0 %3784
        %3786 = vrot.lane.b32.xlu0 %v543, 120
        %v3787 = vpop.permute.xlu0 %3786
        %v3791 = vsel %vm1427, %v3108, 0
        %v3794 = vsel %vm1427, %v3110, 0
        %3796 = vmatprep.subr.mxu0 0.0
        %3797 = vmatpush1.msra.mxu0 %v3785
        %3798 = vmatprep.subr.mxu0 0.0
        %3799 = vmatpush1.msra.mxu0 %v3787
        %3800 = vmatprep.subr.mxu0 0.0
        %3801 = vmatpush1.msra.mxu0 0.0
        %3802 = vmatprep.subr.mxu0 0.0
        %3803 = vmatpush1.msra.mxu0 0.0
        %3804 = vmatprep.subr.mxu0 0.0
        %3805 = vmatpush1.msra.mxu0 0.0
        %3806 = vmatprep.subr.mxu0 0.0
        %3807 = vmatpush1.msra.mxu0 0.0
        %3808 = vmatprep.subr.mxu0 0.0
        %3809 = vmatpush1.msra.mxu0 0.0
        %3810 = vmatprep.subr.mxu0 0.0
        %3811 = vmatpush1.msra.mxu0 0.0
        %3812 = vmatprep.subr.mxu0 0.0
        %3813 = vmatpush1.msra.mxu0 0.0
        %3814 = vmatprep.subr.mxu0 0.0
        %3815 = vmatpush1.msra.mxu0 0.0
        %3816 = vmatprep.subr.mxu0 0.0
        %3817 = vmatpush1.msra.mxu0 0.0
        %3818 = vmatprep.subr.mxu0 0.0
        %3819 = vmatpush1.msra.mxu0 0.0
        %3820 = vmatprep.subr.mxu0 0.0
        %3821 = vmatpush1.msra.mxu0 0.0
        %3822 = vmatprep.subr.mxu0 0.0
        %3823 = vmatpush1.msra.mxu0 0.0
        %3824 = vmatprep.subr.mxu0 0.0
        %3825 = vmatpush1.msra.mxu0 0.0
        %3826 = vmatprep.subr.mxu0 0.0
        %3827 = vmatpush1.msra.mxu0 0.0
        %3828 = vmatprep.subr.mxu0 0.0
        %3829 = vmatpush1.msra.mxu0 0.0
        %3830 = vmatprep.subr.mxu0 0.0
        %3831 = vmatpush1.msra.mxu0 0.0
        %3832 = vmatprep.subr.mxu0 0.0
        %3833 = vmatpush1.msra.mxu0 0.0
        %3834 = vmatprep.subr.mxu0 0.0
        %3835 = vmatpush1.msra.mxu0 0.0
        %3836 = vmatprep.subr.mxu0 0.0
        %3837 = vmatpush1.msra.mxu0 0.0
        %3838 = vmatprep.subr.mxu0 0.0
        %3839 = vmatpush1.msra.mxu0 0.0
        %3840 = vmatprep.subr.mxu0 0.0
        %3841 = vmatpush1.msra.mxu0 0.0
        %3842 = vmatprep.subr.mxu0 0.0
        %3843 = vmatpush1.msra.mxu0 0.0
        %3844 = vmatprep.subr.mxu0 0.0
        %3845 = vmatpush1.msra.mxu0 0.0
        %3846 = vmatprep.subr.mxu0 0.0
        %3847 = vmatpush1.msra.mxu0 0.0
        %3848 = vmatprep.subr.mxu0 0.0
        %3849 = vmatpush1.msra.mxu0 0.0
        %3850 = vmatprep.subr.mxu0 0.0
        %3851 = vmatpush1.msra.mxu0 0.0
        %3852 = vmatprep.subr.mxu0 0.0
        %3853 = vmatpush1.msra.mxu0 0.0
        %3854 = vmatprep.subr.mxu0 0.0
        %3855 = vmatpush1.msra.mxu0 0.0
        %3856 = vmatprep.subr.mxu0 0.0
        %3857 = vmatpush1.msra.mxu0 0.0
        %3858 = vmatprep.subr.mxu0 0.0
        %3859 = vmatpush1.msra.mxu0 0.0
        %3860 = vmatprep.mubr.f32.mxu0 0.0
        %3861 = vmatmul.mubr.f32.gmra.mrb[0].mxu0 %v3791
        %v3862 = vpop.f32.mrb[0].mxu0
        %v3863 = vadd.f32 0.0, %v3862
        %v3864 = vpop.f32.mrb[0].mxu0
        %3865 = vmatprep.mubr.f32.mxu0 0.0
        %3866 = vmatmul.mubr.f32.gmra.mrb[0].mxu0 %v3794
        %v3867 = vpop.f32.mrb[0].mxu0
        %v3868 = vadd.f32 0.0, %v3867
        %v3869 = vpop.f32.mrb[0].mxu0
        %3870 = vdwg.mxu0
        %v3871 = vrcp.pop %v3113
        %v3872 = vrcp.pop %v3116
        %v3873 = vrcp.pop %v3119
        %v3874 = vrcp.pop %v3122
        %v3875 = vrcp.pop %v3125
        %v3876 = vrcp.pop %v3128
        %v3877 = vrcp.pop %v3131
        %v3878 = vrcp.pop %v3134
        %v3879 = vrcp.pop %v3137
        %v3880 = vrcp.pop %v3140
        %v3881 = vrcp.pop %v3143
        %v3882 = vrcp.pop %v3146
        %v3883 = vrcp.pop %v3149
        %v3884 = vrcp.pop %v3152
        %v3885 = vrcp.pop %v3155
        %v3886 = vrcp.pop %v3158
        %v3887 = vmul.f32 %v3240, %v3871
        %v3888 = vmul.f32 %v3245, %v3872
        %v3889 = vmul.f32 %v3329, %v3873
        %v3890 = vmul.f32 %v3334, %v3874
        %v3891 = vmul.f32 %v3418, %v3875
        %v3892 = vmul.f32 %v3423, %v3876
        %v3893 = vmul.f32 %v3507, %v3877
        %v3894 = vmul.f32 %v3512, %v3878
        %v3895 = vmul.f32 %v3596, %v3879
        %v3896 = vmul.f32 %v3601, %v3880
        %v3897 = vmul.f32 %v3685, %v3881
        %v3898 = vmul.f32 %v3690, %v3882
        %v3899 = vmul.f32 %v3774, %v3883
        %v3900 = vmul.f32 %v3779, %v3884
        %v3901 = vmul.f32 %v3863, %v3885
        %v3902 = vmul.f32 %v3868, %v3886
        %3919 = vrot.lane.b32.xlu0 %v633, 120
        %v3920 = vpop.permute.xlu0 %3919
        %3921 = vrot.lane.b32.xlu0 %v635, 120
        %v3922 = vpop.permute.xlu0 %3921
        %3923 = vrot.lane.b32.xlu0 %v637, 120
        %v3924 = vpop.permute.xlu0 %3923
        %3925 = vrot.lane.b32.xlu0 %v639, 120
        %v3926 = vpop.permute.xlu0 %3925
        %3927 = vrot.lane.b32.xlu0 %v641, 120
        %v3928 = vpop.permute.xlu0 %3927
        %3929 = vrot.lane.b32.xlu0 %v643, 120
        %v3930 = vpop.permute.xlu0 %3929
        %3931 = vrot.lane.b32.xlu0 %v645, 120
        %v3932 = vpop.permute.xlu0 %3931
        %3933 = vrot.lane.b32.xlu0 %v647, 120
        %v3934 = vpop.permute.xlu0 %3933
        %3935 = vrot.lane.b32.xlu0 %v649, 120
        %v3936 = vpop.permute.xlu0 %3935
        %3937 = vrot.lane.b32.xlu0 %v651, 120
        %v3938 = vpop.permute.xlu0 %3937
        %3939 = vrot.lane.b32.xlu0 %v653, 120
        %v3940 = vpop.permute.xlu0 %3939
        %3941 = vrot.lane.b32.xlu0 %v655, 120
        %v3942 = vpop.permute.xlu0 %3941
        %3943 = vrot.lane.b32.xlu0 %v657, 120
        %v3944 = vpop.permute.xlu0 %3943
        %3945 = vrot.lane.b32.xlu0 %v659, 120
        %v3946 = vpop.permute.xlu0 %3945
        %3947 = vrot.lane.b32.xlu0 %v661, 120
        %v3948 = vpop.permute.xlu0 %3947
        %3949 = vrot.lane.b32.xlu0 %v663, 120
        %v3950 = vpop.permute.xlu0 %3949
        %v3967 = vmul.f32 %v3887, %v3920
        %v3968 = vmul.f32 %v3888, %v3922
        %v3969 = vmul.f32 %v3889, %v3924
        %v3970 = vmul.f32 %v3890, %v3926
        %v3971 = vmul.f32 %v3891, %v3928
        %v3972 = vmul.f32 %v3892, %v3930
        %v3973 = vmul.f32 %v3893, %v3932
        %v3974 = vmul.f32 %v3894, %v3934
        %v3975 = vmul.f32 %v3895, %v3936
        %v3976 = vmul.f32 %v3896, %v3938
        %v3977 = vmul.f32 %v3897, %v3940
        %v3978 = vmul.f32 %v3898, %v3942
        %v3979 = vmul.f32 %v3899, %v3944
        %v3980 = vmul.f32 %v3900, %v3946
        %v3981 = vmul.f32 %v3901, %v3948
        %v3982 = vmul.f32 %v3902, %v3950
        %s3983 = scalar_lea.vmem %s425, 32 [#allocation10]
        %v3984 = vld [vmem:[%s3983] sm:$0xff]
        %v3985 = vld [vmem:[%s3983 + $0x8] sm:$0xff]
        %3986 = vrot.lane.b32.xlu0 %v496, 112
        %v3987 = vpop.permute.xlu0 %3986
        %3988 = vrot.lane.b32.xlu0 %v497, 112
        %v3989 = vpop.permute.xlu0 %3988
        %3990 = vrot.lane.b32.xlu0 %v512, 112
        %v3991 = vpop.permute.xlu0 %3990
        %3992 = vrot.lane.b32.xlu0 %v513, 112
        %v3993 = vpop.permute.xlu0 %3992
        %v3994 = vsel %vm666, %v3987, 0
        %v3996 = vsel %vm666, %v3989, 0
        %v3998 = vsel %vm666, %v3991, 0
        %v4000 = vsel %vm666, %v3993, 0
        %4002 = vmatprep.subr.mxu0 0.0
        %4003 = vmatpush1.xpose.msra.mxu0 %v3998
        %4004 = vmatprep.subr.mxu0 0.0
        %4005 = vmatpush1.xpose.msra.mxu0 %v4000
        %4006 = vmatprep.subr.mxu0 0.0
        %4007 = vmatpush1.xpose.msra.mxu0 0.0
        %4008 = vmatprep.subr.mxu0 0.0
        %4009 = vmatpush1.xpose.msra.mxu0 0.0
        %4010 = vmatprep.subr.mxu0 0.0
        %4011 = vmatpush1.xpose.msra.mxu0 0.0
        %4012 = vmatprep.subr.mxu0 0.0
        %4013 = vmatpush1.xpose.msra.mxu0 0.0
        %4014 = vmatprep.subr.mxu0 0.0
        %4015 = vmatpush1.xpose.msra.mxu0 0.0
        %4016 = vmatprep.subr.mxu0 0.0
        %4017 = vmatpush1.xpose.msra.mxu0 0.0
        %4018 = vmatprep.subr.mxu0 0.0
        %4019 = vmatpush1.xpose.msra.mxu0 0.0
        %4020 = vmatprep.subr.mxu0 0.0
        %4021 = vmatpush1.xpose.msra.mxu0 0.0
        %4022 = vmatprep.subr.mxu0 0.0
        %4023 = vmatpush1.xpose.msra.mxu0 0.0
        %4024 = vmatprep.subr.mxu0 0.0
        %4025 = vmatpush1.xpose.msra.mxu0 0.0
        %4026 = vmatprep.subr.mxu0 0.0
        %4027 = vmatpush1.xpose.msra.mxu0 0.0
        %4028 = vmatprep.subr.mxu0 0.0
        %4029 = vmatpush1.xpose.msra.mxu0 0.0
        %4030 = vmatprep.subr.mxu0 0.0
        %4031 = vmatpush1.xpose.msra.mxu0 0.0
        %4032 = vmatprep.subr.mxu0 0.0
        %4033 = vmatpush1.xpose.msra.mxu0 0.0
        %4034 = vmatprep.subr.mxu0 0.0
        %4035 = vmatpush1.xpose.msra.mxu0 0.0
        %4036 = vmatprep.subr.mxu0 0.0
        %4037 = vmatpush1.xpose.msra.mxu0 0.0
        %4038 = vmatprep.subr.mxu0 0.0
        %4039 = vmatpush1.xpose.msra.mxu0 0.0
        %4040 = vmatprep.subr.mxu0 0.0
        %4041 = vmatpush1.xpose.msra.mxu0 0.0
        %4042 = vmatprep.subr.mxu0 0.0
        %4043 = vmatpush1.xpose.msra.mxu0 0.0
        %4044 = vmatprep.subr.mxu0 0.0
        %4045 = vmatpush1.xpose.msra.mxu0 0.0
        %4046 = vmatprep.subr.mxu0 0.0
        %4047 = vmatpush1.xpose.msra.mxu0 0.0
        %4048 = vmatprep.subr.mxu0 0.0
        %4049 = vmatpush1.xpose.msra.mxu0 0.0
        %4050 = vmatprep.subr.mxu0 0.0
        %4051 = vmatpush1.xpose.msra.mxu0 0.0
        %4052 = vmatprep.subr.mxu0 0.0
        %4053 = vmatpush1.xpose.msra.mxu0 0.0
        %4054 = vmatprep.subr.mxu0 0.0
        %4055 = vmatpush1.xpose.msra.mxu0 0.0
        %4056 = vmatprep.subr.mxu0 0.0
        %4057 = vmatpush1.xpose.msra.mxu0 0.0
        %4058 = vmatprep.subr.mxu0 0.0
        %4059 = vmatpush1.xpose.msra.mxu0 0.0
        %4060 = vmatprep.subr.mxu0 0.0
        %4061 = vmatpush1.xpose.msra.mxu0 0.0
        %4062 = vmatprep.subr.mxu0 0.0
        %4063 = vmatpush1.xpose.msra.mxu0 0.0
        %4064 = vmatprep.subr.mxu0 0.0
        %4065 = vmatpush1.xpose.msra.mxu0 0.0
        %4066 = vmatprep.mubr.f32.mxu0 0.0
        %4067 = vmatmul.mubr.f32.gmra.mrb[0].mxu0 %v3994
        %v4068 = vpop.f32.mrb[0].mxu0
        %v4069 = vadd.f32 %v3984, %v4068
        %v4070 = vpop.f32.mrb[0].mxu0
        %4071 = vmatprep.mubr.f32.mxu0 0.0
        %4072 = vmatmul.mubr.f32.gmra.mrb[0].mxu0 %v3996
        %v4073 = vpop.f32.mrb[0].mxu0
        %v4074 = vadd.f32 %v3985, %v4073
        %v4075 = vpop.f32.mrb[0].mxu0
        %4076 = vdwg.mxu0
        %4077 = vrot.lane.b32.xlu0 %v498, 112
        %v4078 = vpop.permute.xlu0 %4077
        %4079 = vrot.lane.b32.xlu0 %v499, 112
        %v4080 = vpop.permute.xlu0 %4079
        %4081 = vrot.lane.b32.xlu0 %v514, 112
        %v4082 = vpop.permute.xlu0 %4081
        %4083 = vrot.lane.b32.xlu0 %v515, 112
        %v4084 = vpop.permute.xlu0 %4083
        %v4085 = vsel %vm666, %v4078, 0
        %v4087 = vsel %vm666, %v4080, 0
        %v4089 = vsel %vm666, %v4082, 0
        %v4091 = vsel %vm666, %v4084, 0
        %4093 = vmatprep.subr.mxu0 0.0
        %4094 = vmatpush1.xpose.msra.mxu0 %v4089
        %4095 = vmatprep.subr.mxu0 0.0
        %4096 = vmatpush1.xpose.msra.mxu0 %v4091
        %4097 = vmatprep.subr.mxu0 0.0
        %4098 = vmatpush1.xpose.msra.mxu0 0.0
        %4099 = vmatprep.subr.mxu0 0.0
        %4100 = vmatpush1.xpose.msra.mxu0 0.0
        %4101 = vmatprep.subr.mxu0 0.0
        %4102 = vmatpush1.xpose.msra.mxu0 0.0
        %4103 = vmatprep.subr.mxu0 0.0
        %4104 = vmatpush1.xpose.msra.mxu0 0.0
        %4105 = vmatprep.subr.mxu0 0.0
        %4106 = vmatpush1.xpose.msra.mxu0 0.0
        %4107 = vmatprep.subr.mxu0 0.0
        %4108 = vmatpush1.xpose.msra.mxu0 0.0
        %4109 = vmatprep.subr.mxu0 0.0
        %4110 = vmatpush1.xpose.msra.mxu0 0.0
        %4111 = vmatprep.subr.mxu0 0.0
        %4112 = vmatpush1.xpose.msra.mxu0 0.0
        %4113 = vmatprep.subr.mxu0 0.0
        %4114 = vmatpush1.xpose.msra.mxu0 0.0
        %4115 = vmatprep.subr.mxu0 0.0
        %4116 = vmatpush1.xpose.msra.mxu0 0.0
        %4117 = vmatprep.subr.mxu0 0.0
        %4118 = vmatpush1.xpose.msra.mxu0 0.0
        %4119 = vmatprep.subr.mxu0 0.0
        %4120 = vmatpush1.xpose.msra.mxu0 0.0
        %4121 = vmatprep.subr.mxu0 0.0
        %4122 = vmatpush1.xpose.msra.mxu0 0.0
        %4123 = vmatprep.subr.mxu0 0.0
        %4124 = vmatpush1.xpose.msra.mxu0 0.0
        %4125 = vmatprep.subr.mxu0 0.0
        %4126 = vmatpush1.xpose.msra.mxu0 0.0
        %4127 = vmatprep.subr.mxu0 0.0
        %4128 = vmatpush1.xpose.msra.mxu0 0.0
        %4129 = vmatprep.subr.mxu0 0.0
        %4130 = vmatpush1.xpose.msra.mxu0 0.0
        %4131 = vmatprep.subr.mxu0 0.0
        %4132 = vmatpush1.xpose.msra.mxu0 0.0
        %4133 = vmatprep.subr.mxu0 0.0
        %4134 = vmatpush1.xpose.msra.mxu0 0.0
        %4135 = vmatprep.subr.mxu0 0.0
        %4136 = vmatpush1.xpose.msra.mxu0 0.0
        %4137 = vmatprep.subr.mxu0 0.0
        %4138 = vmatpush1.xpose.msra.mxu0 0.0
        %4139 = vmatprep.subr.mxu0 0.0
        %4140 = vmatpush1.xpose.msra.mxu0 0.0
        %4141 = vmatprep.subr.mxu0 0.0
        %4142 = vmatpush1.xpose.msra.mxu0 0.0
        %4143 = vmatprep.subr.mxu0 0.0
        %4144 = vmatpush1.xpose.msra.mxu0 0.0
        %4145 = vmatprep.subr.mxu0 0.0
        %4146 = vmatpush1.xpose.msra.mxu0 0.0
        %4147 = vmatprep.subr.mxu0 0.0
        %4148 = vmatpush1.xpose.msra.mxu0 0.0
        %4149 = vmatprep.subr.mxu0 0.0
        %4150 = vmatpush1.xpose.msra.mxu0 0.0
        %4151 = vmatprep.subr.mxu0 0.0
        %4152 = vmatpush1.xpose.msra.mxu0 0.0
        %4153 = vmatprep.subr.mxu0 0.0
        %4154 = vmatpush1.xpose.msra.mxu0 0.0
        %4155 = vmatprep.subr.mxu0 0.0
        %4156 = vmatpush1.xpose.msra.mxu0 0.0
        %4157 = vmatprep.mubr.f32.mxu0 0.0
        %4158 = vmatmul.mubr.f32.gmra.mrb[0].mxu0 %v4085
        %v4159 = vpop.f32.mrb[0].mxu0
        %v4160 = vadd.f32 %v3984, %v4159
        %v4161 = vpop.f32.mrb[0].mxu0
        %4162 = vmatprep.mubr.f32.mxu0 0.0
        %4163 = vmatmul.mubr.f32.gmra.mrb[0].mxu0 %v4087
        %v4164 = vpop.f32.mrb[0].mxu0
        %v4165 = vadd.f32 %v3985, %v4164
        %v4166 = vpop.f32.mrb[0].mxu0
        %4167 = vdwg.mxu0
        %4168 = vrot.lane.b32.xlu0 %v500, 112
        %v4169 = vpop.permute.xlu0 %4168
        %4170 = vrot.lane.b32.xlu0 %v501, 112
        %v4171 = vpop.permute.xlu0 %4170
        %4172 = vrot.lane.b32.xlu0 %v516, 112
        %v4173 = vpop.permute.xlu0 %4172
        %4174 = vrot.lane.b32.xlu0 %v517, 112
        %v4175 = vpop.permute.xlu0 %4174
        %v4176 = vsel %vm666, %v4169, 0
        %v4178 = vsel %vm666, %v4171, 0
        %v4180 = vsel %vm666, %v4173, 0
        %v4182 = vsel %vm666, %v4175, 0
        %4184 = vmatprep.subr.mxu0 0.0
        %4185 = vmatpush1.xpose.msra.mxu0 %v4180
        %4186 = vmatprep.subr.mxu0 0.0
        %4187 = vmatpush1.xpose.msra.mxu0 %v4182
        %4188 = vmatprep.subr.mxu0 0.0
        %4189 = vmatpush1.xpose.msra.mxu0 0.0
        %4190 = vmatprep.subr.mxu0 0.0
        %4191 = vmatpush1.xpose.msra.mxu0 0.0
        %4192 = vmatprep.subr.mxu0 0.0
        %4193 = vmatpush1.xpose.msra.mxu0 0.0
        %4194 = vmatprep.subr.mxu0 0.0
        %4195 = vmatpush1.xpose.msra.mxu0 0.0
        %4196 = vmatprep.subr.mxu0 0.0
        %4197 = vmatpush1.xpose.msra.mxu0 0.0
        %4198 = vmatprep.subr.mxu0 0.0
        %4199 = vmatpush1.xpose.msra.mxu0 0.0
        %4200 = vmatprep.subr.mxu0 0.0
        %4201 = vmatpush1.xpose.msra.mxu0 0.0
        %4202 = vmatprep.subr.mxu0 0.0
        %4203 = vmatpush1.xpose.msra.mxu0 0.0
        %4204 = vmatprep.subr.mxu0 0.0
        %4205 = vmatpush1.xpose.msra.mxu0 0.0
        %4206 = vmatprep.subr.mxu0 0.0
        %4207 = vmatpush1.xpose.msra.mxu0 0.0
        %4208 = vmatprep.subr.mxu0 0.0
        %4209 = vmatpush1.xpose.msra.mxu0 0.0
        %4210 = vmatprep.subr.mxu0 0.0
        %4211 = vmatpush1.xpose.msra.mxu0 0.0
        %4212 = vmatprep.subr.mxu0 0.0
        %4213 = vmatpush1.xpose.msra.mxu0 0.0
        %4214 = vmatprep.subr.mxu0 0.0
        %4215 = vmatpush1.xpose.msra.mxu0 0.0
        %4216 = vmatprep.subr.mxu0 0.0
        %4217 = vmatpush1.xpose.msra.mxu0 0.0
        %4218 = vmatprep.subr.mxu0 0.0
        %4219 = vmatpush1.xpose.msra.mxu0 0.0
        %4220 = vmatprep.subr.mxu0 0.0
        %4221 = vmatpush1.xpose.msra.mxu0 0.0
        %4222 = vmatprep.subr.mxu0 0.0
        %4223 = vmatpush1.xpose.msra.mxu0 0.0
        %4224 = vmatprep.subr.mxu0 0.0
        %4225 = vmatpush1.xpose.msra.mxu0 0.0
        %4226 = vmatprep.subr.mxu0 0.0
        %4227 = vmatpush1.xpose.msra.mxu0 0.0
        %4228 = vmatprep.subr.mxu0 0.0
        %4229 = vmatpush1.xpose.msra.mxu0 0.0
        %4230 = vmatprep.subr.mxu0 0.0
        %4231 = vmatpush1.xpose.msra.mxu0 0.0
        %4232 = vmatprep.subr.mxu0 0.0
        %4233 = vmatpush1.xpose.msra.mxu0 0.0
        %4234 = vmatprep.subr.mxu0 0.0
        %4235 = vmatpush1.xpose.msra.mxu0 0.0
        %4236 = vmatprep.subr.mxu0 0.0
        %4237 = vmatpush1.xpose.msra.mxu0 0.0
        %4238 = vmatprep.subr.mxu0 0.0
        %4239 = vmatpush1.xpose.msra.mxu0 0.0
        %4240 = vmatprep.subr.mxu0 0.0
        %4241 = vmatpush1.xpose.msra.mxu0 0.0
        %4242 = vmatprep.subr.mxu0 0.0
        %4243 = vmatpush1.xpose.msra.mxu0 0.0
        %4244 = vmatprep.subr.mxu0 0.0
        %4245 = vmatpush1.xpose.msra.mxu0 0.0
        %4246 = vmatprep.subr.mxu0 0.0
        %4247 = vmatpush1.xpose.msra.mxu0 0.0
        %4248 = vmatprep.mubr.f32.mxu0 0.0
        %4249 = vmatmul.mubr.f32.gmra.mrb[0].mxu0 %v4176
        %v4250 = vpop.f32.mrb[0].mxu0
        %v4251 = vadd.f32 %v3984, %v4250
        %v4252 = vpop.f32.mrb[0].mxu0
        %4253 = vmatprep.mubr.f32.mxu0 0.0
        %4254 = vmatmul.mubr.f32.gmra.mrb[0].mxu0 %v4178
        %v4255 = vpop.f32.mrb[0].mxu0
        %v4256 = vadd.f32 %v3985, %v4255
        %v4257 = vpop.f32.mrb[0].mxu0
        %4258 = vdwg.mxu0
        %4259 = vrot.lane.b32.xlu0 %v502, 112
        %v4260 = vpop.permute.xlu0 %4259
        %4261 = vrot.lane.b32.xlu0 %v503, 112
        %v4262 = vpop.permute.xlu0 %4261
        %4263 = vrot.lane.b32.xlu0 %v518, 112
        %v4264 = vpop.permute.xlu0 %4263
        %4265 = vrot.lane.b32.xlu0 %v519, 112
        %v4266 = vpop.permute.xlu0 %4265
        %v4267 = vsel %vm666, %v4260, 0
        %v4269 = vsel %vm666, %v4262, 0
        %v4271 = vsel %vm666, %v4264, 0
        %v4273 = vsel %vm666, %v4266, 0
        %4275 = vmatprep.subr.mxu0 0.0
        %4276 = vmatpush1.xpose.msra.mxu0 %v4271
        %4277 = vmatprep.subr.mxu0 0.0
        %4278 = vmatpush1.xpose.msra.mxu0 %v4273
        %4279 = vmatprep.subr.mxu0 0.0
        %4280 = vmatpush1.xpose.msra.mxu0 0.0
        %4281 = vmatprep.subr.mxu0 0.0
        %4282 = vmatpush1.xpose.msra.mxu0 0.0
        %4283 = vmatprep.subr.mxu0 0.0
        %4284 = vmatpush1.xpose.msra.mxu0 0.0
        %4285 = vmatprep.subr.mxu0 0.0
        %4286 = vmatpush1.xpose.msra.mxu0 0.0
        %4287 = vmatprep.subr.mxu0 0.0
        %4288 = vmatpush1.xpose.msra.mxu0 0.0
        %4289 = vmatprep.subr.mxu0 0.0
        %4290 = vmatpush1.xpose.msra.mxu0 0.0
        %4291 = vmatprep.subr.mxu0 0.0
        %4292 = vmatpush1.xpose.msra.mxu0 0.0
        %4293 = vmatprep.subr.mxu0 0.0
        %4294 = vmatpush1.xpose.msra.mxu0 0.0
        %4295 = vmatprep.subr.mxu0 0.0
        %4296 = vmatpush1.xpose.msra.mxu0 0.0
        %4297 = vmatprep.subr.mxu0 0.0
        %4298 = vmatpush1.xpose.msra.mxu0 0.0
        %4299 = vmatprep.subr.mxu0 0.0
        %4300 = vmatpush1.xpose.msra.mxu0 0.0
        %4301 = vmatprep.subr.mxu0 0.0
        %4302 = vmatpush1.xpose.msra.mxu0 0.0
        %4303 = vmatprep.subr.mxu0 0.0
        %4304 = vmatpush1.xpose.msra.mxu0 0.0
        %4305 = vmatprep.subr.mxu0 0.0
        %4306 = vmatpush1.xpose.msra.mxu0 0.0
        %4307 = vmatprep.subr.mxu0 0.0
        %4308 = vmatpush1.xpose.msra.mxu0 0.0
        %4309 = vmatprep.subr.mxu0 0.0
        %4310 = vmatpush1.xpose.msra.mxu0 0.0
        %4311 = vmatprep.subr.mxu0 0.0
        %4312 = vmatpush1.xpose.msra.mxu0 0.0
        %4313 = vmatprep.subr.mxu0 0.0
        %4314 = vmatpush1.xpose.msra.mxu0 0.0
        %4315 = vmatprep.subr.mxu0 0.0
        %4316 = vmatpush1.xpose.msra.mxu0 0.0
        %4317 = vmatprep.subr.mxu0 0.0
        %4318 = vmatpush1.xpose.msra.mxu0 0.0
        %4319 = vmatprep.subr.mxu0 0.0
        %4320 = vmatpush1.xpose.msra.mxu0 0.0
        %4321 = vmatprep.subr.mxu0 0.0
        %4322 = vmatpush1.xpose.msra.mxu0 0.0
        %4323 = vmatprep.subr.mxu0 0.0
        %4324 = vmatpush1.xpose.msra.mxu0 0.0
        %4325 = vmatprep.subr.mxu0 0.0
        %4326 = vmatpush1.xpose.msra.mxu0 0.0
        %4327 = vmatprep.subr.mxu0 0.0
        %4328 = vmatpush1.xpose.msra.mxu0 0.0
        %4329 = vmatprep.subr.mxu0 0.0
        %4330 = vmatpush1.xpose.msra.mxu0 0.0
        %4331 = vmatprep.subr.mxu0 0.0
        %4332 = vmatpush1.xpose.msra.mxu0 0.0
        %4333 = vmatprep.subr.mxu0 0.0
        %4334 = vmatpush1.xpose.msra.mxu0 0.0
        %4335 = vmatprep.subr.mxu0 0.0
        %4336 = vmatpush1.xpose.msra.mxu0 0.0
        %4337 = vmatprep.subr.mxu0 0.0
        %4338 = vmatpush1.xpose.msra.mxu0 0.0
        %4339 = vmatprep.mubr.f32.mxu0 0.0
        %4340 = vmatmul.mubr.f32.gmra.mrb[0].mxu0 %v4267
        %v4341 = vpop.f32.mrb[0].mxu0
        %v4342 = vadd.f32 %v3984, %v4341
        %v4343 = vpop.f32.mrb[0].mxu0
        %4344 = vmatprep.mubr.f32.mxu0 0.0
        %4345 = vmatmul.mubr.f32.gmra.mrb[0].mxu0 %v4269
        %v4346 = vpop.f32.mrb[0].mxu0
        %v4347 = vadd.f32 %v3985, %v4346
        %v4348 = vpop.f32.mrb[0].mxu0
        %4349 = vdwg.mxu0
        %4350 = vrot.lane.b32.xlu0 %v504, 112
        %v4351 = vpop.permute.xlu0 %4350
        %4352 = vrot.lane.b32.xlu0 %v505, 112
        %v4353 = vpop.permute.xlu0 %4352
        %4354 = vrot.lane.b32.xlu0 %v520, 112
        %v4355 = vpop.permute.xlu0 %4354
        %4356 = vrot.lane.b32.xlu0 %v521, 112
        %v4357 = vpop.permute.xlu0 %4356
        %v4358 = vsel %vm666, %v4351, 0
        %v4360 = vsel %vm666, %v4353, 0
        %v4362 = vsel %vm666, %v4355, 0
        %v4364 = vsel %vm666, %v4357, 0
        %4366 = vmatprep.subr.mxu0 0.0
        %4367 = vmatpush1.xpose.msra.mxu0 %v4362
        %4368 = vmatprep.subr.mxu0 0.0
        %4369 = vmatpush1.xpose.msra.mxu0 %v4364
        %4370 = vmatprep.subr.mxu0 0.0
        %4371 = vmatpush1.xpose.msra.mxu0 0.0
        %4372 = vmatprep.subr.mxu0 0.0
        %4373 = vmatpush1.xpose.msra.mxu0 0.0
        %4374 = vmatprep.subr.mxu0 0.0
        %4375 = vmatpush1.xpose.msra.mxu0 0.0
        %4376 = vmatprep.subr.mxu0 0.0
        %4377 = vmatpush1.xpose.msra.mxu0 0.0
        %4378 = vmatprep.subr.mxu0 0.0
        %4379 = vmatpush1.xpose.msra.mxu0 0.0
        %4380 = vmatprep.subr.mxu0 0.0
        %4381 = vmatpush1.xpose.msra.mxu0 0.0
        %4382 = vmatprep.subr.mxu0 0.0
        %4383 = vmatpush1.xpose.msra.mxu0 0.0
        %4384 = vmatprep.subr.mxu0 0.0
        %4385 = vmatpush1.xpose.msra.mxu0 0.0
        %4386 = vmatprep.subr.mxu0 0.0
        %4387 = vmatpush1.xpose.msra.mxu0 0.0
        %4388 = vmatprep.subr.mxu0 0.0
        %4389 = vmatpush1.xpose.msra.mxu0 0.0
        %4390 = vmatprep.subr.mxu0 0.0
        %4391 = vmatpush1.xpose.msra.mxu0 0.0
        %4392 = vmatprep.subr.mxu0 0.0
        %4393 = vmatpush1.xpose.msra.mxu0 0.0
        %4394 = vmatprep.subr.mxu0 0.0
        %4395 = vmatpush1.xpose.msra.mxu0 0.0
        %4396 = vmatprep.subr.mxu0 0.0
        %4397 = vmatpush1.xpose.msra.mxu0 0.0
        %4398 = vmatprep.subr.mxu0 0.0
        %4399 = vmatpush1.xpose.msra.mxu0 0.0
        %4400 = vmatprep.subr.mxu0 0.0
        %4401 = vmatpush1.xpose.msra.mxu0 0.0
        %4402 = vmatprep.subr.mxu0 0.0
        %4403 = vmatpush1.xpose.msra.mxu0 0.0
        %4404 = vmatprep.subr.mxu0 0.0
        %4405 = vmatpush1.xpose.msra.mxu0 0.0
        %4406 = vmatprep.subr.mxu0 0.0
        %4407 = vmatpush1.xpose.msra.mxu0 0.0
        %4408 = vmatprep.subr.mxu0 0.0
        %4409 = vmatpush1.xpose.msra.mxu0 0.0
        %4410 = vmatprep.subr.mxu0 0.0
        %4411 = vmatpush1.xpose.msra.mxu0 0.0
        %4412 = vmatprep.subr.mxu0 0.0
        %4413 = vmatpush1.xpose.msra.mxu0 0.0
        %4414 = vmatprep.subr.mxu0 0.0
        %4415 = vmatpush1.xpose.msra.mxu0 0.0
        %4416 = vmatprep.subr.mxu0 0.0
        %4417 = vmatpush1.xpose.msra.mxu0 0.0
        %4418 = vmatprep.subr.mxu0 0.0
        %4419 = vmatpush1.xpose.msra.mxu0 0.0
        %4420 = vmatprep.subr.mxu0 0.0
        %4421 = vmatpush1.xpose.msra.mxu0 0.0
        %4422 = vmatprep.subr.mxu0 0.0
        %4423 = vmatpush1.xpose.msra.mxu0 0.0
        %4424 = vmatprep.subr.mxu0 0.0
        %4425 = vmatpush1.xpose.msra.mxu0 0.0
        %4426 = vmatprep.subr.mxu0 0.0
        %4427 = vmatpush1.xpose.msra.mxu0 0.0
        %4428 = vmatprep.subr.mxu0 0.0
        %4429 = vmatpush1.xpose.msra.mxu0 0.0
        %4430 = vmatprep.mubr.f32.mxu0 0.0
        %4431 = vmatmul.mubr.f32.gmra.mrb[0].mxu0 %v4358
        %v4432 = vpop.f32.mrb[0].mxu0
        %v4433 = vadd.f32 %v3984, %v4432
        %v4434 = vpop.f32.mrb[0].mxu0
        %4435 = vmatprep.mubr.f32.mxu0 0.0
        %4436 = vmatmul.mubr.f32.gmra.mrb[0].mxu0 %v4360
        %v4437 = vpop.f32.mrb[0].mxu0
        %v4438 = vadd.f32 %v3985, %v4437
        %v4439 = vpop.f32.mrb[0].mxu0
        %4440 = vdwg.mxu0
        %4441 = vrot.lane.b32.xlu0 %v506, 112
        %v4442 = vpop.permute.xlu0 %4441
        %4443 = vrot.lane.b32.xlu0 %v507, 112
        %v4444 = vpop.permute.xlu0 %4443
        %4445 = vrot.lane.b32.xlu0 %v522, 112
        %v4446 = vpop.permute.xlu0 %4445
        %4447 = vrot.lane.b32.xlu0 %v523, 112
        %v4448 = vpop.permute.xlu0 %4447
        %v4449 = vsel %vm666, %v4442, 0
        %v4451 = vsel %vm666, %v4444, 0
        %v4453 = vsel %vm666, %v4446, 0
        %v4455 = vsel %vm666, %v4448, 0
        %4457 = vmatprep.subr.mxu0 0.0
        %4458 = vmatpush1.xpose.msra.mxu0 %v4453
        %4459 = vmatprep.subr.mxu0 0.0
        %4460 = vmatpush1.xpose.msra.mxu0 %v4455
        %4461 = vmatprep.subr.mxu0 0.0
        %4462 = vmatpush1.xpose.msra.mxu0 0.0
        %4463 = vmatprep.subr.mxu0 0.0
        %4464 = vmatpush1.xpose.msra.mxu0 0.0
        %4465 = vmatprep.subr.mxu0 0.0
        %4466 = vmatpush1.xpose.msra.mxu0 0.0
        %4467 = vmatprep.subr.mxu0 0.0
        %4468 = vmatpush1.xpose.msra.mxu0 0.0
        %4469 = vmatprep.subr.mxu0 0.0
        %4470 = vmatpush1.xpose.msra.mxu0 0.0
        %4471 = vmatprep.subr.mxu0 0.0
        %4472 = vmatpush1.xpose.msra.mxu0 0.0
        %4473 = vmatprep.subr.mxu0 0.0
        %4474 = vmatpush1.xpose.msra.mxu0 0.0
        %4475 = vmatprep.subr.mxu0 0.0
        %4476 = vmatpush1.xpose.msra.mxu0 0.0
        %4477 = vmatprep.subr.mxu0 0.0
        %4478 = vmatpush1.xpose.msra.mxu0 0.0
        %4479 = vmatprep.subr.mxu0 0.0
        %4480 = vmatpush1.xpose.msra.mxu0 0.0
        %4481 = vmatprep.subr.mxu0 0.0
        %4482 = vmatpush1.xpose.msra.mxu0 0.0
        %4483 = vmatprep.subr.mxu0 0.0
        %4484 = vmatpush1.xpose.msra.mxu0 0.0
        %4485 = vmatprep.subr.mxu0 0.0
        %4486 = vmatpush1.xpose.msra.mxu0 0.0
        %4487 = vmatprep.subr.mxu0 0.0
        %4488 = vmatpush1.xpose.msra.mxu0 0.0
        %4489 = vmatprep.subr.mxu0 0.0
        %4490 = vmatpush1.xpose.msra.mxu0 0.0
        %4491 = vmatprep.subr.mxu0 0.0
        %4492 = vmatpush1.xpose.msra.mxu0 0.0
        %4493 = vmatprep.subr.mxu0 0.0
        %4494 = vmatpush1.xpose.msra.mxu0 0.0
        %4495 = vmatprep.subr.mxu0 0.0
        %4496 = vmatpush1.xpose.msra.mxu0 0.0
        %4497 = vmatprep.subr.mxu0 0.0
        %4498 = vmatpush1.xpose.msra.mxu0 0.0
        %4499 = vmatprep.subr.mxu0 0.0
        %4500 = vmatpush1.xpose.msra.mxu0 0.0
        %4501 = vmatprep.subr.mxu0 0.0
        %4502 = vmatpush1.xpose.msra.mxu0 0.0
        %4503 = vmatprep.subr.mxu0 0.0
        %4504 = vmatpush1.xpose.msra.mxu0 0.0
        %4505 = vmatprep.subr.mxu0 0.0
        %4506 = vmatpush1.xpose.msra.mxu0 0.0
        %4507 = vmatprep.subr.mxu0 0.0
        %4508 = vmatpush1.xpose.msra.mxu0 0.0
        %4509 = vmatprep.subr.mxu0 0.0
        %4510 = vmatpush1.xpose.msra.mxu0 0.0
        %4511 = vmatprep.subr.mxu0 0.0
        %4512 = vmatpush1.xpose.msra.mxu0 0.0
        %4513 = vmatprep.subr.mxu0 0.0
        %4514 = vmatpush1.xpose.msra.mxu0 0.0
        %4515 = vmatprep.subr.mxu0 0.0
        %4516 = vmatpush1.xpose.msra.mxu0 0.0
        %4517 = vmatprep.subr.mxu0 0.0
        %4518 = vmatpush1.xpose.msra.mxu0 0.0
        %4519 = vmatprep.subr.mxu0 0.0
        %4520 = vmatpush1.xpose.msra.mxu0 0.0
        %4521 = vmatprep.mubr.f32.mxu0 0.0
        %4522 = vmatmul.mubr.f32.gmra.mrb[0].mxu0 %v4449
        %v4523 = vpop.f32.mrb[0].mxu0
        %v4524 = vadd.f32 %v3984, %v4523
        %v4525 = vpop.f32.mrb[0].mxu0
        %4526 = vmatprep.mubr.f32.mxu0 0.0
        %4527 = vmatmul.mubr.f32.gmra.mrb[0].mxu0 %v4451
        %v4528 = vpop.f32.mrb[0].mxu0
        %v4529 = vadd.f32 %v3985, %v4528
        %v4530 = vpop.f32.mrb[0].mxu0
        %4531 = vdwg.mxu0
        %4532 = vrot.lane.b32.xlu0 %v508, 112
        %v4533 = vpop.permute.xlu0 %4532
        %4534 = vrot.lane.b32.xlu0 %v509, 112
        %v4535 = vpop.permute.xlu0 %4534
        %4536 = vrot.lane.b32.xlu0 %v524, 112
        %v4537 = vpop.permute.xlu0 %4536
        %4538 = vrot.lane.b32.xlu0 %v525, 112
        %v4539 = vpop.permute.xlu0 %4538
        %v4540 = vsel %vm666, %v4533, 0
        %v4542 = vsel %vm666, %v4535, 0
        %v4544 = vsel %vm666, %v4537, 0
        %v4546 = vsel %vm666, %v4539, 0
        %4548 = vmatprep.subr.mxu0 0.0
        %4549 = vmatpush1.xpose.msra.mxu0 %v4544
        %4550 = vmatprep.subr.mxu0 0.0
        %4551 = vmatpush1.xpose.msra.mxu0 %v4546
        %4552 = vmatprep.subr.mxu0 0.0
        %4553 = vmatpush1.xpose.msra.mxu0 0.0
        %4554 = vmatprep.subr.mxu0 0.0
        %4555 = vmatpush1.xpose.msra.mxu0 0.0
        %4556 = vmatprep.subr.mxu0 0.0
        %4557 = vmatpush1.xpose.msra.mxu0 0.0
        %4558 = vmatprep.subr.mxu0 0.0
        %4559 = vmatpush1.xpose.msra.mxu0 0.0
        %4560 = vmatprep.subr.mxu0 0.0
        %4561 = vmatpush1.xpose.msra.mxu0 0.0
        %4562 = vmatprep.subr.mxu0 0.0
        %4563 = vmatpush1.xpose.msra.mxu0 0.0
        %4564 = vmatprep.subr.mxu0 0.0
        %4565 = vmatpush1.xpose.msra.mxu0 0.0
        %4566 = vmatprep.subr.mxu0 0.0
        %4567 = vmatpush1.xpose.msra.mxu0 0.0
        %4568 = vmatprep.subr.mxu0 0.0
        %4569 = vmatpush1.xpose.msra.mxu0 0.0
        %4570 = vmatprep.subr.mxu0 0.0
        %4571 = vmatpush1.xpose.msra.mxu0 0.0
        %4572 = vmatprep.subr.mxu0 0.0
        %4573 = vmatpush1.xpose.msra.mxu0 0.0
        %4574 = vmatprep.subr.mxu0 0.0
        %4575 = vmatpush1.xpose.msra.mxu0 0.0
        %4576 = vmatprep.subr.mxu0 0.0
        %4577 = vmatpush1.xpose.msra.mxu0 0.0
        %4578 = vmatprep.subr.mxu0 0.0
        %4579 = vmatpush1.xpose.msra.mxu0 0.0
        %4580 = vmatprep.subr.mxu0 0.0
        %4581 = vmatpush1.xpose.msra.mxu0 0.0
        %4582 = vmatprep.subr.mxu0 0.0
        %4583 = vmatpush1.xpose.msra.mxu0 0.0
        %4584 = vmatprep.subr.mxu0 0.0
        %4585 = vmatpush1.xpose.msra.mxu0 0.0
        %4586 = vmatprep.subr.mxu0 0.0
        %4587 = vmatpush1.xpose.msra.mxu0 0.0
        %4588 = vmatprep.subr.mxu0 0.0
        %4589 = vmatpush1.xpose.msra.mxu0 0.0
        %4590 = vmatprep.subr.mxu0 0.0
        %4591 = vmatpush1.xpose.msra.mxu0 0.0
        %4592 = vmatprep.subr.mxu0 0.0
        %4593 = vmatpush1.xpose.msra.mxu0 0.0
        %4594 = vmatprep.subr.mxu0 0.0
        %4595 = vmatpush1.xpose.msra.mxu0 0.0
        %4596 = vmatprep.subr.mxu0 0.0
        %4597 = vmatpush1.xpose.msra.mxu0 0.0
        %4598 = vmatprep.subr.mxu0 0.0
        %4599 = vmatpush1.xpose.msra.mxu0 0.0
        %4600 = vmatprep.subr.mxu0 0.0
        %4601 = vmatpush1.xpose.msra.mxu0 0.0
        %4602 = vmatprep.subr.mxu0 0.0
        %4603 = vmatpush1.xpose.msra.mxu0 0.0
        %4604 = vmatprep.subr.mxu0 0.0
        %4605 = vmatpush1.xpose.msra.mxu0 0.0
        %4606 = vmatprep.subr.mxu0 0.0
        %4607 = vmatpush1.xpose.msra.mxu0 0.0
        %4608 = vmatprep.subr.mxu0 0.0
        %4609 = vmatpush1.xpose.msra.mxu0 0.0
        %4610 = vmatprep.subr.mxu0 0.0
        %4611 = vmatpush1.xpose.msra.mxu0 0.0
        %4612 = vmatprep.mubr.f32.mxu0 0.0
        %4613 = vmatmul.mubr.f32.gmra.mrb[0].mxu0 %v4540
        %v4614 = vpop.f32.mrb[0].mxu0
        %v4615 = vadd.f32 %v3984, %v4614
        %v4616 = vpop.f32.mrb[0].mxu0
        %4617 = vmatprep.mubr.f32.mxu0 0.0
        %4618 = vmatmul.mubr.f32.gmra.mrb[0].mxu0 %v4542
        %v4619 = vpop.f32.mrb[0].mxu0
        %v4620 = vadd.f32 %v3985, %v4619
        %v4621 = vpop.f32.mrb[0].mxu0
        %4622 = vdwg.mxu0
        %4623 = vrot.lane.b32.xlu0 %v510, 112
        %v4624 = vpop.permute.xlu0 %4623
        %4625 = vrot.lane.b32.xlu0 %v511, 112
        %v4626 = vpop.permute.xlu0 %4625
        %4627 = vrot.lane.b32.xlu0 %v526, 112
        %v4628 = vpop.permute.xlu0 %4627
        %4629 = vrot.lane.b32.xlu0 %v527, 112
        %v4630 = vpop.permute.xlu0 %4629
        %v4631 = vsel %vm666, %v4624, 0
        %v4633 = vsel %vm666, %v4626, 0
        %v4635 = vsel %vm666, %v4628, 0
        %v4637 = vsel %vm666, %v4630, 0
        %4639 = vmatprep.subr.mxu0 0.0
        %4640 = vmatpush1.xpose.msra.mxu0 %v4635
        %4641 = vmatprep.subr.mxu0 0.0
        %4642 = vmatpush1.xpose.msra.mxu0 %v4637
        %4643 = vmatprep.subr.mxu0 0.0
        %4644 = vmatpush1.xpose.msra.mxu0 0.0
        %4645 = vmatprep.subr.mxu0 0.0
        %4646 = vmatpush1.xpose.msra.mxu0 0.0
        %4647 = vmatprep.subr.mxu0 0.0
        %4648 = vmatpush1.xpose.msra.mxu0 0.0
        %4649 = vmatprep.subr.mxu0 0.0
        %4650 = vmatpush1.xpose.msra.mxu0 0.0
        %4651 = vmatprep.subr.mxu0 0.0
        %4652 = vmatpush1.xpose.msra.mxu0 0.0
        %4653 = vmatprep.subr.mxu0 0.0
        %4654 = vmatpush1.xpose.msra.mxu0 0.0
        %4655 = vmatprep.subr.mxu0 0.0
        %4656 = vmatpush1.xpose.msra.mxu0 0.0
        %4657 = vmatprep.subr.mxu0 0.0
        %4658 = vmatpush1.xpose.msra.mxu0 0.0
        %4659 = vmatprep.subr.mxu0 0.0
        %4660 = vmatpush1.xpose.msra.mxu0 0.0
        %4661 = vmatprep.subr.mxu0 0.0
        %4662 = vmatpush1.xpose.msra.mxu0 0.0
        %4663 = vmatprep.subr.mxu0 0.0
        %4664 = vmatpush1.xpose.msra.mxu0 0.0
        %4665 = vmatprep.subr.mxu0 0.0
        %4666 = vmatpush1.xpose.msra.mxu0 0.0
        %4667 = vmatprep.subr.mxu0 0.0
        %4668 = vmatpush1.xpose.msra.mxu0 0.0
        %4669 = vmatprep.subr.mxu0 0.0
        %4670 = vmatpush1.xpose.msra.mxu0 0.0
        %4671 = vmatprep.subr.mxu0 0.0
        %4672 = vmatpush1.xpose.msra.mxu0 0.0
        %4673 = vmatprep.subr.mxu0 0.0
        %4674 = vmatpush1.xpose.msra.mxu0 0.0
        %4675 = vmatprep.subr.mxu0 0.0
        %4676 = vmatpush1.xpose.msra.mxu0 0.0
        %4677 = vmatprep.subr.mxu0 0.0
        %4678 = vmatpush1.xpose.msra.mxu0 0.0
        %4679 = vmatprep.subr.mxu0 0.0
        %4680 = vmatpush1.xpose.msra.mxu0 0.0
        %4681 = vmatprep.subr.mxu0 0.0
        %4682 = vmatpush1.xpose.msra.mxu0 0.0
        %4683 = vmatprep.subr.mxu0 0.0
        %4684 = vmatpush1.xpose.msra.mxu0 0.0
        %4685 = vmatprep.subr.mxu0 0.0
        %4686 = vmatpush1.xpose.msra.mxu0 0.0
        %4687 = vmatprep.subr.mxu0 0.0
        %4688 = vmatpush1.xpose.msra.mxu0 0.0
        %4689 = vmatprep.subr.mxu0 0.0
        %4690 = vmatpush1.xpose.msra.mxu0 0.0
        %4691 = vmatprep.subr.mxu0 0.0
        %4692 = vmatpush1.xpose.msra.mxu0 0.0
        %4693 = vmatprep.subr.mxu0 0.0
        %4694 = vmatpush1.xpose.msra.mxu0 0.0
        %4695 = vmatprep.subr.mxu0 0.0
        %4696 = vmatpush1.xpose.msra.mxu0 0.0
        %4697 = vmatprep.subr.mxu0 0.0
        %4698 = vmatpush1.xpose.msra.mxu0 0.0
        %4699 = vmatprep.subr.mxu0 0.0
        %4700 = vmatpush1.xpose.msra.mxu0 0.0
        %4701 = vmatprep.subr.mxu0 0.0
        %4702 = vmatpush1.xpose.msra.mxu0 0.0
        %4703 = vmatprep.mubr.f32.mxu0 0.0
        %4704 = vmatmul.mubr.f32.gmra.mrb[0].mxu0 %v4631
        %v4705 = vpop.f32.mrb[0].mxu0
        %v4706 = vadd.f32 %v3984, %v4705
        %v4707 = vpop.f32.mrb[0].mxu0
        %4708 = vmatprep.mubr.f32.mxu0 0.0
        %4709 = vmatmul.mubr.f32.gmra.mrb[0].mxu0 %v4633
        %v4710 = vpop.f32.mrb[0].mxu0
        %v4711 = vadd.f32 %v3985, %v4710
        %v4712 = vpop.f32.mrb[0].mxu0
        %4713 = vdwg.mxu0
        %v4714 = vadd.f32 %v4069, %v1374
        %v4715 = vadd.f32 %v4074, %v1374
        %v4716 = vadd.f32 %v4160, %v1378
        %v4717 = vadd.f32 %v4165, %v1378
        %v4718 = vadd.f32 %v4251, %v1382
        %v4719 = vadd.f32 %v4256, %v1382
        %v4720 = vadd.f32 %v4342, %v1386
        %v4721 = vadd.f32 %v4347, %v1386
        %v4722 = vadd.f32 %v4433, %v1390
        %v4723 = vadd.f32 %v4438, %v1390
        %v4724 = vadd.f32 %v4524, %v1394
        %v4725 = vadd.f32 %v4529, %v1394
        %v4726 = vadd.f32 %v4615, %v1398
        %v4727 = vadd.f32 %v4620, %v1398
        %v4728 = vadd.f32 %v4706, %v1402
        %v4729 = vadd.f32 %v4711, %v1402
        %v4730 = vsel %vm1427, %v4714, -inf
        %4731 = vmax.xlane.f32.xlu0 %v4730
        %v4732 = vpop.xlane.xlu0 %4731
        %v4733 = vsel %vm1427, %v4715, -inf
        %4734 = vmax.xlane.f32.xlu0 %v4733
        %v4735 = vpop.xlane.xlu0 %4734
        %v4736 = vsel %vm1427, %v4716, -inf
        %4737 = vmax.xlane.f32.xlu0 %v4736
        %v4738 = vpop.xlane.xlu0 %4737
        %v4739 = vsel %vm1427, %v4717, -inf
        %4740 = vmax.xlane.f32.xlu0 %v4739
        %v4741 = vpop.xlane.xlu0 %4740
        %v4742 = vsel %vm1427, %v4718, -inf
        %4743 = vmax.xlane.f32.xlu0 %v4742
        %v4744 = vpop.xlane.xlu0 %4743
        %v4745 = vsel %vm1427, %v4719, -inf
        %4746 = vmax.xlane.f32.xlu0 %v4745
        %v4747 = vpop.xlane.xlu0 %4746
        %v4748 = vsel %vm1427, %v4720, -inf
        %4749 = vmax.xlane.f32.xlu0 %v4748
        %v4750 = vpop.xlane.xlu0 %4749
        %v4751 = vsel %vm1427, %v4721, -inf
        %4752 = vmax.xlane.f32.xlu0 %v4751
        %v4753 = vpop.xlane.xlu0 %4752
        %v4754 = vsel %vm1427, %v4722, -inf
        %4755 = vmax.xlane.f32.xlu0 %v4754
        %v4756 = vpop.xlane.xlu0 %4755
        %v4757 = vsel %vm1427, %v4723, -inf
        %4758 = vmax.xlane.f32.xlu0 %v4757
        %v4759 = vpop.xlane.xlu0 %4758
        %v4760 = vsel %vm1427, %v4724, -inf
        %4761 = vmax.xlane.f32.xlu0 %v4760
        %v4762 = vpop.xlane.xlu0 %4761
        %v4763 = vsel %vm1427, %v4725, -inf
        %4764 = vmax.xlane.f32.xlu0 %v4763
        %v4765 = vpop.xlane.xlu0 %4764
        %v4766 = vsel %vm1427, %v4726, -inf
        %4767 = vmax.xlane.f32.xlu0 %v4766
        %v4768 = vpop.xlane.xlu0 %4767
        %v4769 = vsel %vm1427, %v4727, -inf
        %4770 = vmax.xlane.f32.xlu0 %v4769
        %v4771 = vpop.xlane.xlu0 %4770
        %v4772 = vsel %vm1427, %v4728, -inf
        %4773 = vmax.xlane.f32.xlu0 %v4772
        %v4774 = vpop.xlane.xlu0 %4773
        %v4775 = vsel %vm1427, %v4729, -inf
        %4776 = vmax.xlane.f32.xlu0 %v4775
        %v4777 = vpop.xlane.xlu0 %4776
        %v4778 = vsub.f32 %v4714, %v4732
        %v4779 = vsub.f32 %v4715, %v4735
        %v4780 = vsub.f32 %v4716, %v4738
        %v4781 = vsub.f32 %v4717, %v4741
        %v4782 = vsub.f32 %v4718, %v4744
        %v4783 = vsub.f32 %v4719, %v4747
        %v4784 = vsub.f32 %v4720, %v4750
        %v4785 = vsub.f32 %v4721, %v4753
        %v4786 = vsub.f32 %v4722, %v4756
        %v4787 = vsub.f32 %v4723, %v4759
        %v4788 = vsub.f32 %v4724, %v4762
        %v4789 = vsub.f32 %v4725, %v4765
        %v4790 = vsub.f32 %v4726, %v4768
        %v4791 = vsub.f32 %v4727, %v4771
        %v4792 = vsub.f32 %v4728, %v4774
        %v4793 = vsub.f32 %v4729, %v4777
        %v4794 = vmul.f32 %v4778, 1.442695
        %v4795 = vpow.pop %v4794
        %v4796 = vmul.f32 %v4779, 1.442695
        %v4797 = vpow.pop %v4796
        %v4798 = vmul.f32 %v4780, 1.442695
        %v4799 = vpow.pop %v4798
        %v4800 = vmul.f32 %v4781, 1.442695
        %v4801 = vpow.pop %v4800
        %v4802 = vmul.f32 %v4782, 1.442695
        %v4803 = vpow.pop %v4802
        %v4804 = vmul.f32 %v4783, 1.442695
        %v4805 = vpow.pop %v4804
        %v4806 = vmul.f32 %v4784, 1.442695
        %v4807 = vpow.pop %v4806
        %v4808 = vmul.f32 %v4785, 1.442695
        %v4809 = vpow.pop %v4808
        %v4810 = vmul.f32 %v4786, 1.442695
        %v4811 = vpow.pop %v4810
        %v4812 = vmul.f32 %v4787, 1.442695
        %v4813 = vpow.pop %v4812
        %v4814 = vmul.f32 %v4788, 1.442695
        %v4815 = vpow.pop %v4814
        %v4816 = vmul.f32 %v4789, 1.442695
        %v4817 = vpow.pop %v4816
        %v4818 = vmul.f32 %v4790, 1.442695
        %v4819 = vpow.pop %v4818
        %v4820 = vmul.f32 %v4791, 1.442695
        %v4821 = vpow.pop %v4820
        %v4822 = vmul.f32 %v4792, 1.442695
        %v4823 = vpow.pop %v4822
        %v4824 = vmul.f32 %v4793, 1.442695
        %v4825 = vpow.pop %v4824
        %v4826 = vsel %vm1427, %v4795, 0.0
        %4827 = vadd.xlane.f32.xlu0 %v4826
        %v4828 = vpop.xlane.xlu0 %4827
        %v4829 = vsel %vm1427, %v4797, 0.0
        %4830 = vadd.xlane.f32.xlu0 %v4829
        %v4831 = vpop.xlane.xlu0 %4830
        %v4832 = vsel %vm1427, %v4799, 0.0
        %4833 = vadd.xlane.f32.xlu0 %v4832
        %v4834 = vpop.xlane.xlu0 %4833
        %v4835 = vsel %vm1427, %v4801, 0.0
        %4836 = vadd.xlane.f32.xlu0 %v4835
        %v4837 = vpop.xlane.xlu0 %4836
        %v4838 = vsel %vm1427, %v4803, 0.0
        %4839 = vadd.xlane.f32.xlu0 %v4838
        %v4840 = vpop.xlane.xlu0 %4839
        %v4841 = vsel %vm1427, %v4805, 0.0
        %4842 = vadd.xlane.f32.xlu0 %v4841
        %v4843 = vpop.xlane.xlu0 %4842
        %v4844 = vsel %vm1427, %v4807, 0.0
        %4845 = vadd.xlane.f32.xlu0 %v4844
        %v4846 = vpop.xlane.xlu0 %4845
        %v4847 = vsel %vm1427, %v4809, 0.0
        %4848 = vadd.xlane.f32.xlu0 %v4847
        %v4849 = vpop.xlane.xlu0 %4848
        %v4850 = vsel %vm1427, %v4811, 0.0
        %4851 = vadd.xlane.f32.xlu0 %v4850
        %v4852 = vpop.xlane.xlu0 %4851
        %v4853 = vsel %vm1427, %v4813, 0.0
        %4854 = vadd.xlane.f32.xlu0 %v4853
        %v4855 = vpop.xlane.xlu0 %4854
        %v4856 = vsel %vm1427, %v4815, 0.0
        %4857 = vadd.xlane.f32.xlu0 %v4856
        %v4858 = vpop.xlane.xlu0 %4857
        %v4859 = vsel %vm1427, %v4817, 0.0
        %4860 = vadd.xlane.f32.xlu0 %v4859
        %v4861 = vpop.xlane.xlu0 %4860
        %v4862 = vsel %vm1427, %v4819, 0.0
        %4863 = vadd.xlane.f32.xlu0 %v4862
        %v4864 = vpop.xlane.xlu0 %4863
        %v4865 = vsel %vm1427, %v4821, 0.0
        %4866 = vadd.xlane.f32.xlu0 %v4865
        %v4867 = vpop.xlane.xlu0 %4866
        %v4868 = vsel %vm1427, %v4823, 0.0
        %4869 = vadd.xlane.f32.xlu0 %v4868
        %v4870 = vpop.xlane.xlu0 %4869
        %v4871 = vsel %vm1427, %v4825, 0.0
        %4872 = vadd.xlane.f32.xlu0 %v4871
        %v4873 = vpop.xlane.xlu0 %4872
        %4874 = vrot.lane.b32.xlu0 %v528, 112
        %v4875 = vpop.permute.xlu0 %4874
        %4876 = vrot.lane.b32.xlu0 %v529, 112
        %v4877 = vpop.permute.xlu0 %4876
        %v4881 = vsel %vm1427, %v4795, 0
        %v4884 = vsel %vm1427, %v4797, 0
        %4886 = vmatprep.subr.mxu0 0.0
        %4887 = vmatpush1.msra.mxu0 %v4875
        %4888 = vmatprep.subr.mxu0 0.0
        %4889 = vmatpush1.msra.mxu0 %v4877
        %4890 = vmatprep.subr.mxu0 0.0
        %4891 = vmatpush1.msra.mxu0 0.0
        %4892 = vmatprep.subr.mxu0 0.0
        %4893 = vmatpush1.msra.mxu0 0.0
        %4894 = vmatprep.subr.mxu0 0.0
        %4895 = vmatpush1.msra.mxu0 0.0
        %4896 = vmatprep.subr.mxu0 0.0
        %4897 = vmatpush1.msra.mxu0 0.0
        %4898 = vmatprep.subr.mxu0 0.0
        %4899 = vmatpush1.msra.mxu0 0.0
        %4900 = vmatprep.subr.mxu0 0.0
        %4901 = vmatpush1.msra.mxu0 0.0
        %4902 = vmatprep.subr.mxu0 0.0
        %4903 = vmatpush1.msra.mxu0 0.0
        %4904 = vmatprep.subr.mxu0 0.0
        %4905 = vmatpush1.msra.mxu0 0.0
        %4906 = vmatprep.subr.mxu0 0.0
        %4907 = vmatpush1.msra.mxu0 0.0
        %4908 = vmatprep.subr.mxu0 0.0
        %4909 = vmatpush1.msra.mxu0 0.0
        %4910 = vmatprep.subr.mxu0 0.0
        %4911 = vmatpush1.msra.mxu0 0.0
        %4912 = vmatprep.subr.mxu0 0.0
        %4913 = vmatpush1.msra.mxu0 0.0
        %4914 = vmatprep.subr.mxu0 0.0
        %4915 = vmatpush1.msra.mxu0 0.0
        %4916 = vmatprep.subr.mxu0 0.0
        %4917 = vmatpush1.msra.mxu0 0.0
        %4918 = vmatprep.subr.mxu0 0.0
        %4919 = vmatpush1.msra.mxu0 0.0
        %4920 = vmatprep.subr.mxu0 0.0
        %4921 = vmatpush1.msra.mxu0 0.0
        %4922 = vmatprep.subr.mxu0 0.0
        %4923 = vmatpush1.msra.mxu0 0.0
        %4924 = vmatprep.subr.mxu0 0.0
        %4925 = vmatpush1.msra.mxu0 0.0
        %4926 = vmatprep.subr.mxu0 0.0
        %4927 = vmatpush1.msra.mxu0 0.0
        %4928 = vmatprep.subr.mxu0 0.0
        %4929 = vmatpush1.msra.mxu0 0.0
        %4930 = vmatprep.subr.mxu0 0.0
        %4931 = vmatpush1.msra.mxu0 0.0
        %4932 = vmatprep.subr.mxu0 0.0
        %4933 = vmatpush1.msra.mxu0 0.0
        %4934 = vmatprep.subr.mxu0 0.0
        %4935 = vmatpush1.msra.mxu0 0.0
        %4936 = vmatprep.subr.mxu0 0.0
        %4937 = vmatpush1.msra.mxu0 0.0
        %4938 = vmatprep.subr.mxu0 0.0
        %4939 = vmatpush1.msra.mxu0 0.0
        %4940 = vmatprep.subr.mxu0 0.0
        %4941 = vmatpush1.msra.mxu0 0.0
        %4942 = vmatprep.subr.mxu0 0.0
        %4943 = vmatpush1.msra.mxu0 0.0
        %4944 = vmatprep.subr.mxu0 0.0
        %4945 = vmatpush1.msra.mxu0 0.0
        %4946 = vmatprep.subr.mxu0 0.0
        %4947 = vmatpush1.msra.mxu0 0.0
        %4948 = vmatprep.subr.mxu0 0.0
        %4949 = vmatpush1.msra.mxu0 0.0
        %4950 = vmatprep.mubr.f32.mxu0 0.0
        %4951 = vmatmul.mubr.f32.gmra.mrb[0].mxu0 %v4881
        %v4952 = vpop.f32.mrb[0].mxu0
        %v4953 = vadd.f32 0.0, %v4952
        %v4954 = vpop.f32.mrb[0].mxu0
        %4955 = vmatprep.mubr.f32.mxu0 0.0
        %4956 = vmatmul.mubr.f32.gmra.mrb[0].mxu0 %v4884
        %v4957 = vpop.f32.mrb[0].mxu0
        %v4958 = vadd.f32 0.0, %v4957
        %v4959 = vpop.f32.mrb[0].mxu0
        %4960 = vdwg.mxu0
        %4961 = vrot.lane.b32.xlu0 %v530, 112
        %v4962 = vpop.permute.xlu0 %4961
        %4963 = vrot.lane.b32.xlu0 %v531, 112
        %v4964 = vpop.permute.xlu0 %4963
        %v4968 = vsel %vm1427, %v4799, 0
        %v4971 = vsel %vm1427, %v4801, 0
        %4973 = vmatprep.subr.mxu0 0.0
        %4974 = vmatpush1.msra.mxu0 %v4962
        %4975 = vmatprep.subr.mxu0 0.0
        %4976 = vmatpush1.msra.mxu0 %v4964
        %4977 = vmatprep.subr.mxu0 0.0
        %4978 = vmatpush1.msra.mxu0 0.0
        %4979 = vmatprep.subr.mxu0 0.0
        %4980 = vmatpush1.msra.mxu0 0.0
        %4981 = vmatprep.subr.mxu0 0.0
        %4982 = vmatpush1.msra.mxu0 0.0
        %4983 = vmatprep.subr.mxu0 0.0
        %4984 = vmatpush1.msra.mxu0 0.0
        %4985 = vmatprep.subr.mxu0 0.0
        %4986 = vmatpush1.msra.mxu0 0.0
        %4987 = vmatprep.subr.mxu0 0.0
        %4988 = vmatpush1.msra.mxu0 0.0
        %4989 = vmatprep.subr.mxu0 0.0
        %4990 = vmatpush1.msra.mxu0 0.0
        %4991 = vmatprep.subr.mxu0 0.0
        %4992 = vmatpush1.msra.mxu0 0.0
        %4993 = vmatprep.subr.mxu0 0.0
        %4994 = vmatpush1.msra.mxu0 0.0
        %4995 = vmatprep.subr.mxu0 0.0
        %4996 = vmatpush1.msra.mxu0 0.0
        %4997 = vmatprep.subr.mxu0 0.0
        %4998 = vmatpush1.msra.mxu0 0.0
        %4999 = vmatprep.subr.mxu0 0.0
        %5000 = vmatpush1.msra.mxu0 0.0
        %5001 = vmatprep.subr.mxu0 0.0
        %5002 = vmatpush1.msra.mxu0 0.0
        %5003 = vmatprep.subr.mxu0 0.0
        %5004 = vmatpush1.msra.mxu0 0.0
        %5005 = vmatprep.subr.mxu0 0.0
        %5006 = vmatpush1.msra.mxu0 0.0
        %5007 = vmatprep.subr.mxu0 0.0
        %5008 = vmatpush1.msra.mxu0 0.0
        %5009 = vmatprep.subr.mxu0 0.0
        %5010 = vmatpush1.msra.mxu0 0.0
        %5011 = vmatprep.subr.mxu0 0.0
        %5012 = vmatpush1.msra.mxu0 0.0
        %5013 = vmatprep.subr.mxu0 0.0
        %5014 = vmatpush1.msra.mxu0 0.0
        %5015 = vmatprep.subr.mxu0 0.0
        %5016 = vmatpush1.msra.mxu0 0.0
        %5017 = vmatprep.subr.mxu0 0.0
        %5018 = vmatpush1.msra.mxu0 0.0
        %5019 = vmatprep.subr.mxu0 0.0
        %5020 = vmatpush1.msra.mxu0 0.0
        %5021 = vmatprep.subr.mxu0 0.0
        %5022 = vmatpush1.msra.mxu0 0.0
        %5023 = vmatprep.subr.mxu0 0.0
        %5024 = vmatpush1.msra.mxu0 0.0
        %5025 = vmatprep.subr.mxu0 0.0
        %5026 = vmatpush1.msra.mxu0 0.0
        %5027 = vmatprep.subr.mxu0 0.0
        %5028 = vmatpush1.msra.mxu0 0.0
        %5029 = vmatprep.subr.mxu0 0.0
        %5030 = vmatpush1.msra.mxu0 0.0
        %5031 = vmatprep.subr.mxu0 0.0
        %5032 = vmatpush1.msra.mxu0 0.0
        %5033 = vmatprep.subr.mxu0 0.0
        %5034 = vmatpush1.msra.mxu0 0.0
        %5035 = vmatprep.subr.mxu0 0.0
        %5036 = vmatpush1.msra.mxu0 0.0
        %5037 = vmatprep.mubr.f32.mxu0 0.0
        %5038 = vmatmul.mubr.f32.gmra.mrb[0].mxu0 %v4968
        %v5039 = vpop.f32.mrb[0].mxu0
        %v5040 = vadd.f32 0.0, %v5039
        %v5041 = vpop.f32.mrb[0].mxu0
        %5042 = vmatprep.mubr.f32.mxu0 0.0
        %5043 = vmatmul.mubr.f32.gmra.mrb[0].mxu0 %v4971
        %v5044 = vpop.f32.mrb[0].mxu0
        %v5045 = vadd.f32 0.0, %v5044
        %v5046 = vpop.f32.mrb[0].mxu0
        %5047 = vdwg.mxu0
        %5048 = vrot.lane.b32.xlu0 %v532, 112
        %v5049 = vpop.permute.xlu0 %5048
        %5050 = vrot.lane.b32.xlu0 %v533, 112
        %v5051 = vpop.permute.xlu0 %5050
        %v5055 = vsel %vm1427, %v4803, 0
        %v5058 = vsel %vm1427, %v4805, 0
        %5060 = vmatprep.subr.mxu0 0.0
        %5061 = vmatpush1.msra.mxu0 %v5049
        %5062 = vmatprep.subr.mxu0 0.0
        %5063 = vmatpush1.msra.mxu0 %v5051
        %5064 = vmatprep.subr.mxu0 0.0
        %5065 = vmatpush1.msra.mxu0 0.0
        %5066 = vmatprep.subr.mxu0 0.0
        %5067 = vmatpush1.msra.mxu0 0.0
        %5068 = vmatprep.subr.mxu0 0.0
        %5069 = vmatpush1.msra.mxu0 0.0
        %5070 = vmatprep.subr.mxu0 0.0
        %5071 = vmatpush1.msra.mxu0 0.0
        %5072 = vmatprep.subr.mxu0 0.0
        %5073 = vmatpush1.msra.mxu0 0.0
        %5074 = vmatprep.subr.mxu0 0.0
        %5075 = vmatpush1.msra.mxu0 0.0
        %5076 = vmatprep.subr.mxu0 0.0
        %5077 = vmatpush1.msra.mxu0 0.0
        %5078 = vmatprep.subr.mxu0 0.0
        %5079 = vmatpush1.msra.mxu0 0.0
        %5080 = vmatprep.subr.mxu0 0.0
        %5081 = vmatpush1.msra.mxu0 0.0
        %5082 = vmatprep.subr.mxu0 0.0
        %5083 = vmatpush1.msra.mxu0 0.0
        %5084 = vmatprep.subr.mxu0 0.0
        %5085 = vmatpush1.msra.mxu0 0.0
        %5086 = vmatprep.subr.mxu0 0.0
        %5087 = vmatpush1.msra.mxu0 0.0
        %5088 = vmatprep.subr.mxu0 0.0
        %5089 = vmatpush1.msra.mxu0 0.0
        %5090 = vmatprep.subr.mxu0 0.0
        %5091 = vmatpush1.msra.mxu0 0.0
        %5092 = vmatprep.subr.mxu0 0.0
        %5093 = vmatpush1.msra.mxu0 0.0
        %5094 = vmatprep.subr.mxu0 0.0
        %5095 = vmatpush1.msra.mxu0 0.0
        %5096 = vmatprep.subr.mxu0 0.0
        %5097 = vmatpush1.msra.mxu0 0.0
        %5098 = vmatprep.subr.mxu0 0.0
        %5099 = vmatpush1.msra.mxu0 0.0
        %5100 = vmatprep.subr.mxu0 0.0
        %5101 = vmatpush1.msra.mxu0 0.0
        %5102 = vmatprep.subr.mxu0 0.0
        %5103 = vmatpush1.msra.mxu0 0.0
        %5104 = vmatprep.subr.mxu0 0.0
        %5105 = vmatpush1.msra.mxu0 0.0
        %5106 = vmatprep.subr.mxu0 0.0
        %5107 = vmatpush1.msra.mxu0 0.0
        %5108 = vmatprep.subr.mxu0 0.0
        %5109 = vmatpush1.msra.mxu0 0.0
        %5110 = vmatprep.subr.mxu0 0.0
        %5111 = vmatpush1.msra.mxu0 0.0
        %5112 = vmatprep.subr.mxu0 0.0
        %5113 = vmatpush1.msra.mxu0 0.0
        %5114 = vmatprep.subr.mxu0 0.0
        %5115 = vmatpush1.msra.mxu0 0.0
        %5116 = vmatprep.subr.mxu0 0.0
        %5117 = vmatpush1.msra.mxu0 0.0
        %5118 = vmatprep.subr.mxu0 0.0
        %5119 = vmatpush1.msra.mxu0 0.0
        %5120 = vmatprep.subr.mxu0 0.0
        %5121 = vmatpush1.msra.mxu0 0.0
        %5122 = vmatprep.subr.mxu0 0.0
        %5123 = vmatpush1.msra.mxu0 0.0
        %5124 = vmatprep.mubr.f32.mxu0 0.0
        %5125 = vmatmul.mubr.f32.gmra.mrb[0].mxu0 %v5055
        %v5126 = vpop.f32.mrb[0].mxu0
        %v5127 = vadd.f32 0.0, %v5126
        %v5128 = vpop.f32.mrb[0].mxu0
        %5129 = vmatprep.mubr.f32.mxu0 0.0
        %5130 = vmatmul.mubr.f32.gmra.mrb[0].mxu0 %v5058
        %v5131 = vpop.f32.mrb[0].mxu0
        %v5132 = vadd.f32 0.0, %v5131
        %v5133 = vpop.f32.mrb[0].mxu0
        %5134 = vdwg.mxu0
        %5135 = vrot.lane.b32.xlu0 %v534, 112
        %v5136 = vpop.permute.xlu0 %5135
        %5137 = vrot.lane.b32.xlu0 %v535, 112
        %v5138 = vpop.permute.xlu0 %5137
        %v5142 = vsel %vm1427, %v4807, 0
        %v5145 = vsel %vm1427, %v4809, 0
        %5147 = vmatprep.subr.mxu0 0.0
        %5148 = vmatpush1.msra.mxu0 %v5136
        %5149 = vmatprep.subr.mxu0 0.0
        %5150 = vmatpush1.msra.mxu0 %v5138
        %5151 = vmatprep.subr.mxu0 0.0
        %5152 = vmatpush1.msra.mxu0 0.0
        %5153 = vmatprep.subr.mxu0 0.0
        %5154 = vmatpush1.msra.mxu0 0.0
        %5155 = vmatprep.subr.mxu0 0.0
        %5156 = vmatpush1.msra.mxu0 0.0
        %5157 = vmatprep.subr.mxu0 0.0
        %5158 = vmatpush1.msra.mxu0 0.0
        %5159 = vmatprep.subr.mxu0 0.0
        %5160 = vmatpush1.msra.mxu0 0.0
        %5161 = vmatprep.subr.mxu0 0.0
        %5162 = vmatpush1.msra.mxu0 0.0
        %5163 = vmatprep.subr.mxu0 0.0
        %5164 = vmatpush1.msra.mxu0 0.0
        %5165 = vmatprep.subr.mxu0 0.0
        %5166 = vmatpush1.msra.mxu0 0.0
        %5167 = vmatprep.subr.mxu0 0.0
        %5168 = vmatpush1.msra.mxu0 0.0
        %5169 = vmatprep.subr.mxu0 0.0
        %5170 = vmatpush1.msra.mxu0 0.0
        %5171 = vmatprep.subr.mxu0 0.0
        %5172 = vmatpush1.msra.mxu0 0.0
        %5173 = vmatprep.subr.mxu0 0.0
        %5174 = vmatpush1.msra.mxu0 0.0
        %5175 = vmatprep.subr.mxu0 0.0
        %5176 = vmatpush1.msra.mxu0 0.0
        %5177 = vmatprep.subr.mxu0 0.0
        %5178 = vmatpush1.msra.mxu0 0.0
        %5179 = vmatprep.subr.mxu0 0.0
        %5180 = vmatpush1.msra.mxu0 0.0
        %5181 = vmatprep.subr.mxu0 0.0
        %5182 = vmatpush1.msra.mxu0 0.0
        %5183 = vmatprep.subr.mxu0 0.0
        %5184 = vmatpush1.msra.mxu0 0.0
        %5185 = vmatprep.subr.mxu0 0.0
        %5186 = vmatpush1.msra.mxu0 0.0
        %5187 = vmatprep.subr.mxu0 0.0
        %5188 = vmatpush1.msra.mxu0 0.0
        %5189 = vmatprep.subr.mxu0 0.0
        %5190 = vmatpush1.msra.mxu0 0.0
        %5191 = vmatprep.subr.mxu0 0.0
        %5192 = vmatpush1.msra.mxu0 0.0
        %5193 = vmatprep.subr.mxu0 0.0
        %5194 = vmatpush1.msra.mxu0 0.0
        %5195 = vmatprep.subr.mxu0 0.0
        %5196 = vmatpush1.msra.mxu0 0.0
        %5197 = vmatprep.subr.mxu0 0.0
        %5198 = vmatpush1.msra.mxu0 0.0
        %5199 = vmatprep.subr.mxu0 0.0
        %5200 = vmatpush1.msra.mxu0 0.0
        %5201 = vmatprep.subr.mxu0 0.0
        %5202 = vmatpush1.msra.mxu0 0.0
        %5203 = vmatprep.subr.mxu0 0.0
        %5204 = vmatpush1.msra.mxu0 0.0
        %5205 = vmatprep.subr.mxu0 0.0
        %5206 = vmatpush1.msra.mxu0 0.0
        %5207 = vmatprep.subr.mxu0 0.0
        %5208 = vmatpush1.msra.mxu0 0.0
        %5209 = vmatprep.subr.mxu0 0.0
        %5210 = vmatpush1.msra.mxu0 0.0
        %5211 = vmatprep.mubr.f32.mxu0 0.0
        %5212 = vmatmul.mubr.f32.gmra.mrb[0].mxu0 %v5142
        %v5213 = vpop.f32.mrb[0].mxu0
        %v5214 = vadd.f32 0.0, %v5213
        %v5215 = vpop.f32.mrb[0].mxu0
        %5216 = vmatprep.mubr.f32.mxu0 0.0
        %5217 = vmatmul.mubr.f32.gmra.mrb[0].mxu0 %v5145
        %v5218 = vpop.f32.mrb[0].mxu0
        %v5219 = vadd.f32 0.0, %v5218
        %v5220 = vpop.f32.mrb[0].mxu0
        %5221 = vdwg.mxu0
        %5222 = vrot.lane.b32.xlu0 %v536, 112
        %v5223 = vpop.permute.xlu0 %5222
        %5224 = vrot.lane.b32.xlu0 %v537, 112
        %v5225 = vpop.permute.xlu0 %5224
        %v5229 = vsel %vm1427, %v4811, 0
        %v5232 = vsel %vm1427, %v4813, 0
        %5234 = vmatprep.subr.mxu0 0.0
        %5235 = vmatpush1.msra.mxu0 %v5223
        %5236 = vmatprep.subr.mxu0 0.0
        %5237 = vmatpush1.msra.mxu0 %v5225
        %5238 = vmatprep.subr.mxu0 0.0
        %5239 = vmatpush1.msra.mxu0 0.0
        %5240 = vmatprep.subr.mxu0 0.0
        %5241 = vmatpush1.msra.mxu0 0.0
        %5242 = vmatprep.subr.mxu0 0.0
        %5243 = vmatpush1.msra.mxu0 0.0
        %5244 = vmatprep.subr.mxu0 0.0
        %5245 = vmatpush1.msra.mxu0 0.0
        %5246 = vmatprep.subr.mxu0 0.0
        %5247 = vmatpush1.msra.mxu0 0.0
        %5248 = vmatprep.subr.mxu0 0.0
        %5249 = vmatpush1.msra.mxu0 0.0
        %5250 = vmatprep.subr.mxu0 0.0
        %5251 = vmatpush1.msra.mxu0 0.0
        %5252 = vmatprep.subr.mxu0 0.0
        %5253 = vmatpush1.msra.mxu0 0.0
        %5254 = vmatprep.subr.mxu0 0.0
        %5255 = vmatpush1.msra.mxu0 0.0
        %5256 = vmatprep.subr.mxu0 0.0
        %5257 = vmatpush1.msra.mxu0 0.0
        %5258 = vmatprep.subr.mxu0 0.0
        %5259 = vmatpush1.msra.mxu0 0.0
        %5260 = vmatprep.subr.mxu0 0.0
        %5261 = vmatpush1.msra.mxu0 0.0
        %5262 = vmatprep.subr.mxu0 0.0
        %5263 = vmatpush1.msra.mxu0 0.0
        %5264 = vmatprep.subr.mxu0 0.0
        %5265 = vmatpush1.msra.mxu0 0.0
        %5266 = vmatprep.subr.mxu0 0.0
        %5267 = vmatpush1.msra.mxu0 0.0
        %5268 = vmatprep.subr.mxu0 0.0
        %5269 = vmatpush1.msra.mxu0 0.0
        %5270 = vmatprep.subr.mxu0 0.0
        %5271 = vmatpush1.msra.mxu0 0.0
        %5272 = vmatprep.subr.mxu0 0.0
        %5273 = vmatpush1.msra.mxu0 0.0
        %5274 = vmatprep.subr.mxu0 0.0
        %5275 = vmatpush1.msra.mxu0 0.0
        %5276 = vmatprep.subr.mxu0 0.0
        %5277 = vmatpush1.msra.mxu0 0.0
        %5278 = vmatprep.subr.mxu0 0.0
        %5279 = vmatpush1.msra.mxu0 0.0
        %5280 = vmatprep.subr.mxu0 0.0
        %5281 = vmatpush1.msra.mxu0 0.0
        %5282 = vmatprep.subr.mxu0 0.0
        %5283 = vmatpush1.msra.mxu0 0.0
        %5284 = vmatprep.subr.mxu0 0.0
        %5285 = vmatpush1.msra.mxu0 0.0
        %5286 = vmatprep.subr.mxu0 0.0
        %5287 = vmatpush1.msra.mxu0 0.0
        %5288 = vmatprep.subr.mxu0 0.0
        %5289 = vmatpush1.msra.mxu0 0.0
        %5290 = vmatprep.subr.mxu0 0.0
        %5291 = vmatpush1.msra.mxu0 0.0
        %5292 = vmatprep.subr.mxu0 0.0
        %5293 = vmatpush1.msra.mxu0 0.0
        %5294 = vmatprep.subr.mxu0 0.0
        %5295 = vmatpush1.msra.mxu0 0.0
        %5296 = vmatprep.subr.mxu0 0.0
        %5297 = vmatpush1.msra.mxu0 0.0
        %5298 = vmatprep.mubr.f32.mxu0 0.0
        %5299 = vmatmul.mubr.f32.gmra.mrb[0].mxu0 %v5229
        %v5300 = vpop.f32.mrb[0].mxu0
        %v5301 = vadd.f32 0.0, %v5300
        %v5302 = vpop.f32.mrb[0].mxu0
        %5303 = vmatprep.mubr.f32.mxu0 0.0
        %5304 = vmatmul.mubr.f32.gmra.mrb[0].mxu0 %v5232
        %v5305 = vpop.f32.mrb[0].mxu0
        %v5306 = vadd.f32 0.0, %v5305
        %v5307 = vpop.f32.mrb[0].mxu0
        %5308 = vdwg.mxu0
        %5309 = vrot.lane.b32.xlu0 %v538, 112
        %v5310 = vpop.permute.xlu0 %5309
        %5311 = vrot.lane.b32.xlu0 %v539, 112
        %v5312 = vpop.permute.xlu0 %5311
        %v5316 = vsel %vm1427, %v4815, 0
        %v5319 = vsel %vm1427, %v4817, 0
        %5321 = vmatprep.subr.mxu0 0.0
        %5322 = vmatpush1.msra.mxu0 %v5310
        %5323 = vmatprep.subr.mxu0 0.0
        %5324 = vmatpush1.msra.mxu0 %v5312
        %5325 = vmatprep.subr.mxu0 0.0
        %5326 = vmatpush1.msra.mxu0 0.0
        %5327 = vmatprep.subr.mxu0 0.0
        %5328 = vmatpush1.msra.mxu0 0.0
        %5329 = vmatprep.subr.mxu0 0.0
        %5330 = vmatpush1.msra.mxu0 0.0
        %5331 = vmatprep.subr.mxu0 0.0
        %5332 = vmatpush1.msra.mxu0 0.0
        %5333 = vmatprep.subr.mxu0 0.0
        %5334 = vmatpush1.msra.mxu0 0.0
        %5335 = vmatprep.subr.mxu0 0.0
        %5336 = vmatpush1.msra.mxu0 0.0
        %5337 = vmatprep.subr.mxu0 0.0
        %5338 = vmatpush1.msra.mxu0 0.0
        %5339 = vmatprep.subr.mxu0 0.0
        %5340 = vmatpush1.msra.mxu0 0.0
        %5341 = vmatprep.subr.mxu0 0.0
        %5342 = vmatpush1.msra.mxu0 0.0
        %5343 = vmatprep.subr.mxu0 0.0
        %5344 = vmatpush1.msra.mxu0 0.0
        %5345 = vmatprep.subr.mxu0 0.0
        %5346 = vmatpush1.msra.mxu0 0.0
        %5347 = vmatprep.subr.mxu0 0.0
        %5348 = vmatpush1.msra.mxu0 0.0
        %5349 = vmatprep.subr.mxu0 0.0
        %5350 = vmatpush1.msra.mxu0 0.0
        %5351 = vmatprep.subr.mxu0 0.0
        %5352 = vmatpush1.msra.mxu0 0.0
        %5353 = vmatprep.subr.mxu0 0.0
        %5354 = vmatpush1.msra.mxu0 0.0
        %5355 = vmatprep.subr.mxu0 0.0
        %5356 = vmatpush1.msra.mxu0 0.0
        %5357 = vmatprep.subr.mxu0 0.0
        %5358 = vmatpush1.msra.mxu0 0.0
        %5359 = vmatprep.subr.mxu0 0.0
        %5360 = vmatpush1.msra.mxu0 0.0
        %5361 = vmatprep.subr.mxu0 0.0
        %5362 = vmatpush1.msra.mxu0 0.0
        %5363 = vmatprep.subr.mxu0 0.0
        %5364 = vmatpush1.msra.mxu0 0.0
        %5365 = vmatprep.subr.mxu0 0.0
        %5366 = vmatpush1.msra.mxu0 0.0
        %5367 = vmatprep.subr.mxu0 0.0
        %5368 = vmatpush1.msra.mxu0 0.0
        %5369 = vmatprep.subr.mxu0 0.0
        %5370 = vmatpush1.msra.mxu0 0.0
        %5371 = vmatprep.subr.mxu0 0.0
        %5372 = vmatpush1.msra.mxu0 0.0
        %5373 = vmatprep.subr.mxu0 0.0
        %5374 = vmatpush1.msra.mxu0 0.0
        %5375 = vmatprep.subr.mxu0 0.0
        %5376 = vmatpush1.msra.mxu0 0.0
        %5377 = vmatprep.subr.mxu0 0.0
        %5378 = vmatpush1.msra.mxu0 0.0
        %5379 = vmatprep.subr.mxu0 0.0
        %5380 = vmatpush1.msra.mxu0 0.0
        %5381 = vmatprep.subr.mxu0 0.0
        %5382 = vmatpush1.msra.mxu0 0.0
        %5383 = vmatprep.subr.mxu0 0.0
        %5384 = vmatpush1.msra.mxu0 0.0
        %5385 = vmatprep.mubr.f32.mxu0 0.0
        %5386 = vmatmul.mubr.f32.gmra.mrb[0].mxu0 %v5316
        %v5387 = vpop.f32.mrb[0].mxu0
        %v5388 = vadd.f32 0.0, %v5387
        %v5389 = vpop.f32.mrb[0].mxu0
        %5390 = vmatprep.mubr.f32.mxu0 0.0
        %5391 = vmatmul.mubr.f32.gmra.mrb[0].mxu0 %v5319
        %v5392 = vpop.f32.mrb[0].mxu0
        %v5393 = vadd.f32 0.0, %v5392
        %v5394 = vpop.f32.mrb[0].mxu0
        %5395 = vdwg.mxu0
        %5396 = vrot.lane.b32.xlu0 %v540, 112
        %v5397 = vpop.permute.xlu0 %5396
        %5398 = vrot.lane.b32.xlu0 %v541, 112
        %v5399 = vpop.permute.xlu0 %5398
        %v5403 = vsel %vm1427, %v4819, 0
        %v5406 = vsel %vm1427, %v4821, 0
        %5408 = vmatprep.subr.mxu0 0.0
        %5409 = vmatpush1.msra.mxu0 %v5397
        %5410 = vmatprep.subr.mxu0 0.0
        %5411 = vmatpush1.msra.mxu0 %v5399
        %5412 = vmatprep.subr.mxu0 0.0
        %5413 = vmatpush1.msra.mxu0 0.0
        %5414 = vmatprep.subr.mxu0 0.0
        %5415 = vmatpush1.msra.mxu0 0.0
        %5416 = vmatprep.subr.mxu0 0.0
        %5417 = vmatpush1.msra.mxu0 0.0
        %5418 = vmatprep.subr.mxu0 0.0
        %5419 = vmatpush1.msra.mxu0 0.0
        %5420 = vmatprep.subr.mxu0 0.0
        %5421 = vmatpush1.msra.mxu0 0.0
        %5422 = vmatprep.subr.mxu0 0.0
        %5423 = vmatpush1.msra.mxu0 0.0
        %5424 = vmatprep.subr.mxu0 0.0
        %5425 = vmatpush1.msra.mxu0 0.0
        %5426 = vmatprep.subr.mxu0 0.0
        %5427 = vmatpush1.msra.mxu0 0.0
        %5428 = vmatprep.subr.mxu0 0.0
        %5429 = vmatpush1.msra.mxu0 0.0
        %5430 = vmatprep.subr.mxu0 0.0
        %5431 = vmatpush1.msra.mxu0 0.0
        %5432 = vmatprep.subr.mxu0 0.0
        %5433 = vmatpush1.msra.mxu0 0.0
        %5434 = vmatprep.subr.mxu0 0.0
        %5435 = vmatpush1.msra.mxu0 0.0
        %5436 = vmatprep.subr.mxu0 0.0
        %5437 = vmatpush1.msra.mxu0 0.0
        %5438 = vmatprep.subr.mxu0 0.0
        %5439 = vmatpush1.msra.mxu0 0.0
        %5440 = vmatprep.subr.mxu0 0.0
        %5441 = vmatpush1.msra.mxu0 0.0
        %5442 = vmatprep.subr.mxu0 0.0
        %5443 = vmatpush1.msra.mxu0 0.0
        %5444 = vmatprep.subr.mxu0 0.0
        %5445 = vmatpush1.msra.mxu0 0.0
        %5446 = vmatprep.subr.mxu0 0.0
        %5447 = vmatpush1.msra.mxu0 0.0
        %5448 = vmatprep.subr.mxu0 0.0
        %5449 = vmatpush1.msra.mxu0 0.0
        %5450 = vmatprep.subr.mxu0 0.0
        %5451 = vmatpush1.msra.mxu0 0.0
        %5452 = vmatprep.subr.mxu0 0.0
        %5453 = vmatpush1.msra.mxu0 0.0
        %5454 = vmatprep.subr.mxu0 0.0
        %5455 = vmatpush1.msra.mxu0 0.0
        %5456 = vmatprep.subr.mxu0 0.0
        %5457 = vmatpush1.msra.mxu0 0.0
        %5458 = vmatprep.subr.mxu0 0.0
        %5459 = vmatpush1.msra.mxu0 0.0
        %5460 = vmatprep.subr.mxu0 0.0
        %5461 = vmatpush1.msra.mxu0 0.0
        %5462 = vmatprep.subr.mxu0 0.0
        %5463 = vmatpush1.msra.mxu0 0.0
        %5464 = vmatprep.subr.mxu0 0.0
        %5465 = vmatpush1.msra.mxu0 0.0
        %5466 = vmatprep.subr.mxu0 0.0
        %5467 = vmatpush1.msra.mxu0 0.0
        %5468 = vmatprep.subr.mxu0 0.0
        %5469 = vmatpush1.msra.mxu0 0.0
        %5470 = vmatprep.subr.mxu0 0.0
        %5471 = vmatpush1.msra.mxu0 0.0
        %5472 = vmatprep.mubr.f32.mxu0 0.0
        %5473 = vmatmul.mubr.f32.gmra.mrb[0].mxu0 %v5403
        %v5474 = vpop.f32.mrb[0].mxu0
        %v5475 = vadd.f32 0.0, %v5474
        %v5476 = vpop.f32.mrb[0].mxu0
        %5477 = vmatprep.mubr.f32.mxu0 0.0
        %5478 = vmatmul.mubr.f32.gmra.mrb[0].mxu0 %v5406
        %v5479 = vpop.f32.mrb[0].mxu0
        %v5480 = vadd.f32 0.0, %v5479
        %v5481 = vpop.f32.mrb[0].mxu0
        %5482 = vdwg.mxu0
        %5483 = vrot.lane.b32.xlu0 %v542, 112
        %v5484 = vpop.permute.xlu0 %5483
        %5485 = vrot.lane.b32.xlu0 %v543, 112
        %v5486 = vpop.permute.xlu0 %5485
        %v5490 = vsel %vm1427, %v4823, 0
        %v5493 = vsel %vm1427, %v4825, 0
        %5495 = vmatprep.subr.mxu0 0.0
        %5496 = vmatpush1.msra.mxu0 %v5484
        %5497 = vmatprep.subr.mxu0 0.0
        %5498 = vmatpush1.msra.mxu0 %v5486
        %5499 = vmatprep.subr.mxu0 0.0
        %5500 = vmatpush1.msra.mxu0 0.0
        %5501 = vmatprep.subr.mxu0 0.0
        %5502 = vmatpush1.msra.mxu0 0.0
        %5503 = vmatprep.subr.mxu0 0.0
        %5504 = vmatpush1.msra.mxu0 0.0
        %5505 = vmatprep.subr.mxu0 0.0
        %5506 = vmatpush1.msra.mxu0 0.0
        %5507 = vmatprep.subr.mxu0 0.0
        %5508 = vmatpush1.msra.mxu0 0.0
        %5509 = vmatprep.subr.mxu0 0.0
        %5510 = vmatpush1.msra.mxu0 0.0
        %5511 = vmatprep.subr.mxu0 0.0
        %5512 = vmatpush1.msra.mxu0 0.0
        %5513 = vmatprep.subr.mxu0 0.0
        %5514 = vmatpush1.msra.mxu0 0.0
        %5515 = vmatprep.subr.mxu0 0.0
        %5516 = vmatpush1.msra.mxu0 0.0
        %5517 = vmatprep.subr.mxu0 0.0
        %5518 = vmatpush1.msra.mxu0 0.0
        %5519 = vmatprep.subr.mxu0 0.0
        %5520 = vmatpush1.msra.mxu0 0.0
        %5521 = vmatprep.subr.mxu0 0.0
        %5522 = vmatpush1.msra.mxu0 0.0
        %5523 = vmatprep.subr.mxu0 0.0
        %5524 = vmatpush1.msra.mxu0 0.0
        %5525 = vmatprep.subr.mxu0 0.0
        %5526 = vmatpush1.msra.mxu0 0.0
        %5527 = vmatprep.subr.mxu0 0.0
        %5528 = vmatpush1.msra.mxu0 0.0
        %5529 = vmatprep.subr.mxu0 0.0
        %5530 = vmatpush1.msra.mxu0 0.0
        %5531 = vmatprep.subr.mxu0 0.0
        %5532 = vmatpush1.msra.mxu0 0.0
        %5533 = vmatprep.subr.mxu0 0.0
        %5534 = vmatpush1.msra.mxu0 0.0
        %5535 = vmatprep.subr.mxu0 0.0
        %5536 = vmatpush1.msra.mxu0 0.0
        %5537 = vmatprep.subr.mxu0 0.0
        %5538 = vmatpush1.msra.mxu0 0.0
        %5539 = vmatprep.subr.mxu0 0.0
        %5540 = vmatpush1.msra.mxu0 0.0
        %5541 = vmatprep.subr.mxu0 0.0
        %5542 = vmatpush1.msra.mxu0 0.0
        %5543 = vmatprep.subr.mxu0 0.0
        %5544 = vmatpush1.msra.mxu0 0.0
        %5545 = vmatprep.subr.mxu0 0.0
        %5546 = vmatpush1.msra.mxu0 0.0
        %5547 = vmatprep.subr.mxu0 0.0
        %5548 = vmatpush1.msra.mxu0 0.0
        %5549 = vmatprep.subr.mxu0 0.0
        %5550 = vmatpush1.msra.mxu0 0.0
        %5551 = vmatprep.subr.mxu0 0.0
        %5552 = vmatpush1.msra.mxu0 0.0
        %5553 = vmatprep.subr.mxu0 0.0
        %5554 = vmatpush1.msra.mxu0 0.0
        %5555 = vmatprep.subr.mxu0 0.0
        %5556 = vmatpush1.msra.mxu0 0.0
        %5557 = vmatprep.subr.mxu0 0.0
        %5558 = vmatpush1.msra.mxu0 0.0
        %5559 = vmatprep.mubr.f32.mxu0 0.0
        %5560 = vmatmul.mubr.f32.gmra.mrb[0].mxu0 %v5490
        %v5561 = vpop.f32.mrb[0].mxu0
        %v5562 = vadd.f32 0.0, %v5561
        %v5563 = vpop.f32.mrb[0].mxu0
        %5564 = vmatprep.mubr.f32.mxu0 0.0
        %5565 = vmatmul.mubr.f32.gmra.mrb[0].mxu0 %v5493
        %v5566 = vpop.f32.mrb[0].mxu0
        %v5567 = vadd.f32 0.0, %v5566
        %v5568 = vpop.f32.mrb[0].mxu0
        %5569 = vdwg.mxu0
        %v5570 = vrcp.pop %v4828
        %v5571 = vrcp.pop %v4831
        %v5572 = vrcp.pop %v4834
        %v5573 = vrcp.pop %v4837
        %v5574 = vrcp.pop %v4840
        %v5575 = vrcp.pop %v4843
        %v5576 = vrcp.pop %v4846
        %v5577 = vrcp.pop %v4849
        %v5578 = vrcp.pop %v4852
        %v5579 = vrcp.pop %v4855
        %v5580 = vrcp.pop %v4858
        %v5581 = vrcp.pop %v4861
        %v5582 = vrcp.pop %v4864
        %v5583 = vrcp.pop %v4867
        %v5584 = vrcp.pop %v4870
        %v5585 = vrcp.pop %v4873
        %v5586 = vmul.f32 %v4953, %v5570
        %v5587 = vmul.f32 %v4958, %v5571
        %v5588 = vmul.f32 %v5040, %v5572
        %v5589 = vmul.f32 %v5045, %v5573
        %v5590 = vmul.f32 %v5127, %v5574
        %v5591 = vmul.f32 %v5132, %v5575
        %v5592 = vmul.f32 %v5214, %v5576
        %v5593 = vmul.f32 %v5219, %v5577
        %v5594 = vmul.f32 %v5301, %v5578
        %v5595 = vmul.f32 %v5306, %v5579
        %v5596 = vmul.f32 %v5388, %v5580
        %v5597 = vmul.f32 %v5393, %v5581
        %v5598 = vmul.f32 %v5475, %v5582
        %v5599 = vmul.f32 %v5480, %v5583
        %v5600 = vmul.f32 %v5562, %v5584
        %v5601 = vmul.f32 %v5567, %v5585
        %5602 = vrot.lane.b32.xlu0 %v633, 112
        %v5603 = vpop.permute.xlu0 %5602
        %5604 = vrot.lane.b32.xlu0 %v635, 112
        %v5605 = vpop.permute.xlu0 %5604
        %5606 = vrot.lane.b32.xlu0 %v637, 112
        %v5607 = vpop.permute.xlu0 %5606
        %5608 = vrot.lane.b32.xlu0 %v639, 112
        %v5609 = vpop.permute.xlu0 %5608
        %5610 = vrot.lane.b32.xlu0 %v641, 112
        %v5611 = vpop.permute.xlu0 %5610
        %5612 = vrot.lane.b32.xlu0 %v643, 112
        %v5613 = vpop.permute.xlu0 %5612
        %5614 = vrot.lane.b32.xlu0 %v645, 112
        %v5615 = vpop.permute.xlu0 %5614
        %5616 = vrot.lane.b32.xlu0 %v647, 112
        %v5617 = vpop.permute.xlu0 %5616
        %5618 = vrot.lane.b32.xlu0 %v649, 112
        %v5619 = vpop.permute.xlu0 %5618
        %5620 = vrot.lane.b32.xlu0 %v651, 112
        %v5621 = vpop.permute.xlu0 %5620
        %5622 = vrot.lane.b32.xlu0 %v653, 112
        %v5623 = vpop.permute.xlu0 %5622
        %5624 = vrot.lane.b32.xlu0 %v655, 112
        %v5625 = vpop.permute.xlu0 %5624
        %5626 = vrot.lane.b32.xlu0 %v657, 112
        %v5627 = vpop.permute.xlu0 %5626
        %5628 = vrot.lane.b32.xlu0 %v659, 112
        %v5629 = vpop.permute.xlu0 %5628
        %5630 = vrot.lane.b32.xlu0 %v661, 112
        %v5631 = vpop.permute.xlu0 %5630
        %5632 = vrot.lane.b32.xlu0 %v663, 112
        %v5633 = vpop.permute.xlu0 %5632
        %v5650 = vmul.f32 %v5586, %v5603
        %v5651 = vmul.f32 %v5587, %v5605
        %v5652 = vmul.f32 %v5588, %v5607
        %v5653 = vmul.f32 %v5589, %v5609
        %v5654 = vmul.f32 %v5590, %v5611
        %v5655 = vmul.f32 %v5591, %v5613
        %v5656 = vmul.f32 %v5592, %v5615
        %v5657 = vmul.f32 %v5593, %v5617
        %v5658 = vmul.f32 %v5594, %v5619
        %v5659 = vmul.f32 %v5595, %v5621
        %v5660 = vmul.f32 %v5596, %v5623
        %v5661 = vmul.f32 %v5597, %v5625
        %v5662 = vmul.f32 %v5598, %v5627
        %v5663 = vmul.f32 %v5599, %v5629
        %v5664 = vmul.f32 %v5600, %v5631
        %v5665 = vmul.f32 %v5601, %v5633
        %s5666 = scalar_lea.vmem %s425, 48 [#allocation10]
        %v5667 = vld [vmem:[%s5666] sm:$0xff]
        %v5668 = vld [vmem:[%s5666 + $0x8] sm:$0xff]
        %5669 = vrot.lane.b32.xlu0 %v496, 104
        %v5670 = vpop.permute.xlu0 %5669
        %5671 = vrot.lane.b32.xlu0 %v497, 104
        %v5672 = vpop.permute.xlu0 %5671
        %5673 = vrot.lane.b32.xlu0 %v512, 104
        %v5674 = vpop.permute.xlu0 %5673
        %5675 = vrot.lane.b32.xlu0 %v513, 104
        %v5676 = vpop.permute.xlu0 %5675
        %v5677 = vsel %vm666, %v5670, 0
        %v5679 = vsel %vm666, %v5672, 0
        %v5681 = vsel %vm666, %v5674, 0
        %v5683 = vsel %vm666, %v5676, 0
        %5685 = vmatprep.subr.mxu0 0.0
        %5686 = vmatpush1.xpose.msra.mxu0 %v5681
        %5687 = vmatprep.subr.mxu0 0.0
        %5688 = vmatpush1.xpose.msra.mxu0 %v5683
        %5689 = vmatprep.subr.mxu0 0.0
        %5690 = vmatpush1.xpose.msra.mxu0 0.0
        %5691 = vmatprep.subr.mxu0 0.0
        %5692 = vmatpush1.xpose.msra.mxu0 0.0
        %5693 = vmatprep.subr.mxu0 0.0
        %5694 = vmatpush1.xpose.msra.mxu0 0.0
        %5695 = vmatprep.subr.mxu0 0.0
        %5696 = vmatpush1.xpose.msra.mxu0 0.0
        %5697 = vmatprep.subr.mxu0 0.0
        %5698 = vmatpush1.xpose.msra.mxu0 0.0
        %5699 = vmatprep.subr.mxu0 0.0
        %5700 = vmatpush1.xpose.msra.mxu0 0.0
        %5701 = vmatprep.subr.mxu0 0.0
        %5702 = vmatpush1.xpose.msra.mxu0 0.0
        %5703 = vmatprep.subr.mxu0 0.0
        %5704 = vmatpush1.xpose.msra.mxu0 0.0
        %5705 = vmatprep.subr.mxu0 0.0
        %5706 = vmatpush1.xpose.msra.mxu0 0.0
        %5707 = vmatprep.subr.mxu0 0.0
        %5708 = vmatpush1.xpose.msra.mxu0 0.0
        %5709 = vmatprep.subr.mxu0 0.0
        %5710 = vmatpush1.xpose.msra.mxu0 0.0
        %5711 = vmatprep.subr.mxu0 0.0
        %5712 = vmatpush1.xpose.msra.mxu0 0.0
        %5713 = vmatprep.subr.mxu0 0.0
        %5714 = vmatpush1.xpose.msra.mxu0 0.0
        %5715 = vmatprep.subr.mxu0 0.0
        %5716 = vmatpush1.xpose.msra.mxu0 0.0
        %5717 = vmatprep.subr.mxu0 0.0
        %5718 = vmatpush1.xpose.msra.mxu0 0.0
        %5719 = vmatprep.subr.mxu0 0.0
        %5720 = vmatpush1.xpose.msra.mxu0 0.0
        %5721 = vmatprep.subr.mxu0 0.0
        %5722 = vmatpush1.xpose.msra.mxu0 0.0
        %5723 = vmatprep.subr.mxu0 0.0
        %5724 = vmatpush1.xpose.msra.mxu0 0.0
        %5725 = vmatprep.subr.mxu0 0.0
        %5726 = vmatpush1.xpose.msra.mxu0 0.0
        %5727 = vmatprep.subr.mxu0 0.0
        %5728 = vmatpush1.xpose.msra.mxu0 0.0
        %5729 = vmatprep.subr.mxu0 0.0
        %5730 = vmatpush1.xpose.msra.mxu0 0.0
        %5731 = vmatprep.subr.mxu0 0.0
        %5732 = vmatpush1.xpose.msra.mxu0 0.0
        %5733 = vmatprep.subr.mxu0 0.0
        %5734 = vmatpush1.xpose.msra.mxu0 0.0
        %5735 = vmatprep.subr.mxu0 0.0
        %5736 = vmatpush1.xpose.msra.mxu0 0.0
        %5737 = vmatprep.subr.mxu0 0.0
        %5738 = vmatpush1.xpose.msra.mxu0 0.0
        %5739 = vmatprep.subr.mxu0 0.0
        %5740 = vmatpush1.xpose.msra.mxu0 0.0
        %5741 = vmatprep.subr.mxu0 0.0
        %5742 = vmatpush1.xpose.msra.mxu0 0.0
        %5743 = vmatprep.subr.mxu0 0.0
        %5744 = vmatpush1.xpose.msra.mxu0 0.0
        %5745 = vmatprep.subr.mxu0 0.0
        %5746 = vmatpush1.xpose.msra.mxu0 0.0
        %5747 = vmatprep.subr.mxu0 0.0
        %5748 = vmatpush1.xpose.msra.mxu0 0.0
        %5749 = vmatprep.mubr.f32.mxu0 0.0
        %5750 = vmatmul.mubr.f32.gmra.mrb[0].mxu0 %v5677
        %v5751 = vpop.f32.mrb[0].mxu0
        %v5752 = vadd.f32 %v5667, %v5751
        %v5753 = vpop.f32.mrb[0].mxu0
        %5754 = vmatprep.mubr.f32.mxu0 0.0
        %5755 = vmatmul.mubr.f32.gmra.mrb[0].mxu0 %v5679
        %v5756 = vpop.f32.mrb[0].mxu0
        %v5757 = vadd.f32 %v5668, %v5756
        %v5758 = vpop.f32.mrb[0].mxu0
        %5759 = vdwg.mxu0
        %5760 = vrot.lane.b32.xlu0 %v498, 104
        %v5761 = vpop.permute.xlu0 %5760
        %5762 = vrot.lane.b32.xlu0 %v499, 104
        %v5763 = vpop.permute.xlu0 %5762
        %5764 = vrot.lane.b32.xlu0 %v514, 104
        %v5765 = vpop.permute.xlu0 %5764
        %5766 = vrot.lane.b32.xlu0 %v515, 104
        %v5767 = vpop.permute.xlu0 %5766
        %v5768 = vsel %vm666, %v5761, 0
        %v5770 = vsel %vm666, %v5763, 0
        %v5772 = vsel %vm666, %v5765, 0
        %v5774 = vsel %vm666, %v5767, 0
        %5776 = vmatprep.subr.mxu0 0.0
        %5777 = vmatpush1.xpose.msra.mxu0 %v5772
        %5778 = vmatprep.subr.mxu0 0.0
        %5779 = vmatpush1.xpose.msra.mxu0 %v5774
        %5780 = vmatprep.subr.mxu0 0.0
        %5781 = vmatpush1.xpose.msra.mxu0 0.0
        %5782 = vmatprep.subr.mxu0 0.0
        %5783 = vmatpush1.xpose.msra.mxu0 0.0
        %5784 = vmatprep.subr.mxu0 0.0
        %5785 = vmatpush1.xpose.msra.mxu0 0.0
        %5786 = vmatprep.subr.mxu0 0.0
        %5787 = vmatpush1.xpose.msra.mxu0 0.0
        %5788 = vmatprep.subr.mxu0 0.0
        %5789 = vmatpush1.xpose.msra.mxu0 0.0
        %5790 = vmatprep.subr.mxu0 0.0
        %5791 = vmatpush1.xpose.msra.mxu0 0.0
        %5792 = vmatprep.subr.mxu0 0.0
        %5793 = vmatpush1.xpose.msra.mxu0 0.0
        %5794 = vmatprep.subr.mxu0 0.0
        %5795 = vmatpush1.xpose.msra.mxu0 0.0
        %5796 = vmatprep.subr.mxu0 0.0
        %5797 = vmatpush1.xpose.msra.mxu0 0.0
        %5798 = vmatprep.subr.mxu0 0.0
        %5799 = vmatpush1.xpose.msra.mxu0 0.0
        %5800 = vmatprep.subr.mxu0 0.0
        %5801 = vmatpush1.xpose.msra.mxu0 0.0
        %5802 = vmatprep.subr.mxu0 0.0
        %5803 = vmatpush1.xpose.msra.mxu0 0.0
        %5804 = vmatprep.subr.mxu0 0.0
        %5805 = vmatpush1.xpose.msra.mxu0 0.0
        %5806 = vmatprep.subr.mxu0 0.0
        %5807 = vmatpush1.xpose.msra.mxu0 0.0
        %5808 = vmatprep.subr.mxu0 0.0
        %5809 = vmatpush1.xpose.msra.mxu0 0.0
        %5810 = vmatprep.subr.mxu0 0.0
        %5811 = vmatpush1.xpose.msra.mxu0 0.0
        %5812 = vmatprep.subr.mxu0 0.0
        %5813 = vmatpush1.xpose.msra.mxu0 0.0
        %5814 = vmatprep.subr.mxu0 0.0
        %5815 = vmatpush1.xpose.msra.mxu0 0.0
        %5816 = vmatprep.subr.mxu0 0.0
        %5817 = vmatpush1.xpose.msra.mxu0 0.0
        %5818 = vmatprep.subr.mxu0 0.0
        %5819 = vmatpush1.xpose.msra.mxu0 0.0
        %5820 = vmatprep.subr.mxu0 0.0
        %5821 = vmatpush1.xpose.msra.mxu0 0.0
        %5822 = vmatprep.subr.mxu0 0.0
        %5823 = vmatpush1.xpose.msra.mxu0 0.0
        %5824 = vmatprep.subr.mxu0 0.0
        %5825 = vmatpush1.xpose.msra.mxu0 0.0
        %5826 = vmatprep.subr.mxu0 0.0
        %5827 = vmatpush1.xpose.msra.mxu0 0.0
        %5828 = vmatprep.subr.mxu0 0.0
        %5829 = vmatpush1.xpose.msra.mxu0 0.0
        %5830 = vmatprep.subr.mxu0 0.0
        %5831 = vmatpush1.xpose.msra.mxu0 0.0
        %5832 = vmatprep.subr.mxu0 0.0
        %5833 = vmatpush1.xpose.msra.mxu0 0.0
        %5834 = vmatprep.subr.mxu0 0.0
        %5835 = vmatpush1.xpose.msra.mxu0 0.0
        %5836 = vmatprep.subr.mxu0 0.0
        %5837 = vmatpush1.xpose.msra.mxu0 0.0
        %5838 = vmatprep.subr.mxu0 0.0
        %5839 = vmatpush1.xpose.msra.mxu0 0.0
        %5840 = vmatprep.mubr.f32.mxu0 0.0
        %5841 = vmatmul.mubr.f32.gmra.mrb[0].mxu0 %v5768
        %v5842 = vpop.f32.mrb[0].mxu0
        %v5843 = vadd.f32 %v5667, %v5842
        %v5844 = vpop.f32.mrb[0].mxu0
        %5845 = vmatprep.mubr.f32.mxu0 0.0
        %5846 = vmatmul.mubr.f32.gmra.mrb[0].mxu0 %v5770
        %v5847 = vpop.f32.mrb[0].mxu0
        %v5848 = vadd.f32 %v5668, %v5847
        %v5849 = vpop.f32.mrb[0].mxu0
        %5850 = vdwg.mxu0
        %5851 = vrot.lane.b32.xlu0 %v500, 104
        %v5852 = vpop.permute.xlu0 %5851
        %5853 = vrot.lane.b32.xlu0 %v501, 104
        %v5854 = vpop.permute.xlu0 %5853
        %5855 = vrot.lane.b32.xlu0 %v516, 104
        %v5856 = vpop.permute.xlu0 %5855
        %5857 = vrot.lane.b32.xlu0 %v517, 104
        %v5858 = vpop.permute.xlu0 %5857
        %v5859 = vsel %vm666, %v5852, 0
        %v5861 = vsel %vm666, %v5854, 0
        %v5863 = vsel %vm666, %v5856, 0
        %v5865 = vsel %vm666, %v5858, 0
        %5867 = vmatprep.subr.mxu0 0.0
        %5868 = vmatpush1.xpose.msra.mxu0 %v5863
        %5869 = vmatprep.subr.mxu0 0.0
        %5870 = vmatpush1.xpose.msra.mxu0 %v5865
        %5871 = vmatprep.subr.mxu0 0.0
        %5872 = vmatpush1.xpose.msra.mxu0 0.0
        %5873 = vmatprep.subr.mxu0 0.0
        %5874 = vmatpush1.xpose.msra.mxu0 0.0
        %5875 = vmatprep.subr.mxu0 0.0
        %5876 = vmatpush1.xpose.msra.mxu0 0.0
        %5877 = vmatprep.subr.mxu0 0.0
        %5878 = vmatpush1.xpose.msra.mxu0 0.0
        %5879 = vmatprep.subr.mxu0 0.0
        %5880 = vmatpush1.xpose.msra.mxu0 0.0
        %5881 = vmatprep.subr.mxu0 0.0
        %5882 = vmatpush1.xpose.msra.mxu0 0.0
        %5883 = vmatprep.subr.mxu0 0.0
        %5884 = vmatpush1.xpose.msra.mxu0 0.0
        %5885 = vmatprep.subr.mxu0 0.0
        %5886 = vmatpush1.xpose.msra.mxu0 0.0
        %5887 = vmatprep.subr.mxu0 0.0
        %5888 = vmatpush1.xpose.msra.mxu0 0.0
        %5889 = vmatprep.subr.mxu0 0.0
        %5890 = vmatpush1.xpose.msra.mxu0 0.0
        %5891 = vmatprep.subr.mxu0 0.0
        %5892 = vmatpush1.xpose.msra.mxu0 0.0
        %5893 = vmatprep.subr.mxu0 0.0
        %5894 = vmatpush1.xpose.msra.mxu0 0.0
        %5895 = vmatprep.subr.mxu0 0.0
        %5896 = vmatpush1.xpose.msra.mxu0 0.0
        %5897 = vmatprep.subr.mxu0 0.0
        %5898 = vmatpush1.xpose.msra.mxu0 0.0
        %5899 = vmatprep.subr.mxu0 0.0
        %5900 = vmatpush1.xpose.msra.mxu0 0.0
        %5901 = vmatprep.subr.mxu0 0.0
        %5902 = vmatpush1.xpose.msra.mxu0 0.0
        %5903 = vmatprep.subr.mxu0 0.0
        %5904 = vmatpush1.xpose.msra.mxu0 0.0
        %5905 = vmatprep.subr.mxu0 0.0
        %5906 = vmatpush1.xpose.msra.mxu0 0.0
        %5907 = vmatprep.subr.mxu0 0.0
        %5908 = vmatpush1.xpose.msra.mxu0 0.0
        %5909 = vmatprep.subr.mxu0 0.0
        %5910 = vmatpush1.xpose.msra.mxu0 0.0
        %5911 = vmatprep.subr.mxu0 0.0
        %5912 = vmatpush1.xpose.msra.mxu0 0.0
        %5913 = vmatprep.subr.mxu0 0.0
        %5914 = vmatpush1.xpose.msra.mxu0 0.0
        %5915 = vmatprep.subr.mxu0 0.0
        %5916 = vmatpush1.xpose.msra.mxu0 0.0
        %5917 = vmatprep.subr.mxu0 0.0
        %5918 = vmatpush1.xpose.msra.mxu0 0.0
        %5919 = vmatprep.subr.mxu0 0.0
        %5920 = vmatpush1.xpose.msra.mxu0 0.0
        %5921 = vmatprep.subr.mxu0 0.0
        %5922 = vmatpush1.xpose.msra.mxu0 0.0
        %5923 = vmatprep.subr.mxu0 0.0
        %5924 = vmatpush1.xpose.msra.mxu0 0.0
        %5925 = vmatprep.subr.mxu0 0.0
        %5926 = vmatpush1.xpose.msra.mxu0 0.0
        %5927 = vmatprep.subr.mxu0 0.0
        %5928 = vmatpush1.xpose.msra.mxu0 0.0
        %5929 = vmatprep.subr.mxu0 0.0
        %5930 = vmatpush1.xpose.msra.mxu0 0.0
        %5931 = vmatprep.mubr.f32.mxu0 0.0
        %5932 = vmatmul.mubr.f32.gmra.mrb[0].mxu0 %v5859
        %v5933 = vpop.f32.mrb[0].mxu0
        %v5934 = vadd.f32 %v5667, %v5933
        %v5935 = vpop.f32.mrb[0].mxu0
        %5936 = vmatprep.mubr.f32.mxu0 0.0
        %5937 = vmatmul.mubr.f32.gmra.mrb[0].mxu0 %v5861
        %v5938 = vpop.f32.mrb[0].mxu0
        %v5939 = vadd.f32 %v5668, %v5938
        %v5940 = vpop.f32.mrb[0].mxu0
        %5941 = vdwg.mxu0
        %5942 = vrot.lane.b32.xlu0 %v502, 104
        %v5943 = vpop.permute.xlu0 %5942
        %5944 = vrot.lane.b32.xlu0 %v503, 104
        %v5945 = vpop.permute.xlu0 %5944
        %5946 = vrot.lane.b32.xlu0 %v518, 104
        %v5947 = vpop.permute.xlu0 %5946
        %5948 = vrot.lane.b32.xlu0 %v519, 104
        %v5949 = vpop.permute.xlu0 %5948
        %v5950 = vsel %vm666, %v5943, 0
        %v5952 = vsel %vm666, %v5945, 0
        %v5954 = vsel %vm666, %v5947, 0
        %v5956 = vsel %vm666, %v5949, 0
        %5958 = vmatprep.subr.mxu0 0.0
        %5959 = vmatpush1.xpose.msra.mxu0 %v5954
        %5960 = vmatprep.subr.mxu0 0.0
        %5961 = vmatpush1.xpose.msra.mxu0 %v5956
        %5962 = vmatprep.subr.mxu0 0.0
        %5963 = vmatpush1.xpose.msra.mxu0 0.0
        %5964 = vmatprep.subr.mxu0 0.0
        %5965 = vmatpush1.xpose.msra.mxu0 0.0
        %5966 = vmatprep.subr.mxu0 0.0
        %5967 = vmatpush1.xpose.msra.mxu0 0.0
        %5968 = vmatprep.subr.mxu0 0.0
        %5969 = vmatpush1.xpose.msra.mxu0 0.0
        %5970 = vmatprep.subr.mxu0 0.0
        %5971 = vmatpush1.xpose.msra.mxu0 0.0
        %5972 = vmatprep.subr.mxu0 0.0
        %5973 = vmatpush1.xpose.msra.mxu0 0.0
        %5974 = vmatprep.subr.mxu0 0.0
        %5975 = vmatpush1.xpose.msra.mxu0 0.0
        %5976 = vmatprep.subr.mxu0 0.0
        %5977 = vmatpush1.xpose.msra.mxu0 0.0
        %5978 = vmatprep.subr.mxu0 0.0
        %5979 = vmatpush1.xpose.msra.mxu0 0.0
        %5980 = vmatprep.subr.mxu0 0.0
        %5981 = vmatpush1.xpose.msra.mxu0 0.0
        %5982 = vmatprep.subr.mxu0 0.0
        %5983 = vmatpush1.xpose.msra.mxu0 0.0
        %5984 = vmatprep.subr.mxu0 0.0
        %5985 = vmatpush1.xpose.msra.mxu0 0.0
        %5986 = vmatprep.subr.mxu0 0.0
        %5987 = vmatpush1.xpose.msra.mxu0 0.0
        %5988 = vmatprep.subr.mxu0 0.0
        %5989 = vmatpush1.xpose.msra.mxu0 0.0
        %5990 = vmatprep.subr.mxu0 0.0
        %5991 = vmatpush1.xpose.msra.mxu0 0.0
        %5992 = vmatprep.subr.mxu0 0.0
        %5993 = vmatpush1.xpose.msra.mxu0 0.0
        %5994 = vmatprep.subr.mxu0 0.0
        %5995 = vmatpush1.xpose.msra.mxu0 0.0
        %5996 = vmatprep.subr.mxu0 0.0
        %5997 = vmatpush1.xpose.msra.mxu0 0.0
        %5998 = vmatprep.subr.mxu0 0.0
        %5999 = vmatpush1.xpose.msra.mxu0 0.0
        %6000 = vmatprep.subr.mxu0 0.0
        %6001 = vmatpush1.xpose.msra.mxu0 0.0
        %6002 = vmatprep.subr.mxu0 0.0
        %6003 = vmatpush1.xpose.msra.mxu0 0.0
        %6004 = vmatprep.subr.mxu0 0.0
        %6005 = vmatpush1.xpose.msra.mxu0 0.0
        %6006 = vmatprep.subr.mxu0 0.0
        %6007 = vmatpush1.xpose.msra.mxu0 0.0
        %6008 = vmatprep.subr.mxu0 0.0
        %6009 = vmatpush1.xpose.msra.mxu0 0.0
        %6010 = vmatprep.subr.mxu0 0.0
        %6011 = vmatpush1.xpose.msra.mxu0 0.0
        %6012 = vmatprep.subr.mxu0 0.0
        %6013 = vmatpush1.xpose.msra.mxu0 0.0
        %6014 = vmatprep.subr.mxu0 0.0
        %6015 = vmatpush1.xpose.msra.mxu0 0.0
        %6016 = vmatprep.subr.mxu0 0.0
        %6017 = vmatpush1.xpose.msra.mxu0 0.0
        %6018 = vmatprep.subr.mxu0 0.0
        %6019 = vmatpush1.xpose.msra.mxu0 0.0
        %6020 = vmatprep.subr.mxu0 0.0
        %6021 = vmatpush1.xpose.msra.mxu0 0.0
        %6022 = vmatprep.mubr.f32.mxu0 0.0
        %6023 = vmatmul.mubr.f32.gmra.mrb[0].mxu0 %v5950
        %v6024 = vpop.f32.mrb[0].mxu0
        %v6025 = vadd.f32 %v5667, %v6024
        %v6026 = vpop.f32.mrb[0].mxu0
        %6027 = vmatprep.mubr.f32.mxu0 0.0
        %6028 = vmatmul.mubr.f32.gmra.mrb[0].mxu0 %v5952
        %v6029 = vpop.f32.mrb[0].mxu0
        %v6030 = vadd.f32 %v5668, %v6029
        %v6031 = vpop.f32.mrb[0].mxu0
        %6032 = vdwg.mxu0
        %6033 = vrot.lane.b32.xlu0 %v504, 104
        %v6034 = vpop.permute.xlu0 %6033
        %6035 = vrot.lane.b32.xlu0 %v505, 104
        %v6036 = vpop.permute.xlu0 %6035
        %6037 = vrot.lane.b32.xlu0 %v520, 104
        %v6038 = vpop.permute.xlu0 %6037
        %6039 = vrot.lane.b32.xlu0 %v521, 104
        %v6040 = vpop.permute.xlu0 %6039
        %v6041 = vsel %vm666, %v6034, 0
        %v6043 = vsel %vm666, %v6036, 0
        %v6045 = vsel %vm666, %v6038, 0
        %v6047 = vsel %vm666, %v6040, 0
        %6049 = vmatprep.subr.mxu0 0.0
        %6050 = vmatpush1.xpose.msra.mxu0 %v6045
        %6051 = vmatprep.subr.mxu0 0.0
        %6052 = vmatpush1.xpose.msra.mxu0 %v6047
        %6053 = vmatprep.subr.mxu0 0.0
        %6054 = vmatpush1.xpose.msra.mxu0 0.0
        %6055 = vmatprep.subr.mxu0 0.0
        %6056 = vmatpush1.xpose.msra.mxu0 0.0
        %6057 = vmatprep.subr.mxu0 0.0
        %6058 = vmatpush1.xpose.msra.mxu0 0.0
        %6059 = vmatprep.subr.mxu0 0.0
        %6060 = vmatpush1.xpose.msra.mxu0 0.0
        %6061 = vmatprep.subr.mxu0 0.0
        %6062 = vmatpush1.xpose.msra.mxu0 0.0
        %6063 = vmatprep.subr.mxu0 0.0
        %6064 = vmatpush1.xpose.msra.mxu0 0.0
        %6065 = vmatprep.subr.mxu0 0.0
        %6066 = vmatpush1.xpose.msra.mxu0 0.0
        %6067 = vmatprep.subr.mxu0 0.0
        %6068 = vmatpush1.xpose.msra.mxu0 0.0
        %6069 = vmatprep.subr.mxu0 0.0
        %6070 = vmatpush1.xpose.msra.mxu0 0.0
        %6071 = vmatprep.subr.mxu0 0.0
        %6072 = vmatpush1.xpose.msra.mxu0 0.0
        %6073 = vmatprep.subr.mxu0 0.0
        %6074 = vmatpush1.xpose.msra.mxu0 0.0
        %6075 = vmatprep.subr.mxu0 0.0
        %6076 = vmatpush1.xpose.msra.mxu0 0.0
        %6077 = vmatprep.subr.mxu0 0.0
        %6078 = vmatpush1.xpose.msra.mxu0 0.0
        %6079 = vmatprep.subr.mxu0 0.0
        %6080 = vmatpush1.xpose.msra.mxu0 0.0
        %6081 = vmatprep.subr.mxu0 0.0
        %6082 = vmatpush1.xpose.msra.mxu0 0.0
        %6083 = vmatprep.subr.mxu0 0.0
        %6084 = vmatpush1.xpose.msra.mxu0 0.0
        %6085 = vmatprep.subr.mxu0 0.0
        %6086 = vmatpush1.xpose.msra.mxu0 0.0
        %6087 = vmatprep.subr.mxu0 0.0
        %6088 = vmatpush1.xpose.msra.mxu0 0.0
        %6089 = vmatprep.subr.mxu0 0.0
        %6090 = vmatpush1.xpose.msra.mxu0 0.0
        %6091 = vmatprep.subr.mxu0 0.0
        %6092 = vmatpush1.xpose.msra.mxu0 0.0
        %6093 = vmatprep.subr.mxu0 0.0
        %6094 = vmatpush1.xpose.msra.mxu0 0.0
        %6095 = vmatprep.subr.mxu0 0.0
        %6096 = vmatpush1.xpose.msra.mxu0 0.0
        %6097 = vmatprep.subr.mxu0 0.0
        %6098 = vmatpush1.xpose.msra.mxu0 0.0
        %6099 = vmatprep.subr.mxu0 0.0
        %6100 = vmatpush1.xpose.msra.mxu0 0.0
        %6101 = vmatprep.subr.mxu0 0.0
        %6102 = vmatpush1.xpose.msra.mxu0 0.0
        %6103 = vmatprep.subr.mxu0 0.0
        %6104 = vmatpush1.xpose.msra.mxu0 0.0
        %6105 = vmatprep.subr.mxu0 0.0
        %6106 = vmatpush1.xpose.msra.mxu0 0.0
        %6107 = vmatprep.subr.mxu0 0.0
        %6108 = vmatpush1.xpose.msra.mxu0 0.0
        %6109 = vmatprep.subr.mxu0 0.0
        %6110 = vmatpush1.xpose.msra.mxu0 0.0
        %6111 = vmatprep.subr.mxu0 0.0
        %6112 = vmatpush1.xpose.msra.mxu0 0.0
        %6113 = vmatprep.mubr.f32.mxu0 0.0
        %6114 = vmatmul.mubr.f32.gmra.mrb[0].mxu0 %v6041
        %v6115 = vpop.f32.mrb[0].mxu0
        %v6116 = vadd.f32 %v5667, %v6115
        %v6117 = vpop.f32.mrb[0].mxu0
        %6118 = vmatprep.mubr.f32.mxu0 0.0
        %6119 = vmatmul.mubr.f32.gmra.mrb[0].mxu0 %v6043
        %v6120 = vpop.f32.mrb[0].mxu0
        %v6121 = vadd.f32 %v5668, %v6120
        %v6122 = vpop.f32.mrb[0].mxu0
        %6123 = vdwg.mxu0
        %6124 = vrot.lane.b32.xlu0 %v506, 104
        %v6125 = vpop.permute.xlu0 %6124
        %6126 = vrot.lane.b32.xlu0 %v507, 104
        %v6127 = vpop.permute.xlu0 %6126
        %6128 = vrot.lane.b32.xlu0 %v522, 104
        %v6129 = vpop.permute.xlu0 %6128
        %6130 = vrot.lane.b32.xlu0 %v523, 104
        %v6131 = vpop.permute.xlu0 %6130
        %v6132 = vsel %vm666, %v6125, 0
        %v6134 = vsel %vm666, %v6127, 0
        %v6136 = vsel %vm666, %v6129, 0
        %v6138 = vsel %vm666, %v6131, 0
        %6140 = vmatprep.subr.mxu0 0.0
        %6141 = vmatpush1.xpose.msra.mxu0 %v6136
        %6142 = vmatprep.subr.mxu0 0.0
        %6143 = vmatpush1.xpose.msra.mxu0 %v6138
        %6144 = vmatprep.subr.mxu0 0.0
        %6145 = vmatpush1.xpose.msra.mxu0 0.0
        %6146 = vmatprep.subr.mxu0 0.0
        %6147 = vmatpush1.xpose.msra.mxu0 0.0
        %6148 = vmatprep.subr.mxu0 0.0
        %6149 = vmatpush1.xpose.msra.mxu0 0.0
        %6150 = vmatprep.subr.mxu0 0.0
        %6151 = vmatpush1.xpose.msra.mxu0 0.0
        %6152 = vmatprep.subr.mxu0 0.0
        %6153 = vmatpush1.xpose.msra.mxu0 0.0
        %6154 = vmatprep.subr.mxu0 0.0
        %6155 = vmatpush1.xpose.msra.mxu0 0.0
        %6156 = vmatprep.subr.mxu0 0.0
        %6157 = vmatpush1.xpose.msra.mxu0 0.0
        %6158 = vmatprep.subr.mxu0 0.0
        %6159 = vmatpush1.xpose.msra.mxu0 0.0
        %6160 = vmatprep.subr.mxu0 0.0
        %6161 = vmatpush1.xpose.msra.mxu0 0.0
        %6162 = vmatprep.subr.mxu0 0.0
        %6163 = vmatpush1.xpose.msra.mxu0 0.0
        %6164 = vmatprep.subr.mxu0 0.0
        %6165 = vmatpush1.xpose.msra.mxu0 0.0
        %6166 = vmatprep.subr.mxu0 0.0
        %6167 = vmatpush1.xpose.msra.mxu0 0.0
        %6168 = vmatprep.subr.mxu0 0.0
        %6169 = vmatpush1.xpose.msra.mxu0 0.0
        %6170 = vmatprep.subr.mxu0 0.0
        %6171 = vmatpush1.xpose.msra.mxu0 0.0
        %6172 = vmatprep.subr.mxu0 0.0
        %6173 = vmatpush1.xpose.msra.mxu0 0.0
        %6174 = vmatprep.subr.mxu0 0.0
        %6175 = vmatpush1.xpose.msra.mxu0 0.0
        %6176 = vmatprep.subr.mxu0 0.0
        %6177 = vmatpush1.xpose.msra.mxu0 0.0
        %6178 = vmatprep.subr.mxu0 0.0
        %6179 = vmatpush1.xpose.msra.mxu0 0.0
        %6180 = vmatprep.subr.mxu0 0.0
        %6181 = vmatpush1.xpose.msra.mxu0 0.0
        %6182 = vmatprep.subr.mxu0 0.0
        %6183 = vmatpush1.xpose.msra.mxu0 0.0
        %6184 = vmatprep.subr.mxu0 0.0
        %6185 = vmatpush1.xpose.msra.mxu0 0.0
        %6186 = vmatprep.subr.mxu0 0.0
        %6187 = vmatpush1.xpose.msra.mxu0 0.0
        %6188 = vmatprep.subr.mxu0 0.0
        %6189 = vmatpush1.xpose.msra.mxu0 0.0
        %6190 = vmatprep.subr.mxu0 0.0
        %6191 = vmatpush1.xpose.msra.mxu0 0.0
        %6192 = vmatprep.subr.mxu0 0.0
        %6193 = vmatpush1.xpose.msra.mxu0 0.0
        %6194 = vmatprep.subr.mxu0 0.0
        %6195 = vmatpush1.xpose.msra.mxu0 0.0
        %6196 = vmatprep.subr.mxu0 0.0
        %6197 = vmatpush1.xpose.msra.mxu0 0.0
        %6198 = vmatprep.subr.mxu0 0.0
        %6199 = vmatpush1.xpose.msra.mxu0 0.0
        %6200 = vmatprep.subr.mxu0 0.0
        %6201 = vmatpush1.xpose.msra.mxu0 0.0
        %6202 = vmatprep.subr.mxu0 0.0
        %6203 = vmatpush1.xpose.msra.mxu0 0.0
        %6204 = vmatprep.mubr.f32.mxu0 0.0
        %6205 = vmatmul.mubr.f32.gmra.mrb[0].mxu0 %v6132
        %v6206 = vpop.f32.mrb[0].mxu0
        %v6207 = vadd.f32 %v5667, %v6206
        %v6208 = vpop.f32.mrb[0].mxu0
        %6209 = vmatprep.mubr.f32.mxu0 0.0
        %6210 = vmatmul.mubr.f32.gmra.mrb[0].mxu0 %v6134
        %v6211 = vpop.f32.mrb[0].mxu0
        %v6212 = vadd.f32 %v5668, %v6211
        %v6213 = vpop.f32.mrb[0].mxu0
        %6214 = vdwg.mxu0
        %6215 = vrot.lane.b32.xlu0 %v508, 104
        %v6216 = vpop.permute.xlu0 %6215
        %6217 = vrot.lane.b32.xlu0 %v509, 104
        %v6218 = vpop.permute.xlu0 %6217
        %6219 = vrot.lane.b32.xlu0 %v524, 104
        %v6220 = vpop.permute.xlu0 %6219
        %6221 = vrot.lane.b32.xlu0 %v525, 104
        %v6222 = vpop.permute.xlu0 %6221
        %v6223 = vsel %vm666, %v6216, 0
        %v6225 = vsel %vm666, %v6218, 0
        %v6227 = vsel %vm666, %v6220, 0
        %v6229 = vsel %vm666, %v6222, 0
        %6231 = vmatprep.subr.mxu0 0.0
        %6232 = vmatpush1.xpose.msra.mxu0 %v6227
        %6233 = vmatprep.subr.mxu0 0.0
        %6234 = vmatpush1.xpose.msra.mxu0 %v6229
        %6235 = vmatprep.subr.mxu0 0.0
        %6236 = vmatpush1.xpose.msra.mxu0 0.0
        %6237 = vmatprep.subr.mxu0 0.0
        %6238 = vmatpush1.xpose.msra.mxu0 0.0
        %6239 = vmatprep.subr.mxu0 0.0
        %6240 = vmatpush1.xpose.msra.mxu0 0.0
        %6241 = vmatprep.subr.mxu0 0.0
        %6242 = vmatpush1.xpose.msra.mxu0 0.0
        %6243 = vmatprep.subr.mxu0 0.0
        %6244 = vmatpush1.xpose.msra.mxu0 0.0
        %6245 = vmatprep.subr.mxu0 0.0
        %6246 = vmatpush1.xpose.msra.mxu0 0.0
        %6247 = vmatprep.subr.mxu0 0.0
        %6248 = vmatpush1.xpose.msra.mxu0 0.0
        %6249 = vmatprep.subr.mxu0 0.0
        %6250 = vmatpush1.xpose.msra.mxu0 0.0
        %6251 = vmatprep.subr.mxu0 0.0
        %6252 = vmatpush1.xpose.msra.mxu0 0.0
        %6253 = vmatprep.subr.mxu0 0.0
        %6254 = vmatpush1.xpose.msra.mxu0 0.0
        %6255 = vmatprep.subr.mxu0 0.0
        %6256 = vmatpush1.xpose.msra.mxu0 0.0
        %6257 = vmatprep.subr.mxu0 0.0
        %6258 = vmatpush1.xpose.msra.mxu0 0.0
        %6259 = vmatprep.subr.mxu0 0.0
        %6260 = vmatpush1.xpose.msra.mxu0 0.0
        %6261 = vmatprep.subr.mxu0 0.0
        %6262 = vmatpush1.xpose.msra.mxu0 0.0
        %6263 = vmatprep.subr.mxu0 0.0
        %6264 = vmatpush1.xpose.msra.mxu0 0.0
        %6265 = vmatprep.subr.mxu0 0.0
        %6266 = vmatpush1.xpose.msra.mxu0 0.0
        %6267 = vmatprep.subr.mxu0 0.0
        %6268 = vmatpush1.xpose.msra.mxu0 0.0
        %6269 = vmatprep.subr.mxu0 0.0
        %6270 = vmatpush1.xpose.msra.mxu0 0.0
        %6271 = vmatprep.subr.mxu0 0.0
        %6272 = vmatpush1.xpose.msra.mxu0 0.0
        %6273 = vmatprep.subr.mxu0 0.0
        %6274 = vmatpush1.xpose.msra.mxu0 0.0
        %6275 = vmatprep.subr.mxu0 0.0
        %6276 = vmatpush1.xpose.msra.mxu0 0.0
        %6277 = vmatprep.subr.mxu0 0.0
        %6278 = vmatpush1.xpose.msra.mxu0 0.0
        %6279 = vmatprep.subr.mxu0 0.0
        %6280 = vmatpush1.xpose.msra.mxu0 0.0
        %6281 = vmatprep.subr.mxu0 0.0
        %6282 = vmatpush1.xpose.msra.mxu0 0.0
        %6283 = vmatprep.subr.mxu0 0.0
        %6284 = vmatpush1.xpose.msra.mxu0 0.0
        %6285 = vmatprep.subr.mxu0 0.0
        %6286 = vmatpush1.xpose.msra.mxu0 0.0
        %6287 = vmatprep.subr.mxu0 0.0
        %6288 = vmatpush1.xpose.msra.mxu0 0.0
        %6289 = vmatprep.subr.mxu0 0.0
        %6290 = vmatpush1.xpose.msra.mxu0 0.0
        %6291 = vmatprep.subr.mxu0 0.0
        %6292 = vmatpush1.xpose.msra.mxu0 0.0
        %6293 = vmatprep.subr.mxu0 0.0
        %6294 = vmatpush1.xpose.msra.mxu0 0.0
        %6295 = vmatprep.mubr.f32.mxu0 0.0
        %6296 = vmatmul.mubr.f32.gmra.mrb[0].mxu0 %v6223
        %v6297 = vpop.f32.mrb[0].mxu0
        %v6298 = vadd.f32 %v5667, %v6297
        %v6299 = vpop.f32.mrb[0].mxu0
        %6300 = vmatprep.mubr.f32.mxu0 0.0
        %6301 = vmatmul.mubr.f32.gmra.mrb[0].mxu0 %v6225
        %v6302 = vpop.f32.mrb[0].mxu0
        %v6303 = vadd.f32 %v5668, %v6302
        %v6304 = vpop.f32.mrb[0].mxu0
        %6305 = vdwg.mxu0
        %6306 = vrot.lane.b32.xlu0 %v510, 104
        %v6307 = vpop.permute.xlu0 %6306
        %6308 = vrot.lane.b32.xlu0 %v511, 104
        %v6309 = vpop.permute.xlu0 %6308
        %6310 = vrot.lane.b32.xlu0 %v526, 104
        %v6311 = vpop.permute.xlu0 %6310
        %6312 = vrot.lane.b32.xlu0 %v527, 104
        %v6313 = vpop.permute.xlu0 %6312
        %v6314 = vsel %vm666, %v6307, 0
        %v6316 = vsel %vm666, %v6309, 0
        %v6318 = vsel %vm666, %v6311, 0
        %v6320 = vsel %vm666, %v6313, 0
        %6322 = vmatprep.subr.mxu0 0.0
        %6323 = vmatpush1.xpose.msra.mxu0 %v6318
        %6324 = vmatprep.subr.mxu0 0.0
        %6325 = vmatpush1.xpose.msra.mxu0 %v6320
        %6326 = vmatprep.subr.mxu0 0.0
        %6327 = vmatpush1.xpose.msra.mxu0 0.0
        %6328 = vmatprep.subr.mxu0 0.0
        %6329 = vmatpush1.xpose.msra.mxu0 0.0
        %6330 = vmatprep.subr.mxu0 0.0
        %6331 = vmatpush1.xpose.msra.mxu0 0.0
        %6332 = vmatprep.subr.mxu0 0.0
        %6333 = vmatpush1.xpose.msra.mxu0 0.0
        %6334 = vmatprep.subr.mxu0 0.0
        %6335 = vmatpush1.xpose.msra.mxu0 0.0
        %6336 = vmatprep.subr.mxu0 0.0
        %6337 = vmatpush1.xpose.msra.mxu0 0.0
        %6338 = vmatprep.subr.mxu0 0.0
        %6339 = vmatpush1.xpose.msra.mxu0 0.0
        %6340 = vmatprep.subr.mxu0 0.0
        %6341 = vmatpush1.xpose.msra.mxu0 0.0
        %6342 = vmatprep.subr.mxu0 0.0
        %6343 = vmatpush1.xpose.msra.mxu0 0.0
        %6344 = vmatprep.subr.mxu0 0.0
        %6345 = vmatpush1.xpose.msra.mxu0 0.0
        %6346 = vmatprep.subr.mxu0 0.0
        %6347 = vmatpush1.xpose.msra.mxu0 0.0
        %6348 = vmatprep.subr.mxu0 0.0
        %6349 = vmatpush1.xpose.msra.mxu0 0.0
        %6350 = vmatprep.subr.mxu0 0.0
        %6351 = vmatpush1.xpose.msra.mxu0 0.0
        %6352 = vmatprep.subr.mxu0 0.0
        %6353 = vmatpush1.xpose.msra.mxu0 0.0
        %6354 = vmatprep.subr.mxu0 0.0
        %6355 = vmatpush1.xpose.msra.mxu0 0.0
        %6356 = vmatprep.subr.mxu0 0.0
        %6357 = vmatpush1.xpose.msra.mxu0 0.0
        %6358 = vmatprep.subr.mxu0 0.0
        %6359 = vmatpush1.xpose.msra.mxu0 0.0
        %6360 = vmatprep.subr.mxu0 0.0
        %6361 = vmatpush1.xpose.msra.mxu0 0.0
        %6362 = vmatprep.subr.mxu0 0.0
        %6363 = vmatpush1.xpose.msra.mxu0 0.0
        %6364 = vmatprep.subr.mxu0 0.0
        %6365 = vmatpush1.xpose.msra.mxu0 0.0
        %6366 = vmatprep.subr.mxu0 0.0
        %6367 = vmatpush1.xpose.msra.mxu0 0.0
        %6368 = vmatprep.subr.mxu0 0.0
        %6369 = vmatpush1.xpose.msra.mxu0 0.0
        %6370 = vmatprep.subr.mxu0 0.0
        %6371 = vmatpush1.xpose.msra.mxu0 0.0
        %6372 = vmatprep.subr.mxu0 0.0
        %6373 = vmatpush1.xpose.msra.mxu0 0.0
        %6374 = vmatprep.subr.mxu0 0.0
        %6375 = vmatpush1.xpose.msra.mxu0 0.0
        %6376 = vmatprep.subr.mxu0 0.0
        %6377 = vmatpush1.xpose.msra.mxu0 0.0
        %6378 = vmatprep.subr.mxu0 0.0
        %6379 = vmatpush1.xpose.msra.mxu0 0.0
        %6380 = vmatprep.subr.mxu0 0.0
        %6381 = vmatpush1.xpose.msra.mxu0 0.0
        %6382 = vmatprep.subr.mxu0 0.0
        %6383 = vmatpush1.xpose.msra.mxu0 0.0
        %6384 = vmatprep.subr.mxu0 0.0
        %6385 = vmatpush1.xpose.msra.mxu0 0.0
        %6386 = vmatprep.mubr.f32.mxu0 0.0
        %6387 = vmatmul.mubr.f32.gmra.mrb[0].mxu0 %v6314
        %v6388 = vpop.f32.mrb[0].mxu0
        %v6389 = vadd.f32 %v5667, %v6388
        %v6390 = vpop.f32.mrb[0].mxu0
        %6391 = vmatprep.mubr.f32.mxu0 0.0
        %6392 = vmatmul.mubr.f32.gmra.mrb[0].mxu0 %v6316
        %v6393 = vpop.f32.mrb[0].mxu0
        %v6394 = vadd.f32 %v5668, %v6393
        %v6395 = vpop.f32.mrb[0].mxu0
        %6396 = vdwg.mxu0
        %v6397 = vadd.f32 %v5752, %v1374
        %v6398 = vadd.f32 %v5757, %v1374
        %v6399 = vadd.f32 %v5843, %v1378
        %v6400 = vadd.f32 %v5848, %v1378
        %v6401 = vadd.f32 %v5934, %v1382
        %v6402 = vadd.f32 %v5939, %v1382
        %v6403 = vadd.f32 %v6025, %v1386
        %v6404 = vadd.f32 %v6030, %v1386
        %v6405 = vadd.f32 %v6116, %v1390
        %v6406 = vadd.f32 %v6121, %v1390
        %v6407 = vadd.f32 %v6207, %v1394
        %v6408 = vadd.f32 %v6212, %v1394
        %v6409 = vadd.f32 %v6298, %v1398
        %v6410 = vadd.f32 %v6303, %v1398
        %v6411 = vadd.f32 %v6389, %v1402
        %v6412 = vadd.f32 %v6394, %v1402
        %v6413 = vsel %vm1427, %v6397, -inf
        %6414 = vmax.xlane.f32.xlu0 %v6413
        %v6415 = vpop.xlane.xlu0 %6414
        %v6416 = vsel %vm1427, %v6398, -inf
        %6417 = vmax.xlane.f32.xlu0 %v6416
        %v6418 = vpop.xlane.xlu0 %6417
        %v6419 = vsel %vm1427, %v6399, -inf
        %6420 = vmax.xlane.f32.xlu0 %v6419
        %v6421 = vpop.xlane.xlu0 %6420
        %v6422 = vsel %vm1427, %v6400, -inf
        %6423 = vmax.xlane.f32.xlu0 %v6422
        %v6424 = vpop.xlane.xlu0 %6423
        %v6425 = vsel %vm1427, %v6401, -inf
        %6426 = vmax.xlane.f32.xlu0 %v6425
        %v6427 = vpop.xlane.xlu0 %6426
        %v6428 = vsel %vm1427, %v6402, -inf
        %6429 = vmax.xlane.f32.xlu0 %v6428
        %v6430 = vpop.xlane.xlu0 %6429
        %v6431 = vsel %vm1427, %v6403, -inf
        %6432 = vmax.xlane.f32.xlu0 %v6431
        %v6433 = vpop.xlane.xlu0 %6432
        %v6434 = vsel %vm1427, %v6404, -inf
        %6435 = vmax.xlane.f32.xlu0 %v6434
        %v6436 = vpop.xlane.xlu0 %6435
        %v6437 = vsel %vm1427, %v6405, -inf
        %6438 = vmax.xlane.f32.xlu0 %v6437
        %v6439 = vpop.xlane.xlu0 %6438
        %v6440 = vsel %vm1427, %v6406, -inf
        %6441 = vmax.xlane.f32.xlu0 %v6440
        %v6442 = vpop.xlane.xlu0 %6441
        %v6443 = vsel %vm1427, %v6407, -inf
        %6444 = vmax.xlane.f32.xlu0 %v6443
        %v6445 = vpop.xlane.xlu0 %6444
        %v6446 = vsel %vm1427, %v6408, -inf
        %6447 = vmax.xlane.f32.xlu0 %v6446
        %v6448 = vpop.xlane.xlu0 %6447
        %v6449 = vsel %vm1427, %v6409, -inf
        %6450 = vmax.xlane.f32.xlu0 %v6449
        %v6451 = vpop.xlane.xlu0 %6450
        %v6452 = vsel %vm1427, %v6410, -inf
        %6453 = vmax.xlane.f32.xlu0 %v6452
        %v6454 = vpop.xlane.xlu0 %6453
        %v6455 = vsel %vm1427, %v6411, -inf
        %6456 = vmax.xlane.f32.xlu0 %v6455
        %v6457 = vpop.xlane.xlu0 %6456
        %v6458 = vsel %vm1427, %v6412, -inf
        %6459 = vmax.xlane.f32.xlu0 %v6458
        %v6460 = vpop.xlane.xlu0 %6459
        %v6461 = vsub.f32 %v6397, %v6415
        %v6462 = vsub.f32 %v6398, %v6418
        %v6463 = vsub.f32 %v6399, %v6421
        %v6464 = vsub.f32 %v6400, %v6424
        %v6465 = vsub.f32 %v6401, %v6427
        %v6466 = vsub.f32 %v6402, %v6430
        %v6467 = vsub.f32 %v6403, %v6433
        %v6468 = vsub.f32 %v6404, %v6436
        %v6469 = vsub.f32 %v6405, %v6439
        %v6470 = vsub.f32 %v6406, %v6442
        %v6471 = vsub.f32 %v6407, %v6445
        %v6472 = vsub.f32 %v6408, %v6448
        %v6473 = vsub.f32 %v6409, %v6451
        %v6474 = vsub.f32 %v6410, %v6454
        %v6475 = vsub.f32 %v6411, %v6457
        %v6476 = vsub.f32 %v6412, %v6460
        %v6477 = vmul.f32 %v6461, 1.442695
        %v6478 = vpow.pop %v6477
        %v6479 = vmul.f32 %v6462, 1.442695
        %v6480 = vpow.pop %v6479
        %v6481 = vmul.f32 %v6463, 1.442695
        %v6482 = vpow.pop %v6481
        %v6483 = vmul.f32 %v6464, 1.442695
        %v6484 = vpow.pop %v6483
        %v6485 = vmul.f32 %v6465, 1.442695
        %v6486 = vpow.pop %v6485
        %v6487 = vmul.f32 %v6466, 1.442695
        %v6488 = vpow.pop %v6487
        %v6489 = vmul.f32 %v6467, 1.442695
        %v6490 = vpow.pop %v6489
        %v6491 = vmul.f32 %v6468, 1.442695
        %v6492 = vpow.pop %v6491
        %v6493 = vmul.f32 %v6469, 1.442695
        %v6494 = vpow.pop %v6493
        %v6495 = vmul.f32 %v6470, 1.442695
        %v6496 = vpow.pop %v6495
        %v6497 = vmul.f32 %v6471, 1.442695
        %v6498 = vpow.pop %v6497
        %v6499 = vmul.f32 %v6472, 1.442695
        %v6500 = vpow.pop %v6499
        %v6501 = vmul.f32 %v6473, 1.442695
        %v6502 = vpow.pop %v6501
        %v6503 = vmul.f32 %v6474, 1.442695
        %v6504 = vpow.pop %v6503
        %v6505 = vmul.f32 %v6475, 1.442695
        %v6506 = vpow.pop %v6505
        %v6507 = vmul.f32 %v6476, 1.442695
        %v6508 = vpow.pop %v6507
        %v6509 = vsel %vm1427, %v6478, 0.0
        %6510 = vadd.xlane.f32.xlu0 %v6509
        %v6511 = vpop.xlane.xlu0 %6510
        %v6512 = vsel %vm1427, %v6480, 0.0
        %6513 = vadd.xlane.f32.xlu0 %v6512
        %v6514 = vpop.xlane.xlu0 %6513
        %v6515 = vsel %vm1427, %v6482, 0.0
        %6516 = vadd.xlane.f32.xlu0 %v6515
        %v6517 = vpop.xlane.xlu0 %6516
        %v6518 = vsel %vm1427, %v6484, 0.0
        %6519 = vadd.xlane.f32.xlu0 %v6518
        %v6520 = vpop.xlane.xlu0 %6519
        %v6521 = vsel %vm1427, %v6486, 0.0
        %6522 = vadd.xlane.f32.xlu0 %v6521
        %v6523 = vpop.xlane.xlu0 %6522
        %v6524 = vsel %vm1427, %v6488, 0.0
        %6525 = vadd.xlane.f32.xlu0 %v6524
        %v6526 = vpop.xlane.xlu0 %6525
        %v6527 = vsel %vm1427, %v6490, 0.0
        %6528 = vadd.xlane.f32.xlu0 %v6527
        %v6529 = vpop.xlane.xlu0 %6528
        %v6530 = vsel %vm1427, %v6492, 0.0
        %6531 = vadd.xlane.f32.xlu0 %v6530
        %v6532 = vpop.xlane.xlu0 %6531
        %v6533 = vsel %vm1427, %v6494, 0.0
        %6534 = vadd.xlane.f32.xlu0 %v6533
        %v6535 = vpop.xlane.xlu0 %6534
        %v6536 = vsel %vm1427, %v6496, 0.0
        %6537 = vadd.xlane.f32.xlu0 %v6536
        %v6538 = vpop.xlane.xlu0 %6537
        %v6539 = vsel %vm1427, %v6498, 0.0
        %6540 = vadd.xlane.f32.xlu0 %v6539
        %v6541 = vpop.xlane.xlu0 %6540
        %v6542 = vsel %vm1427, %v6500, 0.0
        %6543 = vadd.xlane.f32.xlu0 %v6542
        %v6544 = vpop.xlane.xlu0 %6543
        %v6545 = vsel %vm1427, %v6502, 0.0
        %6546 = vadd.xlane.f32.xlu0 %v6545
        %v6547 = vpop.xlane.xlu0 %6546
        %v6548 = vsel %vm1427, %v6504, 0.0
        %6549 = vadd.xlane.f32.xlu0 %v6548
        %v6550 = vpop.xlane.xlu0 %6549
        %v6551 = vsel %vm1427, %v6506, 0.0
        %6552 = vadd.xlane.f32.xlu0 %v6551
        %v6553 = vpop.xlane.xlu0 %6552
        %v6554 = vsel %vm1427, %v6508, 0.0
        %6555 = vadd.xlane.f32.xlu0 %v6554
        %v6556 = vpop.xlane.xlu0 %6555
        %6557 = vrot.lane.b32.xlu0 %v528, 104
        %v6558 = vpop.permute.xlu0 %6557
        %6559 = vrot.lane.b32.xlu0 %v529, 104
        %v6560 = vpop.permute.xlu0 %6559
        %v6564 = vsel %vm1427, %v6478, 0
        %v6567 = vsel %vm1427, %v6480, 0
        %6569 = vmatprep.subr.mxu0 0.0
        %6570 = vmatpush1.msra.mxu0 %v6558
        %6571 = vmatprep.subr.mxu0 0.0
        %6572 = vmatpush1.msra.mxu0 %v6560
        %6573 = vmatprep.subr.mxu0 0.0
        %6574 = vmatpush1.msra.mxu0 0.0
        %6575 = vmatprep.subr.mxu0 0.0
        %6576 = vmatpush1.msra.mxu0 0.0
        %6577 = vmatprep.subr.mxu0 0.0
        %6578 = vmatpush1.msra.mxu0 0.0
        %6579 = vmatprep.subr.mxu0 0.0
        %6580 = vmatpush1.msra.mxu0 0.0
        %6581 = vmatprep.subr.mxu0 0.0
        %6582 = vmatpush1.msra.mxu0 0.0
        %6583 = vmatprep.subr.mxu0 0.0
        %6584 = vmatpush1.msra.mxu0 0.0
        %6585 = vmatprep.subr.mxu0 0.0
        %6586 = vmatpush1.msra.mxu0 0.0
        %6587 = vmatprep.subr.mxu0 0.0
        %6588 = vmatpush1.msra.mxu0 0.0
        %6589 = vmatprep.subr.mxu0 0.0
        %6590 = vmatpush1.msra.mxu0 0.0
        %6591 = vmatprep.subr.mxu0 0.0
        %6592 = vmatpush1.msra.mxu0 0.0
        %6593 = vmatprep.subr.mxu0 0.0
        %6594 = vmatpush1.msra.mxu0 0.0
        %6595 = vmatprep.subr.mxu0 0.0
        %6596 = vmatpush1.msra.mxu0 0.0
        %6597 = vmatprep.subr.mxu0 0.0
        %6598 = vmatpush1.msra.mxu0 0.0
        %6599 = vmatprep.subr.mxu0 0.0
        %6600 = vmatpush1.msra.mxu0 0.0
        %6601 = vmatprep.subr.mxu0 0.0
        %6602 = vmatpush1.msra.mxu0 0.0
        %6603 = vmatprep.subr.mxu0 0.0
        %6604 = vmatpush1.msra.mxu0 0.0
        %6605 = vmatprep.subr.mxu0 0.0
        %6606 = vmatpush1.msra.mxu0 0.0
        %6607 = vmatprep.subr.mxu0 0.0
        %6608 = vmatpush1.msra.mxu0 0.0
        %6609 = vmatprep.subr.mxu0 0.0
        %6610 = vmatpush1.msra.mxu0 0.0
        %6611 = vmatprep.subr.mxu0 0.0
        %6612 = vmatpush1.msra.mxu0 0.0
        %6613 = vmatprep.subr.mxu0 0.0
        %6614 = vmatpush1.msra.mxu0 0.0
        %6615 = vmatprep.subr.mxu0 0.0
        %6616 = vmatpush1.msra.mxu0 0.0
        %6617 = vmatprep.subr.mxu0 0.0
        %6618 = vmatpush1.msra.mxu0 0.0
        %6619 = vmatprep.subr.mxu0 0.0
        %6620 = vmatpush1.msra.mxu0 0.0
        %6621 = vmatprep.subr.mxu0 0.0
        %6622 = vmatpush1.msra.mxu0 0.0
        %6623 = vmatprep.subr.mxu0 0.0
        %6624 = vmatpush1.msra.mxu0 0.0
        %6625 = vmatprep.subr.mxu0 0.0
        %6626 = vmatpush1.msra.mxu0 0.0
        %6627 = vmatprep.subr.mxu0 0.0
        %6628 = vmatpush1.msra.mxu0 0.0
        %6629 = vmatprep.subr.mxu0 0.0
        %6630 = vmatpush1.msra.mxu0 0.0
        %6631 = vmatprep.subr.mxu0 0.0
        %6632 = vmatpush1.msra.mxu0 0.0
        %6633 = vmatprep.mubr.f32.mxu0 0.0
        %6634 = vmatmul.mubr.f32.gmra.mrb[0].mxu0 %v6564
        %v6635 = vpop.f32.mrb[0].mxu0
        %v6636 = vadd.f32 0.0, %v6635
        %v6637 = vpop.f32.mrb[0].mxu0
        %6638 = vmatprep.mubr.f32.mxu0 0.0
        %6639 = vmatmul.mubr.f32.gmra.mrb[0].mxu0 %v6567
        %v6640 = vpop.f32.mrb[0].mxu0
        %v6641 = vadd.f32 0.0, %v6640
        %v6642 = vpop.f32.mrb[0].mxu0
        %6643 = vdwg.mxu0
        %6644 = vrot.lane.b32.xlu0 %v530, 104
        %v6645 = vpop.permute.xlu0 %6644
        %6646 = vrot.lane.b32.xlu0 %v531, 104
        %v6647 = vpop.permute.xlu0 %6646
        %v6651 = vsel %vm1427, %v6482, 0
        %v6654 = vsel %vm1427, %v6484, 0
        %6656 = vmatprep.subr.mxu0 0.0
        %6657 = vmatpush1.msra.mxu0 %v6645
        %6658 = vmatprep.subr.mxu0 0.0
        %6659 = vmatpush1.msra.mxu0 %v6647
        %6660 = vmatprep.subr.mxu0 0.0
        %6661 = vmatpush1.msra.mxu0 0.0
        %6662 = vmatprep.subr.mxu0 0.0
        %6663 = vmatpush1.msra.mxu0 0.0
        %6664 = vmatprep.subr.mxu0 0.0
        %6665 = vmatpush1.msra.mxu0 0.0
        %6666 = vmatprep.subr.mxu0 0.0
        %6667 = vmatpush1.msra.mxu0 0.0
        %6668 = vmatprep.subr.mxu0 0.0
        %6669 = vmatpush1.msra.mxu0 0.0
        %6670 = vmatprep.subr.mxu0 0.0
        %6671 = vmatpush1.msra.mxu0 0.0
        %6672 = vmatprep.subr.mxu0 0.0
        %6673 = vmatpush1.msra.mxu0 0.0
        %6674 = vmatprep.subr.mxu0 0.0
        %6675 = vmatpush1.msra.mxu0 0.0
        %6676 = vmatprep.subr.mxu0 0.0
        %6677 = vmatpush1.msra.mxu0 0.0
        %6678 = vmatprep.subr.mxu0 0.0
        %6679 = vmatpush1.msra.mxu0 0.0
        %6680 = vmatprep.subr.mxu0 0.0
        %6681 = vmatpush1.msra.mxu0 0.0
        %6682 = vmatprep.subr.mxu0 0.0
        %6683 = vmatpush1.msra.mxu0 0.0
        %6684 = vmatprep.subr.mxu0 0.0
        %6685 = vmatpush1.msra.mxu0 0.0
        %6686 = vmatprep.subr.mxu0 0.0
        %6687 = vmatpush1.msra.mxu0 0.0
        %6688 = vmatprep.subr.mxu0 0.0
        %6689 = vmatpush1.msra.mxu0 0.0
        %6690 = vmatprep.subr.mxu0 0.0
        %6691 = vmatpush1.msra.mxu0 0.0
        %6692 = vmatprep.subr.mxu0 0.0
        %6693 = vmatpush1.msra.mxu0 0.0
        %6694 = vmatprep.subr.mxu0 0.0
        %6695 = vmatpush1.msra.mxu0 0.0
        %6696 = vmatprep.subr.mxu0 0.0
        %6697 = vmatpush1.msra.mxu0 0.0
        %6698 = vmatprep.subr.mxu0 0.0
        %6699 = vmatpush1.msra.mxu0 0.0
        %6700 = vmatprep.subr.mxu0 0.0
        %6701 = vmatpush1.msra.mxu0 0.0
        %6702 = vmatprep.subr.mxu0 0.0
        %6703 = vmatpush1.msra.mxu0 0.0
        %6704 = vmatprep.subr.mxu0 0.0
        %6705 = vmatpush1.msra.mxu0 0.0
        %6706 = vmatprep.subr.mxu0 0.0
        %6707 = vmatpush1.msra.mxu0 0.0
        %6708 = vmatprep.subr.mxu0 0.0
        %6709 = vmatpush1.msra.mxu0 0.0
        %6710 = vmatprep.subr.mxu0 0.0
        %6711 = vmatpush1.msra.mxu0 0.0
        %6712 = vmatprep.subr.mxu0 0.0
        %6713 = vmatpush1.msra.mxu0 0.0
        %6714 = vmatprep.subr.mxu0 0.0
        %6715 = vmatpush1.msra.mxu0 0.0
        %6716 = vmatprep.subr.mxu0 0.0
        %6717 = vmatpush1.msra.mxu0 0.0
        %6718 = vmatprep.subr.mxu0 0.0
        %6719 = vmatpush1.msra.mxu0 0.0
        %6720 = vmatprep.mubr.f32.mxu0 0.0
        %6721 = vmatmul.mubr.f32.gmra.mrb[0].mxu0 %v6651
        %v6722 = vpop.f32.mrb[0].mxu0
        %v6723 = vadd.f32 0.0, %v6722
        %v6724 = vpop.f32.mrb[0].mxu0
        %6725 = vmatprep.mubr.f32.mxu0 0.0
        %6726 = vmatmul.mubr.f32.gmra.mrb[0].mxu0 %v6654
        %v6727 = vpop.f32.mrb[0].mxu0
        %v6728 = vadd.f32 0.0, %v6727
        %v6729 = vpop.f32.mrb[0].mxu0
        %6730 = vdwg.mxu0
        %6731 = vrot.lane.b32.xlu0 %v532, 104
        %v6732 = vpop.permute.xlu0 %6731
        %6733 = vrot.lane.b32.xlu0 %v533, 104
        %v6734 = vpop.permute.xlu0 %6733
        %v6738 = vsel %vm1427, %v6486, 0
        %v6741 = vsel %vm1427, %v6488, 0
        %6743 = vmatprep.subr.mxu0 0.0
        %6744 = vmatpush1.msra.mxu0 %v6732
        %6745 = vmatprep.subr.mxu0 0.0
        %6746 = vmatpush1.msra.mxu0 %v6734
        %6747 = vmatprep.subr.mxu0 0.0
        %6748 = vmatpush1.msra.mxu0 0.0
        %6749 = vmatprep.subr.mxu0 0.0
        %6750 = vmatpush1.msra.mxu0 0.0
        %6751 = vmatprep.subr.mxu0 0.0
        %6752 = vmatpush1.msra.mxu0 0.0
        %6753 = vmatprep.subr.mxu0 0.0
        %6754 = vmatpush1.msra.mxu0 0.0
        %6755 = vmatprep.subr.mxu0 0.0
        %6756 = vmatpush1.msra.mxu0 0.0
        %6757 = vmatprep.subr.mxu0 0.0
        %6758 = vmatpush1.msra.mxu0 0.0
        %6759 = vmatprep.subr.mxu0 0.0
        %6760 = vmatpush1.msra.mxu0 0.0
        %6761 = vmatprep.subr.mxu0 0.0
        %6762 = vmatpush1.msra.mxu0 0.0
        %6763 = vmatprep.subr.mxu0 0.0
        %6764 = vmatpush1.msra.mxu0 0.0
        %6765 = vmatprep.subr.mxu0 0.0
        %6766 = vmatpush1.msra.mxu0 0.0
        %6767 = vmatprep.subr.mxu0 0.0
        %6768 = vmatpush1.msra.mxu0 0.0
        %6769 = vmatprep.subr.mxu0 0.0
        %6770 = vmatpush1.msra.mxu0 0.0
        %6771 = vmatprep.subr.mxu0 0.0
        %6772 = vmatpush1.msra.mxu0 0.0
        %6773 = vmatprep.subr.mxu0 0.0
        %6774 = vmatpush1.msra.mxu0 0.0
        %6775 = vmatprep.subr.mxu0 0.0
        %6776 = vmatpush1.msra.mxu0 0.0
        %6777 = vmatprep.subr.mxu0 0.0
        %6778 = vmatpush1.msra.mxu0 0.0
        %6779 = vmatprep.subr.mxu0 0.0
        %6780 = vmatpush1.msra.mxu0 0.0
        %6781 = vmatprep.subr.mxu0 0.0
        %6782 = vmatpush1.msra.mxu0 0.0
        %6783 = vmatprep.subr.mxu0 0.0
        %6784 = vmatpush1.msra.mxu0 0.0
        %6785 = vmatprep.subr.mxu0 0.0
        %6786 = vmatpush1.msra.mxu0 0.0
        %6787 = vmatprep.subr.mxu0 0.0
        %6788 = vmatpush1.msra.mxu0 0.0
        %6789 = vmatprep.subr.mxu0 0.0
        %6790 = vmatpush1.msra.mxu0 0.0
        %6791 = vmatprep.subr.mxu0 0.0
        %6792 = vmatpush1.msra.mxu0 0.0
        %6793 = vmatprep.subr.mxu0 0.0
        %6794 = vmatpush1.msra.mxu0 0.0
        %6795 = vmatprep.subr.mxu0 0.0
        %6796 = vmatpush1.msra.mxu0 0.0
        %6797 = vmatprep.subr.mxu0 0.0
        %6798 = vmatpush1.msra.mxu0 0.0
        %6799 = vmatprep.subr.mxu0 0.0
        %6800 = vmatpush1.msra.mxu0 0.0
        %6801 = vmatprep.subr.mxu0 0.0
        %6802 = vmatpush1.msra.mxu0 0.0
        %6803 = vmatprep.subr.mxu0 0.0
        %6804 = vmatpush1.msra.mxu0 0.0
        %6805 = vmatprep.subr.mxu0 0.0
        %6806 = vmatpush1.msra.mxu0 0.0
        %6807 = vmatprep.mubr.f32.mxu0 0.0
        %6808 = vmatmul.mubr.f32.gmra.mrb[0].mxu0 %v6738
        %v6809 = vpop.f32.mrb[0].mxu0
        %v6810 = vadd.f32 0.0, %v6809
        %v6811 = vpop.f32.mrb[0].mxu0
        %6812 = vmatprep.mubr.f32.mxu0 0.0
        %6813 = vmatmul.mubr.f32.gmra.mrb[0].mxu0 %v6741
        %v6814 = vpop.f32.mrb[0].mxu0
        %v6815 = vadd.f32 0.0, %v6814
        %v6816 = vpop.f32.mrb[0].mxu0
        %6817 = vdwg.mxu0
        %6818 = vrot.lane.b32.xlu0 %v534, 104
        %v6819 = vpop.permute.xlu0 %6818
        %6820 = vrot.lane.b32.xlu0 %v535, 104
        %v6821 = vpop.permute.xlu0 %6820
        %v6825 = vsel %vm1427, %v6490, 0
        %v6828 = vsel %vm1427, %v6492, 0
        %6830 = vmatprep.subr.mxu0 0.0
        %6831 = vmatpush1.msra.mxu0 %v6819
        %6832 = vmatprep.subr.mxu0 0.0
        %6833 = vmatpush1.msra.mxu0 %v6821
        %6834 = vmatprep.subr.mxu0 0.0
        %6835 = vmatpush1.msra.mxu0 0.0
        %6836 = vmatprep.subr.mxu0 0.0
        %6837 = vmatpush1.msra.mxu0 0.0
        %6838 = vmatprep.subr.mxu0 0.0
        %6839 = vmatpush1.msra.mxu0 0.0
        %6840 = vmatprep.subr.mxu0 0.0
        %6841 = vmatpush1.msra.mxu0 0.0
        %6842 = vmatprep.subr.mxu0 0.0
        %6843 = vmatpush1.msra.mxu0 0.0
        %6844 = vmatprep.subr.mxu0 0.0
        %6845 = vmatpush1.msra.mxu0 0.0
        %6846 = vmatprep.subr.mxu0 0.0
        %6847 = vmatpush1.msra.mxu0 0.0
        %6848 = vmatprep.subr.mxu0 0.0
        %6849 = vmatpush1.msra.mxu0 0.0
        %6850 = vmatprep.subr.mxu0 0.0
        %6851 = vmatpush1.msra.mxu0 0.0
        %6852 = vmatprep.subr.mxu0 0.0
        %6853 = vmatpush1.msra.mxu0 0.0
        %6854 = vmatprep.subr.mxu0 0.0
        %6855 = vmatpush1.msra.mxu0 0.0
        %6856 = vmatprep.subr.mxu0 0.0
        %6857 = vmatpush1.msra.mxu0 0.0
        %6858 = vmatprep.subr.mxu0 0.0
        %6859 = vmatpush1.msra.mxu0 0.0
        %6860 = vmatprep.subr.mxu0 0.0
        %6861 = vmatpush1.msra.mxu0 0.0
        %6862 = vmatprep.subr.mxu0 0.0
        %6863 = vmatpush1.msra.mxu0 0.0
        %6864 = vmatprep.subr.mxu0 0.0
        %6865 = vmatpush1.msra.mxu0 0.0
        %6866 = vmatprep.subr.mxu0 0.0
        %6867 = vmatpush1.msra.mxu0 0.0
        %6868 = vmatprep.subr.mxu0 0.0
        %6869 = vmatpush1.msra.mxu0 0.0
        %6870 = vmatprep.subr.mxu0 0.0
        %6871 = vmatpush1.msra.mxu0 0.0
        %6872 = vmatprep.subr.mxu0 0.0
        %6873 = vmatpush1.msra.mxu0 0.0
        %6874 = vmatprep.subr.mxu0 0.0
        %6875 = vmatpush1.msra.mxu0 0.0
        %6876 = vmatprep.subr.mxu0 0.0
        %6877 = vmatpush1.msra.mxu0 0.0
        %6878 = vmatprep.subr.mxu0 0.0
        %6879 = vmatpush1.msra.mxu0 0.0
        %6880 = vmatprep.subr.mxu0 0.0
        %6881 = vmatpush1.msra.mxu0 0.0
        %6882 = vmatprep.subr.mxu0 0.0
        %6883 = vmatpush1.msra.mxu0 0.0
        %6884 = vmatprep.subr.mxu0 0.0
        %6885 = vmatpush1.msra.mxu0 0.0
        %6886 = vmatprep.subr.mxu0 0.0
        %6887 = vmatpush1.msra.mxu0 0.0
        %6888 = vmatprep.subr.mxu0 0.0
        %6889 = vmatpush1.msra.mxu0 0.0
        %6890 = vmatprep.subr.mxu0 0.0
        %6891 = vmatpush1.msra.mxu0 0.0
        %6892 = vmatprep.subr.mxu0 0.0
        %6893 = vmatpush1.msra.mxu0 0.0
        %6894 = vmatprep.mubr.f32.mxu0 0.0
        %6895 = vmatmul.mubr.f32.gmra.mrb[0].mxu0 %v6825
        %v6896 = vpop.f32.mrb[0].mxu0
        %v6897 = vadd.f32 0.0, %v6896
        %v6898 = vpop.f32.mrb[0].mxu0
        %6899 = vmatprep.mubr.f32.mxu0 0.0
        %6900 = vmatmul.mubr.f32.gmra.mrb[0].mxu0 %v6828
        %v6901 = vpop.f32.mrb[0].mxu0
        %v6902 = vadd.f32 0.0, %v6901
        %v6903 = vpop.f32.mrb[0].mxu0
        %6904 = vdwg.mxu0
        %6905 = vrot.lane.b32.xlu0 %v536, 104
        %v6906 = vpop.permute.xlu0 %6905
        %6907 = vrot.lane.b32.xlu0 %v537, 104
        %v6908 = vpop.permute.xlu0 %6907
        %v6912 = vsel %vm1427, %v6494, 0
        %v6915 = vsel %vm1427, %v6496, 0
        %6917 = vmatprep.subr.mxu0 0.0
        %6918 = vmatpush1.msra.mxu0 %v6906
        %6919 = vmatprep.subr.mxu0 0.0
        %6920 = vmatpush1.msra.mxu0 %v6908
        %6921 = vmatprep.subr.mxu0 0.0
        %6922 = vmatpush1.msra.mxu0 0.0
        %6923 = vmatprep.subr.mxu0 0.0
        %6924 = vmatpush1.msra.mxu0 0.0
        %6925 = vmatprep.subr.mxu0 0.0
        %6926 = vmatpush1.msra.mxu0 0.0
        %6927 = vmatprep.subr.mxu0 0.0
        %6928 = vmatpush1.msra.mxu0 0.0
        %6929 = vmatprep.subr.mxu0 0.0
        %6930 = vmatpush1.msra.mxu0 0.0
        %6931 = vmatprep.subr.mxu0 0.0
        %6932 = vmatpush1.msra.mxu0 0.0
        %6933 = vmatprep.subr.mxu0 0.0
        %6934 = vmatpush1.msra.mxu0 0.0
        %6935 = vmatprep.subr.mxu0 0.0
        %6936 = vmatpush1.msra.mxu0 0.0
        %6937 = vmatprep.subr.mxu0 0.0
        %6938 = vmatpush1.msra.mxu0 0.0
        %6939 = vmatprep.subr.mxu0 0.0
        %6940 = vmatpush1.msra.mxu0 0.0
        %6941 = vmatprep.subr.mxu0 0.0
        %6942 = vmatpush1.msra.mxu0 0.0
        %6943 = vmatprep.subr.mxu0 0.0
        %6944 = vmatpush1.msra.mxu0 0.0
        %6945 = vmatprep.subr.mxu0 0.0
        %6946 = vmatpush1.msra.mxu0 0.0
        %6947 = vmatprep.subr.mxu0 0.0
        %6948 = vmatpush1.msra.mxu0 0.0
        %6949 = vmatprep.subr.mxu0 0.0
        %6950 = vmatpush1.msra.mxu0 0.0
        %6951 = vmatprep.subr.mxu0 0.0
        %6952 = vmatpush1.msra.mxu0 0.0
        %6953 = vmatprep.subr.mxu0 0.0
        %6954 = vmatpush1.msra.mxu0 0.0
        %6955 = vmatprep.subr.mxu0 0.0
        %6956 = vmatpush1.msra.mxu0 0.0
        %6957 = vmatprep.subr.mxu0 0.0
        %6958 = vmatpush1.msra.mxu0 0.0
        %6959 = vmatprep.subr.mxu0 0.0
        %6960 = vmatpush1.msra.mxu0 0.0
        %6961 = vmatprep.subr.mxu0 0.0
        %6962 = vmatpush1.msra.mxu0 0.0
        %6963 = vmatprep.subr.mxu0 0.0
        %6964 = vmatpush1.msra.mxu0 0.0
        %6965 = vmatprep.subr.mxu0 0.0
        %6966 = vmatpush1.msra.mxu0 0.0
        %6967 = vmatprep.subr.mxu0 0.0
        %6968 = vmatpush1.msra.mxu0 0.0
        %6969 = vmatprep.subr.mxu0 0.0
        %6970 = vmatpush1.msra.mxu0 0.0
        %6971 = vmatprep.subr.mxu0 0.0
        %6972 = vmatpush1.msra.mxu0 0.0
        %6973 = vmatprep.subr.mxu0 0.0
        %6974 = vmatpush1.msra.mxu0 0.0
        %6975 = vmatprep.subr.mxu0 0.0
        %6976 = vmatpush1.msra.mxu0 0.0
        %6977 = vmatprep.subr.mxu0 0.0
        %6978 = vmatpush1.msra.mxu0 0.0
        %6979 = vmatprep.subr.mxu0 0.0
        %6980 = vmatpush1.msra.mxu0 0.0
        %6981 = vmatprep.mubr.f32.mxu0 0.0
        %6982 = vmatmul.mubr.f32.gmra.mrb[0].mxu0 %v6912
        %v6983 = vpop.f32.mrb[0].mxu0
        %v6984 = vadd.f32 0.0, %v6983
        %v6985 = vpop.f32.mrb[0].mxu0
        %6986 = vmatprep.mubr.f32.mxu0 0.0
        %6987 = vmatmul.mubr.f32.gmra.mrb[0].mxu0 %v6915
        %v6988 = vpop.f32.mrb[0].mxu0
        %v6989 = vadd.f32 0.0, %v6988
        %v6990 = vpop.f32.mrb[0].mxu0
        %6991 = vdwg.mxu0
        %6992 = vrot.lane.b32.xlu0 %v538, 104
        %v6993 = vpop.permute.xlu0 %6992
        %6994 = vrot.lane.b32.xlu0 %v539, 104
        %v6995 = vpop.permute.xlu0 %6994
        %v6999 = vsel %vm1427, %v6498, 0
        %v7002 = vsel %vm1427, %v6500, 0
        %7004 = vmatprep.subr.mxu0 0.0
        %7005 = vmatpush1.msra.mxu0 %v6993
        %7006 = vmatprep.subr.mxu0 0.0
        %7007 = vmatpush1.msra.mxu0 %v6995
        %7008 = vmatprep.subr.mxu0 0.0
        %7009 = vmatpush1.msra.mxu0 0.0
        %7010 = vmatprep.subr.mxu0 0.0
        %7011 = vmatpush1.msra.mxu0 0.0
        %7012 = vmatprep.subr.mxu0 0.0
        %7013 = vmatpush1.msra.mxu0 0.0
        %7014 = vmatprep.subr.mxu0 0.0
        %7015 = vmatpush1.msra.mxu0 0.0
        %7016 = vmatprep.subr.mxu0 0.0
        %7017 = vmatpush1.msra.mxu0 0.0
        %7018 = vmatprep.subr.mxu0 0.0
        %7019 = vmatpush1.msra.mxu0 0.0
        %7020 = vmatprep.subr.mxu0 0.0
        %7021 = vmatpush1.msra.mxu0 0.0
        %7022 = vmatprep.subr.mxu0 0.0
        %7023 = vmatpush1.msra.mxu0 0.0
        %7024 = vmatprep.subr.mxu0 0.0
        %7025 = vmatpush1.msra.mxu0 0.0
        %7026 = vmatprep.subr.mxu0 0.0
        %7027 = vmatpush1.msra.mxu0 0.0
        %7028 = vmatprep.subr.mxu0 0.0
        %7029 = vmatpush1.msra.mxu0 0.0
        %7030 = vmatprep.subr.mxu0 0.0
        %7031 = vmatpush1.msra.mxu0 0.0
        %7032 = vmatprep.subr.mxu0 0.0
        %7033 = vmatpush1.msra.mxu0 0.0
        %7034 = vmatprep.subr.mxu0 0.0
        %7035 = vmatpush1.msra.mxu0 0.0
        %7036 = vmatprep.subr.mxu0 0.0
        %7037 = vmatpush1.msra.mxu0 0.0
        %7038 = vmatprep.subr.mxu0 0.0
        %7039 = vmatpush1.msra.mxu0 0.0
        %7040 = vmatprep.subr.mxu0 0.0
        %7041 = vmatpush1.msra.mxu0 0.0
        %7042 = vmatprep.subr.mxu0 0.0
        %7043 = vmatpush1.msra.mxu0 0.0
        %7044 = vmatprep.subr.mxu0 0.0
        %7045 = vmatpush1.msra.mxu0 0.0
        %7046 = vmatprep.subr.mxu0 0.0
        %7047 = vmatpush1.msra.mxu0 0.0
        %7048 = vmatprep.subr.mxu0 0.0
        %7049 = vmatpush1.msra.mxu0 0.0
        %7050 = vmatprep.subr.mxu0 0.0
        %7051 = vmatpush1.msra.mxu0 0.0
        %7052 = vmatprep.subr.mxu0 0.0
        %7053 = vmatpush1.msra.mxu0 0.0
        %7054 = vmatprep.subr.mxu0 0.0
        %7055 = vmatpush1.msra.mxu0 0.0
        %7056 = vmatprep.subr.mxu0 0.0
        %7057 = vmatpush1.msra.mxu0 0.0
        %7058 = vmatprep.subr.mxu0 0.0
        %7059 = vmatpush1.msra.mxu0 0.0
        %7060 = vmatprep.subr.mxu0 0.0
        %7061 = vmatpush1.msra.mxu0 0.0
        %7062 = vmatprep.subr.mxu0 0.0
        %7063 = vmatpush1.msra.mxu0 0.0
        %7064 = vmatprep.subr.mxu0 0.0
        %7065 = vmatpush1.msra.mxu0 0.0
        %7066 = vmatprep.subr.mxu0 0.0
        %7067 = vmatpush1.msra.mxu0 0.0
        %7068 = vmatprep.mubr.f32.mxu0 0.0
        %7069 = vmatmul.mubr.f32.gmra.mrb[0].mxu0 %v6999
        %v7070 = vpop.f32.mrb[0].mxu0
        %v7071 = vadd.f32 0.0, %v7070
        %v7072 = vpop.f32.mrb[0].mxu0
        %7073 = vmatprep.mubr.f32.mxu0 0.0
        %7074 = vmatmul.mubr.f32.gmra.mrb[0].mxu0 %v7002
        %v7075 = vpop.f32.mrb[0].mxu0
        %v7076 = vadd.f32 0.0, %v7075
        %v7077 = vpop.f32.mrb[0].mxu0
        %7078 = vdwg.mxu0
        %7079 = vrot.lane.b32.xlu0 %v540, 104
        %v7080 = vpop.permute.xlu0 %7079
        %7081 = vrot.lane.b32.xlu0 %v541, 104
        %v7082 = vpop.permute.xlu0 %7081
        %v7086 = vsel %vm1427, %v6502, 0
        %v7089 = vsel %vm1427, %v6504, 0
        %7091 = vmatprep.subr.mxu0 0.0
        %7092 = vmatpush1.msra.mxu0 %v7080
        %7093 = vmatprep.subr.mxu0 0.0
        %7094 = vmatpush1.msra.mxu0 %v7082
        %7095 = vmatprep.subr.mxu0 0.0
        %7096 = vmatpush1.msra.mxu0 0.0
        %7097 = vmatprep.subr.mxu0 0.0
        %7098 = vmatpush1.msra.mxu0 0.0
        %7099 = vmatprep.subr.mxu0 0.0
        %7100 = vmatpush1.msra.mxu0 0.0
        %7101 = vmatprep.subr.mxu0 0.0
        %7102 = vmatpush1.msra.mxu0 0.0
        %7103 = vmatprep.subr.mxu0 0.0
        %7104 = vmatpush1.msra.mxu0 0.0
        %7105 = vmatprep.subr.mxu0 0.0
        %7106 = vmatpush1.msra.mxu0 0.0
        %7107 = vmatprep.subr.mxu0 0.0
        %7108 = vmatpush1.msra.mxu0 0.0
        %7109 = vmatprep.subr.mxu0 0.0
        %7110 = vmatpush1.msra.mxu0 0.0
        %7111 = vmatprep.subr.mxu0 0.0
        %7112 = vmatpush1.msra.mxu0 0.0
        %7113 = vmatprep.subr.mxu0 0.0
        %7114 = vmatpush1.msra.mxu0 0.0
        %7115 = vmatprep.subr.mxu0 0.0
        %7116 = vmatpush1.msra.mxu0 0.0
        %7117 = vmatprep.subr.mxu0 0.0
        %7118 = vmatpush1.msra.mxu0 0.0
        %7119 = vmatprep.subr.mxu0 0.0
        %7120 = vmatpush1.msra.mxu0 0.0
        %7121 = vmatprep.subr.mxu0 0.0
        %7122 = vmatpush1.msra.mxu0 0.0
        %7123 = vmatprep.subr.mxu0 0.0
        %7124 = vmatpush1.msra.mxu0 0.0
        %7125 = vmatprep.subr.mxu0 0.0
        %7126 = vmatpush1.msra.mxu0 0.0
        %7127 = vmatprep.subr.mxu0 0.0
        %7128 = vmatpush1.msra.mxu0 0.0
        %7129 = vmatprep.subr.mxu0 0.0
        %7130 = vmatpush1.msra.mxu0 0.0
        %7131 = vmatprep.subr.mxu0 0.0
        %7132 = vmatpush1.msra.mxu0 0.0
        %7133 = vmatprep.subr.mxu0 0.0
        %7134 = vmatpush1.msra.mxu0 0.0
        %7135 = vmatprep.subr.mxu0 0.0
        %7136 = vmatpush1.msra.mxu0 0.0
        %7137 = vmatprep.subr.mxu0 0.0
        %7138 = vmatpush1.msra.mxu0 0.0
        %7139 = vmatprep.subr.mxu0 0.0
        %7140 = vmatpush1.msra.mxu0 0.0
        %7141 = vmatprep.subr.mxu0 0.0
        %7142 = vmatpush1.msra.mxu0 0.0
        %7143 = vmatprep.subr.mxu0 0.0
        %7144 = vmatpush1.msra.mxu0 0.0
        %7145 = vmatprep.subr.mxu0 0.0
        %7146 = vmatpush1.msra.mxu0 0.0
        %7147 = vmatprep.subr.mxu0 0.0
        %7148 = vmatpush1.msra.mxu0 0.0
        %7149 = vmatprep.subr.mxu0 0.0
        %7150 = vmatpush1.msra.mxu0 0.0
        %7151 = vmatprep.subr.mxu0 0.0
        %7152 = vmatpush1.msra.mxu0 0.0
        %7153 = vmatprep.subr.mxu0 0.0
        %7154 = vmatpush1.msra.mxu0 0.0
        %7155 = vmatprep.mubr.f32.mxu0 0.0
        %7156 = vmatmul.mubr.f32.gmra.mrb[0].mxu0 %v7086
        %v7157 = vpop.f32.mrb[0].mxu0
        %v7158 = vadd.f32 0.0, %v7157
        %v7159 = vpop.f32.mrb[0].mxu0
        %7160 = vmatprep.mubr.f32.mxu0 0.0
        %7161 = vmatmul.mubr.f32.gmra.mrb[0].mxu0 %v7089
        %v7162 = vpop.f32.mrb[0].mxu0
        %v7163 = vadd.f32 0.0, %v7162
        %v7164 = vpop.f32.mrb[0].mxu0
        %7165 = vdwg.mxu0
        %7166 = vrot.lane.b32.xlu0 %v542, 104
        %v7167 = vpop.permute.xlu0 %7166
        %7168 = vrot.lane.b32.xlu0 %v543, 104
        %v7169 = vpop.permute.xlu0 %7168
        %v7173 = vsel %vm1427, %v6506, 0
        %v7176 = vsel %vm1427, %v6508, 0
        %7178 = vmatprep.subr.mxu0 0.0
        %7179 = vmatpush1.msra.mxu0 %v7167
        %7180 = vmatprep.subr.mxu0 0.0
        %7181 = vmatpush1.msra.mxu0 %v7169
        %7182 = vmatprep.subr.mxu0 0.0
        %7183 = vmatpush1.msra.mxu0 0.0
        %7184 = vmatprep.subr.mxu0 0.0
        %7185 = vmatpush1.msra.mxu0 0.0
        %7186 = vmatprep.subr.mxu0 0.0
        %7187 = vmatpush1.msra.mxu0 0.0
        %7188 = vmatprep.subr.mxu0 0.0
        %7189 = vmatpush1.msra.mxu0 0.0
        %7190 = vmatprep.subr.mxu0 0.0
        %7191 = vmatpush1.msra.mxu0 0.0
        %7192 = vmatprep.subr.mxu0 0.0
        %7193 = vmatpush1.msra.mxu0 0.0
        %7194 = vmatprep.subr.mxu0 0.0
        %7195 = vmatpush1.msra.mxu0 0.0
        %7196 = vmatprep.subr.mxu0 0.0
        %7197 = vmatpush1.msra.mxu0 0.0
        %7198 = vmatprep.subr.mxu0 0.0
        %7199 = vmatpush1.msra.mxu0 0.0
        %7200 = vmatprep.subr.mxu0 0.0
        %7201 = vmatpush1.msra.mxu0 0.0
        %7202 = vmatprep.subr.mxu0 0.0
        %7203 = vmatpush1.msra.mxu0 0.0
        %7204 = vmatprep.subr.mxu0 0.0
        %7205 = vmatpush1.msra.mxu0 0.0
        %7206 = vmatprep.subr.mxu0 0.0
        %7207 = vmatpush1.msra.mxu0 0.0
        %7208 = vmatprep.subr.mxu0 0.0
        %7209 = vmatpush1.msra.mxu0 0.0
        %7210 = vmatprep.subr.mxu0 0.0
        %7211 = vmatpush1.msra.mxu0 0.0
        %7212 = vmatprep.subr.mxu0 0.0
        %7213 = vmatpush1.msra.mxu0 0.0
        %7214 = vmatprep.subr.mxu0 0.0
        %7215 = vmatpush1.msra.mxu0 0.0
        %7216 = vmatprep.subr.mxu0 0.0
        %7217 = vmatpush1.msra.mxu0 0.0
        %7218 = vmatprep.subr.mxu0 0.0
        %7219 = vmatpush1.msra.mxu0 0.0
        %7220 = vmatprep.subr.mxu0 0.0
        %7221 = vmatpush1.msra.mxu0 0.0
        %7222 = vmatprep.subr.mxu0 0.0
        %7223 = vmatpush1.msra.mxu0 0.0
        %7224 = vmatprep.subr.mxu0 0.0
        %7225 = vmatpush1.msra.mxu0 0.0
        %7226 = vmatprep.subr.mxu0 0.0
        %7227 = vmatpush1.msra.mxu0 0.0
        %7228 = vmatprep.subr.mxu0 0.0
        %7229 = vmatpush1.msra.mxu0 0.0
        %7230 = vmatprep.subr.mxu0 0.0
        %7231 = vmatpush1.msra.mxu0 0.0
        %7232 = vmatprep.subr.mxu0 0.0
        %7233 = vmatpush1.msra.mxu0 0.0
        %7234 = vmatprep.subr.mxu0 0.0
        %7235 = vmatpush1.msra.mxu0 0.0
        %7236 = vmatprep.subr.mxu0 0.0
        %7237 = vmatpush1.msra.mxu0 0.0
        %7238 = vmatprep.subr.mxu0 0.0
        %7239 = vmatpush1.msra.mxu0 0.0
        %7240 = vmatprep.subr.mxu0 0.0
        %7241 = vmatpush1.msra.mxu0 0.0
        %7242 = vmatprep.mubr.f32.mxu0 0.0
        %7243 = vmatmul.mubr.f32.gmra.mrb[0].mxu0 %v7173
        %v7244 = vpop.f32.mrb[0].mxu0
        %v7245 = vadd.f32 0.0, %v7244
        %v7246 = vpop.f32.mrb[0].mxu0
        %7247 = vmatprep.mubr.f32.mxu0 0.0
        %7248 = vmatmul.mubr.f32.gmra.mrb[0].mxu0 %v7176
        %v7249 = vpop.f32.mrb[0].mxu0
        %v7250 = vadd.f32 0.0, %v7249
        %v7251 = vpop.f32.mrb[0].mxu0
        %7252 = vdwg.mxu0
        %v7253 = vrcp.pop %v6511
        %v7254 = vrcp.pop %v6514
        %v7255 = vrcp.pop %v6517
        %v7256 = vrcp.pop %v6520
        %v7257 = vrcp.pop %v6523
        %v7258 = vrcp.pop %v6526
        %v7259 = vrcp.pop %v6529
        %v7260 = vrcp.pop %v6532
        %v7261 = vrcp.pop %v6535
        %v7262 = vrcp.pop %v6538
        %v7263 = vrcp.pop %v6541
        %v7264 = vrcp.pop %v6544
        %v7265 = vrcp.pop %v6547
        %v7266 = vrcp.pop %v6550
        %v7267 = vrcp.pop %v6553
        %v7268 = vrcp.pop %v6556
        %v7269 = vmul.f32 %v6636, %v7253
        %v7270 = vmul.f32 %v6641, %v7254
        %v7271 = vmul.f32 %v6723, %v7255
        %v7272 = vmul.f32 %v6728, %v7256
        %v7273 = vmul.f32 %v6810, %v7257
        %v7274 = vmul.f32 %v6815, %v7258
        %v7275 = vmul.f32 %v6897, %v7259
        %v7276 = vmul.f32 %v6902, %v7260
        %v7277 = vmul.f32 %v6984, %v7261
        %v7278 = vmul.f32 %v6989, %v7262
        %v7279 = vmul.f32 %v7071, %v7263
        %v7280 = vmul.f32 %v7076, %v7264
        %v7281 = vmul.f32 %v7158, %v7265
        %v7282 = vmul.f32 %v7163, %v7266
        %v7283 = vmul.f32 %v7245, %v7267
        %v7284 = vmul.f32 %v7250, %v7268
        %7285 = vrot.lane.b32.xlu0 %v633, 104
        %v7286 = vpop.permute.xlu0 %7285
        %7287 = vrot.lane.b32.xlu0 %v635, 104
        %v7288 = vpop.permute.xlu0 %7287
        %7289 = vrot.lane.b32.xlu0 %v637, 104
        %v7290 = vpop.permute.xlu0 %7289
        %7291 = vrot.lane.b32.xlu0 %v639, 104
        %v7292 = vpop.permute.xlu0 %7291
        %7293 = vrot.lane.b32.xlu0 %v641, 104
        %v7294 = vpop.permute.xlu0 %7293
        %7295 = vrot.lane.b32.xlu0 %v643, 104
        %v7296 = vpop.permute.xlu0 %7295
        %7297 = vrot.lane.b32.xlu0 %v645, 104
        %v7298 = vpop.permute.xlu0 %7297
        %7299 = vrot.lane.b32.xlu0 %v647, 104
        %v7300 = vpop.permute.xlu0 %7299
        %7301 = vrot.lane.b32.xlu0 %v649, 104
        %v7302 = vpop.permute.xlu0 %7301
        %7303 = vrot.lane.b32.xlu0 %v651, 104
        %v7304 = vpop.permute.xlu0 %7303
        %7305 = vrot.lane.b32.xlu0 %v653, 104
        %v7306 = vpop.permute.xlu0 %7305
        %7307 = vrot.lane.b32.xlu0 %v655, 104
        %v7308 = vpop.permute.xlu0 %7307
        %7309 = vrot.lane.b32.xlu0 %v657, 104
        %v7310 = vpop.permute.xlu0 %7309
        %7311 = vrot.lane.b32.xlu0 %v659, 104
        %v7312 = vpop.permute.xlu0 %7311
        %7313 = vrot.lane.b32.xlu0 %v661, 104
        %v7314 = vpop.permute.xlu0 %7313
        %7315 = vrot.lane.b32.xlu0 %v663, 104
        %v7316 = vpop.permute.xlu0 %7315
        %v7333 = vmul.f32 %v7269, %v7286
        %v7334 = vmul.f32 %v7270, %v7288
        %v7335 = vmul.f32 %v7271, %v7290
        %v7336 = vmul.f32 %v7272, %v7292
        %v7337 = vmul.f32 %v7273, %v7294
        %v7338 = vmul.f32 %v7274, %v7296
        %v7339 = vmul.f32 %v7275, %v7298
        %v7340 = vmul.f32 %v7276, %v7300
        %v7341 = vmul.f32 %v7277, %v7302
        %v7342 = vmul.f32 %v7278, %v7304
        %v7343 = vmul.f32 %v7279, %v7306
        %v7344 = vmul.f32 %v7280, %v7308
        %v7345 = vmul.f32 %v7281, %v7310
        %v7346 = vmul.f32 %v7282, %v7312
        %v7347 = vmul.f32 %v7283, %v7314
        %v7348 = vmul.f32 %v7284, %v7316
        %7365 = vrot.lane.b32.xlu0 %v3967, 8
        %v7366 = vpop.permute.xlu0 %7365
        %7367 = vrot.lane.b32.xlu0 %v3968, 8
        %v7368 = vpop.permute.xlu0 %7367
        %7369 = vrot.lane.b32.xlu0 %v3969, 8
        %v7370 = vpop.permute.xlu0 %7369
        %7371 = vrot.lane.b32.xlu0 %v3970, 8
        %v7372 = vpop.permute.xlu0 %7371
        %7373 = vrot.lane.b32.xlu0 %v3971, 8
        %v7374 = vpop.permute.xlu0 %7373
        %7375 = vrot.lane.b32.xlu0 %v3972, 8
        %v7376 = vpop.permute.xlu0 %7375
        %7377 = vrot.lane.b32.xlu0 %v3973, 8
        %v7378 = vpop.permute.xlu0 %7377
        %7379 = vrot.lane.b32.xlu0 %v3974, 8
        %v7380 = vpop.permute.xlu0 %7379
        %7381 = vrot.lane.b32.xlu0 %v3975, 8
        %v7382 = vpop.permute.xlu0 %7381
        %7383 = vrot.lane.b32.xlu0 %v3976, 8
        %v7384 = vpop.permute.xlu0 %7383
        %7385 = vrot.lane.b32.xlu0 %v3977, 8
        %v7386 = vpop.permute.xlu0 %7385
        %7387 = vrot.lane.b32.xlu0 %v3978, 8
        %v7388 = vpop.permute.xlu0 %7387
        %7389 = vrot.lane.b32.xlu0 %v3979, 8
        %v7390 = vpop.permute.xlu0 %7389
        %7391 = vrot.lane.b32.xlu0 %v3980, 8
        %v7392 = vpop.permute.xlu0 %7391
        %7393 = vrot.lane.b32.xlu0 %v3981, 8
        %v7394 = vpop.permute.xlu0 %7393
        %7395 = vrot.lane.b32.xlu0 %v3982, 8
        %v7396 = vpop.permute.xlu0 %7395
        %7429 = vrot.lane.b32.xlu0 %v5650, 16
        %v7430 = vpop.permute.xlu0 %7429
        %7431 = vrot.lane.b32.xlu0 %v5651, 16
        %v7432 = vpop.permute.xlu0 %7431
        %7433 = vrot.lane.b32.xlu0 %v5652, 16
        %v7434 = vpop.permute.xlu0 %7433
        %7435 = vrot.lane.b32.xlu0 %v5653, 16
        %v7436 = vpop.permute.xlu0 %7435
        %7437 = vrot.lane.b32.xlu0 %v5654, 16
        %v7438 = vpop.permute.xlu0 %7437
        %7439 = vrot.lane.b32.xlu0 %v5655, 16
        %v7440 = vpop.permute.xlu0 %7439
        %7441 = vrot.lane.b32.xlu0 %v5656, 16
        %v7442 = vpop.permute.xlu0 %7441
        %7443 = vrot.lane.b32.xlu0 %v5657, 16
        %v7444 = vpop.permute.xlu0 %7443
        %7445 = vrot.lane.b32.xlu0 %v5658, 16
        %v7446 = vpop.permute.xlu0 %7445
        %7447 = vrot.lane.b32.xlu0 %v5659, 16
        %v7448 = vpop.permute.xlu0 %7447
        %7449 = vrot.lane.b32.xlu0 %v5660, 16
        %v7450 = vpop.permute.xlu0 %7449
        %7451 = vrot.lane.b32.xlu0 %v5661, 16
        %v7452 = vpop.permute.xlu0 %7451
        %7453 = vrot.lane.b32.xlu0 %v5662, 16
        %v7454 = vpop.permute.xlu0 %7453
        %7455 = vrot.lane.b32.xlu0 %v5663, 16
        %v7456 = vpop.permute.xlu0 %7455
        %7457 = vrot.lane.b32.xlu0 %v5664, 16
        %v7458 = vpop.permute.xlu0 %7457
        %7459 = vrot.lane.b32.xlu0 %v5665, 16
        %v7460 = vpop.permute.xlu0 %7459
        %7493 = vrot.lane.b32.xlu0 %v7333, 24
        %v7494 = vpop.permute.xlu0 %7493
        %7495 = vrot.lane.b32.xlu0 %v7334, 24
        %v7496 = vpop.permute.xlu0 %7495
        %7497 = vrot.lane.b32.xlu0 %v7335, 24
        %v7498 = vpop.permute.xlu0 %7497
        %7499 = vrot.lane.b32.xlu0 %v7336, 24
        %v7500 = vpop.permute.xlu0 %7499
        %7501 = vrot.lane.b32.xlu0 %v7337, 24
        %v7502 = vpop.permute.xlu0 %7501
        %7503 = vrot.lane.b32.xlu0 %v7338, 24
        %v7504 = vpop.permute.xlu0 %7503
        %7505 = vrot.lane.b32.xlu0 %v7339, 24
        %v7506 = vpop.permute.xlu0 %7505
        %7507 = vrot.lane.b32.xlu0 %v7340, 24
        %v7508 = vpop.permute.xlu0 %7507
        %7509 = vrot.lane.b32.xlu0 %v7341, 24
        %v7510 = vpop.permute.xlu0 %7509
        %7511 = vrot.lane.b32.xlu0 %v7342, 24
        %v7512 = vpop.permute.xlu0 %7511
        %7513 = vrot.lane.b32.xlu0 %v7343, 24
        %v7514 = vpop.permute.xlu0 %7513
        %7515 = vrot.lane.b32.xlu0 %v7344, 24
        %v7516 = vpop.permute.xlu0 %7515
        %7517 = vrot.lane.b32.xlu0 %v7345, 24
        %v7518 = vpop.permute.xlu0 %7517
        %7519 = vrot.lane.b32.xlu0 %v7346, 24
        %v7520 = vpop.permute.xlu0 %7519
        %7521 = vrot.lane.b32.xlu0 %v7347, 24
        %v7522 = vpop.permute.xlu0 %7521
        %7523 = vrot.lane.b32.xlu0 %v7348, 24
        %v7524 = vpop.permute.xlu0 %7523
        %v7541 = vsel %vm666, %v2252, %v7366
        %v7542 = vsel %vm666, %v2253, %v7368
        %v7543 = vsel %vm666, %v2254, %v7370
        %v7544 = vsel %vm666, %v2255, %v7372
        %v7545 = vsel %vm666, %v2256, %v7374
        %v7546 = vsel %vm666, %v2257, %v7376
        %v7547 = vsel %vm666, %v2258, %v7378
        %v7548 = vsel %vm666, %v2259, %v7380
        %v7549 = vsel %vm666, %v2260, %v7382
        %v7550 = vsel %vm666, %v2261, %v7384
        %v7551 = vsel %vm666, %v2262, %v7386
        %v7552 = vsel %vm666, %v2263, %v7388
        %v7553 = vsel %vm666, %v2264, %v7390
        %v7554 = vsel %vm666, %v2265, %v7392
        %v7555 = vsel %vm666, %v2266, %v7394
        %v7556 = vsel %vm666, %v2267, %v7396
        %v7557 = vsel %vm1427, %v7541, %v7430
        %v7558 = vsel %vm1427, %v7542, %v7432
        %v7559 = vsel %vm1427, %v7543, %v7434
        %v7560 = vsel %vm1427, %v7544, %v7436
        %v7561 = vsel %vm1427, %v7545, %v7438
        %v7562 = vsel %vm1427, %v7546, %v7440
        %v7563 = vsel %vm1427, %v7547, %v7442
        %v7564 = vsel %vm1427, %v7548, %v7444
        %v7565 = vsel %vm1427, %v7549, %v7446
        %v7566 = vsel %vm1427, %v7550, %v7448
        %v7567 = vsel %vm1427, %v7551, %v7450
        %v7568 = vsel %vm1427, %v7552, %v7452
        %v7569 = vsel %vm1427, %v7553, %v7454
        %v7570 = vsel %vm1427, %v7554, %v7456
        %v7571 = vsel %vm1427, %v7555, %v7458
        %v7572 = vsel %vm1427, %v7556, %v7460
        %vm7573 = vcmask 195584
        %v7574 = vsel %vm7573, %v7557, %v7494
        %v7575 = vsel %vm7573, %v7558, %v7496
        %v7576 = vsel %vm7573, %v7559, %v7498
        %v7577 = vsel %vm7573, %v7560, %v7500
        %v7578 = vsel %vm7573, %v7561, %v7502
        %v7579 = vsel %vm7573, %v7562, %v7504
        %v7580 = vsel %vm7573, %v7563, %v7506
        %v7581 = vsel %vm7573, %v7564, %v7508
        %v7582 = vsel %vm7573, %v7565, %v7510
        %v7583 = vsel %vm7573, %v7566, %v7512
        %v7584 = vsel %vm7573, %v7567, %v7514
        %v7585 = vsel %vm7573, %v7568, %v7516
        %v7586 = vsel %vm7573, %v7569, %v7518
        %v7587 = vsel %vm7573, %v7570, %v7520
        %v7588 = vsel %vm7573, %v7571, %v7522
        %v7589 = vsel %vm7573, %v7572, %v7524
        %vm7590 = vcmask 261120
        %7591 = vst.msk [vmem:[%s481] sm:$0xff] %vm7590, %v7574
        %7592 = vst.msk [vmem:[%s481 + $0x8] sm:$0xff] %vm7590, %v7575
        %7593 = vst.msk [vmem:[%s481 + $0x10] sm:$0xff] %vm7590, %v7576
        %7594 = vst.msk [vmem:[%s481 + $0x18] sm:$0xff] %vm7590, %v7577
        %7595 = vst.msk [vmem:[%s481 + $0x20] sm:$0xff] %vm7590, %v7578
        %7596 = vst.msk [vmem:[%s481 + $0x28] sm:$0xff] %vm7590, %v7579
        %7597 = vst.msk [vmem:[%s481 + $0x30] sm:$0xff] %vm7590, %v7580
        %7598 = vst.msk [vmem:[%s481 + $0x38] sm:$0xff] %vm7590, %v7581
        %7599 = vst.msk [vmem:[%s481 + $0x40] sm:$0xff] %vm7590, %v7582
        %7600 = vst.msk [vmem:[%s481 + $0x48] sm:$0xff] %vm7590, %v7583
        %7601 = vst.msk [vmem:[%s481 + $0x50] sm:$0xff] %vm7590, %v7584
        %7602 = vst.msk [vmem:[%s481 + $0x58] sm:$0xff] %vm7590, %v7585
        %7603 = vst.msk [vmem:[%s481 + $0x60] sm:$0xff] %vm7590, %v7586
        %7604 = vst.msk [vmem:[%s481 + $0x68] sm:$0xff] %vm7590, %v7587
        %7605 = vst.msk [vmem:[%s481 + $0x70] sm:$0xff] %vm7590, %v7588
        %7606 = vst.msk [vmem:[%s481 + $0x78] sm:$0xff] %vm7590, %v7589
        %s7607 = sand.u32 %s217, 1
        %s7608 = scalar_lea.sflag [#allocation4], %s7607
        %s7609 = sand.u32 %s217, 1
        %s7610 = smul.addr %s7609, 128
        %s7611 = scalar_lea.vmem [#allocation11], %s7610
        // Predicated region
        $region65: #{tpu_custom_call.1} parent=43 // pred_check
          %p7612 = pneg %p227
        $region66: #{tpu_custom_call.1} parent=43 // pred_check_branch
          %7614 = sbr.rel (%p7612) target = $region68
        $region67: #{tpu_custom_call.1} parent=43 // pred_region
          %s7615 = smul.u32 8, %s34
          %s7617 = ssub.s32 2048, 2048
          %7618 = vsyncadd %s7608, %s7617
          %s7619 = smul.addr %s7615, 2
          %s7620 = smul.addr %s33, 16
          %s7621 = sadd.s32 %s7619, %s7620
          %s7622 = smul.addr %s7621, 128
          %s7623 = scalar_lea.hbm %s6, %s7622
          %s7624 = sshll.u32 %s7611, 4
          %s7625 = int_to_ptr.vmem [resolvable:$true] %s7624
          %7630 = dma.vmem_to_hbm [thread:$0]  %s7625, 2048, %s7623, %s7608, 128, 128, 8
        $region68: #{tpu_custom_call.1} parent=43 // pred_fallthru
          _
      $region44: #{tpu_custom_call.1} parent=5 // pred_fallthru
        _
      %p7631 = scmp.le.s32.totalorder 2, %s24
      // Predicated region
      $region69: #{tpu_custom_call.1} parent=5 // pred_check
        %p7632 = pneg %p7631
      $region70: #{tpu_custom_call.1} parent=5 // pred_check_branch
        %7634 = sbr.rel (%p7632) target = $region72
      $region71: #{tpu_custom_call.1} parent=5 // pred_region
        %s7635 = ssub.s32 %s24, 2
        // Predicated region
        $region73: #{tpu_custom_call.1} parent=71 // pred_check
          %p7636 = pneg %p233
        $region74: #{tpu_custom_call.1} parent=71 // pred_check_branch
          %7638 = sbr.rel (%p7636) target = $region76
        $region75: #{tpu_custom_call.1} parent=71 // pred_region
          %s7639 = sand.u32 %s218, 1
          %s7640 = scalar_lea.sflag [#allocation4], %s7639
          %s7641 = sand.u32 %s218, 1
          %s7642 = smul.addr %s7641, 128
          %s7643 = scalar_lea.vmem [#allocation11], %s7642
          %7644 = dma.done %s7640, 2048
        $region76: #{tpu_custom_call.1} parent=71 // pred_fallthru
          _
      $region72: #{tpu_custom_call.1} parent=5 // pred_fallthru
        _
    $region6: #{tpu_custom_call.1} parent=1 // loop_footer
      %s28 = sadd.s32 1, %s24
    $region7: #{tpu_custom_call.1} parent=1 // loop_footer_branch
      %23 = sbr.rel target = $region3
    $region8: #{tpu_custom_call.1} parent=1 // loop_exit
      _
    %7645 = vsyncpa [#allocation3], 1
    %s7646 = scalar_lea.sflag [#allocation3], 1
    %7647 = vsyncpa %s7646, 1
    %7648 = vsyncpa [#allocation6], 1
    %s7649 = scalar_lea.sflag [#allocation6], 1
    %7650 = vsyncpa %s7649, 1
    %7651 = vsyncpa [#allocation9], 1
    %s7652 = scalar_lea.sflag [#allocation9], 1
    %7653 = vsyncpa %s7652, 1
    %7654 = vsyncpa [#allocation4], 1
    %s7655 = scalar_lea.sflag [#allocation4], 1
    %7656 = vsyncpa %s7655, 1

</llo_original>
